<compile_context>
chip_gen: v7x
topology: tpu7x:2x2x1
jax: 0.10.0
libtpu: 0.0.40
codegen_flags: <defaults>
</compile_context>

<pallas_src>
import functools

import jax
import jax.numpy as jnp
from jax.experimental import pallas as pl
from jax.experimental.pallas import tpu as pltpu


def abmil_classifier_kernel(
    x_ref,          # (B_blk, N, D)   f32   -- block of bags
    wvu_ref,        # (D, 2H)         bf16  -- [Wv | Wu] fused
    w1_ref,         # (D, HID)        bf16  -- classifier first layer
    side_ref,       # (8, SIDE_W)     f32   -- packed small tensors (rows 0..3 used)
    scalars_ref,    # (2,)            f32   -- [bw, b2] in SMEM
    out_ref,        # (1, B_blk)      f32   -- lane-dense logits for this block
    *,
    head_dim,
    hidden_dim,
):
    b_blk, n, d = x_ref.shape
    h = head_dim
    two_h = 2 * head_dim
    hid = hidden_dim

    # Packed small f32 tensors (lane slices are 128-aligned for these dims).
    b_vu = side_ref[0:1, 0:two_h]        # (1, 2H)  = [bv | bu]
    ww_t = side_ref[1:2, 0:h]            # (1, H)   = Ww^T
    b1   = side_ref[2:3, 0:hid]          # (1, HID)
    w2_t = side_ref[3:4, 0:hid]          # (1, HID) = W2^T
    bw   = scalars_ref[0]                # scalar
    b2   = scalars_ref[1]                # scalar

    x = x_ref[...]                                       # (B_blk, N, D) f32
    x2 = x.astype(jnp.bfloat16).reshape(b_blk * n, d)    # in-kernel cast, fold bags into M

    # Fused gated-attention projection: one bf16 MXU matmul, f32 accumulate, 2H-lane output.
    z = jnp.dot(x2, wvu_ref[...], preferred_element_type=jnp.float32) + b_vu  # (M, 2H)
    a_v = jnp.tanh(z[:, :h])
    a_u = jax.nn.sigmoid(z[:, h:])
    gate = (a_v * a_u).reshape(b_blk, n, h)              # (B_blk, N, H) f32

    # Attention scores on VPU + XLU lane reduce; keep N on sublanes (keepdims).
    scores = jnp.sum(gate * ww_t.reshape(1, 1, h), axis=-1, keepdims=True) + bw  # (B_blk, N, 1)

    # Per-bag softmax over instances (axis=1, sublane reductions, no relayout).
    m = jnp.max(scores, axis=1, keepdims=True)
    e = jnp.exp(scores - m)
    denom = jnp.sum(e, axis=1, keepdims=True)
    attn = e * pl.reciprocal(denom, approx=True)          # (B_blk, N, 1)

    # Attention pooling: lane-broadcast multiply + sublane reduce over N (x stays f32).
    pooled = jnp.sum(attn * x, axis=1)                    # (B_blk, D) f32

    # Classifier: bf16 MXU matmul at M = B_blk, then VPU/XLU final (HID -> 1) projection.
    hidden = jnp.maximum(
        jnp.dot(pooled.astype(jnp.bfloat16), w1_ref[...],
                preferred_element_type=jnp.float32) + b1,
        0.0,
    )                                                     # (B_blk, HID)
    logits = jnp.sum(hidden * w2_t, axis=-1, keepdims=True) + b2   # (B_blk, 1)
    out_ref[...] = logits.reshape(1, b_blk)               # lane-dense store


def prepare_params(params):
    """One-time packing / bf16 casting of the module weights (do NOT redo per call)."""
    wv, bv, wu, bu, ww, bw, w1, b1, w2, b2 = params
    d, h = wv.shape
    hid = w1.shape[1]
    assert ww.shape == (h, 1), "kernel implements the module default n_heads=1"

    w_vu = jnp.concatenate([wv, wu], axis=1).astype(jnp.bfloat16)   # (D, 2H)
    w1_b = w1.astype(jnp.bfloat16)                                   # (D, HID)

    side_w = max(2 * h, h, hid)
    side_w = ((side_w + 127) // 128) * 128
    side = jnp.zeros((8, side_w), jnp.float32)
    side = side.at[0, : 2 * h].set(jnp.concatenate([bv, bu], axis=1)[0])  # b_vu
    side = side.at[1, :h].set(ww[:, 0])                                   # Ww^T
    side = side.at[2, :hid].set(b1[0])                                    # b1
    side = side.at[3, :hid].set(w2[:, 0])                                 # W2^T

    scalars = jnp.concatenate([bw.reshape(-1), b2.reshape(-1)]).astype(jnp.float32)  # [bw, b2]
    return w_vu, w1_b, side, scalars


def base_model_forward(x, packed, *, bags_per_block=None):
    """x: (B, N, D) float32 bags of patch features. Returns logits (B,)."""
    w_vu, w1_b, side, scalars = packed
    B, N, D = x.shape
    two_h = w_vu.shape[1]
    H = two_h // 2
    HID = w1_b.shape[1]

    # Cover the whole batch in one grid step by default (B*N rows is plenty of MXU M here).
    b_blk = B if bags_per_block is None else min(bags_per_block, B)
    num_blocks = pl.cdiv(B, b_blk)
    b_pad = num_blocks * b_blk
    x_p = x if b_pad == B else jnp.pad(x, ((0, b_pad - B), (0, 0), (0, 0)))

    kernel = functools.partial(abmil_classifier_kernel, head_dim=H, hidden_dim=HID)
    const2 = lambda b: (0, 0)   # weights: same full block every step

    out = pl.pallas_call(
        kernel,
        out_shape=jax.ShapeDtypeStruct((num_blocks, b_blk), jnp.float32),
        grid_spec=pltpu.PrefetchScalarGridSpec(
            num_scalar_prefetch=0,
            grid=(num_blocks,),
            in_specs=[
                pl.BlockSpec((b_blk, N, D), lambda b: (b, 0, 0)),   # x (f32, cast in-kernel)
                pl.BlockSpec((D, two_h), const2),                   # [Wv | Wu] bf16
                pl.BlockSpec((D, HID), const2),                     # W1 bf16
                pl.BlockSpec(side.shape, const2),                   # packed small f32 tensors
                pl.BlockSpec(memory_space=pltpu.MemorySpace.SMEM),  # [bw, b2] scalars
            ],
            out_specs=pl.BlockSpec((1, b_blk), lambda b: (b, 0)),
        ),
        compiler_params=pltpu.CompilerParams(
            # "arbitrary": megacore 'parallel' would duplicate the dominant weight DMA per TC
            # on v7x; at grid=1 it makes no difference anyway.
            dimension_semantics=("arbitrary",),
            vmem_limit_bytes=32 << 20,
        ),
    )(x_p, w_vu, w1_b, side, scalars)

    return out.reshape(b_pad)[:B]


def reference_forward(x, params):
    """Pure-JAX reference mirroring the PyTorch module at the kernel's mixed precision."""
    wv, bv, wu, bu, ww, bw, w1, b1, w2, b2 = params
    H = wv.shape[1]
    xb = x.astype(jnp.bfloat16)
    wvu = jnp.concatenate([wv, wu], axis=1).astype(jnp.bfloat16)
    bvu = jnp.concatenate([bv, bu], axis=1)

    z = jnp.einsum("bnd,dh->bnh", xb, wvu,
                   preferred_element_type=jnp.float32) + bvu      # (B, N, 2H)
    a_v = jnp.tanh(z[..., :H])
    a_u = jax.nn.sigmoid(z[..., H:])
    scores = (a_v * a_u) @ ww + bw                                 # (B, N, 1)
    attn = jax.nn.softmax(scores, axis=1)
    pooled = jnp.sum(attn * x, axis=1)                             # (B, D) f32
    h = jnp.maximum(
        jnp.einsum("bd,dh->bh", pooled.astype(jnp.bfloat16), w1.astype(jnp.bfloat16),
                   preferred_element_type=jnp.float32) + b1,
        0.0,
    )                                                              # (B, HID)
    return (h @ w2 + b2)[:, 0]                                     # (B,)


def make_params(key, input_feature_dim=1024, n_heads=1, head_dim=512, hidden_dim=256):
    ks = jax.random.split(key, 10)
    f32 = jnp.float32
    s = lambda fan_in: 1.0 / jnp.sqrt(jnp.asarray(fan_in, f32))
    wv = jax.random.normal(ks[0], (input_feature_dim, head_dim), f32) * s(input_feature_dim)
    bv = jax.random.normal(ks[1], (1, head_dim), f32) * 0.01
    wu = jax.random.normal(ks[2], (input_feature_dim, head_dim), f32) * s(input_feature_dim)
    bu = jax.random.normal(ks[3], (1, head_dim), f32) * 0.01
    ww = jax.random.normal(ks[4], (head_dim, n_heads), f32) * s(head_dim)
    bw = jax.random.normal(ks[5], (1, n_heads), f32) * 0.01
    w1 = jax.random.normal(ks[6], (n_heads * input_feature_dim, hidden_dim), f32) * s(input_feature_dim)
    b1 = jax.random.normal(ks[7], (1, hidden_dim), f32) * 0.01
    w2 = jax.random.normal(ks[8], (hidden_dim, 1), f32) * s(hidden_dim)
    b2 = jax.random.normal(ks[9], (1, 1), f32) * 0.01
    return (wv, bv, wu, bu, ww, bw, w1, b1, w2, b2)


if __name__ == "__main__":
    key = jax.random.PRNGKey(0)
    k_x, k_p = jax.random.split(key)

    B, N, D = 16, 16, 1024          # 16 slides x 16 patches x 1024-dim features
    x = jax.random.normal(k_x, (B, N, D), jnp.float32)
    params = make_params(k_p, input_feature_dim=D, n_heads=1, head_dim=512, hidden_dim=256)

    packed = prepare_params(params)                 # one-time weight fusion + bf16 cast
    fwd = jax.jit(base_model_forward)
    logits = jax.block_until_ready(fwd(x, packed))

    ref = reference_forward(x, params)
    assert logits.shape == (B,), logits.shape
    assert jnp.allclose(logits, ref, atol=1e-2, rtol=1e-2), (logits, ref)

    print("KERNEL_OK")
</pallas_src>

<mosaic_0001>
module attributes {stable_mosaic.version = 11 : i64} {
  func.func @abmil_classifier_kernel(%arg0: i32, %arg1: memref<16x16x1024xf32, #tpu.memory_space<vmem>>, %arg2: memref<1024x1024xbf16, #tpu.memory_space<vmem>>, %arg3: memref<1024x256xbf16, #tpu.memory_space<vmem>>, %arg4: memref<8x1024xf32, #tpu.memory_space<vmem>>, %arg5: memref<2xf32, #tpu.memory_space<smem>>, %arg6: memref<1x16xf32, #tpu.memory_space<vmem>>) attributes {dimension_semantics = [#tpu.dimension_semantics<arbitrary>], iteration_bounds = array<i64: 1>, scalar_prefetch = 0 : i64, scratch_operands = 0 : i64, tpu.core_type = #tpu.core_type<tc>, window_params = [{transform_indices = @transform_0, window_bounds = array<i64: 16, 16, 1024>}, {pipeline_mode = #tpu.pipeline_mode<synchronous>, transform_indices = @transform_1, window_bounds = array<i64: 1024, 1024>}, {pipeline_mode = #tpu.pipeline_mode<synchronous>, transform_indices = @transform_2, window_bounds = array<i64: 1024, 256>}, {pipeline_mode = #tpu.pipeline_mode<synchronous>, transform_indices = @transform_3, window_bounds = array<i64: 8, 1024>}, {transform_indices = @transform_4, window_bounds = array<i64: 2>}, {transform_indices = @transform_5, window_bounds = array<i64: 1, 16>}]} {
    %c0 = arith.constant 0 : index
    %c0_0 = arith.constant 0 : index
    %0 = vector.load %arg4[%c0, %c0_0] : memref<8x1024xf32, #tpu.memory_space<vmem>>, vector<1x1024xf32>
    %c1 = arith.constant 1 : index
    %c0_1 = arith.constant 0 : index
    %1 = vector.load %arg4[%c1, %c0_1] : memref<8x1024xf32, #tpu.memory_space<vmem>>, vector<1x512xf32>
    %c2 = arith.constant 2 : index
    %c0_2 = arith.constant 0 : index
    %2 = vector.load %arg4[%c2, %c0_2] : memref<8x1024xf32, #tpu.memory_space<vmem>>, vector<1x256xf32>
    %c3 = arith.constant 3 : index
    %c0_3 = arith.constant 0 : index
    %3 = vector.load %arg4[%c3, %c0_3] : memref<8x1024xf32, #tpu.memory_space<vmem>>, vector<1x256xf32>
    %c0_4 = arith.constant 0 : index
    %4 = memref.load %arg5[%c0_4] : memref<2xf32, #tpu.memory_space<smem>>
    %c1_5 = arith.constant 1 : index
    %5 = memref.load %arg5[%c1_5] : memref<2xf32, #tpu.memory_space<smem>>
    %c0_6 = arith.constant 0 : index
    %c0_7 = arith.constant 0 : index
    %c0_8 = arith.constant 0 : index
    %6 = vector.load %arg1[%c0_6, %c0_7, %c0_8] : memref<16x16x1024xf32, #tpu.memory_space<vmem>>, vector<16x16x1024xf32>
    %7 = arith.truncf %6 : vector<16x16x1024xf32> to vector<16x16x1024xbf16>
    %8 = vector.shape_cast %7 : vector<16x16x1024xbf16> to vector<256x1024xbf16>
    %c0_9 = arith.constant 0 : index
    %c0_10 = arith.constant 0 : index
    %9 = vector.load %arg2[%c0_9, %c0_10] : memref<1024x1024xbf16, #tpu.memory_space<vmem>>, vector<1024x1024xbf16>
    %cst = arith.constant dense<0.000000e+00> : vector<256x1024xf32>
    %10 = tpu.matmul %8, %9, %cst {dimension_numbers = #tpu.dot_dimension_numbers<[1], [0], [0], [1], [0, 0, 1, 1], [], []>} : vector<256x1024xbf16>, vector<1024x1024xbf16>, vector<256x1024xf32> -> vector<256x1024xf32>
    %11 = vector.broadcast %0 : vector<1x1024xf32> to vector<256x1024xf32>
    %12 = arith.addf %10, %11 : vector<256x1024xf32>
    %13 = vector.extract_strided_slice %12 {offsets = [0, 0], sizes = [256, 512], strides = [1, 1]} : vector<256x1024xf32> to vector<256x512xf32>
    %14 = math.tanh %13 : vector<256x512xf32>
    %15 = vector.extract_strided_slice %12 {offsets = [0, 512], sizes = [256, 512], strides = [1, 1]} : vector<256x1024xf32> to vector<256x512xf32>
    %16 = arith.negf %15 : vector<256x512xf32>
    %17 = math.exp %16 : vector<256x512xf32>
    %cst_11 = arith.constant 1.000000e+00 : f32
    %18 = vector.broadcast %cst_11 : f32 to vector<256x512xf32>
    %19 = arith.addf %18, %17 : vector<256x512xf32>
    %20 = arith.divf %18, %19 : vector<256x512xf32>
    %21 = arith.mulf %14, %20 : vector<256x512xf32>
    %22 = vector.shape_cast %21 : vector<256x512xf32> to vector<16x16x512xf32>
    %23 = vector.shape_cast %1 : vector<1x512xf32> to vector<1x1x512xf32>
    %24 = vector.broadcast %23 : vector<1x1x512xf32> to vector<16x16x512xf32>
    %25 = arith.mulf %22, %24 : vector<16x16x512xf32>
    %cst_12 = arith.constant dense<0.000000e+00> : vector<16x16xf32>
    %26 = vector.multi_reduction <add>, %25, %cst_12 [2] : vector<16x16x512xf32> to vector<16x16xf32>
    %27 = vector.shape_cast %26 : vector<16x16xf32> to vector<16x16x1xf32>
    %28 = vector.broadcast %4 : f32 to vector<16x16x1xf32>
    %29 = arith.addf %27, %28 : vector<16x16x1xf32>
    %cst_13 = arith.constant dense<0xFF800000> : vector<16x1xf32>
    %30 = vector.multi_reduction <maximumf>, %29, %cst_13 [1] : vector<16x16x1xf32> to vector<16x1xf32>
    %31 = vector.shape_cast %30 : vector<16x1xf32> to vector<16x1x1xf32>
    %32 = vector.broadcast %31 : vector<16x1x1xf32> to vector<16x16x1xf32>
    %33 = arith.subf %29, %32 : vector<16x16x1xf32>
    %34 = math.exp %33 : vector<16x16x1xf32>
    %cst_14 = arith.constant dense<0.000000e+00> : vector<16x1xf32>
    %35 = vector.multi_reduction <add>, %34, %cst_14 [1] : vector<16x16x1xf32> to vector<16x1xf32>
    %36 = vector.shape_cast %35 : vector<16x1xf32> to vector<16x1x1xf32>
    %37 = tpu.reciprocal %36 {approx = true} : vector<16x1x1xf32> -> vector<16x1x1xf32>
    %38 = vector.broadcast %37 : vector<16x1x1xf32> to vector<16x16x1xf32>
    %39 = arith.mulf %34, %38 : vector<16x16x1xf32>
    %40 = vector.broadcast %39 : vector<16x16x1xf32> to vector<16x16x1024xf32>
    %41 = arith.mulf %40, %6 : vector<16x16x1024xf32>
    %cst_15 = arith.constant dense<0.000000e+00> : vector<16x1024xf32>
    %42 = vector.multi_reduction <add>, %41, %cst_15 [1] : vector<16x16x1024xf32> to vector<16x1024xf32>
    %43 = arith.truncf %42 : vector<16x1024xf32> to vector<16x1024xbf16>
    %c0_16 = arith.constant 0 : index
    %c0_17 = arith.constant 0 : index
    %44 = vector.load %arg3[%c0_16, %c0_17] : memref<1024x256xbf16, #tpu.memory_space<vmem>>, vector<1024x256xbf16>
    %cst_18 = arith.constant dense<0.000000e+00> : vector<16x256xf32>
    %45 = tpu.matmul %43, %44, %cst_18 {dimension_numbers = #tpu.dot_dimension_numbers<[1], [0], [0], [1], [0, 0, 1, 1], [], []>} : vector<16x1024xbf16>, vector<1024x256xbf16>, vector<16x256xf32> -> vector<16x256xf32>
    %46 = vector.broadcast %2 : vector<1x256xf32> to vector<16x256xf32>
    %47 = arith.addf %45, %46 : vector<16x256xf32>
    %cst_19 = arith.constant 0.000000e+00 : f32
    %48 = vector.broadcast %cst_19 : f32 to vector<16x256xf32>
    %49 = arith.maximumf %47, %48 : vector<16x256xf32>
    %50 = vector.broadcast %3 : vector<1x256xf32> to vector<16x256xf32>
    %51 = arith.mulf %49, %50 : vector<16x256xf32>
    %cst_20 = arith.constant dense<0.000000e+00> : vector<16xf32>
    %52 = vector.multi_reduction <add>, %51, %cst_20 [1] : vector<16x256xf32> to vector<16xf32>
    %53 = vector.shape_cast %52 : vector<16xf32> to vector<16x1xf32>
    %54 = vector.broadcast %5 : f32 to vector<16x1xf32>
    %55 = arith.addf %53, %54 : vector<16x1xf32>
    %56 = vector.shape_cast %55 : vector<16x1xf32> to vector<1x16xf32>
    %c0_21 = arith.constant 0 : index
    %c0_22 = arith.constant 0 : index
    %57 = vector.load %arg6[%c0_21, %c0_22] : memref<1x16xf32, #tpu.memory_space<vmem>>, vector<1x16xf32>
    tpu.vector_store %arg6[%c0_21, %c0_22], %56 {strides = array<i32>} : memref<1x16xf32, #tpu.memory_space<vmem>>, vector<1x16xf32>,
    return
  }
  func.func @transform_0(%arg0: i32) -> (i32, i32, i32) {
    %c0_i32 = arith.constant 0 : i32
    %c0_i32_0 = arith.constant 0 : i32
    %c0_i32_1 = arith.constant 0 : i32
    return %arg0, %c0_i32, %c0_i32_0 : i32, i32, i32
  }
  func.func @transform_1(%arg0: i32) -> (i32, i32) {
    %c0_i32 = arith.constant 0 : i32
    %c0_i32_0 = arith.constant 0 : i32
    %c0_i32_1 = arith.constant 0 : i32
    return %c0_i32, %c0_i32_0 : i32, i32
  }
  func.func @transform_2(%arg0: i32) -> (i32, i32) {
    %c0_i32 = arith.constant 0 : i32
    %c0_i32_0 = arith.constant 0 : i32
    %c0_i32_1 = arith.constant 0 : i32
    return %c0_i32, %c0_i32_0 : i32, i32
  }
  func.func @transform_3(%arg0: i32) -> (i32, i32) {
    %c0_i32 = arith.constant 0 : i32
    %c0_i32_0 = arith.constant 0 : i32
    %c0_i32_1 = arith.constant 0 : i32
    return %c0_i32, %c0_i32_0 : i32, i32
  }
  func.func @transform_4(%arg0: i32) -> i32 {
    %c0_i32 = arith.constant 0 : i32
    %c0_i32_0 = arith.constant 0 : i32
    return %c0_i32 : i32
  }
  func.func @transform_5(%arg0: i32) -> (i32, i32) {
    %c0_i32 = arith.constant 0 : i32
    %c0_i32_0 = arith.constant 0 : i32
    return %arg0, %c0_i32 : i32, i32
  }
}

</mosaic_0001>

<llo_original>
// kernel: base_model_forward.1
$region0: #{base_model_forward.1}
  #allocation0 [shape = 'u32[]', space=smem, size = 0x4, offset = 0x4, fixed_abs, tag = 'smem constant byte address 0x4 - core index']
  #allocation1 [shape = 'u32[144,128]{1,0:T(1,128)}', space=vmem, size = 0x12000, scoped, tag = 'internal scratch']
  %s0 = inlined_call_operand.hbm [shape: f32[16,16,1024], index: 0, kind: input, shape index: {}]
  %s1 = inlined_call_operand.hbm [shape: bf16[1024,1024], index: 1, kind: input, shape index: {}]
  %s2 = inlined_call_operand.hbm [shape: bf16[1024,256], index: 2, kind: input, shape index: {}]
  %s3 = inlined_call_operand.hbm [shape: f32[8,1024], index: 3, kind: input, shape index: {}]
  %s4 = inlined_call_operand.hbm [shape: f32[2], index: 4, kind: input, shape index: {}]
  %s5 = inlined_call_operand.hbm [shape: f32[1,16], index: 5, kind: output, shape index: {}]
  %s6 = sld [smem:[#allocation0]]
  $region50: #{base_model_forward.1} parent=0
    _
  %s8 = ssub.s32 1, %s6
  %s9 = scalar_select 0, %s8, %s6
  $region1: #{base_model_forward.1} parent=0
    #allocation2 [shape = 'u8[1048576]{0}', space=vmem, size = 0x100000, scoped, tag = 'input window, operand 0, single buffered']
    #allocation3 [shape = 's32[1]{0}', space=sflag, size = 0x4, scoped, tag = 'scoped memory for base_model_forward.1']
    #allocation4 [shape = 's32[1]{0}', space=sflag, size = 0x4, scoped, tag = 'scoped memory for base_model_forward.1']
    #allocation5 [shape = 's32[1]{0}', space=sflag, size = 0x4, scoped, tag = 'scoped memory for base_model_forward.1']
    #allocation6 [shape = 'u8[2097152]{0}', space=vmem, size = 0x200000, scoped, tag = 'input window, operand 1, single buffered']
    #allocation7 [shape = 's32[1]{0}', space=sflag, size = 0x4, scoped, tag = 'scoped memory for base_model_forward.1']
    #allocation8 [shape = 'u8[524288]{0}', space=vmem, size = 0x80000, scoped, tag = 'input window, operand 2, single buffered']
    #allocation9 [shape = 'u8[32768]{0}', space=vmem, size = 0x8000, scoped, tag = 'input window, operand 3, single buffered']
    #allocation10 [shape = 's32[1]{0}', space=sflag, size = 0x4, scoped, tag = 'scoped memory for base_model_forward.1']
    #allocation11 [shape = 'u8[512]{0}', space=smem, size = 0x200, scoped, tag = 'input window, operand 4, single buffered']
    #allocation12 [shape = 'u8[512]{0}', space=vmem, size = 0x400, scoped, tag = 'output window, operand 0, single buffered']
    %10 = vsyncpa [#allocation3], 0
    %11 = vsyncpa [#allocation7], 0
    %12 = vsyncpa [#allocation10], 0
    %13 = vsyncpa [#allocation5], 0
    %14 = vsyncpa [#allocation4], 0
    // Predicated region
    $region2: #{base_model_forward.1} parent=1 // pred_check
      _
    $region3: #{base_model_forward.1} parent=1 // pred_check_branch
      %16 = sbr.rel (0) target = $region5
    $region4: #{base_model_forward.1} parent=1 // pred_region
      %s18 = ssub.s32 32768, 32768
      %19 = vsyncadd [#allocation3], %s18
      %s20 = sshll.u32 [#allocation2], 4
      %s21 = int_to_ptr.vmem [resolvable:$true] %s20
      %26 = dma.hbm_to_vmem [thread:$0]  %s0, 32768, %s21, [#allocation3], 1024, 1024, 64
    $region5: #{base_model_forward.1} parent=1 // pred_fallthru
      _
    // Predicated region
    $region6: #{base_model_forward.1} parent=1 // pred_check
      _
    $region7: #{base_model_forward.1} parent=1 // pred_check_branch
      %28 = sbr.rel (0) target = $region9
    $region8: #{base_model_forward.1} parent=1 // pred_region
      %s30 = ssub.s32 65536, 65536
      %31 = vsyncadd [#allocation7], %s30
      %s32 = sshll.u32 [#allocation6], 4
      %s33 = int_to_ptr.vmem [resolvable:$true] %s32
      %38 = dma.hbm_to_vmem [thread:$0]  %s1, 65536, %s33, [#allocation7], 512, 512, 32
    $region9: #{base_model_forward.1} parent=1 // pred_fallthru
      _
    // Predicated region
    $region10: #{base_model_forward.1} parent=1 // pred_check
      _
    $region11: #{base_model_forward.1} parent=1 // pred_check_branch
      %40 = sbr.rel (0) target = $region13
    $region12: #{base_model_forward.1} parent=1 // pred_region
      %s42 = ssub.s32 16384, 16384
      %43 = vsyncadd [#allocation7], %s42
      %s44 = sshll.u32 [#allocation8], 4
      %s45 = int_to_ptr.vmem [resolvable:$true] %s44
      %50 = dma.hbm_to_vmem [thread:$0]  %s2, 16384, %s45, [#allocation7], 128, 128, 8
    $region13: #{base_model_forward.1} parent=1 // pred_fallthru
      _
    // Predicated region
    $region14: #{base_model_forward.1} parent=1 // pred_check
      _
    $region15: #{base_model_forward.1} parent=1 // pred_check_branch
      %52 = sbr.rel (0) target = $region17
    $region16: #{base_model_forward.1} parent=1 // pred_region
      %s54 = ssub.s32 1024, 1024
      %55 = vsyncadd [#allocation10], %s54
      %s57 = sshll.u32 [#allocation9], 4
      %s58 = int_to_ptr.vmem [resolvable:$true] %s57
      %60 = dma.hbm_to_vmem [thread:$0]  %s3, 1024, %s58, [#allocation10]
    $region17: #{base_model_forward.1} parent=1 // pred_fallthru
      _
    // Predicated region
    $region18: #{base_model_forward.1} parent=1 // pred_check
      _
    $region19: #{base_model_forward.1} parent=1 // pred_check_branch
      %62 = sbr.rel (0) target = $region21
    $region20: #{base_model_forward.1} parent=1 // pred_region
      %s64 = ssub.s32 16, 16
      %65 = vsyncadd [#allocation5], %s64
      %68 = dma.hbm_to_smem %s4, 16, [#allocation11], [#allocation5]
    $region21: #{base_model_forward.1} parent=1 // pred_fallthru
      _
    // Predicated region
    $region22: #{base_model_forward.1} parent=1 // pred_check
      _
    $region23: #{base_model_forward.1} parent=1 // pred_check_branch
      %70 = sbr.rel (0) target = $region25
    $region24: #{base_model_forward.1} parent=1 // pred_region
      %71 = dma.done [#allocation3], 32768
    $region25: #{base_model_forward.1} parent=1 // pred_fallthru
      _
    // Predicated region
    $region26: #{base_model_forward.1} parent=1 // pred_check
      _
    $region27: #{base_model_forward.1} parent=1 // pred_check_branch
      %73 = sbr.rel (0) target = $region29
    $region28: #{base_model_forward.1} parent=1 // pred_region
      %74 = dma.done [#allocation7], 65536
    $region29: #{base_model_forward.1} parent=1 // pred_fallthru
      _
    // Predicated region
    $region30: #{base_model_forward.1} parent=1 // pred_check
      _
    $region31: #{base_model_forward.1} parent=1 // pred_check_branch
      %76 = sbr.rel (0) target = $region33
    $region32: #{base_model_forward.1} parent=1 // pred_region
      %77 = dma.done [#allocation7], 16384
    $region33: #{base_model_forward.1} parent=1 // pred_fallthru
      _
    // Predicated region
    $region34: #{base_model_forward.1} parent=1 // pred_check
      _
    $region35: #{base_model_forward.1} parent=1 // pred_check_branch
      %79 = sbr.rel (0) target = $region37
    $region36: #{base_model_forward.1} parent=1 // pred_region
      %80 = dma.done [#allocation10], 1024
    $region37: #{base_model_forward.1} parent=1 // pred_fallthru
      _
    // Predicated region
    $region38: #{base_model_forward.1} parent=1 // pred_check
      _
    $region39: #{base_model_forward.1} parent=1 // pred_check_branch
      %82 = sbr.rel (0) target = $region41
    $region40: #{base_model_forward.1} parent=1 // pred_region
      %83 = dma.done [#allocation5], 16
    $region41: #{base_model_forward.1} parent=1 // pred_fallthru
      _
    %84 = sfence
    %v85 = vld [vmem:[#allocation9] ss:$8 sm:$0xf]
    %v86 = vld [vmem:[#allocation9] ss:$8 sm:$0xf0]
    %v87 = vor.u32 %v85, %v86
    %s88 = scalar_lea.vmem [#allocation9], 1
    %v89 = vld [vmem:[%s88] ss:$8 sm:$0xf]
    %s90 = scalar_lea.vmem [#allocation9], 2
    %v91 = vld [vmem:[%s90] ss:$8 sm:$0x3]
    %s92 = scalar_lea.vmem [#allocation9], 3
    %v93 = vld [vmem:[%s92] ss:$8 sm:$0x3]
    %s94 = sld [smem:[#allocation11]]
    %s95 = sld [smem:[#allocation11 + $0x1]]
    %v96 = vld [vmem:[#allocation2] sm:$0xff]
    %v97 = vld [vmem:[#allocation2 + $0x8] sm:$0xff]
    %v98 = vld [vmem:[#allocation2 + $0x10] sm:$0xff]
    %v99 = vld [vmem:[#allocation2 + $0x18] sm:$0xff]
    %v100 = vld [vmem:[#allocation2 + $0x20] sm:$0xff]
    %v101 = vld [vmem:[#allocation2 + $0x28] sm:$0xff]
    %v102 = vld [vmem:[#allocation2 + $0x30] sm:$0xff]
    %v103 = vld [vmem:[#allocation2 + $0x38] sm:$0xff]
    %v104 = vld [vmem:[#allocation2 + $0x40] sm:$0xff]
    %v105 = vld [vmem:[#allocation2 + $0x48] sm:$0xff]
    %v106 = vld [vmem:[#allocation2 + $0x50] sm:$0xff]
    %v107 = vld [vmem:[#allocation2 + $0x58] sm:$0xff]
    %v108 = vld [vmem:[#allocation2 + $0x60] sm:$0xff]
    %v109 = vld [vmem:[#allocation2 + $0x68] sm:$0xff]
    %v110 = vld [vmem:[#allocation2 + $0x70] sm:$0xff]
    %v111 = vld [vmem:[#allocation2 + $0x78] sm:$0xff]
    %v112 = vld [vmem:[#allocation2 + $0x80] sm:$0xff]
    %v113 = vld [vmem:[#allocation2 + $0x88] sm:$0xff]
    %v114 = vld [vmem:[#allocation2 + $0x90] sm:$0xff]
    %v115 = vld [vmem:[#allocation2 + $0x98] sm:$0xff]
    %v116 = vld [vmem:[#allocation2 + $0xa0] sm:$0xff]
    %v117 = vld [vmem:[#allocation2 + $0xa8] sm:$0xff]
    %v118 = vld [vmem:[#allocation2 + $0xb0] sm:$0xff]
    %v119 = vld [vmem:[#allocation2 + $0xb8] sm:$0xff]
    %v120 = vld [vmem:[#allocation2 + $0xc0] sm:$0xff]
    %v121 = vld [vmem:[#allocation2 + $0xc8] sm:$0xff]
    %v122 = vld [vmem:[#allocation2 + $0xd0] sm:$0xff]
    %v123 = vld [vmem:[#allocation2 + $0xd8] sm:$0xff]
    %v124 = vld [vmem:[#allocation2 + $0xe0] sm:$0xff]
    %v125 = vld [vmem:[#allocation2 + $0xe8] sm:$0xff]
    %v126 = vld [vmem:[#allocation2 + $0xf0] sm:$0xff]
    %v127 = vld [vmem:[#allocation2 + $0xf8] sm:$0xff]
    %v128 = vld [vmem:[#allocation2 + $0x100] sm:$0xff]
    %v129 = vld [vmem:[#allocation2 + $0x108] sm:$0xff]
    %v130 = vld [vmem:[#allocation2 + $0x110] sm:$0xff]
    %v131 = vld [vmem:[#allocation2 + $0x118] sm:$0xff]
    %v132 = vld [vmem:[#allocation2 + $0x120] sm:$0xff]
    %v133 = vld [vmem:[#allocation2 + $0x128] sm:$0xff]
    %v134 = vld [vmem:[#allocation2 + $0x130] sm:$0xff]
    %v135 = vld [vmem:[#allocation2 + $0x138] sm:$0xff]
    %v136 = vld [vmem:[#allocation2 + $0x140] sm:$0xff]
    %v137 = vld [vmem:[#allocation2 + $0x148] sm:$0xff]
    %v138 = vld [vmem:[#allocation2 + $0x150] sm:$0xff]
    %v139 = vld [vmem:[#allocation2 + $0x158] sm:$0xff]
    %v140 = vld [vmem:[#allocation2 + $0x160] sm:$0xff]
    %v141 = vld [vmem:[#allocation2 + $0x168] sm:$0xff]
    %v142 = vld [vmem:[#allocation2 + $0x170] sm:$0xff]
    %v143 = vld [vmem:[#allocation2 + $0x178] sm:$0xff]
    %v144 = vld [vmem:[#allocation2 + $0x180] sm:$0xff]
    %v145 = vld [vmem:[#allocation2 + $0x188] sm:$0xff]
    %v146 = vld [vmem:[#allocation2 + $0x190] sm:$0xff]
    %v147 = vld [vmem:[#allocation2 + $0x198] sm:$0xff]
    %v148 = vld [vmem:[#allocation2 + $0x1a0] sm:$0xff]
    %v149 = vld [vmem:[#allocation2 + $0x1a8] sm:$0xff]
    %v150 = vld [vmem:[#allocation2 + $0x1b0] sm:$0xff]
    %v151 = vld [vmem:[#allocation2 + $0x1b8] sm:$0xff]
    %v152 = vld [vmem:[#allocation2 + $0x1c0] sm:$0xff]
    %v153 = vld [vmem:[#allocation2 + $0x1c8] sm:$0xff]
    %v154 = vld [vmem:[#allocation2 + $0x1d0] sm:$0xff]
    %v155 = vld [vmem:[#allocation2 + $0x1d8] sm:$0xff]
    %v156 = vld [vmem:[#allocation2 + $0x1e0] sm:$0xff]
    %v157 = vld [vmem:[#allocation2 + $0x1e8] sm:$0xff]
    %v158 = vld [vmem:[#allocation2 + $0x1f0] sm:$0xff]
    %v159 = vld [vmem:[#allocation2 + $0x1f8] sm:$0xff]
    %v160 = vld [vmem:[#allocation2 + $0x200] sm:$0xff]
    %v161 = vld [vmem:[#allocation2 + $0x208] sm:$0xff]
    %v162 = vld [vmem:[#allocation2 + $0x210] sm:$0xff]
    %v163 = vld [vmem:[#allocation2 + $0x218] sm:$0xff]
    %v164 = vld [vmem:[#allocation2 + $0x220] sm:$0xff]
    %v165 = vld [vmem:[#allocation2 + $0x228] sm:$0xff]
    %v166 = vld [vmem:[#allocation2 + $0x230] sm:$0xff]
    %v167 = vld [vmem:[#allocation2 + $0x238] sm:$0xff]
    %v168 = vld [vmem:[#allocation2 + $0x240] sm:$0xff]
    %v169 = vld [vmem:[#allocation2 + $0x248] sm:$0xff]
    %v170 = vld [vmem:[#allocation2 + $0x250] sm:$0xff]
    %v171 = vld [vmem:[#allocation2 + $0x258] sm:$0xff]
    %v172 = vld [vmem:[#allocation2 + $0x260] sm:$0xff]
    %v173 = vld [vmem:[#allocation2 + $0x268] sm:$0xff]
    %v174 = vld [vmem:[#allocation2 + $0x270] sm:$0xff]
    %v175 = vld [vmem:[#allocation2 + $0x278] sm:$0xff]
    %v176 = vld [vmem:[#allocation2 + $0x280] sm:$0xff]
    %v177 = vld [vmem:[#allocation2 + $0x288] sm:$0xff]
    %v178 = vld [vmem:[#allocation2 + $0x290] sm:$0xff]
    %v179 = vld [vmem:[#allocation2 + $0x298] sm:$0xff]
    %v180 = vld [vmem:[#allocation2 + $0x2a0] sm:$0xff]
    %v181 = vld [vmem:[#allocation2 + $0x2a8] sm:$0xff]
    %v182 = vld [vmem:[#allocation2 + $0x2b0] sm:$0xff]
    %v183 = vld [vmem:[#allocation2 + $0x2b8] sm:$0xff]
    %v184 = vld [vmem:[#allocation2 + $0x2c0] sm:$0xff]
    %v185 = vld [vmem:[#allocation2 + $0x2c8] sm:$0xff]
    %v186 = vld [vmem:[#allocation2 + $0x2d0] sm:$0xff]
    %v187 = vld [vmem:[#allocation2 + $0x2d8] sm:$0xff]
    %v188 = vld [vmem:[#allocation2 + $0x2e0] sm:$0xff]
    %v189 = vld [vmem:[#allocation2 + $0x2e8] sm:$0xff]
    %v190 = vld [vmem:[#allocation2 + $0x2f0] sm:$0xff]
    %v191 = vld [vmem:[#allocation2 + $0x2f8] sm:$0xff]
    %v192 = vld [vmem:[#allocation2 + $0x300] sm:$0xff]
    %v193 = vld [vmem:[#allocation2 + $0x308] sm:$0xff]
    %v194 = vld [vmem:[#allocation2 + $0x310] sm:$0xff]
    %v195 = vld [vmem:[#allocation2 + $0x318] sm:$0xff]
    %v196 = vld [vmem:[#allocation2 + $0x320] sm:$0xff]
    %v197 = vld [vmem:[#allocation2 + $0x328] sm:$0xff]
    %v198 = vld [vmem:[#allocation2 + $0x330] sm:$0xff]
    %v199 = vld [vmem:[#allocation2 + $0x338] sm:$0xff]
    %v200 = vld [vmem:[#allocation2 + $0x340] sm:$0xff]
    %v201 = vld [vmem:[#allocation2 + $0x348] sm:$0xff]
    %v202 = vld [vmem:[#allocation2 + $0x350] sm:$0xff]
    %v203 = vld [vmem:[#allocation2 + $0x358] sm:$0xff]
    %v204 = vld [vmem:[#allocation2 + $0x360] sm:$0xff]
    %v205 = vld [vmem:[#allocation2 + $0x368] sm:$0xff]
    %v206 = vld [vmem:[#allocation2 + $0x370] sm:$0xff]
    %v207 = vld [vmem:[#allocation2 + $0x378] sm:$0xff]
    %v208 = vld [vmem:[#allocation2 + $0x380] sm:$0xff]
    %v209 = vld [vmem:[#allocation2 + $0x388] sm:$0xff]
    %v210 = vld [vmem:[#allocation2 + $0x390] sm:$0xff]
    %v211 = vld [vmem:[#allocation2 + $0x398] sm:$0xff]
    %v212 = vld [vmem:[#allocation2 + $0x3a0] sm:$0xff]
    %v213 = vld [vmem:[#allocation2 + $0x3a8] sm:$0xff]
    %v214 = vld [vmem:[#allocation2 + $0x3b0] sm:$0xff]
    %v215 = vld [vmem:[#allocation2 + $0x3b8] sm:$0xff]
    %v216 = vld [vmem:[#allocation2 + $0x3c0] sm:$0xff]
    %v217 = vld [vmem:[#allocation2 + $0x3c8] sm:$0xff]
    %v218 = vld [vmem:[#allocation2 + $0x3d0] sm:$0xff]
    %v219 = vld [vmem:[#allocation2 + $0x3d8] sm:$0xff]
    %v220 = vld [vmem:[#allocation2 + $0x3e0] sm:$0xff]
    %v221 = vld [vmem:[#allocation2 + $0x3e8] sm:$0xff]
    %v222 = vld [vmem:[#allocation2 + $0x3f0] sm:$0xff]
    %v223 = vld [vmem:[#allocation2 + $0x3f8] sm:$0xff]
    %v224 = vld [vmem:[#allocation2 + $0x400] sm:$0xff]
    %v225 = vld [vmem:[#allocation2 + $0x408] sm:$0xff]
    %v226 = vld [vmem:[#allocation2 + $0x410] sm:$0xff]
    %v227 = vld [vmem:[#allocation2 + $0x418] sm:$0xff]
    %v228 = vld [vmem:[#allocation2 + $0x420] sm:$0xff]
    %v229 = vld [vmem:[#allocation2 + $0x428] sm:$0xff]
    %v230 = vld [vmem:[#allocation2 + $0x430] sm:$0xff]
    %v231 = vld [vmem:[#allocation2 + $0x438] sm:$0xff]
    %v232 = vld [vmem:[#allocation2 + $0x440] sm:$0xff]
    %v233 = vld [vmem:[#allocation2 + $0x448] sm:$0xff]
    %v234 = vld [vmem:[#allocation2 + $0x450] sm:$0xff]
    %v235 = vld [vmem:[#allocation2 + $0x458] sm:$0xff]
    %v236 = vld [vmem:[#allocation2 + $0x460] sm:$0xff]
    %v237 = vld [vmem:[#allocation2 + $0x468] sm:$0xff]
    %v238 = vld [vmem:[#allocation2 + $0x470] sm:$0xff]
    %v239 = vld [vmem:[#allocation2 + $0x478] sm:$0xff]
    %v240 = vld [vmem:[#allocation2 + $0x480] sm:$0xff]
    %v241 = vld [vmem:[#allocation2 + $0x488] sm:$0xff]
    %v242 = vld [vmem:[#allocation2 + $0x490] sm:$0xff]
    %v243 = vld [vmem:[#allocation2 + $0x498] sm:$0xff]
    %v244 = vld [vmem:[#allocation2 + $0x4a0] sm:$0xff]
    %v245 = vld [vmem:[#allocation2 + $0x4a8] sm:$0xff]
    %v246 = vld [vmem:[#allocation2 + $0x4b0] sm:$0xff]
    %v247 = vld [vmem:[#allocation2 + $0x4b8] sm:$0xff]
    %v248 = vld [vmem:[#allocation2 + $0x4c0] sm:$0xff]
    %v249 = vld [vmem:[#allocation2 + $0x4c8] sm:$0xff]
    %v250 = vld [vmem:[#allocation2 + $0x4d0] sm:$0xff]
    %v251 = vld [vmem:[#allocation2 + $0x4d8] sm:$0xff]
    %v252 = vld [vmem:[#allocation2 + $0x4e0] sm:$0xff]
    %v253 = vld [vmem:[#allocation2 + $0x4e8] sm:$0xff]
    %v254 = vld [vmem:[#allocation2 + $0x4f0] sm:$0xff]
    %v255 = vld [vmem:[#allocation2 + $0x4f8] sm:$0xff]
    %v256 = vld [vmem:[#allocation2 + $0x500] sm:$0xff]
    %v257 = vld [vmem:[#allocation2 + $0x508] sm:$0xff]
    %v258 = vld [vmem:[#allocation2 + $0x510] sm:$0xff]
    %v259 = vld [vmem:[#allocation2 + $0x518] sm:$0xff]
    %v260 = vld [vmem:[#allocation2 + $0x520] sm:$0xff]
    %v261 = vld [vmem:[#allocation2 + $0x528] sm:$0xff]
    %v262 = vld [vmem:[#allocation2 + $0x530] sm:$0xff]
    %v263 = vld [vmem:[#allocation2 + $0x538] sm:$0xff]
    %v264 = vld [vmem:[#allocation2 + $0x540] sm:$0xff]
    %v265 = vld [vmem:[#allocation2 + $0x548] sm:$0xff]
    %v266 = vld [vmem:[#allocation2 + $0x550] sm:$0xff]
    %v267 = vld [vmem:[#allocation2 + $0x558] sm:$0xff]
    %v268 = vld [vmem:[#allocation2 + $0x560] sm:$0xff]
    %v269 = vld [vmem:[#allocation2 + $0x568] sm:$0xff]
    %v270 = vld [vmem:[#allocation2 + $0x570] sm:$0xff]
    %v271 = vld [vmem:[#allocation2 + $0x578] sm:$0xff]
    %v272 = vld [vmem:[#allocation2 + $0x580] sm:$0xff]
    %v273 = vld [vmem:[#allocation2 + $0x588] sm:$0xff]
    %v274 = vld [vmem:[#allocation2 + $0x590] sm:$0xff]
    %v275 = vld [vmem:[#allocation2 + $0x598] sm:$0xff]
    %v276 = vld [vmem:[#allocation2 + $0x5a0] sm:$0xff]
    %v277 = vld [vmem:[#allocation2 + $0x5a8] sm:$0xff]
    %v278 = vld [vmem:[#allocation2 + $0x5b0] sm:$0xff]
    %v279 = vld [vmem:[#allocation2 + $0x5b8] sm:$0xff]
    %v280 = vld [vmem:[#allocation2 + $0x5c0] sm:$0xff]
    %v281 = vld [vmem:[#allocation2 + $0x5c8] sm:$0xff]
    %v282 = vld [vmem:[#allocation2 + $0x5d0] sm:$0xff]
    %v283 = vld [vmem:[#allocation2 + $0x5d8] sm:$0xff]
    %v284 = vld [vmem:[#allocation2 + $0x5e0] sm:$0xff]
    %v285 = vld [vmem:[#allocation2 + $0x5e8] sm:$0xff]
    %v286 = vld [vmem:[#allocation2 + $0x5f0] sm:$0xff]
    %v287 = vld [vmem:[#allocation2 + $0x5f8] sm:$0xff]
    %v288 = vld [vmem:[#allocation2 + $0x600] sm:$0xff]
    %v289 = vld [vmem:[#allocation2 + $0x608] sm:$0xff]
    %v290 = vld [vmem:[#allocation2 + $0x610] sm:$0xff]
    %v291 = vld [vmem:[#allocation2 + $0x618] sm:$0xff]
    %v292 = vld [vmem:[#allocation2 + $0x620] sm:$0xff]
    %v293 = vld [vmem:[#allocation2 + $0x628] sm:$0xff]
    %v294 = vld [vmem:[#allocation2 + $0x630] sm:$0xff]
    %v295 = vld [vmem:[#allocation2 + $0x638] sm:$0xff]
    %v296 = vld [vmem:[#allocation2 + $0x640] sm:$0xff]
    %v297 = vld [vmem:[#allocation2 + $0x648] sm:$0xff]
    %v298 = vld [vmem:[#allocation2 + $0x650] sm:$0xff]
    %v299 = vld [vmem:[#allocation2 + $0x658] sm:$0xff]
    %v300 = vld [vmem:[#allocation2 + $0x660] sm:$0xff]
    %v301 = vld [vmem:[#allocation2 + $0x668] sm:$0xff]
    %v302 = vld [vmem:[#allocation2 + $0x670] sm:$0xff]
    %v303 = vld [vmem:[#allocation2 + $0x678] sm:$0xff]
    %v304 = vld [vmem:[#allocation2 + $0x680] sm:$0xff]
    %v305 = vld [vmem:[#allocation2 + $0x688] sm:$0xff]
    %v306 = vld [vmem:[#allocation2 + $0x690] sm:$0xff]
    %v307 = vld [vmem:[#allocation2 + $0x698] sm:$0xff]
    %v308 = vld [vmem:[#allocation2 + $0x6a0] sm:$0xff]
    %v309 = vld [vmem:[#allocation2 + $0x6a8] sm:$0xff]
    %v310 = vld [vmem:[#allocation2 + $0x6b0] sm:$0xff]
    %v311 = vld [vmem:[#allocation2 + $0x6b8] sm:$0xff]
    %v312 = vld [vmem:[#allocation2 + $0x6c0] sm:$0xff]
    %v313 = vld [vmem:[#allocation2 + $0x6c8] sm:$0xff]
    %v314 = vld [vmem:[#allocation2 + $0x6d0] sm:$0xff]
    %v315 = vld [vmem:[#allocation2 + $0x6d8] sm:$0xff]
    %v316 = vld [vmem:[#allocation2 + $0x6e0] sm:$0xff]
    %v317 = vld [vmem:[#allocation2 + $0x6e8] sm:$0xff]
    %v318 = vld [vmem:[#allocation2 + $0x6f0] sm:$0xff]
    %v319 = vld [vmem:[#allocation2 + $0x6f8] sm:$0xff]
    %v320 = vld [vmem:[#allocation2 + $0x700] sm:$0xff]
    %v321 = vld [vmem:[#allocation2 + $0x708] sm:$0xff]
    %v322 = vld [vmem:[#allocation2 + $0x710] sm:$0xff]
    %v323 = vld [vmem:[#allocation2 + $0x718] sm:$0xff]
    %v324 = vld [vmem:[#allocation2 + $0x720] sm:$0xff]
    %v325 = vld [vmem:[#allocation2 + $0x728] sm:$0xff]
    %v326 = vld [vmem:[#allocation2 + $0x730] sm:$0xff]
    %v327 = vld [vmem:[#allocation2 + $0x738] sm:$0xff]
    %v328 = vld [vmem:[#allocation2 + $0x740] sm:$0xff]
    %v329 = vld [vmem:[#allocation2 + $0x748] sm:$0xff]
    %v330 = vld [vmem:[#allocation2 + $0x750] sm:$0xff]
    %v331 = vld [vmem:[#allocation2 + $0x758] sm:$0xff]
    %v332 = vld [vmem:[#allocation2 + $0x760] sm:$0xff]
    %v333 = vld [vmem:[#allocation2 + $0x768] sm:$0xff]
    %v334 = vld [vmem:[#allocation2 + $0x770] sm:$0xff]
    %v335 = vld [vmem:[#allocation2 + $0x778] sm:$0xff]
    %v336 = vld [vmem:[#allocation2 + $0x780] sm:$0xff]
    %v337 = vld [vmem:[#allocation2 + $0x788] sm:$0xff]
    %v338 = vld [vmem:[#allocation2 + $0x790] sm:$0xff]
    %v339 = vld [vmem:[#allocation2 + $0x798] sm:$0xff]
    %v340 = vld [vmem:[#allocation2 + $0x7a0] sm:$0xff]
    %v341 = vld [vmem:[#allocation2 + $0x7a8] sm:$0xff]
    %v342 = vld [vmem:[#allocation2 + $0x7b0] sm:$0xff]
    %v343 = vld [vmem:[#allocation2 + $0x7b8] sm:$0xff]
    %v344 = vld [vmem:[#allocation2 + $0x7c0] sm:$0xff]
    %v345 = vld [vmem:[#allocation2 + $0x7c8] sm:$0xff]
    %v346 = vld [vmem:[#allocation2 + $0x7d0] sm:$0xff]
    %v347 = vld [vmem:[#allocation2 + $0x7d8] sm:$0xff]
    %v348 = vld [vmem:[#allocation2 + $0x7e0] sm:$0xff]
    %v349 = vld [vmem:[#allocation2 + $0x7e8] sm:$0xff]
    %v350 = vld [vmem:[#allocation2 + $0x7f0] sm:$0xff]
    %v351 = vld [vmem:[#allocation2 + $0x7f8] sm:$0xff]
    %v352 = vpack.c.bf16 %v104, %v96
    %v353 = vpack.c.bf16 %v105, %v97
    %v354 = vpack.c.bf16 %v106, %v98
    %v355 = vpack.c.bf16 %v107, %v99
    %v356 = vpack.c.bf16 %v108, %v100
    %v357 = vpack.c.bf16 %v109, %v101
    %v358 = vpack.c.bf16 %v110, %v102
    %v359 = vpack.c.bf16 %v111, %v103
    %v360 = vpack.c.bf16 %v120, %v112
    %v361 = vpack.c.bf16 %v121, %v113
    %v362 = vpack.c.bf16 %v122, %v114
    %v363 = vpack.c.bf16 %v123, %v115
    %v364 = vpack.c.bf16 %v124, %v116
    %v365 = vpack.c.bf16 %v125, %v117
    %v366 = vpack.c.bf16 %v126, %v118
    %v367 = vpack.c.bf16 %v127, %v119
    %v368 = vpack.c.bf16 %v136, %v128
    %v369 = vpack.c.bf16 %v137, %v129
    %v370 = vpack.c.bf16 %v138, %v130
    %v371 = vpack.c.bf16 %v139, %v131
    %v372 = vpack.c.bf16 %v140, %v132
    %v373 = vpack.c.bf16 %v141, %v133
    %v374 = vpack.c.bf16 %v142, %v134
    %v375 = vpack.c.bf16 %v143, %v135
    %v376 = vpack.c.bf16 %v152, %v144
    %v377 = vpack.c.bf16 %v153, %v145
    %v378 = vpack.c.bf16 %v154, %v146
    %v379 = vpack.c.bf16 %v155, %v147
    %v380 = vpack.c.bf16 %v156, %v148
    %v381 = vpack.c.bf16 %v157, %v149
    %v382 = vpack.c.bf16 %v158, %v150
    %v383 = vpack.c.bf16 %v159, %v151
    %v384 = vpack.c.bf16 %v168, %v160
    %v385 = vpack.c.bf16 %v169, %v161
    %v386 = vpack.c.bf16 %v170, %v162
    %v387 = vpack.c.bf16 %v171, %v163
    %v388 = vpack.c.bf16 %v172, %v164
    %v389 = vpack.c.bf16 %v173, %v165
    %v390 = vpack.c.bf16 %v174, %v166
    %v391 = vpack.c.bf16 %v175, %v167
    %v392 = vpack.c.bf16 %v184, %v176
    %v393 = vpack.c.bf16 %v185, %v177
    %v394 = vpack.c.bf16 %v186, %v178
    %v395 = vpack.c.bf16 %v187, %v179
    %v396 = vpack.c.bf16 %v188, %v180
    %v397 = vpack.c.bf16 %v189, %v181
    %v398 = vpack.c.bf16 %v190, %v182
    %v399 = vpack.c.bf16 %v191, %v183
    %v400 = vpack.c.bf16 %v200, %v192
    %v401 = vpack.c.bf16 %v201, %v193
    %v402 = vpack.c.bf16 %v202, %v194
    %v403 = vpack.c.bf16 %v203, %v195
    %v404 = vpack.c.bf16 %v204, %v196
    %v405 = vpack.c.bf16 %v205, %v197
    %v406 = vpack.c.bf16 %v206, %v198
    %v407 = vpack.c.bf16 %v207, %v199
    %v408 = vpack.c.bf16 %v216, %v208
    %v409 = vpack.c.bf16 %v217, %v209
    %v410 = vpack.c.bf16 %v218, %v210
    %v411 = vpack.c.bf16 %v219, %v211
    %v412 = vpack.c.bf16 %v220, %v212
    %v413 = vpack.c.bf16 %v221, %v213
    %v414 = vpack.c.bf16 %v222, %v214
    %v415 = vpack.c.bf16 %v223, %v215
    %v416 = vpack.c.bf16 %v232, %v224
    %v417 = vpack.c.bf16 %v233, %v225
    %v418 = vpack.c.bf16 %v234, %v226
    %v419 = vpack.c.bf16 %v235, %v227
    %v420 = vpack.c.bf16 %v236, %v228
    %v421 = vpack.c.bf16 %v237, %v229
    %v422 = vpack.c.bf16 %v238, %v230
    %v423 = vpack.c.bf16 %v239, %v231
    %v424 = vpack.c.bf16 %v248, %v240
    %v425 = vpack.c.bf16 %v249, %v241
    %v426 = vpack.c.bf16 %v250, %v242
    %v427 = vpack.c.bf16 %v251, %v243
    %v428 = vpack.c.bf16 %v252, %v244
    %v429 = vpack.c.bf16 %v253, %v245
    %v430 = vpack.c.bf16 %v254, %v246
    %v431 = vpack.c.bf16 %v255, %v247
    %v432 = vpack.c.bf16 %v264, %v256
    %v433 = vpack.c.bf16 %v265, %v257
    %v434 = vpack.c.bf16 %v266, %v258
    %v435 = vpack.c.bf16 %v267, %v259
    %v436 = vpack.c.bf16 %v268, %v260
    %v437 = vpack.c.bf16 %v269, %v261
    %v438 = vpack.c.bf16 %v270, %v262
    %v439 = vpack.c.bf16 %v271, %v263
    %v440 = vpack.c.bf16 %v280, %v272
    %v441 = vpack.c.bf16 %v281, %v273
    %v442 = vpack.c.bf16 %v282, %v274
    %v443 = vpack.c.bf16 %v283, %v275
    %v444 = vpack.c.bf16 %v284, %v276
    %v445 = vpack.c.bf16 %v285, %v277
    %v446 = vpack.c.bf16 %v286, %v278
    %v447 = vpack.c.bf16 %v287, %v279
    %v448 = vpack.c.bf16 %v296, %v288
    %v449 = vpack.c.bf16 %v297, %v289
    %v450 = vpack.c.bf16 %v298, %v290
    %v451 = vpack.c.bf16 %v299, %v291
    %v452 = vpack.c.bf16 %v300, %v292
    %v453 = vpack.c.bf16 %v301, %v293
    %v454 = vpack.c.bf16 %v302, %v294
    %v455 = vpack.c.bf16 %v303, %v295
    %v456 = vpack.c.bf16 %v312, %v304
    %v457 = vpack.c.bf16 %v313, %v305
    %v458 = vpack.c.bf16 %v314, %v306
    %v459 = vpack.c.bf16 %v315, %v307
    %v460 = vpack.c.bf16 %v316, %v308
    %v461 = vpack.c.bf16 %v317, %v309
    %v462 = vpack.c.bf16 %v318, %v310
    %v463 = vpack.c.bf16 %v319, %v311
    %v464 = vpack.c.bf16 %v328, %v320
    %v465 = vpack.c.bf16 %v329, %v321
    %v466 = vpack.c.bf16 %v330, %v322
    %v467 = vpack.c.bf16 %v331, %v323
    %v468 = vpack.c.bf16 %v332, %v324
    %v469 = vpack.c.bf16 %v333, %v325
    %v470 = vpack.c.bf16 %v334, %v326
    %v471 = vpack.c.bf16 %v335, %v327
    %v472 = vpack.c.bf16 %v344, %v336
    %v473 = vpack.c.bf16 %v345, %v337
    %v474 = vpack.c.bf16 %v346, %v338
    %v475 = vpack.c.bf16 %v347, %v339
    %v476 = vpack.c.bf16 %v348, %v340
    %v477 = vpack.c.bf16 %v349, %v341
    %v478 = vpack.c.bf16 %v350, %v342
    %v479 = vpack.c.bf16 %v351, %v343
    %v480 = vld [vmem:[#allocation6] sm:$0xff]
    %v481 = vld [vmem:[#allocation6 + $0x8] sm:$0xff]
    %v482 = vld [vmem:[#allocation6 + $0x10] sm:$0xff]
    %v483 = vld [vmem:[#allocation6 + $0x18] sm:$0xff]
    %v484 = vld [vmem:[#allocation6 + $0x20] sm:$0xff]
    %v485 = vld [vmem:[#allocation6 + $0x28] sm:$0xff]
    %v486 = vld [vmem:[#allocation6 + $0x30] sm:$0xff]
    %v487 = vld [vmem:[#allocation6 + $0x38] sm:$0xff]
    %v488 = vld [vmem:[#allocation6 + $0x40] sm:$0xff]
    %v489 = vld [vmem:[#allocation6 + $0x48] sm:$0xff]
    %v490 = vld [vmem:[#allocation6 + $0x50] sm:$0xff]
    %v491 = vld [vmem:[#allocation6 + $0x58] sm:$0xff]
    %v492 = vld [vmem:[#allocation6 + $0x60] sm:$0xff]
    %v493 = vld [vmem:[#allocation6 + $0x68] sm:$0xff]
    %v494 = vld [vmem:[#allocation6 + $0x70] sm:$0xff]
    %v495 = vld [vmem:[#allocation6 + $0x78] sm:$0xff]
    %v496 = vld [vmem:[#allocation6 + $0x80] sm:$0xff]
    %v497 = vld [vmem:[#allocation6 + $0x88] sm:$0xff]
    %v498 = vld [vmem:[#allocation6 + $0x90] sm:$0xff]
    %v499 = vld [vmem:[#allocation6 + $0x98] sm:$0xff]
    %v500 = vld [vmem:[#allocation6 + $0xa0] sm:$0xff]
    %v501 = vld [vmem:[#allocation6 + $0xa8] sm:$0xff]
    %v502 = vld [vmem:[#allocation6 + $0xb0] sm:$0xff]
    %v503 = vld [vmem:[#allocation6 + $0xb8] sm:$0xff]
    %v504 = vld [vmem:[#allocation6 + $0xc0] sm:$0xff]
    %v505 = vld [vmem:[#allocation6 + $0xc8] sm:$0xff]
    %v506 = vld [vmem:[#allocation6 + $0xd0] sm:$0xff]
    %v507 = vld [vmem:[#allocation6 + $0xd8] sm:$0xff]
    %v508 = vld [vmem:[#allocation6 + $0xe0] sm:$0xff]
    %v509 = vld [vmem:[#allocation6 + $0xe8] sm:$0xff]
    %v510 = vld [vmem:[#allocation6 + $0xf0] sm:$0xff]
    %v511 = vld [vmem:[#allocation6 + $0xf8] sm:$0xff]
    %v512 = vld [vmem:[#allocation6 + $0x100] sm:$0xff]
    %v513 = vld [vmem:[#allocation6 + $0x108] sm:$0xff]
    %v514 = vld [vmem:[#allocation6 + $0x110] sm:$0xff]
    %v515 = vld [vmem:[#allocation6 + $0x118] sm:$0xff]
    %v516 = vld [vmem:[#allocation6 + $0x120] sm:$0xff]
    %v517 = vld [vmem:[#allocation6 + $0x128] sm:$0xff]
    %v518 = vld [vmem:[#allocation6 + $0x130] sm:$0xff]
    %v519 = vld [vmem:[#allocation6 + $0x138] sm:$0xff]
    %v520 = vld [vmem:[#allocation6 + $0x140] sm:$0xff]
    %v521 = vld [vmem:[#allocation6 + $0x148] sm:$0xff]
    %v522 = vld [vmem:[#allocation6 + $0x150] sm:$0xff]
    %v523 = vld [vmem:[#allocation6 + $0x158] sm:$0xff]
    %v524 = vld [vmem:[#allocation6 + $0x160] sm:$0xff]
    %v525 = vld [vmem:[#allocation6 + $0x168] sm:$0xff]
    %v526 = vld [vmem:[#allocation6 + $0x170] sm:$0xff]
    %v527 = vld [vmem:[#allocation6 + $0x178] sm:$0xff]
    %v528 = vld [vmem:[#allocation6 + $0x180] sm:$0xff]
    %v529 = vld [vmem:[#allocation6 + $0x188] sm:$0xff]
    %v530 = vld [vmem:[#allocation6 + $0x190] sm:$0xff]
    %v531 = vld [vmem:[#allocation6 + $0x198] sm:$0xff]
    %v532 = vld [vmem:[#allocation6 + $0x1a0] sm:$0xff]
    %v533 = vld [vmem:[#allocation6 + $0x1a8] sm:$0xff]
    %v534 = vld [vmem:[#allocation6 + $0x1b0] sm:$0xff]
    %v535 = vld [vmem:[#allocation6 + $0x1b8] sm:$0xff]
    %v536 = vld [vmem:[#allocation6 + $0x1c0] sm:$0xff]
    %v537 = vld [vmem:[#allocation6 + $0x1c8] sm:$0xff]
    %v538 = vld [vmem:[#allocation6 + $0x1d0] sm:$0xff]
    %v539 = vld [vmem:[#allocation6 + $0x1d8] sm:$0xff]
    %v540 = vld [vmem:[#allocation6 + $0x1e0] sm:$0xff]
    %v541 = vld [vmem:[#allocation6 + $0x1e8] sm:$0xff]
    %v542 = vld [vmem:[#allocation6 + $0x1f0] sm:$0xff]
    %v543 = vld [vmem:[#allocation6 + $0x1f8] sm:$0xff]
    %v544 = vld [vmem:[#allocation6 + $0x200] sm:$0xff]
    %v545 = vld [vmem:[#allocation6 + $0x208] sm:$0xff]
    %v546 = vld [vmem:[#allocation6 + $0x210] sm:$0xff]
    %v547 = vld [vmem:[#allocation6 + $0x218] sm:$0xff]
    %v548 = vld [vmem:[#allocation6 + $0x220] sm:$0xff]
    %v549 = vld [vmem:[#allocation6 + $0x228] sm:$0xff]
    %v550 = vld [vmem:[#allocation6 + $0x230] sm:$0xff]
    %v551 = vld [vmem:[#allocation6 + $0x238] sm:$0xff]
    %v552 = vld [vmem:[#allocation6 + $0x240] sm:$0xff]
    %v553 = vld [vmem:[#allocation6 + $0x248] sm:$0xff]
    %v554 = vld [vmem:[#allocation6 + $0x250] sm:$0xff]
    %v555 = vld [vmem:[#allocation6 + $0x258] sm:$0xff]
    %v556 = vld [vmem:[#allocation6 + $0x260] sm:$0xff]
    %v557 = vld [vmem:[#allocation6 + $0x268] sm:$0xff]
    %v558 = vld [vmem:[#allocation6 + $0x270] sm:$0xff]
    %v559 = vld [vmem:[#allocation6 + $0x278] sm:$0xff]
    %v560 = vld [vmem:[#allocation6 + $0x280] sm:$0xff]
    %v561 = vld [vmem:[#allocation6 + $0x288] sm:$0xff]
    %v562 = vld [vmem:[#allocation6 + $0x290] sm:$0xff]
    %v563 = vld [vmem:[#allocation6 + $0x298] sm:$0xff]
    %v564 = vld [vmem:[#allocation6 + $0x2a0] sm:$0xff]
    %v565 = vld [vmem:[#allocation6 + $0x2a8] sm:$0xff]
    %v566 = vld [vmem:[#allocation6 + $0x2b0] sm:$0xff]
    %v567 = vld [vmem:[#allocation6 + $0x2b8] sm:$0xff]
    %v568 = vld [vmem:[#allocation6 + $0x2c0] sm:$0xff]
    %v569 = vld [vmem:[#allocation6 + $0x2c8] sm:$0xff]
    %v570 = vld [vmem:[#allocation6 + $0x2d0] sm:$0xff]
    %v571 = vld [vmem:[#allocation6 + $0x2d8] sm:$0xff]
    %v572 = vld [vmem:[#allocation6 + $0x2e0] sm:$0xff]
    %v573 = vld [vmem:[#allocation6 + $0x2e8] sm:$0xff]
    %v574 = vld [vmem:[#allocation6 + $0x2f0] sm:$0xff]
    %v575 = vld [vmem:[#allocation6 + $0x2f8] sm:$0xff]
    %v576 = vld [vmem:[#allocation6 + $0x300] sm:$0xff]
    %v577 = vld [vmem:[#allocation6 + $0x308] sm:$0xff]
    %v578 = vld [vmem:[#allocation6 + $0x310] sm:$0xff]
    %v579 = vld [vmem:[#allocation6 + $0x318] sm:$0xff]
    %v580 = vld [vmem:[#allocation6 + $0x320] sm:$0xff]
    %v581 = vld [vmem:[#allocation6 + $0x328] sm:$0xff]
    %v582 = vld [vmem:[#allocation6 + $0x330] sm:$0xff]
    %v583 = vld [vmem:[#allocation6 + $0x338] sm:$0xff]
    %v584 = vld [vmem:[#allocation6 + $0x340] sm:$0xff]
    %v585 = vld [vmem:[#allocation6 + $0x348] sm:$0xff]
    %v586 = vld [vmem:[#allocation6 + $0x350] sm:$0xff]
    %v587 = vld [vmem:[#allocation6 + $0x358] sm:$0xff]
    %v588 = vld [vmem:[#allocation6 + $0x360] sm:$0xff]
    %v589 = vld [vmem:[#allocation6 + $0x368] sm:$0xff]
    %v590 = vld [vmem:[#allocation6 + $0x370] sm:$0xff]
    %v591 = vld [vmem:[#allocation6 + $0x378] sm:$0xff]
    %v592 = vld [vmem:[#allocation6 + $0x380] sm:$0xff]
    %v593 = vld [vmem:[#allocation6 + $0x388] sm:$0xff]
    %v594 = vld [vmem:[#allocation6 + $0x390] sm:$0xff]
    %v595 = vld [vmem:[#allocation6 + $0x398] sm:$0xff]
    %v596 = vld [vmem:[#allocation6 + $0x3a0] sm:$0xff]
    %v597 = vld [vmem:[#allocation6 + $0x3a8] sm:$0xff]
    %v598 = vld [vmem:[#allocation6 + $0x3b0] sm:$0xff]
    %v599 = vld [vmem:[#allocation6 + $0x3b8] sm:$0xff]
    %v600 = vld [vmem:[#allocation6 + $0x3c0] sm:$0xff]
    %v601 = vld [vmem:[#allocation6 + $0x3c8] sm:$0xff]
    %v602 = vld [vmem:[#allocation6 + $0x3d0] sm:$0xff]
    %v603 = vld [vmem:[#allocation6 + $0x3d8] sm:$0xff]
    %v604 = vld [vmem:[#allocation6 + $0x3e0] sm:$0xff]
    %v605 = vld [vmem:[#allocation6 + $0x3e8] sm:$0xff]
    %v606 = vld [vmem:[#allocation6 + $0x3f0] sm:$0xff]
    %v607 = vld [vmem:[#allocation6 + $0x3f8] sm:$0xff]
    %v608 = vld [vmem:[#allocation6 + $0x400] sm:$0xff]
    %v609 = vld [vmem:[#allocation6 + $0x408] sm:$0xff]
    %v610 = vld [vmem:[#allocation6 + $0x410] sm:$0xff]
    %v611 = vld [vmem:[#allocation6 + $0x418] sm:$0xff]
    %v612 = vld [vmem:[#allocation6 + $0x420] sm:$0xff]
    %v613 = vld [vmem:[#allocation6 + $0x428] sm:$0xff]
    %v614 = vld [vmem:[#allocation6 + $0x430] sm:$0xff]
    %v615 = vld [vmem:[#allocation6 + $0x438] sm:$0xff]
    %v616 = vld [vmem:[#allocation6 + $0x440] sm:$0xff]
    %v617 = vld [vmem:[#allocation6 + $0x448] sm:$0xff]
    %v618 = vld [vmem:[#allocation6 + $0x450] sm:$0xff]
    %v619 = vld [vmem:[#allocation6 + $0x458] sm:$0xff]
    %v620 = vld [vmem:[#allocation6 + $0x460] sm:$0xff]
    %v621 = vld [vmem:[#allocation6 + $0x468] sm:$0xff]
    %v622 = vld [vmem:[#allocation6 + $0x470] sm:$0xff]
    %v623 = vld [vmem:[#allocation6 + $0x478] sm:$0xff]
    %v624 = vld [vmem:[#allocation6 + $0x480] sm:$0xff]
    %v625 = vld [vmem:[#allocation6 + $0x488] sm:$0xff]
    %v626 = vld [vmem:[#allocation6 + $0x490] sm:$0xff]
    %v627 = vld [vmem:[#allocation6 + $0x498] sm:$0xff]
    %v628 = vld [vmem:[#allocation6 + $0x4a0] sm:$0xff]
    %v629 = vld [vmem:[#allocation6 + $0x4a8] sm:$0xff]
    %v630 = vld [vmem:[#allocation6 + $0x4b0] sm:$0xff]
    %v631 = vld [vmem:[#allocation6 + $0x4b8] sm:$0xff]
    %v632 = vld [vmem:[#allocation6 + $0x4c0] sm:$0xff]
    %v633 = vld [vmem:[#allocation6 + $0x4c8] sm:$0xff]
    %v634 = vld [vmem:[#allocation6 + $0x4d0] sm:$0xff]
    %v635 = vld [vmem:[#allocation6 + $0x4d8] sm:$0xff]
    %v636 = vld [vmem:[#allocation6 + $0x4e0] sm:$0xff]
    %v637 = vld [vmem:[#allocation6 + $0x4e8] sm:$0xff]
    %v638 = vld [vmem:[#allocation6 + $0x4f0] sm:$0xff]
    %v639 = vld [vmem:[#allocation6 + $0x4f8] sm:$0xff]
    %v640 = vld [vmem:[#allocation6 + $0x500] sm:$0xff]
    %v641 = vld [vmem:[#allocation6 + $0x508] sm:$0xff]
    %v642 = vld [vmem:[#allocation6 + $0x510] sm:$0xff]
    %v643 = vld [vmem:[#allocation6 + $0x518] sm:$0xff]
    %v644 = vld [vmem:[#allocation6 + $0x520] sm:$0xff]
    %v645 = vld [vmem:[#allocation6 + $0x528] sm:$0xff]
    %v646 = vld [vmem:[#allocation6 + $0x530] sm:$0xff]
    %v647 = vld [vmem:[#allocation6 + $0x538] sm:$0xff]
    %v648 = vld [vmem:[#allocation6 + $0x540] sm:$0xff]
    %v649 = vld [vmem:[#allocation6 + $0x548] sm:$0xff]
    %v650 = vld [vmem:[#allocation6 + $0x550] sm:$0xff]
    %v651 = vld [vmem:[#allocation6 + $0x558] sm:$0xff]
    %v652 = vld [vmem:[#allocation6 + $0x560] sm:$0xff]
    %v653 = vld [vmem:[#allocation6 + $0x568] sm:$0xff]
    %v654 = vld [vmem:[#allocation6 + $0x570] sm:$0xff]
    %v655 = vld [vmem:[#allocation6 + $0x578] sm:$0xff]
    %v656 = vld [vmem:[#allocation6 + $0x580] sm:$0xff]
    %v657 = vld [vmem:[#allocation6 + $0x588] sm:$0xff]
    %v658 = vld [vmem:[#allocation6 + $0x590] sm:$0xff]
    %v659 = vld [vmem:[#allocation6 + $0x598] sm:$0xff]
    %v660 = vld [vmem:[#allocation6 + $0x5a0] sm:$0xff]
    %v661 = vld [vmem:[#allocation6 + $0x5a8] sm:$0xff]
    %v662 = vld [vmem:[#allocation6 + $0x5b0] sm:$0xff]
    %v663 = vld [vmem:[#allocation6 + $0x5b8] sm:$0xff]
    %v664 = vld [vmem:[#allocation6 + $0x5c0] sm:$0xff]
    %v665 = vld [vmem:[#allocation6 + $0x5c8] sm:$0xff]
    %v666 = vld [vmem:[#allocation6 + $0x5d0] sm:$0xff]
    %v667 = vld [vmem:[#allocation6 + $0x5d8] sm:$0xff]
    %v668 = vld [vmem:[#allocation6 + $0x5e0] sm:$0xff]
    %v669 = vld [vmem:[#allocation6 + $0x5e8] sm:$0xff]
    %v670 = vld [vmem:[#allocation6 + $0x5f0] sm:$0xff]
    %v671 = vld [vmem:[#allocation6 + $0x5f8] sm:$0xff]
    %v672 = vld [vmem:[#allocation6 + $0x600] sm:$0xff]
    %v673 = vld [vmem:[#allocation6 + $0x608] sm:$0xff]
    %v674 = vld [vmem:[#allocation6 + $0x610] sm:$0xff]
    %v675 = vld [vmem:[#allocation6 + $0x618] sm:$0xff]
    %v676 = vld [vmem:[#allocation6 + $0x620] sm:$0xff]
    %v677 = vld [vmem:[#allocation6 + $0x628] sm:$0xff]
    %v678 = vld [vmem:[#allocation6 + $0x630] sm:$0xff]
    %v679 = vld [vmem:[#allocation6 + $0x638] sm:$0xff]
    %v680 = vld [vmem:[#allocation6 + $0x640] sm:$0xff]
    %v681 = vld [vmem:[#allocation6 + $0x648] sm:$0xff]
    %v682 = vld [vmem:[#allocation6 + $0x650] sm:$0xff]
    %v683 = vld [vmem:[#allocation6 + $0x658] sm:$0xff]
    %v684 = vld [vmem:[#allocation6 + $0x660] sm:$0xff]
    %v685 = vld [vmem:[#allocation6 + $0x668] sm:$0xff]
    %v686 = vld [vmem:[#allocation6 + $0x670] sm:$0xff]
    %v687 = vld [vmem:[#allocation6 + $0x678] sm:$0xff]
    %v688 = vld [vmem:[#allocation6 + $0x680] sm:$0xff]
    %v689 = vld [vmem:[#allocation6 + $0x688] sm:$0xff]
    %v690 = vld [vmem:[#allocation6 + $0x690] sm:$0xff]
    %v691 = vld [vmem:[#allocation6 + $0x698] sm:$0xff]
    %v692 = vld [vmem:[#allocation6 + $0x6a0] sm:$0xff]
    %v693 = vld [vmem:[#allocation6 + $0x6a8] sm:$0xff]
    %v694 = vld [vmem:[#allocation6 + $0x6b0] sm:$0xff]
    %v695 = vld [vmem:[#allocation6 + $0x6b8] sm:$0xff]
    %v696 = vld [vmem:[#allocation6 + $0x6c0] sm:$0xff]
    %v697 = vld [vmem:[#allocation6 + $0x6c8] sm:$0xff]
    %v698 = vld [vmem:[#allocation6 + $0x6d0] sm:$0xff]
    %v699 = vld [vmem:[#allocation6 + $0x6d8] sm:$0xff]
    %v700 = vld [vmem:[#allocation6 + $0x6e0] sm:$0xff]
    %v701 = vld [vmem:[#allocation6 + $0x6e8] sm:$0xff]
    %v702 = vld [vmem:[#allocation6 + $0x6f0] sm:$0xff]
    %v703 = vld [vmem:[#allocation6 + $0x6f8] sm:$0xff]
    %v704 = vld [vmem:[#allocation6 + $0x700] sm:$0xff]
    %v705 = vld [vmem:[#allocation6 + $0x708] sm:$0xff]
    %v706 = vld [vmem:[#allocation6 + $0x710] sm:$0xff]
    %v707 = vld [vmem:[#allocation6 + $0x718] sm:$0xff]
    %v708 = vld [vmem:[#allocation6 + $0x720] sm:$0xff]
    %v709 = vld [vmem:[#allocation6 + $0x728] sm:$0xff]
    %v710 = vld [vmem:[#allocation6 + $0x730] sm:$0xff]
    %v711 = vld [vmem:[#allocation6 + $0x738] sm:$0xff]
    %v712 = vld [vmem:[#allocation6 + $0x740] sm:$0xff]
    %v713 = vld [vmem:[#allocation6 + $0x748] sm:$0xff]
    %v714 = vld [vmem:[#allocation6 + $0x750] sm:$0xff]
    %v715 = vld [vmem:[#allocation6 + $0x758] sm:$0xff]
    %v716 = vld [vmem:[#allocation6 + $0x760] sm:$0xff]
    %v717 = vld [vmem:[#allocation6 + $0x768] sm:$0xff]
    %v718 = vld [vmem:[#allocation6 + $0x770] sm:$0xff]
    %v719 = vld [vmem:[#allocation6 + $0x778] sm:$0xff]
    %v720 = vld [vmem:[#allocation6 + $0x780] sm:$0xff]
    %v721 = vld [vmem:[#allocation6 + $0x788] sm:$0xff]
    %v722 = vld [vmem:[#allocation6 + $0x790] sm:$0xff]
    %v723 = vld [vmem:[#allocation6 + $0x798] sm:$0xff]
    %v724 = vld [vmem:[#allocation6 + $0x7a0] sm:$0xff]
    %v725 = vld [vmem:[#allocation6 + $0x7a8] sm:$0xff]
    %v726 = vld [vmem:[#allocation6 + $0x7b0] sm:$0xff]
    %v727 = vld [vmem:[#allocation6 + $0x7b8] sm:$0xff]
    %v728 = vld [vmem:[#allocation6 + $0x7c0] sm:$0xff]
    %v729 = vld [vmem:[#allocation6 + $0x7c8] sm:$0xff]
    %v730 = vld [vmem:[#allocation6 + $0x7d0] sm:$0xff]
    %v731 = vld [vmem:[#allocation6 + $0x7d8] sm:$0xff]
    %v732 = vld [vmem:[#allocation6 + $0x7e0] sm:$0xff]
    %v733 = vld [vmem:[#allocation6 + $0x7e8] sm:$0xff]
    %v734 = vld [vmem:[#allocation6 + $0x7f0] sm:$0xff]
    %v735 = vld [vmem:[#allocation6 + $0x7f8] sm:$0xff]
    %v736 = vld [vmem:[#allocation6 + $0x800] sm:$0xff]
    %v737 = vld [vmem:[#allocation6 + $0x808] sm:$0xff]
    %v738 = vld [vmem:[#allocation6 + $0x810] sm:$0xff]
    %v739 = vld [vmem:[#allocation6 + $0x818] sm:$0xff]
    %v740 = vld [vmem:[#allocation6 + $0x820] sm:$0xff]
    %v741 = vld [vmem:[#allocation6 + $0x828] sm:$0xff]
    %v742 = vld [vmem:[#allocation6 + $0x830] sm:$0xff]
    %v743 = vld [vmem:[#allocation6 + $0x838] sm:$0xff]
    %v744 = vld [vmem:[#allocation6 + $0x840] sm:$0xff]
    %v745 = vld [vmem:[#allocation6 + $0x848] sm:$0xff]
    %v746 = vld [vmem:[#allocation6 + $0x850] sm:$0xff]
    %v747 = vld [vmem:[#allocation6 + $0x858] sm:$0xff]
    %v748 = vld [vmem:[#allocation6 + $0x860] sm:$0xff]
    %v749 = vld [vmem:[#allocation6 + $0x868] sm:$0xff]
    %v750 = vld [vmem:[#allocation6 + $0x870] sm:$0xff]
    %v751 = vld [vmem:[#allocation6 + $0x878] sm:$0xff]
    %v752 = vld [vmem:[#allocation6 + $0x880] sm:$0xff]
    %v753 = vld [vmem:[#allocation6 + $0x888] sm:$0xff]
    %v754 = vld [vmem:[#allocation6 + $0x890] sm:$0xff]
    %v755 = vld [vmem:[#allocation6 + $0x898] sm:$0xff]
    %v756 = vld [vmem:[#allocation6 + $0x8a0] sm:$0xff]
    %v757 = vld [vmem:[#allocation6 + $0x8a8] sm:$0xff]
    %v758 = vld [vmem:[#allocation6 + $0x8b0] sm:$0xff]
    %v759 = vld [vmem:[#allocation6 + $0x8b8] sm:$0xff]
    %v760 = vld [vmem:[#allocation6 + $0x8c0] sm:$0xff]
    %v761 = vld [vmem:[#allocation6 + $0x8c8] sm:$0xff]
    %v762 = vld [vmem:[#allocation6 + $0x8d0] sm:$0xff]
    %v763 = vld [vmem:[#allocation6 + $0x8d8] sm:$0xff]
    %v764 = vld [vmem:[#allocation6 + $0x8e0] sm:$0xff]
    %v765 = vld [vmem:[#allocation6 + $0x8e8] sm:$0xff]
    %v766 = vld [vmem:[#allocation6 + $0x8f0] sm:$0xff]
    %v767 = vld [vmem:[#allocation6 + $0x8f8] sm:$0xff]
    %v768 = vld [vmem:[#allocation6 + $0x900] sm:$0xff]
    %v769 = vld [vmem:[#allocation6 + $0x908] sm:$0xff]
    %v770 = vld [vmem:[#allocation6 + $0x910] sm:$0xff]
    %v771 = vld [vmem:[#allocation6 + $0x918] sm:$0xff]
    %v772 = vld [vmem:[#allocation6 + $0x920] sm:$0xff]
    %v773 = vld [vmem:[#allocation6 + $0x928] sm:$0xff]
    %v774 = vld [vmem:[#allocation6 + $0x930] sm:$0xff]
    %v775 = vld [vmem:[#allocation6 + $0x938] sm:$0xff]
    %v776 = vld [vmem:[#allocation6 + $0x940] sm:$0xff]
    %v777 = vld [vmem:[#allocation6 + $0x948] sm:$0xff]
    %v778 = vld [vmem:[#allocation6 + $0x950] sm:$0xff]
    %v779 = vld [vmem:[#allocation6 + $0x958] sm:$0xff]
    %v780 = vld [vmem:[#allocation6 + $0x960] sm:$0xff]
    %v781 = vld [vmem:[#allocation6 + $0x968] sm:$0xff]
    %v782 = vld [vmem:[#allocation6 + $0x970] sm:$0xff]
    %v783 = vld [vmem:[#allocation6 + $0x978] sm:$0xff]
    %v784 = vld [vmem:[#allocation6 + $0x980] sm:$0xff]
    %v785 = vld [vmem:[#allocation6 + $0x988] sm:$0xff]
    %v786 = vld [vmem:[#allocation6 + $0x990] sm:$0xff]
    %v787 = vld [vmem:[#allocation6 + $0x998] sm:$0xff]
    %v788 = vld [vmem:[#allocation6 + $0x9a0] sm:$0xff]
    %v789 = vld [vmem:[#allocation6 + $0x9a8] sm:$0xff]
    %v790 = vld [vmem:[#allocation6 + $0x9b0] sm:$0xff]
    %v791 = vld [vmem:[#allocation6 + $0x9b8] sm:$0xff]
    %v792 = vld [vmem:[#allocation6 + $0x9c0] sm:$0xff]
    %v793 = vld [vmem:[#allocation6 + $0x9c8] sm:$0xff]
    %v794 = vld [vmem:[#allocation6 + $0x9d0] sm:$0xff]
    %v795 = vld [vmem:[#allocation6 + $0x9d8] sm:$0xff]
    %v796 = vld [vmem:[#allocation6 + $0x9e0] sm:$0xff]
    %v797 = vld [vmem:[#allocation6 + $0x9e8] sm:$0xff]
    %v798 = vld [vmem:[#allocation6 + $0x9f0] sm:$0xff]
    %v799 = vld [vmem:[#allocation6 + $0x9f8] sm:$0xff]
    %v800 = vld [vmem:[#allocation6 + $0xa00] sm:$0xff]
    %v801 = vld [vmem:[#allocation6 + $0xa08] sm:$0xff]
    %v802 = vld [vmem:[#allocation6 + $0xa10] sm:$0xff]
    %v803 = vld [vmem:[#allocation6 + $0xa18] sm:$0xff]
    %v804 = vld [vmem:[#allocation6 + $0xa20] sm:$0xff]
    %v805 = vld [vmem:[#allocation6 + $0xa28] sm:$0xff]
    %v806 = vld [vmem:[#allocation6 + $0xa30] sm:$0xff]
    %v807 = vld [vmem:[#allocation6 + $0xa38] sm:$0xff]
    %v808 = vld [vmem:[#allocation6 + $0xa40] sm:$0xff]
    %v809 = vld [vmem:[#allocation6 + $0xa48] sm:$0xff]
    %v810 = vld [vmem:[#allocation6 + $0xa50] sm:$0xff]
    %v811 = vld [vmem:[#allocation6 + $0xa58] sm:$0xff]
    %v812 = vld [vmem:[#allocation6 + $0xa60] sm:$0xff]
    %v813 = vld [vmem:[#allocation6 + $0xa68] sm:$0xff]
    %v814 = vld [vmem:[#allocation6 + $0xa70] sm:$0xff]
    %v815 = vld [vmem:[#allocation6 + $0xa78] sm:$0xff]
    %v816 = vld [vmem:[#allocation6 + $0xa80] sm:$0xff]
    %v817 = vld [vmem:[#allocation6 + $0xa88] sm:$0xff]
    %v818 = vld [vmem:[#allocation6 + $0xa90] sm:$0xff]
    %v819 = vld [vmem:[#allocation6 + $0xa98] sm:$0xff]
    %v820 = vld [vmem:[#allocation6 + $0xaa0] sm:$0xff]
    %v821 = vld [vmem:[#allocation6 + $0xaa8] sm:$0xff]
    %v822 = vld [vmem:[#allocation6 + $0xab0] sm:$0xff]
    %v823 = vld [vmem:[#allocation6 + $0xab8] sm:$0xff]
    %v824 = vld [vmem:[#allocation6 + $0xac0] sm:$0xff]
    %v825 = vld [vmem:[#allocation6 + $0xac8] sm:$0xff]
    %v826 = vld [vmem:[#allocation6 + $0xad0] sm:$0xff]
    %v827 = vld [vmem:[#allocation6 + $0xad8] sm:$0xff]
    %v828 = vld [vmem:[#allocation6 + $0xae0] sm:$0xff]
    %v829 = vld [vmem:[#allocation6 + $0xae8] sm:$0xff]
    %v830 = vld [vmem:[#allocation6 + $0xaf0] sm:$0xff]
    %v831 = vld [vmem:[#allocation6 + $0xaf8] sm:$0xff]
    %v832 = vld [vmem:[#allocation6 + $0xb00] sm:$0xff]
    %v833 = vld [vmem:[#allocation6 + $0xb08] sm:$0xff]
    %v834 = vld [vmem:[#allocation6 + $0xb10] sm:$0xff]
    %v835 = vld [vmem:[#allocation6 + $0xb18] sm:$0xff]
    %v836 = vld [vmem:[#allocation6 + $0xb20] sm:$0xff]
    %v837 = vld [vmem:[#allocation6 + $0xb28] sm:$0xff]
    %v838 = vld [vmem:[#allocation6 + $0xb30] sm:$0xff]
    %v839 = vld [vmem:[#allocation6 + $0xb38] sm:$0xff]
    %v840 = vld [vmem:[#allocation6 + $0xb40] sm:$0xff]
    %v841 = vld [vmem:[#allocation6 + $0xb48] sm:$0xff]
    %v842 = vld [vmem:[#allocation6 + $0xb50] sm:$0xff]
    %v843 = vld [vmem:[#allocation6 + $0xb58] sm:$0xff]
    %v844 = vld [vmem:[#allocation6 + $0xb60] sm:$0xff]
    %v845 = vld [vmem:[#allocation6 + $0xb68] sm:$0xff]
    %v846 = vld [vmem:[#allocation6 + $0xb70] sm:$0xff]
    %v847 = vld [vmem:[#allocation6 + $0xb78] sm:$0xff]
    %v848 = vld [vmem:[#allocation6 + $0xb80] sm:$0xff]
    %v849 = vld [vmem:[#allocation6 + $0xb88] sm:$0xff]
    %v850 = vld [vmem:[#allocation6 + $0xb90] sm:$0xff]
    %v851 = vld [vmem:[#allocation6 + $0xb98] sm:$0xff]
    %v852 = vld [vmem:[#allocation6 + $0xba0] sm:$0xff]
    %v853 = vld [vmem:[#allocation6 + $0xba8] sm:$0xff]
    %v854 = vld [vmem:[#allocation6 + $0xbb0] sm:$0xff]
    %v855 = vld [vmem:[#allocation6 + $0xbb8] sm:$0xff]
    %v856 = vld [vmem:[#allocation6 + $0xbc0] sm:$0xff]
    %v857 = vld [vmem:[#allocation6 + $0xbc8] sm:$0xff]
    %v858 = vld [vmem:[#allocation6 + $0xbd0] sm:$0xff]
    %v859 = vld [vmem:[#allocation6 + $0xbd8] sm:$0xff]
    %v860 = vld [vmem:[#allocation6 + $0xbe0] sm:$0xff]
    %v861 = vld [vmem:[#allocation6 + $0xbe8] sm:$0xff]
    %v862 = vld [vmem:[#allocation6 + $0xbf0] sm:$0xff]
    %v863 = vld [vmem:[#allocation6 + $0xbf8] sm:$0xff]
    %v864 = vld [vmem:[#allocation6 + $0xc00] sm:$0xff]
    %v865 = vld [vmem:[#allocation6 + $0xc08] sm:$0xff]
    %v866 = vld [vmem:[#allocation6 + $0xc10] sm:$0xff]
    %v867 = vld [vmem:[#allocation6 + $0xc18] sm:$0xff]
    %v868 = vld [vmem:[#allocation6 + $0xc20] sm:$0xff]
    %v869 = vld [vmem:[#allocation6 + $0xc28] sm:$0xff]
    %v870 = vld [vmem:[#allocation6 + $0xc30] sm:$0xff]
    %v871 = vld [vmem:[#allocation6 + $0xc38] sm:$0xff]
    %v872 = vld [vmem:[#allocation6 + $0xc40] sm:$0xff]
    %v873 = vld [vmem:[#allocation6 + $0xc48] sm:$0xff]
    %v874 = vld [vmem:[#allocation6 + $0xc50] sm:$0xff]
    %v875 = vld [vmem:[#allocation6 + $0xc58] sm:$0xff]
    %v876 = vld [vmem:[#allocation6 + $0xc60] sm:$0xff]
    %v877 = vld [vmem:[#allocation6 + $0xc68] sm:$0xff]
    %v878 = vld [vmem:[#allocation6 + $0xc70] sm:$0xff]
    %v879 = vld [vmem:[#allocation6 + $0xc78] sm:$0xff]
    %v880 = vld [vmem:[#allocation6 + $0xc80] sm:$0xff]
    %v881 = vld [vmem:[#allocation6 + $0xc88] sm:$0xff]
    %v882 = vld [vmem:[#allocation6 + $0xc90] sm:$0xff]
    %v883 = vld [vmem:[#allocation6 + $0xc98] sm:$0xff]
    %v884 = vld [vmem:[#allocation6 + $0xca0] sm:$0xff]
    %v885 = vld [vmem:[#allocation6 + $0xca8] sm:$0xff]
    %v886 = vld [vmem:[#allocation6 + $0xcb0] sm:$0xff]
    %v887 = vld [vmem:[#allocation6 + $0xcb8] sm:$0xff]
    %v888 = vld [vmem:[#allocation6 + $0xcc0] sm:$0xff]
    %v889 = vld [vmem:[#allocation6 + $0xcc8] sm:$0xff]
    %v890 = vld [vmem:[#allocation6 + $0xcd0] sm:$0xff]
    %v891 = vld [vmem:[#allocation6 + $0xcd8] sm:$0xff]
    %v892 = vld [vmem:[#allocation6 + $0xce0] sm:$0xff]
    %v893 = vld [vmem:[#allocation6 + $0xce8] sm:$0xff]
    %v894 = vld [vmem:[#allocation6 + $0xcf0] sm:$0xff]
    %v895 = vld [vmem:[#allocation6 + $0xcf8] sm:$0xff]
    %v896 = vld [vmem:[#allocation6 + $0xd00] sm:$0xff]
    %v897 = vld [vmem:[#allocation6 + $0xd08] sm:$0xff]
    %v898 = vld [vmem:[#allocation6 + $0xd10] sm:$0xff]
    %v899 = vld [vmem:[#allocation6 + $0xd18] sm:$0xff]
    %v900 = vld [vmem:[#allocation6 + $0xd20] sm:$0xff]
    %v901 = vld [vmem:[#allocation6 + $0xd28] sm:$0xff]
    %v902 = vld [vmem:[#allocation6 + $0xd30] sm:$0xff]
    %v903 = vld [vmem:[#allocation6 + $0xd38] sm:$0xff]
    %v904 = vld [vmem:[#allocation6 + $0xd40] sm:$0xff]
    %v905 = vld [vmem:[#allocation6 + $0xd48] sm:$0xff]
    %v906 = vld [vmem:[#allocation6 + $0xd50] sm:$0xff]
    %v907 = vld [vmem:[#allocation6 + $0xd58] sm:$0xff]
    %v908 = vld [vmem:[#allocation6 + $0xd60] sm:$0xff]
    %v909 = vld [vmem:[#allocation6 + $0xd68] sm:$0xff]
    %v910 = vld [vmem:[#allocation6 + $0xd70] sm:$0xff]
    %v911 = vld [vmem:[#allocation6 + $0xd78] sm:$0xff]
    %v912 = vld [vmem:[#allocation6 + $0xd80] sm:$0xff]
    %v913 = vld [vmem:[#allocation6 + $0xd88] sm:$0xff]
    %v914 = vld [vmem:[#allocation6 + $0xd90] sm:$0xff]
    %v915 = vld [vmem:[#allocation6 + $0xd98] sm:$0xff]
    %v916 = vld [vmem:[#allocation6 + $0xda0] sm:$0xff]
    %v917 = vld [vmem:[#allocation6 + $0xda8] sm:$0xff]
    %v918 = vld [vmem:[#allocation6 + $0xdb0] sm:$0xff]
    %v919 = vld [vmem:[#allocation6 + $0xdb8] sm:$0xff]
    %v920 = vld [vmem:[#allocation6 + $0xdc0] sm:$0xff]
    %v921 = vld [vmem:[#allocation6 + $0xdc8] sm:$0xff]
    %v922 = vld [vmem:[#allocation6 + $0xdd0] sm:$0xff]
    %v923 = vld [vmem:[#allocation6 + $0xdd8] sm:$0xff]
    %v924 = vld [vmem:[#allocation6 + $0xde0] sm:$0xff]
    %v925 = vld [vmem:[#allocation6 + $0xde8] sm:$0xff]
    %v926 = vld [vmem:[#allocation6 + $0xdf0] sm:$0xff]
    %v927 = vld [vmem:[#allocation6 + $0xdf8] sm:$0xff]
    %v928 = vld [vmem:[#allocation6 + $0xe00] sm:$0xff]
    %v929 = vld [vmem:[#allocation6 + $0xe08] sm:$0xff]
    %v930 = vld [vmem:[#allocation6 + $0xe10] sm:$0xff]
    %v931 = vld [vmem:[#allocation6 + $0xe18] sm:$0xff]
    %v932 = vld [vmem:[#allocation6 + $0xe20] sm:$0xff]
    %v933 = vld [vmem:[#allocation6 + $0xe28] sm:$0xff]
    %v934 = vld [vmem:[#allocation6 + $0xe30] sm:$0xff]
    %v935 = vld [vmem:[#allocation6 + $0xe38] sm:$0xff]
    %v936 = vld [vmem:[#allocation6 + $0xe40] sm:$0xff]
    %v937 = vld [vmem:[#allocation6 + $0xe48] sm:$0xff]
    %v938 = vld [vmem:[#allocation6 + $0xe50] sm:$0xff]
    %v939 = vld [vmem:[#allocation6 + $0xe58] sm:$0xff]
    %v940 = vld [vmem:[#allocation6 + $0xe60] sm:$0xff]
    %v941 = vld [vmem:[#allocation6 + $0xe68] sm:$0xff]
    %v942 = vld [vmem:[#allocation6 + $0xe70] sm:$0xff]
    %v943 = vld [vmem:[#allocation6 + $0xe78] sm:$0xff]
    %v944 = vld [vmem:[#allocation6 + $0xe80] sm:$0xff]
    %v945 = vld [vmem:[#allocation6 + $0xe88] sm:$0xff]
    %v946 = vld [vmem:[#allocation6 + $0xe90] sm:$0xff]
    %v947 = vld [vmem:[#allocation6 + $0xe98] sm:$0xff]
    %v948 = vld [vmem:[#allocation6 + $0xea0] sm:$0xff]
    %v949 = vld [vmem:[#allocation6 + $0xea8] sm:$0xff]
    %v950 = vld [vmem:[#allocation6 + $0xeb0] sm:$0xff]
    %v951 = vld [vmem:[#allocation6 + $0xeb8] sm:$0xff]
    %v952 = vld [vmem:[#allocation6 + $0xec0] sm:$0xff]
    %v953 = vld [vmem:[#allocation6 + $0xec8] sm:$0xff]
    %v954 = vld [vmem:[#allocation6 + $0xed0] sm:$0xff]
    %v955 = vld [vmem:[#allocation6 + $0xed8] sm:$0xff]
    %v956 = vld [vmem:[#allocation6 + $0xee0] sm:$0xff]
    %v957 = vld [vmem:[#allocation6 + $0xee8] sm:$0xff]
    %v958 = vld [vmem:[#allocation6 + $0xef0] sm:$0xff]
    %v959 = vld [vmem:[#allocation6 + $0xef8] sm:$0xff]
    %v960 = vld [vmem:[#allocation6 + $0xf00] sm:$0xff]
    %v961 = vld [vmem:[#allocation6 + $0xf08] sm:$0xff]
    %v962 = vld [vmem:[#allocation6 + $0xf10] sm:$0xff]
    %v963 = vld [vmem:[#allocation6 + $0xf18] sm:$0xff]
    %v964 = vld [vmem:[#allocation6 + $0xf20] sm:$0xff]
    %v965 = vld [vmem:[#allocation6 + $0xf28] sm:$0xff]
    %v966 = vld [vmem:[#allocation6 + $0xf30] sm:$0xff]
    %v967 = vld [vmem:[#allocation6 + $0xf38] sm:$0xff]
    %v968 = vld [vmem:[#allocation6 + $0xf40] sm:$0xff]
    %v969 = vld [vmem:[#allocation6 + $0xf48] sm:$0xff]
    %v970 = vld [vmem:[#allocation6 + $0xf50] sm:$0xff]
    %v971 = vld [vmem:[#allocation6 + $0xf58] sm:$0xff]
    %v972 = vld [vmem:[#allocation6 + $0xf60] sm:$0xff]
    %v973 = vld [vmem:[#allocation6 + $0xf68] sm:$0xff]
    %v974 = vld [vmem:[#allocation6 + $0xf70] sm:$0xff]
    %v975 = vld [vmem:[#allocation6 + $0xf78] sm:$0xff]
    %v976 = vld [vmem:[#allocation6 + $0xf80] sm:$0xff]
    %v977 = vld [vmem:[#allocation6 + $0xf88] sm:$0xff]
    %v978 = vld [vmem:[#allocation6 + $0xf90] sm:$0xff]
    %v979 = vld [vmem:[#allocation6 + $0xf98] sm:$0xff]
    %v980 = vld [vmem:[#allocation6 + $0xfa0] sm:$0xff]
    %v981 = vld [vmem:[#allocation6 + $0xfa8] sm:$0xff]
    %v982 = vld [vmem:[#allocation6 + $0xfb0] sm:$0xff]
    %v983 = vld [vmem:[#allocation6 + $0xfb8] sm:$0xff]
    %v984 = vld [vmem:[#allocation6 + $0xfc0] sm:$0xff]
    %v985 = vld [vmem:[#allocation6 + $0xfc8] sm:$0xff]
    %v986 = vld [vmem:[#allocation6 + $0xfd0] sm:$0xff]
    %v987 = vld [vmem:[#allocation6 + $0xfd8] sm:$0xff]
    %v988 = vld [vmem:[#allocation6 + $0xfe0] sm:$0xff]
    %v989 = vld [vmem:[#allocation6 + $0xfe8] sm:$0xff]
    %v990 = vld [vmem:[#allocation6 + $0xff0] sm:$0xff]
    %v991 = vld [vmem:[#allocation6 + $0xff8] sm:$0xff]
    %v993 = vlaneseq
    %v994 = vshrl.u32 %v993, 7
    %v995 = vsub.s32 0, %v994
    %v996 = vrot.slane %v87, %v995
    %v997 = vlaneseq
    %v998 = vshrl.u32 %v997, 7
    %v999 = vsub.s32 1, %v998
    %v1000 = vrot.slane %v87, %v999
    %v1001 = vlaneseq
    %v1002 = vshrl.u32 %v1001, 7
    %v1003 = vsub.s32 2, %v1002
    %v1004 = vrot.slane %v87, %v1003
    %v1005 = vlaneseq
    %v1006 = vshrl.u32 %v1005, 7
    %v1007 = vsub.s32 3, %v1006
    %v1008 = vrot.slane %v87, %v1007
    %v1009 = vlaneseq
    %v1010 = vshrl.u32 %v1009, 7
    %v1011 = vsub.s32 4, %v1010
    %v1012 = vrot.slane %v87, %v1011
    %v1013 = vlaneseq
    %v1014 = vshrl.u32 %v1013, 7
    %v1015 = vsub.s32 5, %v1014
    %v1016 = vrot.slane %v87, %v1015
    %v1017 = vlaneseq
    %v1018 = vshrl.u32 %v1017, 7
    %v1019 = vsub.s32 6, %v1018
    %v1020 = vrot.slane %v87, %v1019
    %v1021 = vlaneseq
    %v1022 = vshrl.u32 %v1021, 7
    %v1023 = vsub.s32 7, %v1022
    %v1024 = vrot.slane %v87, %v1023
    %v1545 = vunpack.c.l.b16 %v480
    %v1546 = vunpack.c.h.b16 %v480
    %v1547 = vunpack.c.l.b16 %v481
    %v1548 = vunpack.c.h.b16 %v481
    %v1549 = vunpack.c.l.b16 %v482
    %v1550 = vunpack.c.h.b16 %v482
    %v1551 = vunpack.c.l.b16 %v483
    %v1552 = vunpack.c.h.b16 %v483
    %v1553 = vunpack.c.l.b16 %v484
    %v1554 = vunpack.c.h.b16 %v484
    %v1555 = vunpack.c.l.b16 %v485
    %v1556 = vunpack.c.h.b16 %v485
    %v1557 = vunpack.c.l.b16 %v486
    %v1558 = vunpack.c.h.b16 %v486
    %v1559 = vunpack.c.l.b16 %v487
    %v1560 = vunpack.c.h.b16 %v487
    %v1561 = vunpack.c.l.b16 %v488
    %v1562 = vunpack.c.h.b16 %v488
    %v1563 = vunpack.c.l.b16 %v489
    %v1564 = vunpack.c.h.b16 %v489
    %v1565 = vunpack.c.l.b16 %v490
    %v1566 = vunpack.c.h.b16 %v490
    %v1567 = vunpack.c.l.b16 %v491
    %v1568 = vunpack.c.h.b16 %v491
    %v1569 = vunpack.c.l.b16 %v492
    %v1570 = vunpack.c.h.b16 %v492
    %v1571 = vunpack.c.l.b16 %v493
    %v1572 = vunpack.c.h.b16 %v493
    %v1573 = vunpack.c.l.b16 %v494
    %v1574 = vunpack.c.h.b16 %v494
    %v1575 = vunpack.c.l.b16 %v495
    %v1576 = vunpack.c.h.b16 %v495
    %v1577 = vunpack.c.l.b16 %v496
    %v1578 = vunpack.c.h.b16 %v496
    %v1579 = vunpack.c.l.b16 %v497
    %v1580 = vunpack.c.h.b16 %v497
    %v1581 = vunpack.c.l.b16 %v498
    %v1582 = vunpack.c.h.b16 %v498
    %v1583 = vunpack.c.l.b16 %v499
    %v1584 = vunpack.c.h.b16 %v499
    %v1585 = vunpack.c.l.b16 %v500
    %v1586 = vunpack.c.h.b16 %v500
    %v1587 = vunpack.c.l.b16 %v501
    %v1588 = vunpack.c.h.b16 %v501
    %v1589 = vunpack.c.l.b16 %v502
    %v1590 = vunpack.c.h.b16 %v502
    %v1591 = vunpack.c.l.b16 %v503
    %v1592 = vunpack.c.h.b16 %v503
    %v1593 = vunpack.c.l.b16 %v504
    %v1594 = vunpack.c.h.b16 %v504
    %v1595 = vunpack.c.l.b16 %v505
    %v1596 = vunpack.c.h.b16 %v505
    %v1597 = vunpack.c.l.b16 %v506
    %v1598 = vunpack.c.h.b16 %v506
    %v1599 = vunpack.c.l.b16 %v507
    %v1600 = vunpack.c.h.b16 %v507
    %v1601 = vunpack.c.l.b16 %v508
    %v1602 = vunpack.c.h.b16 %v508
    %v1603 = vunpack.c.l.b16 %v509
    %v1604 = vunpack.c.h.b16 %v509
    %v1605 = vunpack.c.l.b16 %v510
    %v1606 = vunpack.c.h.b16 %v510
    %v1607 = vunpack.c.l.b16 %v511
    %v1608 = vunpack.c.h.b16 %v511
    %v1609 = vunpack.c.l.b16 %v512
    %v1610 = vunpack.c.h.b16 %v512
    %v1611 = vunpack.c.l.b16 %v513
    %v1612 = vunpack.c.h.b16 %v513
    %v1613 = vunpack.c.l.b16 %v514
    %v1614 = vunpack.c.h.b16 %v514
    %v1615 = vunpack.c.l.b16 %v515
    %v1616 = vunpack.c.h.b16 %v515
    %v1617 = vunpack.c.l.b16 %v516
    %v1618 = vunpack.c.h.b16 %v516
    %v1619 = vunpack.c.l.b16 %v517
    %v1620 = vunpack.c.h.b16 %v517
    %v1621 = vunpack.c.l.b16 %v518
    %v1622 = vunpack.c.h.b16 %v518
    %v1623 = vunpack.c.l.b16 %v519
    %v1624 = vunpack.c.h.b16 %v519
    %v1625 = vunpack.c.l.b16 %v520
    %v1626 = vunpack.c.h.b16 %v520
    %v1627 = vunpack.c.l.b16 %v521
    %v1628 = vunpack.c.h.b16 %v521
    %v1629 = vunpack.c.l.b16 %v522
    %v1630 = vunpack.c.h.b16 %v522
    %v1631 = vunpack.c.l.b16 %v523
    %v1632 = vunpack.c.h.b16 %v523
    %v1633 = vunpack.c.l.b16 %v524
    %v1634 = vunpack.c.h.b16 %v524
    %v1635 = vunpack.c.l.b16 %v525
    %v1636 = vunpack.c.h.b16 %v525
    %v1637 = vunpack.c.l.b16 %v526
    %v1638 = vunpack.c.h.b16 %v526
    %v1639 = vunpack.c.l.b16 %v527
    %v1640 = vunpack.c.h.b16 %v527
    %v1641 = vunpack.c.l.b16 %v528
    %v1642 = vunpack.c.h.b16 %v528
    %v1643 = vunpack.c.l.b16 %v529
    %v1644 = vunpack.c.h.b16 %v529
    %v1645 = vunpack.c.l.b16 %v530
    %v1646 = vunpack.c.h.b16 %v530
    %v1647 = vunpack.c.l.b16 %v531
    %v1648 = vunpack.c.h.b16 %v531
    %v1649 = vunpack.c.l.b16 %v532
    %v1650 = vunpack.c.h.b16 %v532
    %v1651 = vunpack.c.l.b16 %v533
    %v1652 = vunpack.c.h.b16 %v533
    %v1653 = vunpack.c.l.b16 %v534
    %v1654 = vunpack.c.h.b16 %v534
    %v1655 = vunpack.c.l.b16 %v535
    %v1656 = vunpack.c.h.b16 %v535
    %v1657 = vunpack.c.l.b16 %v536
    %v1658 = vunpack.c.h.b16 %v536
    %v1659 = vunpack.c.l.b16 %v537
    %v1660 = vunpack.c.h.b16 %v537
    %v1661 = vunpack.c.l.b16 %v538
    %v1662 = vunpack.c.h.b16 %v538
    %v1663 = vunpack.c.l.b16 %v539
    %v1664 = vunpack.c.h.b16 %v539
    %v1665 = vunpack.c.l.b16 %v540
    %v1666 = vunpack.c.h.b16 %v540
    %v1667 = vunpack.c.l.b16 %v541
    %v1668 = vunpack.c.h.b16 %v541
    %v1669 = vunpack.c.l.b16 %v542
    %v1670 = vunpack.c.h.b16 %v542
    %v1671 = vunpack.c.l.b16 %v543
    %v1672 = vunpack.c.h.b16 %v543
    %v1673 = vunpack.c.l.b16 %v544
    %v1674 = vunpack.c.h.b16 %v544
    %v1675 = vunpack.c.l.b16 %v545
    %v1676 = vunpack.c.h.b16 %v545
    %v1677 = vunpack.c.l.b16 %v546
    %v1678 = vunpack.c.h.b16 %v546
    %v1679 = vunpack.c.l.b16 %v547
    %v1680 = vunpack.c.h.b16 %v547
    %v1681 = vunpack.c.l.b16 %v548
    %v1682 = vunpack.c.h.b16 %v548
    %v1683 = vunpack.c.l.b16 %v549
    %v1684 = vunpack.c.h.b16 %v549
    %v1685 = vunpack.c.l.b16 %v550
    %v1686 = vunpack.c.h.b16 %v550
    %v1687 = vunpack.c.l.b16 %v551
    %v1688 = vunpack.c.h.b16 %v551
    %v1689 = vunpack.c.l.b16 %v552
    %v1690 = vunpack.c.h.b16 %v552
    %v1691 = vunpack.c.l.b16 %v553
    %v1692 = vunpack.c.h.b16 %v553
    %v1693 = vunpack.c.l.b16 %v554
    %v1694 = vunpack.c.h.b16 %v554
    %v1695 = vunpack.c.l.b16 %v555
    %v1696 = vunpack.c.h.b16 %v555
    %v1697 = vunpack.c.l.b16 %v556
    %v1698 = vunpack.c.h.b16 %v556
    %v1699 = vunpack.c.l.b16 %v557
    %v1700 = vunpack.c.h.b16 %v557
    %v1701 = vunpack.c.l.b16 %v558
    %v1702 = vunpack.c.h.b16 %v558
    %v1703 = vunpack.c.l.b16 %v559
    %v1704 = vunpack.c.h.b16 %v559
    %v1705 = vunpack.c.l.b16 %v560
    %v1706 = vunpack.c.h.b16 %v560
    %v1707 = vunpack.c.l.b16 %v561
    %v1708 = vunpack.c.h.b16 %v561
    %v1709 = vunpack.c.l.b16 %v562
    %v1710 = vunpack.c.h.b16 %v562
    %v1711 = vunpack.c.l.b16 %v563
    %v1712 = vunpack.c.h.b16 %v563
    %v1713 = vunpack.c.l.b16 %v564
    %v1714 = vunpack.c.h.b16 %v564
    %v1715 = vunpack.c.l.b16 %v565
    %v1716 = vunpack.c.h.b16 %v565
    %v1717 = vunpack.c.l.b16 %v566
    %v1718 = vunpack.c.h.b16 %v566
    %v1719 = vunpack.c.l.b16 %v567
    %v1720 = vunpack.c.h.b16 %v567
    %v1721 = vunpack.c.l.b16 %v568
    %v1722 = vunpack.c.h.b16 %v568
    %v1723 = vunpack.c.l.b16 %v569
    %v1724 = vunpack.c.h.b16 %v569
    %v1725 = vunpack.c.l.b16 %v570
    %v1726 = vunpack.c.h.b16 %v570
    %v1727 = vunpack.c.l.b16 %v571
    %v1728 = vunpack.c.h.b16 %v571
    %v1729 = vunpack.c.l.b16 %v572
    %v1730 = vunpack.c.h.b16 %v572
    %v1731 = vunpack.c.l.b16 %v573
    %v1732 = vunpack.c.h.b16 %v573
    %v1733 = vunpack.c.l.b16 %v574
    %v1734 = vunpack.c.h.b16 %v574
    %v1735 = vunpack.c.l.b16 %v575
    %v1736 = vunpack.c.h.b16 %v575
    %v1737 = vunpack.c.l.b16 %v576
    %v1738 = vunpack.c.h.b16 %v576
    %v1739 = vunpack.c.l.b16 %v577
    %v1740 = vunpack.c.h.b16 %v577
    %v1741 = vunpack.c.l.b16 %v578
    %v1742 = vunpack.c.h.b16 %v578
    %v1743 = vunpack.c.l.b16 %v579
    %v1744 = vunpack.c.h.b16 %v579
    %v1745 = vunpack.c.l.b16 %v580
    %v1746 = vunpack.c.h.b16 %v580
    %v1747 = vunpack.c.l.b16 %v581
    %v1748 = vunpack.c.h.b16 %v581
    %v1749 = vunpack.c.l.b16 %v582
    %v1750 = vunpack.c.h.b16 %v582
    %v1751 = vunpack.c.l.b16 %v583
    %v1752 = vunpack.c.h.b16 %v583
    %v1753 = vunpack.c.l.b16 %v584
    %v1754 = vunpack.c.h.b16 %v584
    %v1755 = vunpack.c.l.b16 %v585
    %v1756 = vunpack.c.h.b16 %v585
    %v1757 = vunpack.c.l.b16 %v586
    %v1758 = vunpack.c.h.b16 %v586
    %v1759 = vunpack.c.l.b16 %v587
    %v1760 = vunpack.c.h.b16 %v587
    %v1761 = vunpack.c.l.b16 %v588
    %v1762 = vunpack.c.h.b16 %v588
    %v1763 = vunpack.c.l.b16 %v589
    %v1764 = vunpack.c.h.b16 %v589
    %v1765 = vunpack.c.l.b16 %v590
    %v1766 = vunpack.c.h.b16 %v590
    %v1767 = vunpack.c.l.b16 %v591
    %v1768 = vunpack.c.h.b16 %v591
    %v1769 = vunpack.c.l.b16 %v592
    %v1770 = vunpack.c.h.b16 %v592
    %v1771 = vunpack.c.l.b16 %v593
    %v1772 = vunpack.c.h.b16 %v593
    %v1773 = vunpack.c.l.b16 %v594
    %v1774 = vunpack.c.h.b16 %v594
    %v1775 = vunpack.c.l.b16 %v595
    %v1776 = vunpack.c.h.b16 %v595
    %v1777 = vunpack.c.l.b16 %v596
    %v1778 = vunpack.c.h.b16 %v596
    %v1779 = vunpack.c.l.b16 %v597
    %v1780 = vunpack.c.h.b16 %v597
    %v1781 = vunpack.c.l.b16 %v598
    %v1782 = vunpack.c.h.b16 %v598
    %v1783 = vunpack.c.l.b16 %v599
    %v1784 = vunpack.c.h.b16 %v599
    %v1785 = vunpack.c.l.b16 %v600
    %v1786 = vunpack.c.h.b16 %v600
    %v1787 = vunpack.c.l.b16 %v601
    %v1788 = vunpack.c.h.b16 %v601
    %v1789 = vunpack.c.l.b16 %v602
    %v1790 = vunpack.c.h.b16 %v602
    %v1791 = vunpack.c.l.b16 %v603
    %v1792 = vunpack.c.h.b16 %v603
    %v1793 = vunpack.c.l.b16 %v604
    %v1794 = vunpack.c.h.b16 %v604
    %v1795 = vunpack.c.l.b16 %v605
    %v1796 = vunpack.c.h.b16 %v605
    %v1797 = vunpack.c.l.b16 %v606
    %v1798 = vunpack.c.h.b16 %v606
    %v1799 = vunpack.c.l.b16 %v607
    %v1800 = vunpack.c.h.b16 %v607
    %v1801 = vunpack.c.l.b16 %v608
    %v1802 = vunpack.c.h.b16 %v608
    %v1803 = vunpack.c.l.b16 %v609
    %v1804 = vunpack.c.h.b16 %v609
    %v1805 = vunpack.c.l.b16 %v610
    %v1806 = vunpack.c.h.b16 %v610
    %v1807 = vunpack.c.l.b16 %v611
    %v1808 = vunpack.c.h.b16 %v611
    %v1809 = vunpack.c.l.b16 %v612
    %v1810 = vunpack.c.h.b16 %v612
    %v1811 = vunpack.c.l.b16 %v613
    %v1812 = vunpack.c.h.b16 %v613
    %v1813 = vunpack.c.l.b16 %v614
    %v1814 = vunpack.c.h.b16 %v614
    %v1815 = vunpack.c.l.b16 %v615
    %v1816 = vunpack.c.h.b16 %v615
    %v1817 = vunpack.c.l.b16 %v616
    %v1818 = vunpack.c.h.b16 %v616
    %v1819 = vunpack.c.l.b16 %v617
    %v1820 = vunpack.c.h.b16 %v617
    %v1821 = vunpack.c.l.b16 %v618
    %v1822 = vunpack.c.h.b16 %v618
    %v1823 = vunpack.c.l.b16 %v619
    %v1824 = vunpack.c.h.b16 %v619
    %v1825 = vunpack.c.l.b16 %v620
    %v1826 = vunpack.c.h.b16 %v620
    %v1827 = vunpack.c.l.b16 %v621
    %v1828 = vunpack.c.h.b16 %v621
    %v1829 = vunpack.c.l.b16 %v622
    %v1830 = vunpack.c.h.b16 %v622
    %v1831 = vunpack.c.l.b16 %v623
    %v1832 = vunpack.c.h.b16 %v623
    %v1833 = vunpack.c.l.b16 %v624
    %v1834 = vunpack.c.h.b16 %v624
    %v1835 = vunpack.c.l.b16 %v625
    %v1836 = vunpack.c.h.b16 %v625
    %v1837 = vunpack.c.l.b16 %v626
    %v1838 = vunpack.c.h.b16 %v626
    %v1839 = vunpack.c.l.b16 %v627
    %v1840 = vunpack.c.h.b16 %v627
    %v1841 = vunpack.c.l.b16 %v628
    %v1842 = vunpack.c.h.b16 %v628
    %v1843 = vunpack.c.l.b16 %v629
    %v1844 = vunpack.c.h.b16 %v629
    %v1845 = vunpack.c.l.b16 %v630
    %v1846 = vunpack.c.h.b16 %v630
    %v1847 = vunpack.c.l.b16 %v631
    %v1848 = vunpack.c.h.b16 %v631
    %v1849 = vunpack.c.l.b16 %v632
    %v1850 = vunpack.c.h.b16 %v632
    %v1851 = vunpack.c.l.b16 %v633
    %v1852 = vunpack.c.h.b16 %v633
    %v1853 = vunpack.c.l.b16 %v634
    %v1854 = vunpack.c.h.b16 %v634
    %v1855 = vunpack.c.l.b16 %v635
    %v1856 = vunpack.c.h.b16 %v635
    %v1857 = vunpack.c.l.b16 %v636
    %v1858 = vunpack.c.h.b16 %v636
    %v1859 = vunpack.c.l.b16 %v637
    %v1860 = vunpack.c.h.b16 %v637
    %v1861 = vunpack.c.l.b16 %v638
    %v1862 = vunpack.c.h.b16 %v638
    %v1863 = vunpack.c.l.b16 %v639
    %v1864 = vunpack.c.h.b16 %v639
    %v1865 = vunpack.c.l.b16 %v640
    %v1866 = vunpack.c.h.b16 %v640
    %v1867 = vunpack.c.l.b16 %v641
    %v1868 = vunpack.c.h.b16 %v641
    %v1869 = vunpack.c.l.b16 %v642
    %v1870 = vunpack.c.h.b16 %v642
    %v1871 = vunpack.c.l.b16 %v643
    %v1872 = vunpack.c.h.b16 %v643
    %v1873 = vunpack.c.l.b16 %v644
    %v1874 = vunpack.c.h.b16 %v644
    %v1875 = vunpack.c.l.b16 %v645
    %v1876 = vunpack.c.h.b16 %v645
    %v1877 = vunpack.c.l.b16 %v646
    %v1878 = vunpack.c.h.b16 %v646
    %v1879 = vunpack.c.l.b16 %v647
    %v1880 = vunpack.c.h.b16 %v647
    %v1881 = vunpack.c.l.b16 %v648
    %v1882 = vunpack.c.h.b16 %v648
    %v1883 = vunpack.c.l.b16 %v649
    %v1884 = vunpack.c.h.b16 %v649
    %v1885 = vunpack.c.l.b16 %v650
    %v1886 = vunpack.c.h.b16 %v650
    %v1887 = vunpack.c.l.b16 %v651
    %v1888 = vunpack.c.h.b16 %v651
    %v1889 = vunpack.c.l.b16 %v652
    %v1890 = vunpack.c.h.b16 %v652
    %v1891 = vunpack.c.l.b16 %v653
    %v1892 = vunpack.c.h.b16 %v653
    %v1893 = vunpack.c.l.b16 %v654
    %v1894 = vunpack.c.h.b16 %v654
    %v1895 = vunpack.c.l.b16 %v655
    %v1896 = vunpack.c.h.b16 %v655
    %v1897 = vunpack.c.l.b16 %v656
    %v1898 = vunpack.c.h.b16 %v656
    %v1899 = vunpack.c.l.b16 %v657
    %v1900 = vunpack.c.h.b16 %v657
    %v1901 = vunpack.c.l.b16 %v658
    %v1902 = vunpack.c.h.b16 %v658
    %v1903 = vunpack.c.l.b16 %v659
    %v1904 = vunpack.c.h.b16 %v659
    %v1905 = vunpack.c.l.b16 %v660
    %v1906 = vunpack.c.h.b16 %v660
    %v1907 = vunpack.c.l.b16 %v661
    %v1908 = vunpack.c.h.b16 %v661
    %v1909 = vunpack.c.l.b16 %v662
    %v1910 = vunpack.c.h.b16 %v662
    %v1911 = vunpack.c.l.b16 %v663
    %v1912 = vunpack.c.h.b16 %v663
    %v1913 = vunpack.c.l.b16 %v664
    %v1914 = vunpack.c.h.b16 %v664
    %v1915 = vunpack.c.l.b16 %v665
    %v1916 = vunpack.c.h.b16 %v665
    %v1917 = vunpack.c.l.b16 %v666
    %v1918 = vunpack.c.h.b16 %v666
    %v1919 = vunpack.c.l.b16 %v667
    %v1920 = vunpack.c.h.b16 %v667
    %v1921 = vunpack.c.l.b16 %v668
    %v1922 = vunpack.c.h.b16 %v668
    %v1923 = vunpack.c.l.b16 %v669
    %v1924 = vunpack.c.h.b16 %v669
    %v1925 = vunpack.c.l.b16 %v670
    %v1926 = vunpack.c.h.b16 %v670
    %v1927 = vunpack.c.l.b16 %v671
    %v1928 = vunpack.c.h.b16 %v671
    %v1929 = vunpack.c.l.b16 %v672
    %v1930 = vunpack.c.h.b16 %v672
    %v1931 = vunpack.c.l.b16 %v673
    %v1932 = vunpack.c.h.b16 %v673
    %v1933 = vunpack.c.l.b16 %v674
    %v1934 = vunpack.c.h.b16 %v674
    %v1935 = vunpack.c.l.b16 %v675
    %v1936 = vunpack.c.h.b16 %v675
    %v1937 = vunpack.c.l.b16 %v676
    %v1938 = vunpack.c.h.b16 %v676
    %v1939 = vunpack.c.l.b16 %v677
    %v1940 = vunpack.c.h.b16 %v677
    %v1941 = vunpack.c.l.b16 %v678
    %v1942 = vunpack.c.h.b16 %v678
    %v1943 = vunpack.c.l.b16 %v679
    %v1944 = vunpack.c.h.b16 %v679
    %v1945 = vunpack.c.l.b16 %v680
    %v1946 = vunpack.c.h.b16 %v680
    %v1947 = vunpack.c.l.b16 %v681
    %v1948 = vunpack.c.h.b16 %v681
    %v1949 = vunpack.c.l.b16 %v682
    %v1950 = vunpack.c.h.b16 %v682
    %v1951 = vunpack.c.l.b16 %v683
    %v1952 = vunpack.c.h.b16 %v683
    %v1953 = vunpack.c.l.b16 %v684
    %v1954 = vunpack.c.h.b16 %v684
    %v1955 = vunpack.c.l.b16 %v685
    %v1956 = vunpack.c.h.b16 %v685
    %v1957 = vunpack.c.l.b16 %v686
    %v1958 = vunpack.c.h.b16 %v686
    %v1959 = vunpack.c.l.b16 %v687
    %v1960 = vunpack.c.h.b16 %v687
    %v1961 = vunpack.c.l.b16 %v688
    %v1962 = vunpack.c.h.b16 %v688
    %v1963 = vunpack.c.l.b16 %v689
    %v1964 = vunpack.c.h.b16 %v689
    %v1965 = vunpack.c.l.b16 %v690
    %v1966 = vunpack.c.h.b16 %v690
    %v1967 = vunpack.c.l.b16 %v691
    %v1968 = vunpack.c.h.b16 %v691
    %v1969 = vunpack.c.l.b16 %v692
    %v1970 = vunpack.c.h.b16 %v692
    %v1971 = vunpack.c.l.b16 %v693
    %v1972 = vunpack.c.h.b16 %v693
    %v1973 = vunpack.c.l.b16 %v694
    %v1974 = vunpack.c.h.b16 %v694
    %v1975 = vunpack.c.l.b16 %v695
    %v1976 = vunpack.c.h.b16 %v695
    %v1977 = vunpack.c.l.b16 %v696
    %v1978 = vunpack.c.h.b16 %v696
    %v1979 = vunpack.c.l.b16 %v697
    %v1980 = vunpack.c.h.b16 %v697
    %v1981 = vunpack.c.l.b16 %v698
    %v1982 = vunpack.c.h.b16 %v698
    %v1983 = vunpack.c.l.b16 %v699
    %v1984 = vunpack.c.h.b16 %v699
    %v1985 = vunpack.c.l.b16 %v700
    %v1986 = vunpack.c.h.b16 %v700
    %v1987 = vunpack.c.l.b16 %v701
    %v1988 = vunpack.c.h.b16 %v701
    %v1989 = vunpack.c.l.b16 %v702
    %v1990 = vunpack.c.h.b16 %v702
    %v1991 = vunpack.c.l.b16 %v703
    %v1992 = vunpack.c.h.b16 %v703
    %v1993 = vunpack.c.l.b16 %v704
    %v1994 = vunpack.c.h.b16 %v704
    %v1995 = vunpack.c.l.b16 %v705
    %v1996 = vunpack.c.h.b16 %v705
    %v1997 = vunpack.c.l.b16 %v706
    %v1998 = vunpack.c.h.b16 %v706
    %v1999 = vunpack.c.l.b16 %v707
    %v2000 = vunpack.c.h.b16 %v707
    %v2001 = vunpack.c.l.b16 %v708
    %v2002 = vunpack.c.h.b16 %v708
    %v2003 = vunpack.c.l.b16 %v709
    %v2004 = vunpack.c.h.b16 %v709
    %v2005 = vunpack.c.l.b16 %v710
    %v2006 = vunpack.c.h.b16 %v710
    %v2007 = vunpack.c.l.b16 %v711
    %v2008 = vunpack.c.h.b16 %v711
    %v2009 = vunpack.c.l.b16 %v712
    %v2010 = vunpack.c.h.b16 %v712
    %v2011 = vunpack.c.l.b16 %v713
    %v2012 = vunpack.c.h.b16 %v713
    %v2013 = vunpack.c.l.b16 %v714
    %v2014 = vunpack.c.h.b16 %v714
    %v2015 = vunpack.c.l.b16 %v715
    %v2016 = vunpack.c.h.b16 %v715
    %v2017 = vunpack.c.l.b16 %v716
    %v2018 = vunpack.c.h.b16 %v716
    %v2019 = vunpack.c.l.b16 %v717
    %v2020 = vunpack.c.h.b16 %v717
    %v2021 = vunpack.c.l.b16 %v718
    %v2022 = vunpack.c.h.b16 %v718
    %v2023 = vunpack.c.l.b16 %v719
    %v2024 = vunpack.c.h.b16 %v719
    %v2025 = vunpack.c.l.b16 %v720
    %v2026 = vunpack.c.h.b16 %v720
    %v2027 = vunpack.c.l.b16 %v721
    %v2028 = vunpack.c.h.b16 %v721
    %v2029 = vunpack.c.l.b16 %v722
    %v2030 = vunpack.c.h.b16 %v722
    %v2031 = vunpack.c.l.b16 %v723
    %v2032 = vunpack.c.h.b16 %v723
    %v2033 = vunpack.c.l.b16 %v724
    %v2034 = vunpack.c.h.b16 %v724
    %v2035 = vunpack.c.l.b16 %v725
    %v2036 = vunpack.c.h.b16 %v725
    %v2037 = vunpack.c.l.b16 %v726
    %v2038 = vunpack.c.h.b16 %v726
    %v2039 = vunpack.c.l.b16 %v727
    %v2040 = vunpack.c.h.b16 %v727
    %v2041 = vunpack.c.l.b16 %v728
    %v2042 = vunpack.c.h.b16 %v728
    %v2043 = vunpack.c.l.b16 %v729
    %v2044 = vunpack.c.h.b16 %v729
    %v2045 = vunpack.c.l.b16 %v730
    %v2046 = vunpack.c.h.b16 %v730
    %v2047 = vunpack.c.l.b16 %v731
    %v2048 = vunpack.c.h.b16 %v731
    %v2049 = vunpack.c.l.b16 %v732
    %v2050 = vunpack.c.h.b16 %v732
    %v2051 = vunpack.c.l.b16 %v733
    %v2052 = vunpack.c.h.b16 %v733
    %v2053 = vunpack.c.l.b16 %v734
    %v2054 = vunpack.c.h.b16 %v734
    %v2055 = vunpack.c.l.b16 %v735
    %v2056 = vunpack.c.h.b16 %v735
    %v2057 = vunpack.c.l.b16 %v736
    %v2058 = vunpack.c.h.b16 %v736
    %v2059 = vunpack.c.l.b16 %v737
    %v2060 = vunpack.c.h.b16 %v737
    %v2061 = vunpack.c.l.b16 %v738
    %v2062 = vunpack.c.h.b16 %v738
    %v2063 = vunpack.c.l.b16 %v739
    %v2064 = vunpack.c.h.b16 %v739
    %v2065 = vunpack.c.l.b16 %v740
    %v2066 = vunpack.c.h.b16 %v740
    %v2067 = vunpack.c.l.b16 %v741
    %v2068 = vunpack.c.h.b16 %v741
    %v2069 = vunpack.c.l.b16 %v742
    %v2070 = vunpack.c.h.b16 %v742
    %v2071 = vunpack.c.l.b16 %v743
    %v2072 = vunpack.c.h.b16 %v743
    %v2073 = vunpack.c.l.b16 %v744
    %v2074 = vunpack.c.h.b16 %v744
    %v2075 = vunpack.c.l.b16 %v745
    %v2076 = vunpack.c.h.b16 %v745
    %v2077 = vunpack.c.l.b16 %v746
    %v2078 = vunpack.c.h.b16 %v746
    %v2079 = vunpack.c.l.b16 %v747
    %v2080 = vunpack.c.h.b16 %v747
    %v2081 = vunpack.c.l.b16 %v748
    %v2082 = vunpack.c.h.b16 %v748
    %v2083 = vunpack.c.l.b16 %v749
    %v2084 = vunpack.c.h.b16 %v749
    %v2085 = vunpack.c.l.b16 %v750
    %v2086 = vunpack.c.h.b16 %v750
    %v2087 = vunpack.c.l.b16 %v751
    %v2088 = vunpack.c.h.b16 %v751
    %v2089 = vunpack.c.l.b16 %v752
    %v2090 = vunpack.c.h.b16 %v752
    %v2091 = vunpack.c.l.b16 %v753
    %v2092 = vunpack.c.h.b16 %v753
    %v2093 = vunpack.c.l.b16 %v754
    %v2094 = vunpack.c.h.b16 %v754
    %v2095 = vunpack.c.l.b16 %v755
    %v2096 = vunpack.c.h.b16 %v755
    %v2097 = vunpack.c.l.b16 %v756
    %v2098 = vunpack.c.h.b16 %v756
    %v2099 = vunpack.c.l.b16 %v757
    %v2100 = vunpack.c.h.b16 %v757
    %v2101 = vunpack.c.l.b16 %v758
    %v2102 = vunpack.c.h.b16 %v758
    %v2103 = vunpack.c.l.b16 %v759
    %v2104 = vunpack.c.h.b16 %v759
    %v2105 = vunpack.c.l.b16 %v760
    %v2106 = vunpack.c.h.b16 %v760
    %v2107 = vunpack.c.l.b16 %v761
    %v2108 = vunpack.c.h.b16 %v761
    %v2109 = vunpack.c.l.b16 %v762
    %v2110 = vunpack.c.h.b16 %v762
    %v2111 = vunpack.c.l.b16 %v763
    %v2112 = vunpack.c.h.b16 %v763
    %v2113 = vunpack.c.l.b16 %v764
    %v2114 = vunpack.c.h.b16 %v764
    %v2115 = vunpack.c.l.b16 %v765
    %v2116 = vunpack.c.h.b16 %v765
    %v2117 = vunpack.c.l.b16 %v766
    %v2118 = vunpack.c.h.b16 %v766
    %v2119 = vunpack.c.l.b16 %v767
    %v2120 = vunpack.c.h.b16 %v767
    %v2121 = vunpack.c.l.b16 %v768
    %v2122 = vunpack.c.h.b16 %v768
    %v2123 = vunpack.c.l.b16 %v769
    %v2124 = vunpack.c.h.b16 %v769
    %v2125 = vunpack.c.l.b16 %v770
    %v2126 = vunpack.c.h.b16 %v770
    %v2127 = vunpack.c.l.b16 %v771
    %v2128 = vunpack.c.h.b16 %v771
    %v2129 = vunpack.c.l.b16 %v772
    %v2130 = vunpack.c.h.b16 %v772
    %v2131 = vunpack.c.l.b16 %v773
    %v2132 = vunpack.c.h.b16 %v773
    %v2133 = vunpack.c.l.b16 %v774
    %v2134 = vunpack.c.h.b16 %v774
    %v2135 = vunpack.c.l.b16 %v775
    %v2136 = vunpack.c.h.b16 %v775
    %v2137 = vunpack.c.l.b16 %v776
    %v2138 = vunpack.c.h.b16 %v776
    %v2139 = vunpack.c.l.b16 %v777
    %v2140 = vunpack.c.h.b16 %v777
    %v2141 = vunpack.c.l.b16 %v778
    %v2142 = vunpack.c.h.b16 %v778
    %v2143 = vunpack.c.l.b16 %v779
    %v2144 = vunpack.c.h.b16 %v779
    %v2145 = vunpack.c.l.b16 %v780
    %v2146 = vunpack.c.h.b16 %v780
    %v2147 = vunpack.c.l.b16 %v781
    %v2148 = vunpack.c.h.b16 %v781
    %v2149 = vunpack.c.l.b16 %v782
    %v2150 = vunpack.c.h.b16 %v782
    %v2151 = vunpack.c.l.b16 %v783
    %v2152 = vunpack.c.h.b16 %v783
    %v2153 = vunpack.c.l.b16 %v784
    %v2154 = vunpack.c.h.b16 %v784
    %v2155 = vunpack.c.l.b16 %v785
    %v2156 = vunpack.c.h.b16 %v785
    %v2157 = vunpack.c.l.b16 %v786
    %v2158 = vunpack.c.h.b16 %v786
    %v2159 = vunpack.c.l.b16 %v787
    %v2160 = vunpack.c.h.b16 %v787
    %v2161 = vunpack.c.l.b16 %v788
    %v2162 = vunpack.c.h.b16 %v788
    %v2163 = vunpack.c.l.b16 %v789
    %v2164 = vunpack.c.h.b16 %v789
    %v2165 = vunpack.c.l.b16 %v790
    %v2166 = vunpack.c.h.b16 %v790
    %v2167 = vunpack.c.l.b16 %v791
    %v2168 = vunpack.c.h.b16 %v791
    %v2169 = vunpack.c.l.b16 %v792
    %v2170 = vunpack.c.h.b16 %v792
    %v2171 = vunpack.c.l.b16 %v793
    %v2172 = vunpack.c.h.b16 %v793
    %v2173 = vunpack.c.l.b16 %v794
    %v2174 = vunpack.c.h.b16 %v794
    %v2175 = vunpack.c.l.b16 %v795
    %v2176 = vunpack.c.h.b16 %v795
    %v2177 = vunpack.c.l.b16 %v796
    %v2178 = vunpack.c.h.b16 %v796
    %v2179 = vunpack.c.l.b16 %v797
    %v2180 = vunpack.c.h.b16 %v797
    %v2181 = vunpack.c.l.b16 %v798
    %v2182 = vunpack.c.h.b16 %v798
    %v2183 = vunpack.c.l.b16 %v799
    %v2184 = vunpack.c.h.b16 %v799
    %v2185 = vunpack.c.l.b16 %v800
    %v2186 = vunpack.c.h.b16 %v800
    %v2187 = vunpack.c.l.b16 %v801
    %v2188 = vunpack.c.h.b16 %v801
    %v2189 = vunpack.c.l.b16 %v802
    %v2190 = vunpack.c.h.b16 %v802
    %v2191 = vunpack.c.l.b16 %v803
    %v2192 = vunpack.c.h.b16 %v803
    %v2193 = vunpack.c.l.b16 %v804
    %v2194 = vunpack.c.h.b16 %v804
    %v2195 = vunpack.c.l.b16 %v805
    %v2196 = vunpack.c.h.b16 %v805
    %v2197 = vunpack.c.l.b16 %v806
    %v2198 = vunpack.c.h.b16 %v806
    %v2199 = vunpack.c.l.b16 %v807
    %v2200 = vunpack.c.h.b16 %v807
    %v2201 = vunpack.c.l.b16 %v808
    %v2202 = vunpack.c.h.b16 %v808
    %v2203 = vunpack.c.l.b16 %v809
    %v2204 = vunpack.c.h.b16 %v809
    %v2205 = vunpack.c.l.b16 %v810
    %v2206 = vunpack.c.h.b16 %v810
    %v2207 = vunpack.c.l.b16 %v811
    %v2208 = vunpack.c.h.b16 %v811
    %v2209 = vunpack.c.l.b16 %v812
    %v2210 = vunpack.c.h.b16 %v812
    %v2211 = vunpack.c.l.b16 %v813
    %v2212 = vunpack.c.h.b16 %v813
    %v2213 = vunpack.c.l.b16 %v814
    %v2214 = vunpack.c.h.b16 %v814
    %v2215 = vunpack.c.l.b16 %v815
    %v2216 = vunpack.c.h.b16 %v815
    %v2217 = vunpack.c.l.b16 %v816
    %v2218 = vunpack.c.h.b16 %v816
    %v2219 = vunpack.c.l.b16 %v817
    %v2220 = vunpack.c.h.b16 %v817
    %v2221 = vunpack.c.l.b16 %v818
    %v2222 = vunpack.c.h.b16 %v818
    %v2223 = vunpack.c.l.b16 %v819
    %v2224 = vunpack.c.h.b16 %v819
    %v2225 = vunpack.c.l.b16 %v820
    %v2226 = vunpack.c.h.b16 %v820
    %v2227 = vunpack.c.l.b16 %v821
    %v2228 = vunpack.c.h.b16 %v821
    %v2229 = vunpack.c.l.b16 %v822
    %v2230 = vunpack.c.h.b16 %v822
    %v2231 = vunpack.c.l.b16 %v823
    %v2232 = vunpack.c.h.b16 %v823
    %v2233 = vunpack.c.l.b16 %v824
    %v2234 = vunpack.c.h.b16 %v824
    %v2235 = vunpack.c.l.b16 %v825
    %v2236 = vunpack.c.h.b16 %v825
    %v2237 = vunpack.c.l.b16 %v826
    %v2238 = vunpack.c.h.b16 %v826
    %v2239 = vunpack.c.l.b16 %v827
    %v2240 = vunpack.c.h.b16 %v827
    %v2241 = vunpack.c.l.b16 %v828
    %v2242 = vunpack.c.h.b16 %v828
    %v2243 = vunpack.c.l.b16 %v829
    %v2244 = vunpack.c.h.b16 %v829
    %v2245 = vunpack.c.l.b16 %v830
    %v2246 = vunpack.c.h.b16 %v830
    %v2247 = vunpack.c.l.b16 %v831
    %v2248 = vunpack.c.h.b16 %v831
    %v2249 = vunpack.c.l.b16 %v832
    %v2250 = vunpack.c.h.b16 %v832
    %v2251 = vunpack.c.l.b16 %v833
    %v2252 = vunpack.c.h.b16 %v833
    %v2253 = vunpack.c.l.b16 %v834
    %v2254 = vunpack.c.h.b16 %v834
    %v2255 = vunpack.c.l.b16 %v835
    %v2256 = vunpack.c.h.b16 %v835
    %v2257 = vunpack.c.l.b16 %v836
    %v2258 = vunpack.c.h.b16 %v836
    %v2259 = vunpack.c.l.b16 %v837
    %v2260 = vunpack.c.h.b16 %v837
    %v2261 = vunpack.c.l.b16 %v838
    %v2262 = vunpack.c.h.b16 %v838
    %v2263 = vunpack.c.l.b16 %v839
    %v2264 = vunpack.c.h.b16 %v839
    %v2265 = vunpack.c.l.b16 %v840
    %v2266 = vunpack.c.h.b16 %v840
    %v2267 = vunpack.c.l.b16 %v841
    %v2268 = vunpack.c.h.b16 %v841
    %v2269 = vunpack.c.l.b16 %v842
    %v2270 = vunpack.c.h.b16 %v842
    %v2271 = vunpack.c.l.b16 %v843
    %v2272 = vunpack.c.h.b16 %v843
    %v2273 = vunpack.c.l.b16 %v844
    %v2274 = vunpack.c.h.b16 %v844
    %v2275 = vunpack.c.l.b16 %v845
    %v2276 = vunpack.c.h.b16 %v845
    %v2277 = vunpack.c.l.b16 %v846
    %v2278 = vunpack.c.h.b16 %v846
    %v2279 = vunpack.c.l.b16 %v847
    %v2280 = vunpack.c.h.b16 %v847
    %v2281 = vunpack.c.l.b16 %v848
    %v2282 = vunpack.c.h.b16 %v848
    %v2283 = vunpack.c.l.b16 %v849
    %v2284 = vunpack.c.h.b16 %v849
    %v2285 = vunpack.c.l.b16 %v850
    %v2286 = vunpack.c.h.b16 %v850
    %v2287 = vunpack.c.l.b16 %v851
    %v2288 = vunpack.c.h.b16 %v851
    %v2289 = vunpack.c.l.b16 %v852
    %v2290 = vunpack.c.h.b16 %v852
    %v2291 = vunpack.c.l.b16 %v853
    %v2292 = vunpack.c.h.b16 %v853
    %v2293 = vunpack.c.l.b16 %v854
    %v2294 = vunpack.c.h.b16 %v854
    %v2295 = vunpack.c.l.b16 %v855
    %v2296 = vunpack.c.h.b16 %v855
    %v2297 = vunpack.c.l.b16 %v856
    %v2298 = vunpack.c.h.b16 %v856
    %v2299 = vunpack.c.l.b16 %v857
    %v2300 = vunpack.c.h.b16 %v857
    %v2301 = vunpack.c.l.b16 %v858
    %v2302 = vunpack.c.h.b16 %v858
    %v2303 = vunpack.c.l.b16 %v859
    %v2304 = vunpack.c.h.b16 %v859
    %v2305 = vunpack.c.l.b16 %v860
    %v2306 = vunpack.c.h.b16 %v860
    %v2307 = vunpack.c.l.b16 %v861
    %v2308 = vunpack.c.h.b16 %v861
    %v2309 = vunpack.c.l.b16 %v862
    %v2310 = vunpack.c.h.b16 %v862
    %v2311 = vunpack.c.l.b16 %v863
    %v2312 = vunpack.c.h.b16 %v863
    %v2313 = vunpack.c.l.b16 %v864
    %v2314 = vunpack.c.h.b16 %v864
    %v2315 = vunpack.c.l.b16 %v865
    %v2316 = vunpack.c.h.b16 %v865
    %v2317 = vunpack.c.l.b16 %v866
    %v2318 = vunpack.c.h.b16 %v866
    %v2319 = vunpack.c.l.b16 %v867
    %v2320 = vunpack.c.h.b16 %v867
    %v2321 = vunpack.c.l.b16 %v868
    %v2322 = vunpack.c.h.b16 %v868
    %v2323 = vunpack.c.l.b16 %v869
    %v2324 = vunpack.c.h.b16 %v869
    %v2325 = vunpack.c.l.b16 %v870
    %v2326 = vunpack.c.h.b16 %v870
    %v2327 = vunpack.c.l.b16 %v871
    %v2328 = vunpack.c.h.b16 %v871
    %v2329 = vunpack.c.l.b16 %v872
    %v2330 = vunpack.c.h.b16 %v872
    %v2331 = vunpack.c.l.b16 %v873
    %v2332 = vunpack.c.h.b16 %v873
    %v2333 = vunpack.c.l.b16 %v874
    %v2334 = vunpack.c.h.b16 %v874
    %v2335 = vunpack.c.l.b16 %v875
    %v2336 = vunpack.c.h.b16 %v875
    %v2337 = vunpack.c.l.b16 %v876
    %v2338 = vunpack.c.h.b16 %v876
    %v2339 = vunpack.c.l.b16 %v877
    %v2340 = vunpack.c.h.b16 %v877
    %v2341 = vunpack.c.l.b16 %v878
    %v2342 = vunpack.c.h.b16 %v878
    %v2343 = vunpack.c.l.b16 %v879
    %v2344 = vunpack.c.h.b16 %v879
    %v2345 = vunpack.c.l.b16 %v880
    %v2346 = vunpack.c.h.b16 %v880
    %v2347 = vunpack.c.l.b16 %v881
    %v2348 = vunpack.c.h.b16 %v881
    %v2349 = vunpack.c.l.b16 %v882
    %v2350 = vunpack.c.h.b16 %v882
    %v2351 = vunpack.c.l.b16 %v883
    %v2352 = vunpack.c.h.b16 %v883
    %v2353 = vunpack.c.l.b16 %v884
    %v2354 = vunpack.c.h.b16 %v884
    %v2355 = vunpack.c.l.b16 %v885
    %v2356 = vunpack.c.h.b16 %v885
    %v2357 = vunpack.c.l.b16 %v886
    %v2358 = vunpack.c.h.b16 %v886
    %v2359 = vunpack.c.l.b16 %v887
    %v2360 = vunpack.c.h.b16 %v887
    %v2361 = vunpack.c.l.b16 %v888
    %v2362 = vunpack.c.h.b16 %v888
    %v2363 = vunpack.c.l.b16 %v889
    %v2364 = vunpack.c.h.b16 %v889
    %v2365 = vunpack.c.l.b16 %v890
    %v2366 = vunpack.c.h.b16 %v890
    %v2367 = vunpack.c.l.b16 %v891
    %v2368 = vunpack.c.h.b16 %v891
    %v2369 = vunpack.c.l.b16 %v892
    %v2370 = vunpack.c.h.b16 %v892
    %v2371 = vunpack.c.l.b16 %v893
    %v2372 = vunpack.c.h.b16 %v893
    %v2373 = vunpack.c.l.b16 %v894
    %v2374 = vunpack.c.h.b16 %v894
    %v2375 = vunpack.c.l.b16 %v895
    %v2376 = vunpack.c.h.b16 %v895
    %v2377 = vunpack.c.l.b16 %v896
    %v2378 = vunpack.c.h.b16 %v896
    %v2379 = vunpack.c.l.b16 %v897
    %v2380 = vunpack.c.h.b16 %v897
    %v2381 = vunpack.c.l.b16 %v898
    %v2382 = vunpack.c.h.b16 %v898
    %v2383 = vunpack.c.l.b16 %v899
    %v2384 = vunpack.c.h.b16 %v899
    %v2385 = vunpack.c.l.b16 %v900
    %v2386 = vunpack.c.h.b16 %v900
    %v2387 = vunpack.c.l.b16 %v901
    %v2388 = vunpack.c.h.b16 %v901
    %v2389 = vunpack.c.l.b16 %v902
    %v2390 = vunpack.c.h.b16 %v902
    %v2391 = vunpack.c.l.b16 %v903
    %v2392 = vunpack.c.h.b16 %v903
    %v2393 = vunpack.c.l.b16 %v904
    %v2394 = vunpack.c.h.b16 %v904
    %v2395 = vunpack.c.l.b16 %v905
    %v2396 = vunpack.c.h.b16 %v905
    %v2397 = vunpack.c.l.b16 %v906
    %v2398 = vunpack.c.h.b16 %v906
    %v2399 = vunpack.c.l.b16 %v907
    %v2400 = vunpack.c.h.b16 %v907
    %v2401 = vunpack.c.l.b16 %v908
    %v2402 = vunpack.c.h.b16 %v908
    %v2403 = vunpack.c.l.b16 %v909
    %v2404 = vunpack.c.h.b16 %v909
    %v2405 = vunpack.c.l.b16 %v910
    %v2406 = vunpack.c.h.b16 %v910
    %v2407 = vunpack.c.l.b16 %v911
    %v2408 = vunpack.c.h.b16 %v911
    %v2409 = vunpack.c.l.b16 %v912
    %v2410 = vunpack.c.h.b16 %v912
    %v2411 = vunpack.c.l.b16 %v913
    %v2412 = vunpack.c.h.b16 %v913
    %v2413 = vunpack.c.l.b16 %v914
    %v2414 = vunpack.c.h.b16 %v914
    %v2415 = vunpack.c.l.b16 %v915
    %v2416 = vunpack.c.h.b16 %v915
    %v2417 = vunpack.c.l.b16 %v916
    %v2418 = vunpack.c.h.b16 %v916
    %v2419 = vunpack.c.l.b16 %v917
    %v2420 = vunpack.c.h.b16 %v917
    %v2421 = vunpack.c.l.b16 %v918
    %v2422 = vunpack.c.h.b16 %v918
    %v2423 = vunpack.c.l.b16 %v919
    %v2424 = vunpack.c.h.b16 %v919
    %v2425 = vunpack.c.l.b16 %v920
    %v2426 = vunpack.c.h.b16 %v920
    %v2427 = vunpack.c.l.b16 %v921
    %v2428 = vunpack.c.h.b16 %v921
    %v2429 = vunpack.c.l.b16 %v922
    %v2430 = vunpack.c.h.b16 %v922
    %v2431 = vunpack.c.l.b16 %v923
    %v2432 = vunpack.c.h.b16 %v923
    %v2433 = vunpack.c.l.b16 %v924
    %v2434 = vunpack.c.h.b16 %v924
    %v2435 = vunpack.c.l.b16 %v925
    %v2436 = vunpack.c.h.b16 %v925
    %v2437 = vunpack.c.l.b16 %v926
    %v2438 = vunpack.c.h.b16 %v926
    %v2439 = vunpack.c.l.b16 %v927
    %v2440 = vunpack.c.h.b16 %v927
    %v2441 = vunpack.c.l.b16 %v928
    %v2442 = vunpack.c.h.b16 %v928
    %v2443 = vunpack.c.l.b16 %v929
    %v2444 = vunpack.c.h.b16 %v929
    %v2445 = vunpack.c.l.b16 %v930
    %v2446 = vunpack.c.h.b16 %v930
    %v2447 = vunpack.c.l.b16 %v931
    %v2448 = vunpack.c.h.b16 %v931
    %v2449 = vunpack.c.l.b16 %v932
    %v2450 = vunpack.c.h.b16 %v932
    %v2451 = vunpack.c.l.b16 %v933
    %v2452 = vunpack.c.h.b16 %v933
    %v2453 = vunpack.c.l.b16 %v934
    %v2454 = vunpack.c.h.b16 %v934
    %v2455 = vunpack.c.l.b16 %v935
    %v2456 = vunpack.c.h.b16 %v935
    %v2457 = vunpack.c.l.b16 %v936
    %v2458 = vunpack.c.h.b16 %v936
    %v2459 = vunpack.c.l.b16 %v937
    %v2460 = vunpack.c.h.b16 %v937
    %v2461 = vunpack.c.l.b16 %v938
    %v2462 = vunpack.c.h.b16 %v938
    %v2463 = vunpack.c.l.b16 %v939
    %v2464 = vunpack.c.h.b16 %v939
    %v2465 = vunpack.c.l.b16 %v940
    %v2466 = vunpack.c.h.b16 %v940
    %v2467 = vunpack.c.l.b16 %v941
    %v2468 = vunpack.c.h.b16 %v941
    %v2469 = vunpack.c.l.b16 %v942
    %v2470 = vunpack.c.h.b16 %v942
    %v2471 = vunpack.c.l.b16 %v943
    %v2472 = vunpack.c.h.b16 %v943
    %v2473 = vunpack.c.l.b16 %v944
    %v2474 = vunpack.c.h.b16 %v944
    %v2475 = vunpack.c.l.b16 %v945
    %v2476 = vunpack.c.h.b16 %v945
    %v2477 = vunpack.c.l.b16 %v946
    %v2478 = vunpack.c.h.b16 %v946
    %v2479 = vunpack.c.l.b16 %v947
    %v2480 = vunpack.c.h.b16 %v947
    %v2481 = vunpack.c.l.b16 %v948
    %v2482 = vunpack.c.h.b16 %v948
    %v2483 = vunpack.c.l.b16 %v949
    %v2484 = vunpack.c.h.b16 %v949
    %v2485 = vunpack.c.l.b16 %v950
    %v2486 = vunpack.c.h.b16 %v950
    %v2487 = vunpack.c.l.b16 %v951
    %v2488 = vunpack.c.h.b16 %v951
    %v2489 = vunpack.c.l.b16 %v952
    %v2490 = vunpack.c.h.b16 %v952
    %v2491 = vunpack.c.l.b16 %v953
    %v2492 = vunpack.c.h.b16 %v953
    %v2493 = vunpack.c.l.b16 %v954
    %v2494 = vunpack.c.h.b16 %v954
    %v2495 = vunpack.c.l.b16 %v955
    %v2496 = vunpack.c.h.b16 %v955
    %v2497 = vunpack.c.l.b16 %v956
    %v2498 = vunpack.c.h.b16 %v956
    %v2499 = vunpack.c.l.b16 %v957
    %v2500 = vunpack.c.h.b16 %v957
    %v2501 = vunpack.c.l.b16 %v958
    %v2502 = vunpack.c.h.b16 %v958
    %v2503 = vunpack.c.l.b16 %v959
    %v2504 = vunpack.c.h.b16 %v959
    %v2505 = vunpack.c.l.b16 %v960
    %v2506 = vunpack.c.h.b16 %v960
    %v2507 = vunpack.c.l.b16 %v961
    %v2508 = vunpack.c.h.b16 %v961
    %v2509 = vunpack.c.l.b16 %v962
    %v2510 = vunpack.c.h.b16 %v962
    %v2511 = vunpack.c.l.b16 %v963
    %v2512 = vunpack.c.h.b16 %v963
    %v2513 = vunpack.c.l.b16 %v964
    %v2514 = vunpack.c.h.b16 %v964
    %v2515 = vunpack.c.l.b16 %v965
    %v2516 = vunpack.c.h.b16 %v965
    %v2517 = vunpack.c.l.b16 %v966
    %v2518 = vunpack.c.h.b16 %v966
    %v2519 = vunpack.c.l.b16 %v967
    %v2520 = vunpack.c.h.b16 %v967
    %v2521 = vunpack.c.l.b16 %v968
    %v2522 = vunpack.c.h.b16 %v968
    %v2523 = vunpack.c.l.b16 %v969
    %v2524 = vunpack.c.h.b16 %v969
    %v2525 = vunpack.c.l.b16 %v970
    %v2526 = vunpack.c.h.b16 %v970
    %v2527 = vunpack.c.l.b16 %v971
    %v2528 = vunpack.c.h.b16 %v971
    %v2529 = vunpack.c.l.b16 %v972
    %v2530 = vunpack.c.h.b16 %v972
    %v2531 = vunpack.c.l.b16 %v973
    %v2532 = vunpack.c.h.b16 %v973
    %v2533 = vunpack.c.l.b16 %v974
    %v2534 = vunpack.c.h.b16 %v974
    %v2535 = vunpack.c.l.b16 %v975
    %v2536 = vunpack.c.h.b16 %v975
    %v2537 = vunpack.c.l.b16 %v976
    %v2538 = vunpack.c.h.b16 %v976
    %v2539 = vunpack.c.l.b16 %v977
    %v2540 = vunpack.c.h.b16 %v977
    %v2541 = vunpack.c.l.b16 %v978
    %v2542 = vunpack.c.h.b16 %v978
    %v2543 = vunpack.c.l.b16 %v979
    %v2544 = vunpack.c.h.b16 %v979
    %v2545 = vunpack.c.l.b16 %v980
    %v2546 = vunpack.c.h.b16 %v980
    %v2547 = vunpack.c.l.b16 %v981
    %v2548 = vunpack.c.h.b16 %v981
    %v2549 = vunpack.c.l.b16 %v982
    %v2550 = vunpack.c.h.b16 %v982
    %v2551 = vunpack.c.l.b16 %v983
    %v2552 = vunpack.c.h.b16 %v983
    %v2553 = vunpack.c.l.b16 %v984
    %v2554 = vunpack.c.h.b16 %v984
    %v2555 = vunpack.c.l.b16 %v985
    %v2556 = vunpack.c.h.b16 %v985
    %v2557 = vunpack.c.l.b16 %v986
    %v2558 = vunpack.c.h.b16 %v986
    %v2559 = vunpack.c.l.b16 %v987
    %v2560 = vunpack.c.h.b16 %v987
    %v2561 = vunpack.c.l.b16 %v988
    %v2562 = vunpack.c.h.b16 %v988
    %v2563 = vunpack.c.l.b16 %v989
    %v2564 = vunpack.c.h.b16 %v989
    %v2565 = vunpack.c.l.b16 %v990
    %v2566 = vunpack.c.h.b16 %v990
    %v2567 = vunpack.c.l.b16 %v991
    %v2568 = vunpack.c.h.b16 %v991
    %v2569 = vpack.c.b16 %v1553, %v1545
    %v2570 = vpack.c.b16 %v1554, %v1546
    %v2571 = vpack.c.b16 %v1555, %v1547
    %v2572 = vpack.c.b16 %v1556, %v1548
    %v2573 = vpack.c.b16 %v1557, %v1549
    %v2574 = vpack.c.b16 %v1558, %v1550
    %v2575 = vpack.c.b16 %v1559, %v1551
    %v2576 = vpack.c.b16 %v1560, %v1552
    %v2577 = vpack.c.b16 %v1569, %v1561
    %v2578 = vpack.c.b16 %v1570, %v1562
    %v2579 = vpack.c.b16 %v1571, %v1563
    %v2580 = vpack.c.b16 %v1572, %v1564
    %v2581 = vpack.c.b16 %v1573, %v1565
    %v2582 = vpack.c.b16 %v1574, %v1566
    %v2583 = vpack.c.b16 %v1575, %v1567
    %v2584 = vpack.c.b16 %v1576, %v1568
    %v2585 = vpack.c.b16 %v1585, %v1577
    %v2586 = vpack.c.b16 %v1586, %v1578
    %v2587 = vpack.c.b16 %v1587, %v1579
    %v2588 = vpack.c.b16 %v1588, %v1580
    %v2589 = vpack.c.b16 %v1589, %v1581
    %v2590 = vpack.c.b16 %v1590, %v1582
    %v2591 = vpack.c.b16 %v1591, %v1583
    %v2592 = vpack.c.b16 %v1592, %v1584
    %v2593 = vpack.c.b16 %v1601, %v1593
    %v2594 = vpack.c.b16 %v1602, %v1594
    %v2595 = vpack.c.b16 %v1603, %v1595
    %v2596 = vpack.c.b16 %v1604, %v1596
    %v2597 = vpack.c.b16 %v1605, %v1597
    %v2598 = vpack.c.b16 %v1606, %v1598
    %v2599 = vpack.c.b16 %v1607, %v1599
    %v2600 = vpack.c.b16 %v1608, %v1600
    %v2601 = vpack.c.b16 %v1617, %v1609
    %v2602 = vpack.c.b16 %v1618, %v1610
    %v2603 = vpack.c.b16 %v1619, %v1611
    %v2604 = vpack.c.b16 %v1620, %v1612
    %v2605 = vpack.c.b16 %v1621, %v1613
    %v2606 = vpack.c.b16 %v1622, %v1614
    %v2607 = vpack.c.b16 %v1623, %v1615
    %v2608 = vpack.c.b16 %v1624, %v1616
    %v2609 = vpack.c.b16 %v1633, %v1625
    %v2610 = vpack.c.b16 %v1634, %v1626
    %v2611 = vpack.c.b16 %v1635, %v1627
    %v2612 = vpack.c.b16 %v1636, %v1628
    %v2613 = vpack.c.b16 %v1637, %v1629
    %v2614 = vpack.c.b16 %v1638, %v1630
    %v2615 = vpack.c.b16 %v1639, %v1631
    %v2616 = vpack.c.b16 %v1640, %v1632
    %v2617 = vpack.c.b16 %v1649, %v1641
    %v2618 = vpack.c.b16 %v1650, %v1642
    %v2619 = vpack.c.b16 %v1651, %v1643
    %v2620 = vpack.c.b16 %v1652, %v1644
    %v2621 = vpack.c.b16 %v1653, %v1645
    %v2622 = vpack.c.b16 %v1654, %v1646
    %v2623 = vpack.c.b16 %v1655, %v1647
    %v2624 = vpack.c.b16 %v1656, %v1648
    %v2625 = vpack.c.b16 %v1665, %v1657
    %v2626 = vpack.c.b16 %v1666, %v1658
    %v2627 = vpack.c.b16 %v1667, %v1659
    %v2628 = vpack.c.b16 %v1668, %v1660
    %v2629 = vpack.c.b16 %v1669, %v1661
    %v2630 = vpack.c.b16 %v1670, %v1662
    %v2631 = vpack.c.b16 %v1671, %v1663
    %v2632 = vpack.c.b16 %v1672, %v1664
    %v2633 = vpack.c.b16 %v1681, %v1673
    %v2634 = vpack.c.b16 %v1682, %v1674
    %v2635 = vpack.c.b16 %v1683, %v1675
    %v2636 = vpack.c.b16 %v1684, %v1676
    %v2637 = vpack.c.b16 %v1685, %v1677
    %v2638 = vpack.c.b16 %v1686, %v1678
    %v2639 = vpack.c.b16 %v1687, %v1679
    %v2640 = vpack.c.b16 %v1688, %v1680
    %v2641 = vpack.c.b16 %v1697, %v1689
    %v2642 = vpack.c.b16 %v1698, %v1690
    %v2643 = vpack.c.b16 %v1699, %v1691
    %v2644 = vpack.c.b16 %v1700, %v1692
    %v2645 = vpack.c.b16 %v1701, %v1693
    %v2646 = vpack.c.b16 %v1702, %v1694
    %v2647 = vpack.c.b16 %v1703, %v1695
    %v2648 = vpack.c.b16 %v1704, %v1696
    %v2649 = vpack.c.b16 %v1713, %v1705
    %v2650 = vpack.c.b16 %v1714, %v1706
    %v2651 = vpack.c.b16 %v1715, %v1707
    %v2652 = vpack.c.b16 %v1716, %v1708
    %v2653 = vpack.c.b16 %v1717, %v1709
    %v2654 = vpack.c.b16 %v1718, %v1710
    %v2655 = vpack.c.b16 %v1719, %v1711
    %v2656 = vpack.c.b16 %v1720, %v1712
    %v2657 = vpack.c.b16 %v1729, %v1721
    %v2658 = vpack.c.b16 %v1730, %v1722
    %v2659 = vpack.c.b16 %v1731, %v1723
    %v2660 = vpack.c.b16 %v1732, %v1724
    %v2661 = vpack.c.b16 %v1733, %v1725
    %v2662 = vpack.c.b16 %v1734, %v1726
    %v2663 = vpack.c.b16 %v1735, %v1727
    %v2664 = vpack.c.b16 %v1736, %v1728
    %v2665 = vpack.c.b16 %v1745, %v1737
    %v2666 = vpack.c.b16 %v1746, %v1738
    %v2667 = vpack.c.b16 %v1747, %v1739
    %v2668 = vpack.c.b16 %v1748, %v1740
    %v2669 = vpack.c.b16 %v1749, %v1741
    %v2670 = vpack.c.b16 %v1750, %v1742
    %v2671 = vpack.c.b16 %v1751, %v1743
    %v2672 = vpack.c.b16 %v1752, %v1744
    %v2673 = vpack.c.b16 %v1761, %v1753
    %v2674 = vpack.c.b16 %v1762, %v1754
    %v2675 = vpack.c.b16 %v1763, %v1755
    %v2676 = vpack.c.b16 %v1764, %v1756
    %v2677 = vpack.c.b16 %v1765, %v1757
    %v2678 = vpack.c.b16 %v1766, %v1758
    %v2679 = vpack.c.b16 %v1767, %v1759
    %v2680 = vpack.c.b16 %v1768, %v1760
    %v2681 = vpack.c.b16 %v1777, %v1769
    %v2682 = vpack.c.b16 %v1778, %v1770
    %v2683 = vpack.c.b16 %v1779, %v1771
    %v2684 = vpack.c.b16 %v1780, %v1772
    %v2685 = vpack.c.b16 %v1781, %v1773
    %v2686 = vpack.c.b16 %v1782, %v1774
    %v2687 = vpack.c.b16 %v1783, %v1775
    %v2688 = vpack.c.b16 %v1784, %v1776
    %v2689 = vpack.c.b16 %v1793, %v1785
    %v2690 = vpack.c.b16 %v1794, %v1786
    %v2691 = vpack.c.b16 %v1795, %v1787
    %v2692 = vpack.c.b16 %v1796, %v1788
    %v2693 = vpack.c.b16 %v1797, %v1789
    %v2694 = vpack.c.b16 %v1798, %v1790
    %v2695 = vpack.c.b16 %v1799, %v1791
    %v2696 = vpack.c.b16 %v1800, %v1792
    %v2697 = vpack.c.b16 %v1809, %v1801
    %v2698 = vpack.c.b16 %v1810, %v1802
    %v2699 = vpack.c.b16 %v1811, %v1803
    %v2700 = vpack.c.b16 %v1812, %v1804
    %v2701 = vpack.c.b16 %v1813, %v1805
    %v2702 = vpack.c.b16 %v1814, %v1806
    %v2703 = vpack.c.b16 %v1815, %v1807
    %v2704 = vpack.c.b16 %v1816, %v1808
    %v2705 = vpack.c.b16 %v1825, %v1817
    %v2706 = vpack.c.b16 %v1826, %v1818
    %v2707 = vpack.c.b16 %v1827, %v1819
    %v2708 = vpack.c.b16 %v1828, %v1820
    %v2709 = vpack.c.b16 %v1829, %v1821
    %v2710 = vpack.c.b16 %v1830, %v1822
    %v2711 = vpack.c.b16 %v1831, %v1823
    %v2712 = vpack.c.b16 %v1832, %v1824
    %v2713 = vpack.c.b16 %v1841, %v1833
    %v2714 = vpack.c.b16 %v1842, %v1834
    %v2715 = vpack.c.b16 %v1843, %v1835
    %v2716 = vpack.c.b16 %v1844, %v1836
    %v2717 = vpack.c.b16 %v1845, %v1837
    %v2718 = vpack.c.b16 %v1846, %v1838
    %v2719 = vpack.c.b16 %v1847, %v1839
    %v2720 = vpack.c.b16 %v1848, %v1840
    %v2721 = vpack.c.b16 %v1857, %v1849
    %v2722 = vpack.c.b16 %v1858, %v1850
    %v2723 = vpack.c.b16 %v1859, %v1851
    %v2724 = vpack.c.b16 %v1860, %v1852
    %v2725 = vpack.c.b16 %v1861, %v1853
    %v2726 = vpack.c.b16 %v1862, %v1854
    %v2727 = vpack.c.b16 %v1863, %v1855
    %v2728 = vpack.c.b16 %v1864, %v1856
    %v2729 = vpack.c.b16 %v1873, %v1865
    %v2730 = vpack.c.b16 %v1874, %v1866
    %v2731 = vpack.c.b16 %v1875, %v1867
    %v2732 = vpack.c.b16 %v1876, %v1868
    %v2733 = vpack.c.b16 %v1877, %v1869
    %v2734 = vpack.c.b16 %v1878, %v1870
    %v2735 = vpack.c.b16 %v1879, %v1871
    %v2736 = vpack.c.b16 %v1880, %v1872
    %v2737 = vpack.c.b16 %v1889, %v1881
    %v2738 = vpack.c.b16 %v1890, %v1882
    %v2739 = vpack.c.b16 %v1891, %v1883
    %v2740 = vpack.c.b16 %v1892, %v1884
    %v2741 = vpack.c.b16 %v1893, %v1885
    %v2742 = vpack.c.b16 %v1894, %v1886
    %v2743 = vpack.c.b16 %v1895, %v1887
    %v2744 = vpack.c.b16 %v1896, %v1888
    %v2745 = vpack.c.b16 %v1905, %v1897
    %v2746 = vpack.c.b16 %v1906, %v1898
    %v2747 = vpack.c.b16 %v1907, %v1899
    %v2748 = vpack.c.b16 %v1908, %v1900
    %v2749 = vpack.c.b16 %v1909, %v1901
    %v2750 = vpack.c.b16 %v1910, %v1902
    %v2751 = vpack.c.b16 %v1911, %v1903
    %v2752 = vpack.c.b16 %v1912, %v1904
    %v2753 = vpack.c.b16 %v1921, %v1913
    %v2754 = vpack.c.b16 %v1922, %v1914
    %v2755 = vpack.c.b16 %v1923, %v1915
    %v2756 = vpack.c.b16 %v1924, %v1916
    %v2757 = vpack.c.b16 %v1925, %v1917
    %v2758 = vpack.c.b16 %v1926, %v1918
    %v2759 = vpack.c.b16 %v1927, %v1919
    %v2760 = vpack.c.b16 %v1928, %v1920
    %v2761 = vpack.c.b16 %v1937, %v1929
    %v2762 = vpack.c.b16 %v1938, %v1930
    %v2763 = vpack.c.b16 %v1939, %v1931
    %v2764 = vpack.c.b16 %v1940, %v1932
    %v2765 = vpack.c.b16 %v1941, %v1933
    %v2766 = vpack.c.b16 %v1942, %v1934
    %v2767 = vpack.c.b16 %v1943, %v1935
    %v2768 = vpack.c.b16 %v1944, %v1936
    %v2769 = vpack.c.b16 %v1953, %v1945
    %v2770 = vpack.c.b16 %v1954, %v1946
    %v2771 = vpack.c.b16 %v1955, %v1947
    %v2772 = vpack.c.b16 %v1956, %v1948
    %v2773 = vpack.c.b16 %v1957, %v1949
    %v2774 = vpack.c.b16 %v1958, %v1950
    %v2775 = vpack.c.b16 %v1959, %v1951
    %v2776 = vpack.c.b16 %v1960, %v1952
    %v2777 = vpack.c.b16 %v1969, %v1961
    %v2778 = vpack.c.b16 %v1970, %v1962
    %v2779 = vpack.c.b16 %v1971, %v1963
    %v2780 = vpack.c.b16 %v1972, %v1964
    %v2781 = vpack.c.b16 %v1973, %v1965
    %v2782 = vpack.c.b16 %v1974, %v1966
    %v2783 = vpack.c.b16 %v1975, %v1967
    %v2784 = vpack.c.b16 %v1976, %v1968
    %v2785 = vpack.c.b16 %v1985, %v1977
    %v2786 = vpack.c.b16 %v1986, %v1978
    %v2787 = vpack.c.b16 %v1987, %v1979
    %v2788 = vpack.c.b16 %v1988, %v1980
    %v2789 = vpack.c.b16 %v1989, %v1981
    %v2790 = vpack.c.b16 %v1990, %v1982
    %v2791 = vpack.c.b16 %v1991, %v1983
    %v2792 = vpack.c.b16 %v1992, %v1984
    %v2793 = vpack.c.b16 %v2001, %v1993
    %v2794 = vpack.c.b16 %v2002, %v1994
    %v2795 = vpack.c.b16 %v2003, %v1995
    %v2796 = vpack.c.b16 %v2004, %v1996
    %v2797 = vpack.c.b16 %v2005, %v1997
    %v2798 = vpack.c.b16 %v2006, %v1998
    %v2799 = vpack.c.b16 %v2007, %v1999
    %v2800 = vpack.c.b16 %v2008, %v2000
    %v2801 = vpack.c.b16 %v2017, %v2009
    %v2802 = vpack.c.b16 %v2018, %v2010
    %v2803 = vpack.c.b16 %v2019, %v2011
    %v2804 = vpack.c.b16 %v2020, %v2012
    %v2805 = vpack.c.b16 %v2021, %v2013
    %v2806 = vpack.c.b16 %v2022, %v2014
    %v2807 = vpack.c.b16 %v2023, %v2015
    %v2808 = vpack.c.b16 %v2024, %v2016
    %v2809 = vpack.c.b16 %v2033, %v2025
    %v2810 = vpack.c.b16 %v2034, %v2026
    %v2811 = vpack.c.b16 %v2035, %v2027
    %v2812 = vpack.c.b16 %v2036, %v2028
    %v2813 = vpack.c.b16 %v2037, %v2029
    %v2814 = vpack.c.b16 %v2038, %v2030
    %v2815 = vpack.c.b16 %v2039, %v2031
    %v2816 = vpack.c.b16 %v2040, %v2032
    %v2817 = vpack.c.b16 %v2049, %v2041
    %v2818 = vpack.c.b16 %v2050, %v2042
    %v2819 = vpack.c.b16 %v2051, %v2043
    %v2820 = vpack.c.b16 %v2052, %v2044
    %v2821 = vpack.c.b16 %v2053, %v2045
    %v2822 = vpack.c.b16 %v2054, %v2046
    %v2823 = vpack.c.b16 %v2055, %v2047
    %v2824 = vpack.c.b16 %v2056, %v2048
    %v2825 = vpack.c.b16 %v2065, %v2057
    %v2826 = vpack.c.b16 %v2066, %v2058
    %v2827 = vpack.c.b16 %v2067, %v2059
    %v2828 = vpack.c.b16 %v2068, %v2060
    %v2829 = vpack.c.b16 %v2069, %v2061
    %v2830 = vpack.c.b16 %v2070, %v2062
    %v2831 = vpack.c.b16 %v2071, %v2063
    %v2832 = vpack.c.b16 %v2072, %v2064
    %v2833 = vpack.c.b16 %v2081, %v2073
    %v2834 = vpack.c.b16 %v2082, %v2074
    %v2835 = vpack.c.b16 %v2083, %v2075
    %v2836 = vpack.c.b16 %v2084, %v2076
    %v2837 = vpack.c.b16 %v2085, %v2077
    %v2838 = vpack.c.b16 %v2086, %v2078
    %v2839 = vpack.c.b16 %v2087, %v2079
    %v2840 = vpack.c.b16 %v2088, %v2080
    %v2841 = vpack.c.b16 %v2097, %v2089
    %v2842 = vpack.c.b16 %v2098, %v2090
    %v2843 = vpack.c.b16 %v2099, %v2091
    %v2844 = vpack.c.b16 %v2100, %v2092
    %v2845 = vpack.c.b16 %v2101, %v2093
    %v2846 = vpack.c.b16 %v2102, %v2094
    %v2847 = vpack.c.b16 %v2103, %v2095
    %v2848 = vpack.c.b16 %v2104, %v2096
    %v2849 = vpack.c.b16 %v2113, %v2105
    %v2850 = vpack.c.b16 %v2114, %v2106
    %v2851 = vpack.c.b16 %v2115, %v2107
    %v2852 = vpack.c.b16 %v2116, %v2108
    %v2853 = vpack.c.b16 %v2117, %v2109
    %v2854 = vpack.c.b16 %v2118, %v2110
    %v2855 = vpack.c.b16 %v2119, %v2111
    %v2856 = vpack.c.b16 %v2120, %v2112
    %v2857 = vpack.c.b16 %v2129, %v2121
    %v2858 = vpack.c.b16 %v2130, %v2122
    %v2859 = vpack.c.b16 %v2131, %v2123
    %v2860 = vpack.c.b16 %v2132, %v2124
    %v2861 = vpack.c.b16 %v2133, %v2125
    %v2862 = vpack.c.b16 %v2134, %v2126
    %v2863 = vpack.c.b16 %v2135, %v2127
    %v2864 = vpack.c.b16 %v2136, %v2128
    %v2865 = vpack.c.b16 %v2145, %v2137
    %v2866 = vpack.c.b16 %v2146, %v2138
    %v2867 = vpack.c.b16 %v2147, %v2139
    %v2868 = vpack.c.b16 %v2148, %v2140
    %v2869 = vpack.c.b16 %v2149, %v2141
    %v2870 = vpack.c.b16 %v2150, %v2142
    %v2871 = vpack.c.b16 %v2151, %v2143
    %v2872 = vpack.c.b16 %v2152, %v2144
    %v2873 = vpack.c.b16 %v2161, %v2153
    %v2874 = vpack.c.b16 %v2162, %v2154
    %v2875 = vpack.c.b16 %v2163, %v2155
    %v2876 = vpack.c.b16 %v2164, %v2156
    %v2877 = vpack.c.b16 %v2165, %v2157
    %v2878 = vpack.c.b16 %v2166, %v2158
    %v2879 = vpack.c.b16 %v2167, %v2159
    %v2880 = vpack.c.b16 %v2168, %v2160
    %v2881 = vpack.c.b16 %v2177, %v2169
    %v2882 = vpack.c.b16 %v2178, %v2170
    %v2883 = vpack.c.b16 %v2179, %v2171
    %v2884 = vpack.c.b16 %v2180, %v2172
    %v2885 = vpack.c.b16 %v2181, %v2173
    %v2886 = vpack.c.b16 %v2182, %v2174
    %v2887 = vpack.c.b16 %v2183, %v2175
    %v2888 = vpack.c.b16 %v2184, %v2176
    %v2889 = vpack.c.b16 %v2193, %v2185
    %v2890 = vpack.c.b16 %v2194, %v2186
    %v2891 = vpack.c.b16 %v2195, %v2187
    %v2892 = vpack.c.b16 %v2196, %v2188
    %v2893 = vpack.c.b16 %v2197, %v2189
    %v2894 = vpack.c.b16 %v2198, %v2190
    %v2895 = vpack.c.b16 %v2199, %v2191
    %v2896 = vpack.c.b16 %v2200, %v2192
    %v2897 = vpack.c.b16 %v2209, %v2201
    %v2898 = vpack.c.b16 %v2210, %v2202
    %v2899 = vpack.c.b16 %v2211, %v2203
    %v2900 = vpack.c.b16 %v2212, %v2204
    %v2901 = vpack.c.b16 %v2213, %v2205
    %v2902 = vpack.c.b16 %v2214, %v2206
    %v2903 = vpack.c.b16 %v2215, %v2207
    %v2904 = vpack.c.b16 %v2216, %v2208
    %v2905 = vpack.c.b16 %v2225, %v2217
    %v2906 = vpack.c.b16 %v2226, %v2218
    %v2907 = vpack.c.b16 %v2227, %v2219
    %v2908 = vpack.c.b16 %v2228, %v2220
    %v2909 = vpack.c.b16 %v2229, %v2221
    %v2910 = vpack.c.b16 %v2230, %v2222
    %v2911 = vpack.c.b16 %v2231, %v2223
    %v2912 = vpack.c.b16 %v2232, %v2224
    %v2913 = vpack.c.b16 %v2241, %v2233
    %v2914 = vpack.c.b16 %v2242, %v2234
    %v2915 = vpack.c.b16 %v2243, %v2235
    %v2916 = vpack.c.b16 %v2244, %v2236
    %v2917 = vpack.c.b16 %v2245, %v2237
    %v2918 = vpack.c.b16 %v2246, %v2238
    %v2919 = vpack.c.b16 %v2247, %v2239
    %v2920 = vpack.c.b16 %v2248, %v2240
    %v2921 = vpack.c.b16 %v2257, %v2249
    %v2922 = vpack.c.b16 %v2258, %v2250
    %v2923 = vpack.c.b16 %v2259, %v2251
    %v2924 = vpack.c.b16 %v2260, %v2252
    %v2925 = vpack.c.b16 %v2261, %v2253
    %v2926 = vpack.c.b16 %v2262, %v2254
    %v2927 = vpack.c.b16 %v2263, %v2255
    %v2928 = vpack.c.b16 %v2264, %v2256
    %v2929 = vpack.c.b16 %v2273, %v2265
    %v2930 = vpack.c.b16 %v2274, %v2266
    %v2931 = vpack.c.b16 %v2275, %v2267
    %v2932 = vpack.c.b16 %v2276, %v2268
    %v2933 = vpack.c.b16 %v2277, %v2269
    %v2934 = vpack.c.b16 %v2278, %v2270
    %v2935 = vpack.c.b16 %v2279, %v2271
    %v2936 = vpack.c.b16 %v2280, %v2272
    %v2937 = vpack.c.b16 %v2289, %v2281
    %v2938 = vpack.c.b16 %v2290, %v2282
    %v2939 = vpack.c.b16 %v2291, %v2283
    %v2940 = vpack.c.b16 %v2292, %v2284
    %v2941 = vpack.c.b16 %v2293, %v2285
    %v2942 = vpack.c.b16 %v2294, %v2286
    %v2943 = vpack.c.b16 %v2295, %v2287
    %v2944 = vpack.c.b16 %v2296, %v2288
    %v2945 = vpack.c.b16 %v2305, %v2297
    %v2946 = vpack.c.b16 %v2306, %v2298
    %v2947 = vpack.c.b16 %v2307, %v2299
    %v2948 = vpack.c.b16 %v2308, %v2300
    %v2949 = vpack.c.b16 %v2309, %v2301
    %v2950 = vpack.c.b16 %v2310, %v2302
    %v2951 = vpack.c.b16 %v2311, %v2303
    %v2952 = vpack.c.b16 %v2312, %v2304
    %v2953 = vpack.c.b16 %v2321, %v2313
    %v2954 = vpack.c.b16 %v2322, %v2314
    %v2955 = vpack.c.b16 %v2323, %v2315
    %v2956 = vpack.c.b16 %v2324, %v2316
    %v2957 = vpack.c.b16 %v2325, %v2317
    %v2958 = vpack.c.b16 %v2326, %v2318
    %v2959 = vpack.c.b16 %v2327, %v2319
    %v2960 = vpack.c.b16 %v2328, %v2320
    %v2961 = vpack.c.b16 %v2337, %v2329
    %v2962 = vpack.c.b16 %v2338, %v2330
    %v2963 = vpack.c.b16 %v2339, %v2331
    %v2964 = vpack.c.b16 %v2340, %v2332
    %v2965 = vpack.c.b16 %v2341, %v2333
    %v2966 = vpack.c.b16 %v2342, %v2334
    %v2967 = vpack.c.b16 %v2343, %v2335
    %v2968 = vpack.c.b16 %v2344, %v2336
    %v2969 = vpack.c.b16 %v2353, %v2345
    %v2970 = vpack.c.b16 %v2354, %v2346
    %v2971 = vpack.c.b16 %v2355, %v2347
    %v2972 = vpack.c.b16 %v2356, %v2348
    %v2973 = vpack.c.b16 %v2357, %v2349
    %v2974 = vpack.c.b16 %v2358, %v2350
    %v2975 = vpack.c.b16 %v2359, %v2351
    %v2976 = vpack.c.b16 %v2360, %v2352
    %v2977 = vpack.c.b16 %v2369, %v2361
    %v2978 = vpack.c.b16 %v2370, %v2362
    %v2979 = vpack.c.b16 %v2371, %v2363
    %v2980 = vpack.c.b16 %v2372, %v2364
    %v2981 = vpack.c.b16 %v2373, %v2365
    %v2982 = vpack.c.b16 %v2374, %v2366
    %v2983 = vpack.c.b16 %v2375, %v2367
    %v2984 = vpack.c.b16 %v2376, %v2368
    %v2985 = vpack.c.b16 %v2385, %v2377
    %v2986 = vpack.c.b16 %v2386, %v2378
    %v2987 = vpack.c.b16 %v2387, %v2379
    %v2988 = vpack.c.b16 %v2388, %v2380
    %v2989 = vpack.c.b16 %v2389, %v2381
    %v2990 = vpack.c.b16 %v2390, %v2382
    %v2991 = vpack.c.b16 %v2391, %v2383
    %v2992 = vpack.c.b16 %v2392, %v2384
    %v2993 = vpack.c.b16 %v2401, %v2393
    %v2994 = vpack.c.b16 %v2402, %v2394
    %v2995 = vpack.c.b16 %v2403, %v2395
    %v2996 = vpack.c.b16 %v2404, %v2396
    %v2997 = vpack.c.b16 %v2405, %v2397
    %v2998 = vpack.c.b16 %v2406, %v2398
    %v2999 = vpack.c.b16 %v2407, %v2399
    %v3000 = vpack.c.b16 %v2408, %v2400
    %v3001 = vpack.c.b16 %v2417, %v2409
    %v3002 = vpack.c.b16 %v2418, %v2410
    %v3003 = vpack.c.b16 %v2419, %v2411
    %v3004 = vpack.c.b16 %v2420, %v2412
    %v3005 = vpack.c.b16 %v2421, %v2413
    %v3006 = vpack.c.b16 %v2422, %v2414
    %v3007 = vpack.c.b16 %v2423, %v2415
    %v3008 = vpack.c.b16 %v2424, %v2416
    %v3009 = vpack.c.b16 %v2433, %v2425
    %v3010 = vpack.c.b16 %v2434, %v2426
    %v3011 = vpack.c.b16 %v2435, %v2427
    %v3012 = vpack.c.b16 %v2436, %v2428
    %v3013 = vpack.c.b16 %v2437, %v2429
    %v3014 = vpack.c.b16 %v2438, %v2430
    %v3015 = vpack.c.b16 %v2439, %v2431
    %v3016 = vpack.c.b16 %v2440, %v2432
    %v3017 = vpack.c.b16 %v2449, %v2441
    %v3018 = vpack.c.b16 %v2450, %v2442
    %v3019 = vpack.c.b16 %v2451, %v2443
    %v3020 = vpack.c.b16 %v2452, %v2444
    %v3021 = vpack.c.b16 %v2453, %v2445
    %v3022 = vpack.c.b16 %v2454, %v2446
    %v3023 = vpack.c.b16 %v2455, %v2447
    %v3024 = vpack.c.b16 %v2456, %v2448
    %v3025 = vpack.c.b16 %v2465, %v2457
    %v3026 = vpack.c.b16 %v2466, %v2458
    %v3027 = vpack.c.b16 %v2467, %v2459
    %v3028 = vpack.c.b16 %v2468, %v2460
    %v3029 = vpack.c.b16 %v2469, %v2461
    %v3030 = vpack.c.b16 %v2470, %v2462
    %v3031 = vpack.c.b16 %v2471, %v2463
    %v3032 = vpack.c.b16 %v2472, %v2464
    %v3033 = vpack.c.b16 %v2481, %v2473
    %v3034 = vpack.c.b16 %v2482, %v2474
    %v3035 = vpack.c.b16 %v2483, %v2475
    %v3036 = vpack.c.b16 %v2484, %v2476
    %v3037 = vpack.c.b16 %v2485, %v2477
    %v3038 = vpack.c.b16 %v2486, %v2478
    %v3039 = vpack.c.b16 %v2487, %v2479
    %v3040 = vpack.c.b16 %v2488, %v2480
    %v3041 = vpack.c.b16 %v2497, %v2489
    %v3042 = vpack.c.b16 %v2498, %v2490
    %v3043 = vpack.c.b16 %v2499, %v2491
    %v3044 = vpack.c.b16 %v2500, %v2492
    %v3045 = vpack.c.b16 %v2501, %v2493
    %v3046 = vpack.c.b16 %v2502, %v2494
    %v3047 = vpack.c.b16 %v2503, %v2495
    %v3048 = vpack.c.b16 %v2504, %v2496
    %v3049 = vpack.c.b16 %v2513, %v2505
    %v3050 = vpack.c.b16 %v2514, %v2506
    %v3051 = vpack.c.b16 %v2515, %v2507
    %v3052 = vpack.c.b16 %v2516, %v2508
    %v3053 = vpack.c.b16 %v2517, %v2509
    %v3054 = vpack.c.b16 %v2518, %v2510
    %v3055 = vpack.c.b16 %v2519, %v2511
    %v3056 = vpack.c.b16 %v2520, %v2512
    %v3057 = vpack.c.b16 %v2529, %v2521
    %v3058 = vpack.c.b16 %v2530, %v2522
    %v3059 = vpack.c.b16 %v2531, %v2523
    %v3060 = vpack.c.b16 %v2532, %v2524
    %v3061 = vpack.c.b16 %v2533, %v2525
    %v3062 = vpack.c.b16 %v2534, %v2526
    %v3063 = vpack.c.b16 %v2535, %v2527
    %v3064 = vpack.c.b16 %v2536, %v2528
    %v3065 = vpack.c.b16 %v2545, %v2537
    %v3066 = vpack.c.b16 %v2546, %v2538
    %v3067 = vpack.c.b16 %v2547, %v2539
    %v3068 = vpack.c.b16 %v2548, %v2540
    %v3069 = vpack.c.b16 %v2549, %v2541
    %v3070 = vpack.c.b16 %v2550, %v2542
    %v3071 = vpack.c.b16 %v2551, %v2543
    %v3072 = vpack.c.b16 %v2552, %v2544
    %v3073 = vpack.c.b16 %v2561, %v2553
    %v3074 = vpack.c.b16 %v2562, %v2554
    %v3075 = vpack.c.b16 %v2563, %v2555
    %v3076 = vpack.c.b16 %v2564, %v2556
    %v3077 = vpack.c.b16 %v2565, %v2557
    %v3078 = vpack.c.b16 %v2566, %v2558
    %v3079 = vpack.c.b16 %v2567, %v2559
    %v3080 = vpack.c.b16 %v2568, %v2560
    %3593 = vmatprep.subr.bf16.mxu0 %v2570
    %3594 = vmatpush1.bf16.msra.mxu0 %v2569
    %3595 = vmatprep.subr.bf16.mxu0 %v2578
    %3596 = vmatpush1.bf16.msra.mxu0 %v2577
    %3597 = vmatprep.subr.bf16.mxu0 %v2586
    %3598 = vmatpush1.bf16.msra.mxu0 %v2585
    %3599 = vmatprep.subr.bf16.mxu0 %v2594
    %3600 = vmatpush1.bf16.msra.mxu0 %v2593
    %3601 = vmatprep.subr.bf16.mxu0 %v2602
    %3602 = vmatpush1.bf16.msra.mxu0 %v2601
    %3603 = vmatprep.subr.bf16.mxu0 %v2610
    %3604 = vmatpush1.bf16.msra.mxu0 %v2609
    %3605 = vmatprep.subr.bf16.mxu0 %v2618
    %3606 = vmatpush1.bf16.msra.mxu0 %v2617
    %3607 = vmatprep.subr.bf16.mxu0 %v2626
    %3608 = vmatpush1.bf16.msra.mxu0 %v2625
    %3609 = vmatprep.subr.bf16.mxu0 %v2634
    %3610 = vmatpush1.bf16.msra.mxu0 %v2633
    %3611 = vmatprep.subr.bf16.mxu0 %v2642
    %3612 = vmatpush1.bf16.msra.mxu0 %v2641
    %3613 = vmatprep.subr.bf16.mxu0 %v2650
    %3614 = vmatpush1.bf16.msra.mxu0 %v2649
    %3615 = vmatprep.subr.bf16.mxu0 %v2658
    %3616 = vmatpush1.bf16.msra.mxu0 %v2657
    %3617 = vmatprep.subr.bf16.mxu0 %v2666
    %3618 = vmatpush1.bf16.msra.mxu0 %v2665
    %3619 = vmatprep.subr.bf16.mxu0 %v2674
    %3620 = vmatpush1.bf16.msra.mxu0 %v2673
    %3621 = vmatprep.subr.bf16.mxu0 %v2682
    %3622 = vmatpush1.bf16.msra.mxu0 %v2681
    %3623 = vmatprep.subr.bf16.mxu0 %v2690
    %3624 = vmatpush1.bf16.msra.mxu0 %v2689
    %3625 = vmatprep.mubr.bf16.mxu0 %v353
    %3626 = vmatmul.mubr.bf16.gmra.mrb[0].mxu0 %v352
    %v3627 = vpop.f32.mrb[0].mxu0
    %v3628 = vadd.f32 %v996, %v3627
    %v3629 = vpop.f32.mrb[0].mxu0
    %v3630 = vadd.f32 %v1000, %v3629
    %v3631 = vpop.f32.mrb[0].mxu0
    %v3632 = vadd.f32 %v996, %v3631
    %v3633 = vpop.f32.mrb[0].mxu0
    %v3634 = vadd.f32 %v1000, %v3633
    %3635 = vmatprep.mubr.bf16.mxu0 %v361
    %3636 = vmatmul.mubr.bf16.gmra.mrb[0].mxu0 %v360
    %v3637 = vpop.f32.mrb[0].mxu0
    %v3638 = vadd.f32 %v996, %v3637
    %v3639 = vpop.f32.mrb[0].mxu0
    %v3640 = vadd.f32 %v1000, %v3639
    %v3641 = vpop.f32.mrb[0].mxu0
    %v3642 = vadd.f32 %v996, %v3641
    %v3643 = vpop.f32.mrb[0].mxu0
    %v3644 = vadd.f32 %v1000, %v3643
    %3645 = vmatprep.mubr.bf16.mxu0 %v369
    %3646 = vmatmul.mubr.bf16.gmra.mrb[0].mxu0 %v368
    %v3647 = vpop.f32.mrb[0].mxu0
    %v3648 = vadd.f32 %v996, %v3647
    %v3649 = vpop.f32.mrb[0].mxu0
    %v3650 = vadd.f32 %v1000, %v3649
    %v3651 = vpop.f32.mrb[0].mxu0
    %v3652 = vadd.f32 %v996, %v3651
    %v3653 = vpop.f32.mrb[0].mxu0
    %v3654 = vadd.f32 %v1000, %v3653
    %3655 = vmatprep.mubr.bf16.mxu0 %v377
    %3656 = vmatmul.mubr.bf16.gmra.mrb[0].mxu0 %v376
    %v3657 = vpop.f32.mrb[0].mxu0
    %v3658 = vadd.f32 %v996, %v3657
    %v3659 = vpop.f32.mrb[0].mxu0
    %v3660 = vadd.f32 %v1000, %v3659
    %v3661 = vpop.f32.mrb[0].mxu0
    %v3662 = vadd.f32 %v996, %v3661
    %v3663 = vpop.f32.mrb[0].mxu0
    %v3664 = vadd.f32 %v1000, %v3663
    %3665 = vmatprep.mubr.bf16.mxu0 %v385
    %3666 = vmatmul.mubr.bf16.gmra.mrb[0].mxu0 %v384
    %v3667 = vpop.f32.mrb[0].mxu0
    %v3668 = vadd.f32 %v996, %v3667
    %v3669 = vpop.f32.mrb[0].mxu0
    %v3670 = vadd.f32 %v1000, %v3669
    %v3671 = vpop.f32.mrb[0].mxu0
    %v3672 = vadd.f32 %v996, %v3671
    %v3673 = vpop.f32.mrb[0].mxu0
    %v3674 = vadd.f32 %v1000, %v3673
    %3675 = vmatprep.mubr.bf16.mxu0 %v393
    %3676 = vmatmul.mubr.bf16.gmra.mrb[0].mxu0 %v392
    %v3677 = vpop.f32.mrb[0].mxu0
    %v3678 = vadd.f32 %v996, %v3677
    %v3679 = vpop.f32.mrb[0].mxu0
    %v3680 = vadd.f32 %v1000, %v3679
    %v3681 = vpop.f32.mrb[0].mxu0
    %v3682 = vadd.f32 %v996, %v3681
    %v3683 = vpop.f32.mrb[0].mxu0
    %v3684 = vadd.f32 %v1000, %v3683
    %3685 = vmatprep.mubr.bf16.mxu0 %v401
    %3686 = vmatmul.mubr.bf16.gmra.mrb[0].mxu0 %v400
    %v3687 = vpop.f32.mrb[0].mxu0
    %v3688 = vadd.f32 %v996, %v3687
    %v3689 = vpop.f32.mrb[0].mxu0
    %v3690 = vadd.f32 %v1000, %v3689
    %v3691 = vpop.f32.mrb[0].mxu0
    %v3692 = vadd.f32 %v996, %v3691
    %v3693 = vpop.f32.mrb[0].mxu0
    %v3694 = vadd.f32 %v1000, %v3693
    %3695 = vmatprep.mubr.bf16.mxu0 %v409
    %3696 = vmatmul.mubr.bf16.gmra.mrb[0].mxu0 %v408
    %v3697 = vpop.f32.mrb[0].mxu0
    %v3698 = vadd.f32 %v996, %v3697
    %v3699 = vpop.f32.mrb[0].mxu0
    %v3700 = vadd.f32 %v1000, %v3699
    %v3701 = vpop.f32.mrb[0].mxu0
    %v3702 = vadd.f32 %v996, %v3701
    %v3703 = vpop.f32.mrb[0].mxu0
    %v3704 = vadd.f32 %v1000, %v3703
    %3705 = vmatprep.mubr.bf16.mxu0 %v417
    %3706 = vmatmul.mubr.bf16.gmra.mrb[0].mxu0 %v416
    %v3707 = vpop.f32.mrb[0].mxu0
    %v3708 = vadd.f32 %v996, %v3707
    %v3709 = vpop.f32.mrb[0].mxu0
    %v3710 = vadd.f32 %v1000, %v3709
    %v3711 = vpop.f32.mrb[0].mxu0
    %v3712 = vadd.f32 %v996, %v3711
    %v3713 = vpop.f32.mrb[0].mxu0
    %v3714 = vadd.f32 %v1000, %v3713
    %3715 = vmatprep.mubr.bf16.mxu0 %v425
    %3716 = vmatmul.mubr.bf16.gmra.mrb[0].mxu0 %v424
    %v3717 = vpop.f32.mrb[0].mxu0
    %v3718 = vadd.f32 %v996, %v3717
    %v3719 = vpop.f32.mrb[0].mxu0
    %v3720 = vadd.f32 %v1000, %v3719
    %v3721 = vpop.f32.mrb[0].mxu0
    %v3722 = vadd.f32 %v996, %v3721
    %v3723 = vpop.f32.mrb[0].mxu0
    %v3724 = vadd.f32 %v1000, %v3723
    %3725 = vmatprep.mubr.bf16.mxu0 %v433
    %3726 = vmatmul.mubr.bf16.gmra.mrb[0].mxu0 %v432
    %v3727 = vpop.f32.mrb[0].mxu0
    %v3728 = vadd.f32 %v996, %v3727
    %v3729 = vpop.f32.mrb[0].mxu0
    %v3730 = vadd.f32 %v1000, %v3729
    %v3731 = vpop.f32.mrb[0].mxu0
    %v3732 = vadd.f32 %v996, %v3731
    %v3733 = vpop.f32.mrb[0].mxu0
    %v3734 = vadd.f32 %v1000, %v3733
    %3735 = vmatprep.mubr.bf16.mxu0 %v441
    %3736 = vmatmul.mubr.bf16.gmra.mrb[0].mxu0 %v440
    %v3737 = vpop.f32.mrb[0].mxu0
    %v3738 = vadd.f32 %v996, %v3737
    %v3739 = vpop.f32.mrb[0].mxu0
    %v3740 = vadd.f32 %v1000, %v3739
    %v3741 = vpop.f32.mrb[0].mxu0
    %v3742 = vadd.f32 %v996, %v3741
    %v3743 = vpop.f32.mrb[0].mxu0
    %v3744 = vadd.f32 %v1000, %v3743
    %3745 = vmatprep.mubr.bf16.mxu0 %v449
    %3746 = vmatmul.mubr.bf16.gmra.mrb[0].mxu0 %v448
    %v3747 = vpop.f32.mrb[0].mxu0
    %v3748 = vadd.f32 %v996, %v3747
    %v3749 = vpop.f32.mrb[0].mxu0
    %v3750 = vadd.f32 %v1000, %v3749
    %v3751 = vpop.f32.mrb[0].mxu0
    %v3752 = vadd.f32 %v996, %v3751
    %v3753 = vpop.f32.mrb[0].mxu0
    %v3754 = vadd.f32 %v1000, %v3753
    %3755 = vmatprep.mubr.bf16.mxu0 %v457
    %3756 = vmatmul.mubr.bf16.gmra.mrb[0].mxu0 %v456
    %v3757 = vpop.f32.mrb[0].mxu0
    %v3758 = vadd.f32 %v996, %v3757
    %v3759 = vpop.f32.mrb[0].mxu0
    %v3760 = vadd.f32 %v1000, %v3759
    %v3761 = vpop.f32.mrb[0].mxu0
    %v3762 = vadd.f32 %v996, %v3761
    %v3763 = vpop.f32.mrb[0].mxu0
    %v3764 = vadd.f32 %v1000, %v3763
    %3765 = vmatprep.mubr.bf16.mxu0 %v465
    %3766 = vmatmul.mubr.bf16.gmra.mrb[0].mxu0 %v464
    %v3767 = vpop.f32.mrb[0].mxu0
    %v3768 = vadd.f32 %v996, %v3767
    %v3769 = vpop.f32.mrb[0].mxu0
    %v3770 = vadd.f32 %v1000, %v3769
    %v3771 = vpop.f32.mrb[0].mxu0
    %v3772 = vadd.f32 %v996, %v3771
    %v3773 = vpop.f32.mrb[0].mxu0
    %v3774 = vadd.f32 %v1000, %v3773
    %3775 = vmatprep.mubr.bf16.mxu0 %v473
    %3776 = vmatmul.mubr.bf16.gmra.mrb[0].mxu0 %v472
    %v3777 = vpop.f32.mrb[0].mxu0
    %v3778 = vadd.f32 %v996, %v3777
    %v3779 = vpop.f32.mrb[0].mxu0
    %v3780 = vadd.f32 %v1000, %v3779
    %v3781 = vpop.f32.mrb[0].mxu0
    %v3782 = vadd.f32 %v996, %v3781
    %v3783 = vpop.f32.mrb[0].mxu0
    %v3784 = vadd.f32 %v1000, %v3783
    %3785 = vdwg.mxu0
    %3786 = vmatprep.subr.bf16.mxu0 %v2698
    %3787 = vmatpush1.bf16.msra.mxu0 %v2697
    %3788 = vmatprep.subr.bf16.mxu0 %v2706
    %3789 = vmatpush1.bf16.msra.mxu0 %v2705
    %3790 = vmatprep.subr.bf16.mxu0 %v2714
    %3791 = vmatpush1.bf16.msra.mxu0 %v2713
    %3792 = vmatprep.subr.bf16.mxu0 %v2722
    %3793 = vmatpush1.bf16.msra.mxu0 %v2721
    %3794 = vmatprep.subr.bf16.mxu0 %v2730
    %3795 = vmatpush1.bf16.msra.mxu0 %v2729
    %3796 = vmatprep.subr.bf16.mxu0 %v2738
    %3797 = vmatpush1.bf16.msra.mxu0 %v2737
    %3798 = vmatprep.subr.bf16.mxu0 %v2746
    %3799 = vmatpush1.bf16.msra.mxu0 %v2745
    %3800 = vmatprep.subr.bf16.mxu0 %v2754
    %3801 = vmatpush1.bf16.msra.mxu0 %v2753
    %3802 = vmatprep.subr.bf16.mxu0 %v2762
    %3803 = vmatpush1.bf16.msra.mxu0 %v2761
    %3804 = vmatprep.subr.bf16.mxu0 %v2770
    %3805 = vmatpush1.bf16.msra.mxu0 %v2769
    %3806 = vmatprep.subr.bf16.mxu0 %v2778
    %3807 = vmatpush1.bf16.msra.mxu0 %v2777
    %3808 = vmatprep.subr.bf16.mxu0 %v2786
    %3809 = vmatpush1.bf16.msra.mxu0 %v2785
    %3810 = vmatprep.subr.bf16.mxu0 %v2794
    %3811 = vmatpush1.bf16.msra.mxu0 %v2793
    %3812 = vmatprep.subr.bf16.mxu0 %v2802
    %3813 = vmatpush1.bf16.msra.mxu0 %v2801
    %3814 = vmatprep.subr.bf16.mxu0 %v2810
    %3815 = vmatpush1.bf16.msra.mxu0 %v2809
    %3816 = vmatprep.subr.bf16.mxu0 %v2818
    %3817 = vmatpush1.bf16.msra.mxu0 %v2817
    %3818 = vmatprep.mubr.bf16.mxu0 %v355
    %3819 = vmatmul.mubr.bf16.gmra.mrb[0].mxu0 %v354
    %v3820 = vpop.f32.mrb[0].mxu0
    %v3821 = vadd.f32 %v3628, %v3820
    %v3822 = vpop.f32.mrb[0].mxu0
    %v3823 = vadd.f32 %v3630, %v3822
    %v3824 = vpop.f32.mrb[0].mxu0
    %v3825 = vadd.f32 %v3632, %v3824
    %v3826 = vpop.f32.mrb[0].mxu0
    %v3827 = vadd.f32 %v3634, %v3826
    %3828 = vmatprep.mubr.bf16.mxu0 %v363
    %3829 = vmatmul.mubr.bf16.gmra.mrb[0].mxu0 %v362
    %v3830 = vpop.f32.mrb[0].mxu0
    %v3831 = vadd.f32 %v3638, %v3830
    %v3832 = vpop.f32.mrb[0].mxu0
    %v3833 = vadd.f32 %v3640, %v3832
    %v3834 = vpop.f32.mrb[0].mxu0
    %v3835 = vadd.f32 %v3642, %v3834
    %v3836 = vpop.f32.mrb[0].mxu0
    %v3837 = vadd.f32 %v3644, %v3836
    %3838 = vmatprep.mubr.bf16.mxu0 %v371
    %3839 = vmatmul.mubr.bf16.gmra.mrb[0].mxu0 %v370
    %v3840 = vpop.f32.mrb[0].mxu0
    %v3841 = vadd.f32 %v3648, %v3840
    %v3842 = vpop.f32.mrb[0].mxu0
    %v3843 = vadd.f32 %v3650, %v3842
    %v3844 = vpop.f32.mrb[0].mxu0
    %v3845 = vadd.f32 %v3652, %v3844
    %v3846 = vpop.f32.mrb[0].mxu0
    %v3847 = vadd.f32 %v3654, %v3846
    %3848 = vmatprep.mubr.bf16.mxu0 %v379
    %3849 = vmatmul.mubr.bf16.gmra.mrb[0].mxu0 %v378
    %v3850 = vpop.f32.mrb[0].mxu0
    %v3851 = vadd.f32 %v3658, %v3850
    %v3852 = vpop.f32.mrb[0].mxu0
    %v3853 = vadd.f32 %v3660, %v3852
    %v3854 = vpop.f32.mrb[0].mxu0
    %v3855 = vadd.f32 %v3662, %v3854
    %v3856 = vpop.f32.mrb[0].mxu0
    %v3857 = vadd.f32 %v3664, %v3856
    %3858 = vmatprep.mubr.bf16.mxu0 %v387
    %3859 = vmatmul.mubr.bf16.gmra.mrb[0].mxu0 %v386
    %v3860 = vpop.f32.mrb[0].mxu0
    %v3861 = vadd.f32 %v3668, %v3860
    %v3862 = vpop.f32.mrb[0].mxu0
    %v3863 = vadd.f32 %v3670, %v3862
    %v3864 = vpop.f32.mrb[0].mxu0
    %v3865 = vadd.f32 %v3672, %v3864
    %v3866 = vpop.f32.mrb[0].mxu0
    %v3867 = vadd.f32 %v3674, %v3866
    %3868 = vmatprep.mubr.bf16.mxu0 %v395
    %3869 = vmatmul.mubr.bf16.gmra.mrb[0].mxu0 %v394
    %v3870 = vpop.f32.mrb[0].mxu0
    %v3871 = vadd.f32 %v3678, %v3870
    %v3872 = vpop.f32.mrb[0].mxu0
    %v3873 = vadd.f32 %v3680, %v3872
    %v3874 = vpop.f32.mrb[0].mxu0
    %v3875 = vadd.f32 %v3682, %v3874
    %v3876 = vpop.f32.mrb[0].mxu0
    %v3877 = vadd.f32 %v3684, %v3876
    %3878 = vmatprep.mubr.bf16.mxu0 %v403
    %3879 = vmatmul.mubr.bf16.gmra.mrb[0].mxu0 %v402
    %v3880 = vpop.f32.mrb[0].mxu0
    %v3881 = vadd.f32 %v3688, %v3880
    %v3882 = vpop.f32.mrb[0].mxu0
    %v3883 = vadd.f32 %v3690, %v3882
    %v3884 = vpop.f32.mrb[0].mxu0
    %v3885 = vadd.f32 %v3692, %v3884
    %v3886 = vpop.f32.mrb[0].mxu0
    %v3887 = vadd.f32 %v3694, %v3886
    %3888 = vmatprep.mubr.bf16.mxu0 %v411
    %3889 = vmatmul.mubr.bf16.gmra.mrb[0].mxu0 %v410
    %v3890 = vpop.f32.mrb[0].mxu0
    %v3891 = vadd.f32 %v3698, %v3890
    %v3892 = vpop.f32.mrb[0].mxu0
    %v3893 = vadd.f32 %v3700, %v3892
    %v3894 = vpop.f32.mrb[0].mxu0
    %v3895 = vadd.f32 %v3702, %v3894
    %v3896 = vpop.f32.mrb[0].mxu0
    %v3897 = vadd.f32 %v3704, %v3896
    %3898 = vmatprep.mubr.bf16.mxu0 %v419
    %3899 = vmatmul.mubr.bf16.gmra.mrb[0].mxu0 %v418
    %v3900 = vpop.f32.mrb[0].mxu0
    %v3901 = vadd.f32 %v3708, %v3900
    %v3902 = vpop.f32.mrb[0].mxu0
    %v3903 = vadd.f32 %v3710, %v3902
    %v3904 = vpop.f32.mrb[0].mxu0
    %v3905 = vadd.f32 %v3712, %v3904
    %v3906 = vpop.f32.mrb[0].mxu0
    %v3907 = vadd.f32 %v3714, %v3906
    %3908 = vmatprep.mubr.bf16.mxu0 %v427
    %3909 = vmatmul.mubr.bf16.gmra.mrb[0].mxu0 %v426
    %v3910 = vpop.f32.mrb[0].mxu0
    %v3911 = vadd.f32 %v3718, %v3910
    %v3912 = vpop.f32.mrb[0].mxu0
    %v3913 = vadd.f32 %v3720, %v3912
    %v3914 = vpop.f32.mrb[0].mxu0
    %v3915 = vadd.f32 %v3722, %v3914
    %v3916 = vpop.f32.mrb[0].mxu0
    %v3917 = vadd.f32 %v3724, %v3916
    %3918 = vmatprep.mubr.bf16.mxu0 %v435
    %3919 = vmatmul.mubr.bf16.gmra.mrb[0].mxu0 %v434
    %v3920 = vpop.f32.mrb[0].mxu0
    %v3921 = vadd.f32 %v3728, %v3920
    %v3922 = vpop.f32.mrb[0].mxu0
    %v3923 = vadd.f32 %v3730, %v3922
    %v3924 = vpop.f32.mrb[0].mxu0
    %v3925 = vadd.f32 %v3732, %v3924
    %v3926 = vpop.f32.mrb[0].mxu0
    %v3927 = vadd.f32 %v3734, %v3926
    %3928 = vmatprep.mubr.bf16.mxu0 %v443
    %3929 = vmatmul.mubr.bf16.gmra.mrb[0].mxu0 %v442
    %v3930 = vpop.f32.mrb[0].mxu0
    %v3931 = vadd.f32 %v3738, %v3930
    %v3932 = vpop.f32.mrb[0].mxu0
    %v3933 = vadd.f32 %v3740, %v3932
    %v3934 = vpop.f32.mrb[0].mxu0
    %v3935 = vadd.f32 %v3742, %v3934
    %v3936 = vpop.f32.mrb[0].mxu0
    %v3937 = vadd.f32 %v3744, %v3936
    %3938 = vmatprep.mubr.bf16.mxu0 %v451
    %3939 = vmatmul.mubr.bf16.gmra.mrb[0].mxu0 %v450
    %v3940 = vpop.f32.mrb[0].mxu0
    %v3941 = vadd.f32 %v3748, %v3940
    %v3942 = vpop.f32.mrb[0].mxu0
    %v3943 = vadd.f32 %v3750, %v3942
    %v3944 = vpop.f32.mrb[0].mxu0
    %v3945 = vadd.f32 %v3752, %v3944
    %v3946 = vpop.f32.mrb[0].mxu0
    %v3947 = vadd.f32 %v3754, %v3946
    %3948 = vmatprep.mubr.bf16.mxu0 %v459
    %3949 = vmatmul.mubr.bf16.gmra.mrb[0].mxu0 %v458
    %v3950 = vpop.f32.mrb[0].mxu0
    %v3951 = vadd.f32 %v3758, %v3950
    %v3952 = vpop.f32.mrb[0].mxu0
    %v3953 = vadd.f32 %v3760, %v3952
    %v3954 = vpop.f32.mrb[0].mxu0
    %v3955 = vadd.f32 %v3762, %v3954
    %v3956 = vpop.f32.mrb[0].mxu0
    %v3957 = vadd.f32 %v3764, %v3956
    %3958 = vmatprep.mubr.bf16.mxu0 %v467
    %3959 = vmatmul.mubr.bf16.gmra.mrb[0].mxu0 %v466
    %v3960 = vpop.f32.mrb[0].mxu0
    %v3961 = vadd.f32 %v3768, %v3960
    %v3962 = vpop.f32.mrb[0].mxu0
    %v3963 = vadd.f32 %v3770, %v3962
    %v3964 = vpop.f32.mrb[0].mxu0
    %v3965 = vadd.f32 %v3772, %v3964
    %v3966 = vpop.f32.mrb[0].mxu0
    %v3967 = vadd.f32 %v3774, %v3966
    %3968 = vmatprep.mubr.bf16.mxu0 %v475
    %3969 = vmatmul.mubr.bf16.gmra.mrb[0].mxu0 %v474
    %v3970 = vpop.f32.mrb[0].mxu0
    %v3971 = vadd.f32 %v3778, %v3970
    %v3972 = vpop.f32.mrb[0].mxu0
    %v3973 = vadd.f32 %v3780, %v3972
    %v3974 = vpop.f32.mrb[0].mxu0
    %v3975 = vadd.f32 %v3782, %v3974
    %v3976 = vpop.f32.mrb[0].mxu0
    %v3977 = vadd.f32 %v3784, %v3976
    %3978 = vdwg.mxu0
    %3979 = vmatprep.subr.bf16.mxu0 %v2826
    %3980 = vmatpush1.bf16.msra.mxu0 %v2825
    %3981 = vmatprep.subr.bf16.mxu0 %v2834
    %3982 = vmatpush1.bf16.msra.mxu0 %v2833
    %3983 = vmatprep.subr.bf16.mxu0 %v2842
    %3984 = vmatpush1.bf16.msra.mxu0 %v2841
    %3985 = vmatprep.subr.bf16.mxu0 %v2850
    %3986 = vmatpush1.bf16.msra.mxu0 %v2849
    %3987 = vmatprep.subr.bf16.mxu0 %v2858
    %3988 = vmatpush1.bf16.msra.mxu0 %v2857
    %3989 = vmatprep.subr.bf16.mxu0 %v2866
    %3990 = vmatpush1.bf16.msra.mxu0 %v2865
    %3991 = vmatprep.subr.bf16.mxu0 %v2874
    %3992 = vmatpush1.bf16.msra.mxu0 %v2873
    %3993 = vmatprep.subr.bf16.mxu0 %v2882
    %3994 = vmatpush1.bf16.msra.mxu0 %v2881
    %3995 = vmatprep.subr.bf16.mxu0 %v2890
    %3996 = vmatpush1.bf16.msra.mxu0 %v2889
    %3997 = vmatprep.subr.bf16.mxu0 %v2898
    %3998 = vmatpush1.bf16.msra.mxu0 %v2897
    %3999 = vmatprep.subr.bf16.mxu0 %v2906
    %4000 = vmatpush1.bf16.msra.mxu0 %v2905
    %4001 = vmatprep.subr.bf16.mxu0 %v2914
    %4002 = vmatpush1.bf16.msra.mxu0 %v2913
    %4003 = vmatprep.subr.bf16.mxu0 %v2922
    %4004 = vmatpush1.bf16.msra.mxu0 %v2921
    %4005 = vmatprep.subr.bf16.mxu0 %v2930
    %4006 = vmatpush1.bf16.msra.mxu0 %v2929
    %4007 = vmatprep.subr.bf16.mxu0 %v2938
    %4008 = vmatpush1.bf16.msra.mxu0 %v2937
    %4009 = vmatprep.subr.bf16.mxu0 %v2946
    %4010 = vmatpush1.bf16.msra.mxu0 %v2945
    %4011 = vmatprep.mubr.bf16.mxu0 %v357
    %4012 = vmatmul.mubr.bf16.gmra.mrb[0].mxu0 %v356
    %v4013 = vpop.f32.mrb[0].mxu0
    %v4014 = vadd.f32 %v3821, %v4013
    %v4015 = vpop.f32.mrb[0].mxu0
    %v4016 = vadd.f32 %v3823, %v4015
    %v4017 = vpop.f32.mrb[0].mxu0
    %v4018 = vadd.f32 %v3825, %v4017
    %v4019 = vpop.f32.mrb[0].mxu0
    %v4020 = vadd.f32 %v3827, %v4019
    %4021 = vmatprep.mubr.bf16.mxu0 %v365
    %4022 = vmatmul.mubr.bf16.gmra.mrb[0].mxu0 %v364
    %v4023 = vpop.f32.mrb[0].mxu0
    %v4024 = vadd.f32 %v3831, %v4023
    %v4025 = vpop.f32.mrb[0].mxu0
    %v4026 = vadd.f32 %v3833, %v4025
    %v4027 = vpop.f32.mrb[0].mxu0
    %v4028 = vadd.f32 %v3835, %v4027
    %v4029 = vpop.f32.mrb[0].mxu0
    %v4030 = vadd.f32 %v3837, %v4029
    %4031 = vmatprep.mubr.bf16.mxu0 %v373
    %4032 = vmatmul.mubr.bf16.gmra.mrb[0].mxu0 %v372
    %v4033 = vpop.f32.mrb[0].mxu0
    %v4034 = vadd.f32 %v3841, %v4033
    %v4035 = vpop.f32.mrb[0].mxu0
    %v4036 = vadd.f32 %v3843, %v4035
    %v4037 = vpop.f32.mrb[0].mxu0
    %v4038 = vadd.f32 %v3845, %v4037
    %v4039 = vpop.f32.mrb[0].mxu0
    %v4040 = vadd.f32 %v3847, %v4039
    %4041 = vmatprep.mubr.bf16.mxu0 %v381
    %4042 = vmatmul.mubr.bf16.gmra.mrb[0].mxu0 %v380
    %v4043 = vpop.f32.mrb[0].mxu0
    %v4044 = vadd.f32 %v3851, %v4043
    %v4045 = vpop.f32.mrb[0].mxu0
    %v4046 = vadd.f32 %v3853, %v4045
    %v4047 = vpop.f32.mrb[0].mxu0
    %v4048 = vadd.f32 %v3855, %v4047
    %v4049 = vpop.f32.mrb[0].mxu0
    %v4050 = vadd.f32 %v3857, %v4049
    %4051 = vmatprep.mubr.bf16.mxu0 %v389
    %4052 = vmatmul.mubr.bf16.gmra.mrb[0].mxu0 %v388
    %v4053 = vpop.f32.mrb[0].mxu0
    %v4054 = vadd.f32 %v3861, %v4053
    %v4055 = vpop.f32.mrb[0].mxu0
    %v4056 = vadd.f32 %v3863, %v4055
    %v4057 = vpop.f32.mrb[0].mxu0
    %v4058 = vadd.f32 %v3865, %v4057
    %v4059 = vpop.f32.mrb[0].mxu0
    %v4060 = vadd.f32 %v3867, %v4059
    %4061 = vmatprep.mubr.bf16.mxu0 %v397
    %4062 = vmatmul.mubr.bf16.gmra.mrb[0].mxu0 %v396
    %v4063 = vpop.f32.mrb[0].mxu0
    %v4064 = vadd.f32 %v3871, %v4063
    %v4065 = vpop.f32.mrb[0].mxu0
    %v4066 = vadd.f32 %v3873, %v4065
    %v4067 = vpop.f32.mrb[0].mxu0
    %v4068 = vadd.f32 %v3875, %v4067
    %v4069 = vpop.f32.mrb[0].mxu0
    %v4070 = vadd.f32 %v3877, %v4069
    %4071 = vmatprep.mubr.bf16.mxu0 %v405
    %4072 = vmatmul.mubr.bf16.gmra.mrb[0].mxu0 %v404
    %v4073 = vpop.f32.mrb[0].mxu0
    %v4074 = vadd.f32 %v3881, %v4073
    %v4075 = vpop.f32.mrb[0].mxu0
    %v4076 = vadd.f32 %v3883, %v4075
    %v4077 = vpop.f32.mrb[0].mxu0
    %v4078 = vadd.f32 %v3885, %v4077
    %v4079 = vpop.f32.mrb[0].mxu0
    %v4080 = vadd.f32 %v3887, %v4079
    %4081 = vmatprep.mubr.bf16.mxu0 %v413
    %4082 = vmatmul.mubr.bf16.gmra.mrb[0].mxu0 %v412
    %v4083 = vpop.f32.mrb[0].mxu0
    %v4084 = vadd.f32 %v3891, %v4083
    %v4085 = vpop.f32.mrb[0].mxu0
    %v4086 = vadd.f32 %v3893, %v4085
    %v4087 = vpop.f32.mrb[0].mxu0
    %v4088 = vadd.f32 %v3895, %v4087
    %v4089 = vpop.f32.mrb[0].mxu0
    %v4090 = vadd.f32 %v3897, %v4089
    %4091 = vmatprep.mubr.bf16.mxu0 %v421
    %4092 = vmatmul.mubr.bf16.gmra.mrb[0].mxu0 %v420
    %v4093 = vpop.f32.mrb[0].mxu0
    %v4094 = vadd.f32 %v3901, %v4093
    %v4095 = vpop.f32.mrb[0].mxu0
    %v4096 = vadd.f32 %v3903, %v4095
    %v4097 = vpop.f32.mrb[0].mxu0
    %v4098 = vadd.f32 %v3905, %v4097
    %v4099 = vpop.f32.mrb[0].mxu0
    %v4100 = vadd.f32 %v3907, %v4099
    %4101 = vmatprep.mubr.bf16.mxu0 %v429
    %4102 = vmatmul.mubr.bf16.gmra.mrb[0].mxu0 %v428
    %v4103 = vpop.f32.mrb[0].mxu0
    %v4104 = vadd.f32 %v3911, %v4103
    %v4105 = vpop.f32.mrb[0].mxu0
    %v4106 = vadd.f32 %v3913, %v4105
    %v4107 = vpop.f32.mrb[0].mxu0
    %v4108 = vadd.f32 %v3915, %v4107
    %v4109 = vpop.f32.mrb[0].mxu0
    %v4110 = vadd.f32 %v3917, %v4109
    %4111 = vmatprep.mubr.bf16.mxu0 %v437
    %4112 = vmatmul.mubr.bf16.gmra.mrb[0].mxu0 %v436
    %v4113 = vpop.f32.mrb[0].mxu0
    %v4114 = vadd.f32 %v3921, %v4113
    %v4115 = vpop.f32.mrb[0].mxu0
    %v4116 = vadd.f32 %v3923, %v4115
    %v4117 = vpop.f32.mrb[0].mxu0
    %v4118 = vadd.f32 %v3925, %v4117
    %v4119 = vpop.f32.mrb[0].mxu0
    %v4120 = vadd.f32 %v3927, %v4119
    %4121 = vmatprep.mubr.bf16.mxu0 %v445
    %4122 = vmatmul.mubr.bf16.gmra.mrb[0].mxu0 %v444
    %v4123 = vpop.f32.mrb[0].mxu0
    %v4124 = vadd.f32 %v3931, %v4123
    %v4125 = vpop.f32.mrb[0].mxu0
    %v4126 = vadd.f32 %v3933, %v4125
    %v4127 = vpop.f32.mrb[0].mxu0
    %v4128 = vadd.f32 %v3935, %v4127
    %v4129 = vpop.f32.mrb[0].mxu0
    %v4130 = vadd.f32 %v3937, %v4129
    %4131 = vmatprep.mubr.bf16.mxu0 %v453
    %4132 = vmatmul.mubr.bf16.gmra.mrb[0].mxu0 %v452
    %v4133 = vpop.f32.mrb[0].mxu0
    %v4134 = vadd.f32 %v3941, %v4133
    %v4135 = vpop.f32.mrb[0].mxu0
    %v4136 = vadd.f32 %v3943, %v4135
    %v4137 = vpop.f32.mrb[0].mxu0
    %v4138 = vadd.f32 %v3945, %v4137
    %v4139 = vpop.f32.mrb[0].mxu0
    %v4140 = vadd.f32 %v3947, %v4139
    %4141 = vmatprep.mubr.bf16.mxu0 %v461
    %4142 = vmatmul.mubr.bf16.gmra.mrb[0].mxu0 %v460
    %v4143 = vpop.f32.mrb[0].mxu0
    %v4144 = vadd.f32 %v3951, %v4143
    %v4145 = vpop.f32.mrb[0].mxu0
    %v4146 = vadd.f32 %v3953, %v4145
    %v4147 = vpop.f32.mrb[0].mxu0
    %v4148 = vadd.f32 %v3955, %v4147
    %v4149 = vpop.f32.mrb[0].mxu0
    %v4150 = vadd.f32 %v3957, %v4149
    %4151 = vmatprep.mubr.bf16.mxu0 %v469
    %4152 = vmatmul.mubr.bf16.gmra.mrb[0].mxu0 %v468
    %v4153 = vpop.f32.mrb[0].mxu0
    %v4154 = vadd.f32 %v3961, %v4153
    %v4155 = vpop.f32.mrb[0].mxu0
    %v4156 = vadd.f32 %v3963, %v4155
    %v4157 = vpop.f32.mrb[0].mxu0
    %v4158 = vadd.f32 %v3965, %v4157
    %v4159 = vpop.f32.mrb[0].mxu0
    %v4160 = vadd.f32 %v3967, %v4159
    %4161 = vmatprep.mubr.bf16.mxu0 %v477
    %4162 = vmatmul.mubr.bf16.gmra.mrb[0].mxu0 %v476
    %v4163 = vpop.f32.mrb[0].mxu0
    %v4164 = vadd.f32 %v3971, %v4163
    %v4165 = vpop.f32.mrb[0].mxu0
    %v4166 = vadd.f32 %v3973, %v4165
    %v4167 = vpop.f32.mrb[0].mxu0
    %v4168 = vadd.f32 %v3975, %v4167
    %v4169 = vpop.f32.mrb[0].mxu0
    %v4170 = vadd.f32 %v3977, %v4169
    %4171 = vdwg.mxu0
    %4172 = vmatprep.subr.bf16.mxu0 %v2954
    %4173 = vmatpush1.bf16.msra.mxu0 %v2953
    %4174 = vmatprep.subr.bf16.mxu0 %v2962
    %4175 = vmatpush1.bf16.msra.mxu0 %v2961
    %4176 = vmatprep.subr.bf16.mxu0 %v2970
    %4177 = vmatpush1.bf16.msra.mxu0 %v2969
    %4178 = vmatprep.subr.bf16.mxu0 %v2978
    %4179 = vmatpush1.bf16.msra.mxu0 %v2977
    %4180 = vmatprep.subr.bf16.mxu0 %v2986
    %4181 = vmatpush1.bf16.msra.mxu0 %v2985
    %4182 = vmatprep.subr.bf16.mxu0 %v2994
    %4183 = vmatpush1.bf16.msra.mxu0 %v2993
    %4184 = vmatprep.subr.bf16.mxu0 %v3002
    %4185 = vmatpush1.bf16.msra.mxu0 %v3001
    %4186 = vmatprep.subr.bf16.mxu0 %v3010
    %4187 = vmatpush1.bf16.msra.mxu0 %v3009
    %4188 = vmatprep.subr.bf16.mxu0 %v3018
    %4189 = vmatpush1.bf16.msra.mxu0 %v3017
    %4190 = vmatprep.subr.bf16.mxu0 %v3026
    %4191 = vmatpush1.bf16.msra.mxu0 %v3025
    %4192 = vmatprep.subr.bf16.mxu0 %v3034
    %4193 = vmatpush1.bf16.msra.mxu0 %v3033
    %4194 = vmatprep.subr.bf16.mxu0 %v3042
    %4195 = vmatpush1.bf16.msra.mxu0 %v3041
    %4196 = vmatprep.subr.bf16.mxu0 %v3050
    %4197 = vmatpush1.bf16.msra.mxu0 %v3049
    %4198 = vmatprep.subr.bf16.mxu0 %v3058
    %4199 = vmatpush1.bf16.msra.mxu0 %v3057
    %4200 = vmatprep.subr.bf16.mxu0 %v3066
    %4201 = vmatpush1.bf16.msra.mxu0 %v3065
    %4202 = vmatprep.subr.bf16.mxu0 %v3074
    %4203 = vmatpush1.bf16.msra.mxu0 %v3073
    %4204 = vmatprep.mubr.bf16.mxu0 %v359
    %4205 = vmatmul.mubr.bf16.gmra.mrb[0].mxu0 %v358
    %v4206 = vpop.f32.mrb[0].mxu0
    %v4207 = vadd.f32 %v4014, %v4206
    %v4208 = vpop.f32.mrb[0].mxu0
    %v4209 = vadd.f32 %v4016, %v4208
    %v4210 = vpop.f32.mrb[0].mxu0
    %v4211 = vadd.f32 %v4018, %v4210
    %v4212 = vpop.f32.mrb[0].mxu0
    %v4213 = vadd.f32 %v4020, %v4212
    %4214 = vmatprep.mubr.bf16.mxu0 %v367
    %4215 = vmatmul.mubr.bf16.gmra.mrb[0].mxu0 %v366
    %v4216 = vpop.f32.mrb[0].mxu0
    %v4217 = vadd.f32 %v4024, %v4216
    %v4218 = vpop.f32.mrb[0].mxu0
    %v4219 = vadd.f32 %v4026, %v4218
    %v4220 = vpop.f32.mrb[0].mxu0
    %v4221 = vadd.f32 %v4028, %v4220
    %v4222 = vpop.f32.mrb[0].mxu0
    %v4223 = vadd.f32 %v4030, %v4222
    %4224 = vmatprep.mubr.bf16.mxu0 %v375
    %4225 = vmatmul.mubr.bf16.gmra.mrb[0].mxu0 %v374
    %v4226 = vpop.f32.mrb[0].mxu0
    %v4227 = vadd.f32 %v4034, %v4226
    %v4228 = vpop.f32.mrb[0].mxu0
    %v4229 = vadd.f32 %v4036, %v4228
    %v4230 = vpop.f32.mrb[0].mxu0
    %v4231 = vadd.f32 %v4038, %v4230
    %v4232 = vpop.f32.mrb[0].mxu0
    %v4233 = vadd.f32 %v4040, %v4232
    %4234 = vmatprep.mubr.bf16.mxu0 %v383
    %4235 = vmatmul.mubr.bf16.gmra.mrb[0].mxu0 %v382
    %v4236 = vpop.f32.mrb[0].mxu0
    %v4237 = vadd.f32 %v4044, %v4236
    %v4238 = vpop.f32.mrb[0].mxu0
    %v4239 = vadd.f32 %v4046, %v4238
    %v4240 = vpop.f32.mrb[0].mxu0
    %v4241 = vadd.f32 %v4048, %v4240
    %v4242 = vpop.f32.mrb[0].mxu0
    %v4243 = vadd.f32 %v4050, %v4242
    %4244 = vmatprep.mubr.bf16.mxu0 %v391
    %4245 = vmatmul.mubr.bf16.gmra.mrb[0].mxu0 %v390
    %v4246 = vpop.f32.mrb[0].mxu0
    %v4247 = vadd.f32 %v4054, %v4246
    %v4248 = vpop.f32.mrb[0].mxu0
    %v4249 = vadd.f32 %v4056, %v4248
    %v4250 = vpop.f32.mrb[0].mxu0
    %v4251 = vadd.f32 %v4058, %v4250
    %v4252 = vpop.f32.mrb[0].mxu0
    %v4253 = vadd.f32 %v4060, %v4252
    %4254 = vmatprep.mubr.bf16.mxu0 %v399
    %4255 = vmatmul.mubr.bf16.gmra.mrb[0].mxu0 %v398
    %v4256 = vpop.f32.mrb[0].mxu0
    %v4257 = vadd.f32 %v4064, %v4256
    %v4258 = vpop.f32.mrb[0].mxu0
    %v4259 = vadd.f32 %v4066, %v4258
    %v4260 = vpop.f32.mrb[0].mxu0
    %v4261 = vadd.f32 %v4068, %v4260
    %v4262 = vpop.f32.mrb[0].mxu0
    %v4263 = vadd.f32 %v4070, %v4262
    %4264 = vmatprep.mubr.bf16.mxu0 %v407
    %4265 = vmatmul.mubr.bf16.gmra.mrb[0].mxu0 %v406
    %v4266 = vpop.f32.mrb[0].mxu0
    %v4267 = vadd.f32 %v4074, %v4266
    %v4268 = vpop.f32.mrb[0].mxu0
    %v4269 = vadd.f32 %v4076, %v4268
    %v4270 = vpop.f32.mrb[0].mxu0
    %v4271 = vadd.f32 %v4078, %v4270
    %v4272 = vpop.f32.mrb[0].mxu0
    %v4273 = vadd.f32 %v4080, %v4272
    %4274 = vmatprep.mubr.bf16.mxu0 %v415
    %4275 = vmatmul.mubr.bf16.gmra.mrb[0].mxu0 %v414
    %v4276 = vpop.f32.mrb[0].mxu0
    %v4277 = vadd.f32 %v4084, %v4276
    %v4278 = vpop.f32.mrb[0].mxu0
    %v4279 = vadd.f32 %v4086, %v4278
    %v4280 = vpop.f32.mrb[0].mxu0
    %v4281 = vadd.f32 %v4088, %v4280
    %v4282 = vpop.f32.mrb[0].mxu0
    %v4283 = vadd.f32 %v4090, %v4282
    %4284 = vmatprep.mubr.bf16.mxu0 %v423
    %4285 = vmatmul.mubr.bf16.gmra.mrb[0].mxu0 %v422
    %v4286 = vpop.f32.mrb[0].mxu0
    %v4287 = vadd.f32 %v4094, %v4286
    %v4288 = vpop.f32.mrb[0].mxu0
    %v4289 = vadd.f32 %v4096, %v4288
    %v4290 = vpop.f32.mrb[0].mxu0
    %v4291 = vadd.f32 %v4098, %v4290
    %v4292 = vpop.f32.mrb[0].mxu0
    %v4293 = vadd.f32 %v4100, %v4292
    %4294 = vmatprep.mubr.bf16.mxu0 %v431
    %4295 = vmatmul.mubr.bf16.gmra.mrb[0].mxu0 %v430
    %v4296 = vpop.f32.mrb[0].mxu0
    %v4297 = vadd.f32 %v4104, %v4296
    %v4298 = vpop.f32.mrb[0].mxu0
    %v4299 = vadd.f32 %v4106, %v4298
    %v4300 = vpop.f32.mrb[0].mxu0
    %v4301 = vadd.f32 %v4108, %v4300
    %v4302 = vpop.f32.mrb[0].mxu0
    %v4303 = vadd.f32 %v4110, %v4302
    %4304 = vmatprep.mubr.bf16.mxu0 %v439
    %4305 = vmatmul.mubr.bf16.gmra.mrb[0].mxu0 %v438
    %v4306 = vpop.f32.mrb[0].mxu0
    %v4307 = vadd.f32 %v4114, %v4306
    %v4308 = vpop.f32.mrb[0].mxu0
    %v4309 = vadd.f32 %v4116, %v4308
    %v4310 = vpop.f32.mrb[0].mxu0
    %v4311 = vadd.f32 %v4118, %v4310
    %v4312 = vpop.f32.mrb[0].mxu0
    %v4313 = vadd.f32 %v4120, %v4312
    %4314 = vmatprep.mubr.bf16.mxu0 %v447
    %4315 = vmatmul.mubr.bf16.gmra.mrb[0].mxu0 %v446
    %v4316 = vpop.f32.mrb[0].mxu0
    %v4317 = vadd.f32 %v4124, %v4316
    %v4318 = vpop.f32.mrb[0].mxu0
    %v4319 = vadd.f32 %v4126, %v4318
    %v4320 = vpop.f32.mrb[0].mxu0
    %v4321 = vadd.f32 %v4128, %v4320
    %v4322 = vpop.f32.mrb[0].mxu0
    %v4323 = vadd.f32 %v4130, %v4322
    %4324 = vmatprep.mubr.bf16.mxu0 %v455
    %4325 = vmatmul.mubr.bf16.gmra.mrb[0].mxu0 %v454
    %v4326 = vpop.f32.mrb[0].mxu0
    %v4327 = vadd.f32 %v4134, %v4326
    %v4328 = vpop.f32.mrb[0].mxu0
    %v4329 = vadd.f32 %v4136, %v4328
    %v4330 = vpop.f32.mrb[0].mxu0
    %v4331 = vadd.f32 %v4138, %v4330
    %v4332 = vpop.f32.mrb[0].mxu0
    %v4333 = vadd.f32 %v4140, %v4332
    %4334 = vmatprep.mubr.bf16.mxu0 %v463
    %4335 = vmatmul.mubr.bf16.gmra.mrb[0].mxu0 %v462
    %v4336 = vpop.f32.mrb[0].mxu0
    %v4337 = vadd.f32 %v4144, %v4336
    %v4338 = vpop.f32.mrb[0].mxu0
    %v4339 = vadd.f32 %v4146, %v4338
    %v4340 = vpop.f32.mrb[0].mxu0
    %v4341 = vadd.f32 %v4148, %v4340
    %v4342 = vpop.f32.mrb[0].mxu0
    %v4343 = vadd.f32 %v4150, %v4342
    %4344 = vmatprep.mubr.bf16.mxu0 %v471
    %4345 = vmatmul.mubr.bf16.gmra.mrb[0].mxu0 %v470
    %v4346 = vpop.f32.mrb[0].mxu0
    %v4347 = vadd.f32 %v4154, %v4346
    %v4348 = vpop.f32.mrb[0].mxu0
    %v4349 = vadd.f32 %v4156, %v4348
    %v4350 = vpop.f32.mrb[0].mxu0
    %v4351 = vadd.f32 %v4158, %v4350
    %v4352 = vpop.f32.mrb[0].mxu0
    %v4353 = vadd.f32 %v4160, %v4352
    %4354 = vmatprep.mubr.bf16.mxu0 %v479
    %4355 = vmatmul.mubr.bf16.gmra.mrb[0].mxu0 %v478
    %v4356 = vpop.f32.mrb[0].mxu0
    %v4357 = vadd.f32 %v4164, %v4356
    %v4358 = vpop.f32.mrb[0].mxu0
    %v4359 = vadd.f32 %v4166, %v4358
    %v4360 = vpop.f32.mrb[0].mxu0
    %v4361 = vadd.f32 %v4168, %v4360
    %v4362 = vpop.f32.mrb[0].mxu0
    %v4363 = vadd.f32 %v4170, %v4362
    %4364 = vdwg.mxu0
    %4365 = vmatprep.subr.bf16.mxu0 %v2572
    %4366 = vmatpush1.bf16.msra.mxu0 %v2571
    %4367 = vmatprep.subr.bf16.mxu0 %v2580
    %4368 = vmatpush1.bf16.msra.mxu0 %v2579
    %4369 = vmatprep.subr.bf16.mxu0 %v2588
    %4370 = vmatpush1.bf16.msra.mxu0 %v2587
    %4371 = vmatprep.subr.bf16.mxu0 %v2596
    %4372 = vmatpush1.bf16.msra.mxu0 %v2595
    %4373 = vmatprep.subr.bf16.mxu0 %v2604
    %4374 = vmatpush1.bf16.msra.mxu0 %v2603
    %4375 = vmatprep.subr.bf16.mxu0 %v2612
    %4376 = vmatpush1.bf16.msra.mxu0 %v2611
    %4377 = vmatprep.subr.bf16.mxu0 %v2620
    %4378 = vmatpush1.bf16.msra.mxu0 %v2619
    %4379 = vmatprep.subr.bf16.mxu0 %v2628
    %4380 = vmatpush1.bf16.msra.mxu0 %v2627
    %4381 = vmatprep.subr.bf16.mxu0 %v2636
    %4382 = vmatpush1.bf16.msra.mxu0 %v2635
    %4383 = vmatprep.subr.bf16.mxu0 %v2644
    %4384 = vmatpush1.bf16.msra.mxu0 %v2643
    %4385 = vmatprep.subr.bf16.mxu0 %v2652
    %4386 = vmatpush1.bf16.msra.mxu0 %v2651
    %4387 = vmatprep.subr.bf16.mxu0 %v2660
    %4388 = vmatpush1.bf16.msra.mxu0 %v2659
    %4389 = vmatprep.subr.bf16.mxu0 %v2668
    %4390 = vmatpush1.bf16.msra.mxu0 %v2667
    %4391 = vmatprep.subr.bf16.mxu0 %v2676
    %4392 = vmatpush1.bf16.msra.mxu0 %v2675
    %4393 = vmatprep.subr.bf16.mxu0 %v2684
    %4394 = vmatpush1.bf16.msra.mxu0 %v2683
    %4395 = vmatprep.subr.bf16.mxu0 %v2692
    %4396 = vmatpush1.bf16.msra.mxu0 %v2691
    %4397 = vmatprep.mubr.bf16.mxu0 %v353
    %4398 = vmatmul.mubr.bf16.gmra.mrb[0].mxu0 %v352
    %v4399 = vpop.f32.mrb[0].mxu0
    %v4400 = vadd.f32 %v1004, %v4399
    %v4401 = vpop.f32.mrb[0].mxu0
    %v4402 = vadd.f32 %v1008, %v4401
    %v4403 = vpop.f32.mrb[0].mxu0
    %v4404 = vadd.f32 %v1004, %v4403
    %v4405 = vpop.f32.mrb[0].mxu0
    %v4406 = vadd.f32 %v1008, %v4405
    %4407 = vmatprep.mubr.bf16.mxu0 %v361
    %4408 = vmatmul.mubr.bf16.gmra.mrb[0].mxu0 %v360
    %v4409 = vpop.f32.mrb[0].mxu0
    %v4410 = vadd.f32 %v1004, %v4409
    %v4411 = vpop.f32.mrb[0].mxu0
    %v4412 = vadd.f32 %v1008, %v4411
    %v4413 = vpop.f32.mrb[0].mxu0
    %v4414 = vadd.f32 %v1004, %v4413
    %v4415 = vpop.f32.mrb[0].mxu0
    %v4416 = vadd.f32 %v1008, %v4415
    %4417 = vmatprep.mubr.bf16.mxu0 %v369
    %4418 = vmatmul.mubr.bf16.gmra.mrb[0].mxu0 %v368
    %v4419 = vpop.f32.mrb[0].mxu0
    %v4420 = vadd.f32 %v1004, %v4419
    %v4421 = vpop.f32.mrb[0].mxu0
    %v4422 = vadd.f32 %v1008, %v4421
    %v4423 = vpop.f32.mrb[0].mxu0
    %v4424 = vadd.f32 %v1004, %v4423
    %v4425 = vpop.f32.mrb[0].mxu0
    %v4426 = vadd.f32 %v1008, %v4425
    %4427 = vmatprep.mubr.bf16.mxu0 %v377
    %4428 = vmatmul.mubr.bf16.gmra.mrb[0].mxu0 %v376
    %v4429 = vpop.f32.mrb[0].mxu0
    %v4430 = vadd.f32 %v1004, %v4429
    %v4431 = vpop.f32.mrb[0].mxu0
    %v4432 = vadd.f32 %v1008, %v4431
    %v4433 = vpop.f32.mrb[0].mxu0
    %v4434 = vadd.f32 %v1004, %v4433
    %v4435 = vpop.f32.mrb[0].mxu0
    %v4436 = vadd.f32 %v1008, %v4435
    %4437 = vmatprep.mubr.bf16.mxu0 %v385
    %4438 = vmatmul.mubr.bf16.gmra.mrb[0].mxu0 %v384
    %v4439 = vpop.f32.mrb[0].mxu0
    %v4440 = vadd.f32 %v1004, %v4439
    %v4441 = vpop.f32.mrb[0].mxu0
    %v4442 = vadd.f32 %v1008, %v4441
    %v4443 = vpop.f32.mrb[0].mxu0
    %v4444 = vadd.f32 %v1004, %v4443
    %v4445 = vpop.f32.mrb[0].mxu0
    %v4446 = vadd.f32 %v1008, %v4445
    %4447 = vmatprep.mubr.bf16.mxu0 %v393
    %4448 = vmatmul.mubr.bf16.gmra.mrb[0].mxu0 %v392
    %v4449 = vpop.f32.mrb[0].mxu0
    %v4450 = vadd.f32 %v1004, %v4449
    %v4451 = vpop.f32.mrb[0].mxu0
    %v4452 = vadd.f32 %v1008, %v4451
    %v4453 = vpop.f32.mrb[0].mxu0
    %v4454 = vadd.f32 %v1004, %v4453
    %v4455 = vpop.f32.mrb[0].mxu0
    %v4456 = vadd.f32 %v1008, %v4455
    %4457 = vmatprep.mubr.bf16.mxu0 %v401
    %4458 = vmatmul.mubr.bf16.gmra.mrb[0].mxu0 %v400
    %v4459 = vpop.f32.mrb[0].mxu0
    %v4460 = vadd.f32 %v1004, %v4459
    %v4461 = vpop.f32.mrb[0].mxu0
    %v4462 = vadd.f32 %v1008, %v4461
    %v4463 = vpop.f32.mrb[0].mxu0
    %v4464 = vadd.f32 %v1004, %v4463
    %v4465 = vpop.f32.mrb[0].mxu0
    %v4466 = vadd.f32 %v1008, %v4465
    %4467 = vmatprep.mubr.bf16.mxu0 %v409
    %4468 = vmatmul.mubr.bf16.gmra.mrb[0].mxu0 %v408
    %v4469 = vpop.f32.mrb[0].mxu0
    %v4470 = vadd.f32 %v1004, %v4469
    %v4471 = vpop.f32.mrb[0].mxu0
    %v4472 = vadd.f32 %v1008, %v4471
    %v4473 = vpop.f32.mrb[0].mxu0
    %v4474 = vadd.f32 %v1004, %v4473
    %v4475 = vpop.f32.mrb[0].mxu0
    %v4476 = vadd.f32 %v1008, %v4475
    %4477 = vmatprep.mubr.bf16.mxu0 %v417
    %4478 = vmatmul.mubr.bf16.gmra.mrb[0].mxu0 %v416
    %v4479 = vpop.f32.mrb[0].mxu0
    %v4480 = vadd.f32 %v1004, %v4479
    %v4481 = vpop.f32.mrb[0].mxu0
    %v4482 = vadd.f32 %v1008, %v4481
    %v4483 = vpop.f32.mrb[0].mxu0
    %v4484 = vadd.f32 %v1004, %v4483
    %v4485 = vpop.f32.mrb[0].mxu0
    %v4486 = vadd.f32 %v1008, %v4485
    %4487 = vmatprep.mubr.bf16.mxu0 %v425
    %4488 = vmatmul.mubr.bf16.gmra.mrb[0].mxu0 %v424
    %v4489 = vpop.f32.mrb[0].mxu0
    %v4490 = vadd.f32 %v1004, %v4489
    %v4491 = vpop.f32.mrb[0].mxu0
    %v4492 = vadd.f32 %v1008, %v4491
    %v4493 = vpop.f32.mrb[0].mxu0
    %v4494 = vadd.f32 %v1004, %v4493
    %v4495 = vpop.f32.mrb[0].mxu0
    %v4496 = vadd.f32 %v1008, %v4495
    %4497 = vmatprep.mubr.bf16.mxu0 %v433
    %4498 = vmatmul.mubr.bf16.gmra.mrb[0].mxu0 %v432
    %v4499 = vpop.f32.mrb[0].mxu0
    %v4500 = vadd.f32 %v1004, %v4499
    %v4501 = vpop.f32.mrb[0].mxu0
    %v4502 = vadd.f32 %v1008, %v4501
    %v4503 = vpop.f32.mrb[0].mxu0
    %v4504 = vadd.f32 %v1004, %v4503
    %v4505 = vpop.f32.mrb[0].mxu0
    %v4506 = vadd.f32 %v1008, %v4505
    %4507 = vmatprep.mubr.bf16.mxu0 %v441
    %4508 = vmatmul.mubr.bf16.gmra.mrb[0].mxu0 %v440
    %v4509 = vpop.f32.mrb[0].mxu0
    %v4510 = vadd.f32 %v1004, %v4509
    %v4511 = vpop.f32.mrb[0].mxu0
    %v4512 = vadd.f32 %v1008, %v4511
    %v4513 = vpop.f32.mrb[0].mxu0
    %v4514 = vadd.f32 %v1004, %v4513
    %v4515 = vpop.f32.mrb[0].mxu0
    %v4516 = vadd.f32 %v1008, %v4515
    %4517 = vmatprep.mubr.bf16.mxu0 %v449
    %4518 = vmatmul.mubr.bf16.gmra.mrb[0].mxu0 %v448
    %v4519 = vpop.f32.mrb[0].mxu0
    %v4520 = vadd.f32 %v1004, %v4519
    %v4521 = vpop.f32.mrb[0].mxu0
    %v4522 = vadd.f32 %v1008, %v4521
    %v4523 = vpop.f32.mrb[0].mxu0
    %v4524 = vadd.f32 %v1004, %v4523
    %v4525 = vpop.f32.mrb[0].mxu0
    %v4526 = vadd.f32 %v1008, %v4525
    %4527 = vmatprep.mubr.bf16.mxu0 %v457
    %4528 = vmatmul.mubr.bf16.gmra.mrb[0].mxu0 %v456
    %v4529 = vpop.f32.mrb[0].mxu0
    %v4530 = vadd.f32 %v1004, %v4529
    %v4531 = vpop.f32.mrb[0].mxu0
    %v4532 = vadd.f32 %v1008, %v4531
    %v4533 = vpop.f32.mrb[0].mxu0
    %v4534 = vadd.f32 %v1004, %v4533
    %v4535 = vpop.f32.mrb[0].mxu0
    %v4536 = vadd.f32 %v1008, %v4535
    %4537 = vmatprep.mubr.bf16.mxu0 %v465
    %4538 = vmatmul.mubr.bf16.gmra.mrb[0].mxu0 %v464
    %v4539 = vpop.f32.mrb[0].mxu0
    %v4540 = vadd.f32 %v1004, %v4539
    %v4541 = vpop.f32.mrb[0].mxu0
    %v4542 = vadd.f32 %v1008, %v4541
    %v4543 = vpop.f32.mrb[0].mxu0
    %v4544 = vadd.f32 %v1004, %v4543
    %v4545 = vpop.f32.mrb[0].mxu0
    %v4546 = vadd.f32 %v1008, %v4545
    %4547 = vmatprep.mubr.bf16.mxu0 %v473
    %4548 = vmatmul.mubr.bf16.gmra.mrb[0].mxu0 %v472
    %v4549 = vpop.f32.mrb[0].mxu0
    %v4550 = vadd.f32 %v1004, %v4549
    %v4551 = vpop.f32.mrb[0].mxu0
    %v4552 = vadd.f32 %v1008, %v4551
    %v4553 = vpop.f32.mrb[0].mxu0
    %v4554 = vadd.f32 %v1004, %v4553
    %v4555 = vpop.f32.mrb[0].mxu0
    %v4556 = vadd.f32 %v1008, %v4555
    %4557 = vdwg.mxu0
    %4558 = vmatprep.subr.bf16.mxu0 %v2700
    %4559 = vmatpush1.bf16.msra.mxu0 %v2699
    %4560 = vmatprep.subr.bf16.mxu0 %v2708
    %4561 = vmatpush1.bf16.msra.mxu0 %v2707
    %4562 = vmatprep.subr.bf16.mxu0 %v2716
    %4563 = vmatpush1.bf16.msra.mxu0 %v2715
    %4564 = vmatprep.subr.bf16.mxu0 %v2724
    %4565 = vmatpush1.bf16.msra.mxu0 %v2723
    %4566 = vmatprep.subr.bf16.mxu0 %v2732
    %4567 = vmatpush1.bf16.msra.mxu0 %v2731
    %4568 = vmatprep.subr.bf16.mxu0 %v2740
    %4569 = vmatpush1.bf16.msra.mxu0 %v2739
    %4570 = vmatprep.subr.bf16.mxu0 %v2748
    %4571 = vmatpush1.bf16.msra.mxu0 %v2747
    %4572 = vmatprep.subr.bf16.mxu0 %v2756
    %4573 = vmatpush1.bf16.msra.mxu0 %v2755
    %4574 = vmatprep.subr.bf16.mxu0 %v2764
    %4575 = vmatpush1.bf16.msra.mxu0 %v2763
    %4576 = vmatprep.subr.bf16.mxu0 %v2772
    %4577 = vmatpush1.bf16.msra.mxu0 %v2771
    %4578 = vmatprep.subr.bf16.mxu0 %v2780
    %4579 = vmatpush1.bf16.msra.mxu0 %v2779
    %4580 = vmatprep.subr.bf16.mxu0 %v2788
    %4581 = vmatpush1.bf16.msra.mxu0 %v2787
    %4582 = vmatprep.subr.bf16.mxu0 %v2796
    %4583 = vmatpush1.bf16.msra.mxu0 %v2795
    %4584 = vmatprep.subr.bf16.mxu0 %v2804
    %4585 = vmatpush1.bf16.msra.mxu0 %v2803
    %4586 = vmatprep.subr.bf16.mxu0 %v2812
    %4587 = vmatpush1.bf16.msra.mxu0 %v2811
    %4588 = vmatprep.subr.bf16.mxu0 %v2820
    %4589 = vmatpush1.bf16.msra.mxu0 %v2819
    %4590 = vmatprep.mubr.bf16.mxu0 %v355
    %4591 = vmatmul.mubr.bf16.gmra.mrb[0].mxu0 %v354
    %v4592 = vpop.f32.mrb[0].mxu0
    %v4593 = vadd.f32 %v4400, %v4592
    %v4594 = vpop.f32.mrb[0].mxu0
    %v4595 = vadd.f32 %v4402, %v4594
    %v4596 = vpop.f32.mrb[0].mxu0
    %v4597 = vadd.f32 %v4404, %v4596
    %v4598 = vpop.f32.mrb[0].mxu0
    %v4599 = vadd.f32 %v4406, %v4598
    %4600 = vmatprep.mubr.bf16.mxu0 %v363
    %4601 = vmatmul.mubr.bf16.gmra.mrb[0].mxu0 %v362
    %v4602 = vpop.f32.mrb[0].mxu0
    %v4603 = vadd.f32 %v4410, %v4602
    %v4604 = vpop.f32.mrb[0].mxu0
    %v4605 = vadd.f32 %v4412, %v4604
    %v4606 = vpop.f32.mrb[0].mxu0
    %v4607 = vadd.f32 %v4414, %v4606
    %v4608 = vpop.f32.mrb[0].mxu0
    %v4609 = vadd.f32 %v4416, %v4608
    %4610 = vmatprep.mubr.bf16.mxu0 %v371
    %4611 = vmatmul.mubr.bf16.gmra.mrb[0].mxu0 %v370
    %v4612 = vpop.f32.mrb[0].mxu0
    %v4613 = vadd.f32 %v4420, %v4612
    %v4614 = vpop.f32.mrb[0].mxu0
    %v4615 = vadd.f32 %v4422, %v4614
    %v4616 = vpop.f32.mrb[0].mxu0
    %v4617 = vadd.f32 %v4424, %v4616
    %v4618 = vpop.f32.mrb[0].mxu0
    %v4619 = vadd.f32 %v4426, %v4618
    %4620 = vmatprep.mubr.bf16.mxu0 %v379
    %4621 = vmatmul.mubr.bf16.gmra.mrb[0].mxu0 %v378
    %v4622 = vpop.f32.mrb[0].mxu0
    %v4623 = vadd.f32 %v4430, %v4622
    %v4624 = vpop.f32.mrb[0].mxu0
    %v4625 = vadd.f32 %v4432, %v4624
    %v4626 = vpop.f32.mrb[0].mxu0
    %v4627 = vadd.f32 %v4434, %v4626
    %v4628 = vpop.f32.mrb[0].mxu0
    %v4629 = vadd.f32 %v4436, %v4628
    %4630 = vmatprep.mubr.bf16.mxu0 %v387
    %4631 = vmatmul.mubr.bf16.gmra.mrb[0].mxu0 %v386
    %v4632 = vpop.f32.mrb[0].mxu0
    %v4633 = vadd.f32 %v4440, %v4632
    %v4634 = vpop.f32.mrb[0].mxu0
    %v4635 = vadd.f32 %v4442, %v4634
    %v4636 = vpop.f32.mrb[0].mxu0
    %v4637 = vadd.f32 %v4444, %v4636
    %v4638 = vpop.f32.mrb[0].mxu0
    %v4639 = vadd.f32 %v4446, %v4638
    %4640 = vmatprep.mubr.bf16.mxu0 %v395
    %4641 = vmatmul.mubr.bf16.gmra.mrb[0].mxu0 %v394
    %v4642 = vpop.f32.mrb[0].mxu0
    %v4643 = vadd.f32 %v4450, %v4642
    %v4644 = vpop.f32.mrb[0].mxu0
    %v4645 = vadd.f32 %v4452, %v4644
    %v4646 = vpop.f32.mrb[0].mxu0
    %v4647 = vadd.f32 %v4454, %v4646
    %v4648 = vpop.f32.mrb[0].mxu0
    %v4649 = vadd.f32 %v4456, %v4648
    %4650 = vmatprep.mubr.bf16.mxu0 %v403
    %4651 = vmatmul.mubr.bf16.gmra.mrb[0].mxu0 %v402
    %v4652 = vpop.f32.mrb[0].mxu0
    %v4653 = vadd.f32 %v4460, %v4652
    %v4654 = vpop.f32.mrb[0].mxu0
    %v4655 = vadd.f32 %v4462, %v4654
    %v4656 = vpop.f32.mrb[0].mxu0
    %v4657 = vadd.f32 %v4464, %v4656
    %v4658 = vpop.f32.mrb[0].mxu0
    %v4659 = vadd.f32 %v4466, %v4658
    %4660 = vmatprep.mubr.bf16.mxu0 %v411
    %4661 = vmatmul.mubr.bf16.gmra.mrb[0].mxu0 %v410
    %v4662 = vpop.f32.mrb[0].mxu0
    %v4663 = vadd.f32 %v4470, %v4662
    %v4664 = vpop.f32.mrb[0].mxu0
    %v4665 = vadd.f32 %v4472, %v4664
    %v4666 = vpop.f32.mrb[0].mxu0
    %v4667 = vadd.f32 %v4474, %v4666
    %v4668 = vpop.f32.mrb[0].mxu0
    %v4669 = vadd.f32 %v4476, %v4668
    %4670 = vmatprep.mubr.bf16.mxu0 %v419
    %4671 = vmatmul.mubr.bf16.gmra.mrb[0].mxu0 %v418
    %v4672 = vpop.f32.mrb[0].mxu0
    %v4673 = vadd.f32 %v4480, %v4672
    %v4674 = vpop.f32.mrb[0].mxu0
    %v4675 = vadd.f32 %v4482, %v4674
    %v4676 = vpop.f32.mrb[0].mxu0
    %v4677 = vadd.f32 %v4484, %v4676
    %v4678 = vpop.f32.mrb[0].mxu0
    %v4679 = vadd.f32 %v4486, %v4678
    %4680 = vmatprep.mubr.bf16.mxu0 %v427
    %4681 = vmatmul.mubr.bf16.gmra.mrb[0].mxu0 %v426
    %v4682 = vpop.f32.mrb[0].mxu0
    %v4683 = vadd.f32 %v4490, %v4682
    %v4684 = vpop.f32.mrb[0].mxu0
    %v4685 = vadd.f32 %v4492, %v4684
    %v4686 = vpop.f32.mrb[0].mxu0
    %v4687 = vadd.f32 %v4494, %v4686
    %v4688 = vpop.f32.mrb[0].mxu0
    %v4689 = vadd.f32 %v4496, %v4688
    %4690 = vmatprep.mubr.bf16.mxu0 %v435
    %4691 = vmatmul.mubr.bf16.gmra.mrb[0].mxu0 %v434
    %v4692 = vpop.f32.mrb[0].mxu0
    %v4693 = vadd.f32 %v4500, %v4692
    %v4694 = vpop.f32.mrb[0].mxu0
    %v4695 = vadd.f32 %v4502, %v4694
    %v4696 = vpop.f32.mrb[0].mxu0
    %v4697 = vadd.f32 %v4504, %v4696
    %v4698 = vpop.f32.mrb[0].mxu0
    %v4699 = vadd.f32 %v4506, %v4698
    %4700 = vmatprep.mubr.bf16.mxu0 %v443
    %4701 = vmatmul.mubr.bf16.gmra.mrb[0].mxu0 %v442
    %v4702 = vpop.f32.mrb[0].mxu0
    %v4703 = vadd.f32 %v4510, %v4702
    %v4704 = vpop.f32.mrb[0].mxu0
    %v4705 = vadd.f32 %v4512, %v4704
    %v4706 = vpop.f32.mrb[0].mxu0
    %v4707 = vadd.f32 %v4514, %v4706
    %v4708 = vpop.f32.mrb[0].mxu0
    %v4709 = vadd.f32 %v4516, %v4708
    %4710 = vmatprep.mubr.bf16.mxu0 %v451
    %4711 = vmatmul.mubr.bf16.gmra.mrb[0].mxu0 %v450
    %v4712 = vpop.f32.mrb[0].mxu0
    %v4713 = vadd.f32 %v4520, %v4712
    %v4714 = vpop.f32.mrb[0].mxu0
    %v4715 = vadd.f32 %v4522, %v4714
    %v4716 = vpop.f32.mrb[0].mxu0
    %v4717 = vadd.f32 %v4524, %v4716
    %v4718 = vpop.f32.mrb[0].mxu0
    %v4719 = vadd.f32 %v4526, %v4718
    %4720 = vmatprep.mubr.bf16.mxu0 %v459
    %4721 = vmatmul.mubr.bf16.gmra.mrb[0].mxu0 %v458
    %v4722 = vpop.f32.mrb[0].mxu0
    %v4723 = vadd.f32 %v4530, %v4722
    %v4724 = vpop.f32.mrb[0].mxu0
    %v4725 = vadd.f32 %v4532, %v4724
    %v4726 = vpop.f32.mrb[0].mxu0
    %v4727 = vadd.f32 %v4534, %v4726
    %v4728 = vpop.f32.mrb[0].mxu0
    %v4729 = vadd.f32 %v4536, %v4728
    %4730 = vmatprep.mubr.bf16.mxu0 %v467
    %4731 = vmatmul.mubr.bf16.gmra.mrb[0].mxu0 %v466
    %v4732 = vpop.f32.mrb[0].mxu0
    %v4733 = vadd.f32 %v4540, %v4732
    %v4734 = vpop.f32.mrb[0].mxu0
    %v4735 = vadd.f32 %v4542, %v4734
    %v4736 = vpop.f32.mrb[0].mxu0
    %v4737 = vadd.f32 %v4544, %v4736
    %v4738 = vpop.f32.mrb[0].mxu0
    %v4739 = vadd.f32 %v4546, %v4738
    %4740 = vmatprep.mubr.bf16.mxu0 %v475
    %4741 = vmatmul.mubr.bf16.gmra.mrb[0].mxu0 %v474
    %v4742 = vpop.f32.mrb[0].mxu0
    %v4743 = vadd.f32 %v4550, %v4742
    %v4744 = vpop.f32.mrb[0].mxu0
    %v4745 = vadd.f32 %v4552, %v4744
    %v4746 = vpop.f32.mrb[0].mxu0
    %v4747 = vadd.f32 %v4554, %v4746
    %v4748 = vpop.f32.mrb[0].mxu0
    %v4749 = vadd.f32 %v4556, %v4748
    %4750 = vdwg.mxu0
    %4751 = vmatprep.subr.bf16.mxu0 %v2828
    %4752 = vmatpush1.bf16.msra.mxu0 %v2827
    %4753 = vmatprep.subr.bf16.mxu0 %v2836
    %4754 = vmatpush1.bf16.msra.mxu0 %v2835
    %4755 = vmatprep.subr.bf16.mxu0 %v2844
    %4756 = vmatpush1.bf16.msra.mxu0 %v2843
    %4757 = vmatprep.subr.bf16.mxu0 %v2852
    %4758 = vmatpush1.bf16.msra.mxu0 %v2851
    %4759 = vmatprep.subr.bf16.mxu0 %v2860
    %4760 = vmatpush1.bf16.msra.mxu0 %v2859
    %4761 = vmatprep.subr.bf16.mxu0 %v2868
    %4762 = vmatpush1.bf16.msra.mxu0 %v2867
    %4763 = vmatprep.subr.bf16.mxu0 %v2876
    %4764 = vmatpush1.bf16.msra.mxu0 %v2875
    %4765 = vmatprep.subr.bf16.mxu0 %v2884
    %4766 = vmatpush1.bf16.msra.mxu0 %v2883
    %4767 = vmatprep.subr.bf16.mxu0 %v2892
    %4768 = vmatpush1.bf16.msra.mxu0 %v2891
    %4769 = vmatprep.subr.bf16.mxu0 %v2900
    %4770 = vmatpush1.bf16.msra.mxu0 %v2899
    %4771 = vmatprep.subr.bf16.mxu0 %v2908
    %4772 = vmatpush1.bf16.msra.mxu0 %v2907
    %4773 = vmatprep.subr.bf16.mxu0 %v2916
    %4774 = vmatpush1.bf16.msra.mxu0 %v2915
    %4775 = vmatprep.subr.bf16.mxu0 %v2924
    %4776 = vmatpush1.bf16.msra.mxu0 %v2923
    %4777 = vmatprep.subr.bf16.mxu0 %v2932
    %4778 = vmatpush1.bf16.msra.mxu0 %v2931
    %4779 = vmatprep.subr.bf16.mxu0 %v2940
    %4780 = vmatpush1.bf16.msra.mxu0 %v2939
    %4781 = vmatprep.subr.bf16.mxu0 %v2948
    %4782 = vmatpush1.bf16.msra.mxu0 %v2947
    %4783 = vmatprep.mubr.bf16.mxu0 %v357
    %4784 = vmatmul.mubr.bf16.gmra.mrb[0].mxu0 %v356
    %v4785 = vpop.f32.mrb[0].mxu0
    %v4786 = vadd.f32 %v4593, %v4785
    %v4787 = vpop.f32.mrb[0].mxu0
    %v4788 = vadd.f32 %v4595, %v4787
    %v4789 = vpop.f32.mrb[0].mxu0
    %v4790 = vadd.f32 %v4597, %v4789
    %v4791 = vpop.f32.mrb[0].mxu0
    %v4792 = vadd.f32 %v4599, %v4791
    %4793 = vmatprep.mubr.bf16.mxu0 %v365
    %4794 = vmatmul.mubr.bf16.gmra.mrb[0].mxu0 %v364
    %v4795 = vpop.f32.mrb[0].mxu0
    %v4796 = vadd.f32 %v4603, %v4795
    %v4797 = vpop.f32.mrb[0].mxu0
    %v4798 = vadd.f32 %v4605, %v4797
    %v4799 = vpop.f32.mrb[0].mxu0
    %v4800 = vadd.f32 %v4607, %v4799
    %v4801 = vpop.f32.mrb[0].mxu0
    %v4802 = vadd.f32 %v4609, %v4801
    %4803 = vmatprep.mubr.bf16.mxu0 %v373
    %4804 = vmatmul.mubr.bf16.gmra.mrb[0].mxu0 %v372
    %v4805 = vpop.f32.mrb[0].mxu0
    %v4806 = vadd.f32 %v4613, %v4805
    %v4807 = vpop.f32.mrb[0].mxu0
    %v4808 = vadd.f32 %v4615, %v4807
    %v4809 = vpop.f32.mrb[0].mxu0
    %v4810 = vadd.f32 %v4617, %v4809
    %v4811 = vpop.f32.mrb[0].mxu0
    %v4812 = vadd.f32 %v4619, %v4811
    %4813 = vmatprep.mubr.bf16.mxu0 %v381
    %4814 = vmatmul.mubr.bf16.gmra.mrb[0].mxu0 %v380
    %v4815 = vpop.f32.mrb[0].mxu0
    %v4816 = vadd.f32 %v4623, %v4815
    %v4817 = vpop.f32.mrb[0].mxu0
    %v4818 = vadd.f32 %v4625, %v4817
    %v4819 = vpop.f32.mrb[0].mxu0
    %v4820 = vadd.f32 %v4627, %v4819
    %v4821 = vpop.f32.mrb[0].mxu0
    %v4822 = vadd.f32 %v4629, %v4821
    %4823 = vmatprep.mubr.bf16.mxu0 %v389
    %4824 = vmatmul.mubr.bf16.gmra.mrb[0].mxu0 %v388
    %v4825 = vpop.f32.mrb[0].mxu0
    %v4826 = vadd.f32 %v4633, %v4825
    %v4827 = vpop.f32.mrb[0].mxu0
    %v4828 = vadd.f32 %v4635, %v4827
    %v4829 = vpop.f32.mrb[0].mxu0
    %v4830 = vadd.f32 %v4637, %v4829
    %v4831 = vpop.f32.mrb[0].mxu0
    %v4832 = vadd.f32 %v4639, %v4831
    %4833 = vmatprep.mubr.bf16.mxu0 %v397
    %4834 = vmatmul.mubr.bf16.gmra.mrb[0].mxu0 %v396
    %v4835 = vpop.f32.mrb[0].mxu0
    %v4836 = vadd.f32 %v4643, %v4835
    %v4837 = vpop.f32.mrb[0].mxu0
    %v4838 = vadd.f32 %v4645, %v4837
    %v4839 = vpop.f32.mrb[0].mxu0
    %v4840 = vadd.f32 %v4647, %v4839
    %v4841 = vpop.f32.mrb[0].mxu0
    %v4842 = vadd.f32 %v4649, %v4841
    %4843 = vmatprep.mubr.bf16.mxu0 %v405
    %4844 = vmatmul.mubr.bf16.gmra.mrb[0].mxu0 %v404
    %v4845 = vpop.f32.mrb[0].mxu0
    %v4846 = vadd.f32 %v4653, %v4845
    %v4847 = vpop.f32.mrb[0].mxu0
    %v4848 = vadd.f32 %v4655, %v4847
    %v4849 = vpop.f32.mrb[0].mxu0
    %v4850 = vadd.f32 %v4657, %v4849
    %v4851 = vpop.f32.mrb[0].mxu0
    %v4852 = vadd.f32 %v4659, %v4851
    %4853 = vmatprep.mubr.bf16.mxu0 %v413
    %4854 = vmatmul.mubr.bf16.gmra.mrb[0].mxu0 %v412
    %v4855 = vpop.f32.mrb[0].mxu0
    %v4856 = vadd.f32 %v4663, %v4855
    %v4857 = vpop.f32.mrb[0].mxu0
    %v4858 = vadd.f32 %v4665, %v4857
    %v4859 = vpop.f32.mrb[0].mxu0
    %v4860 = vadd.f32 %v4667, %v4859
    %v4861 = vpop.f32.mrb[0].mxu0
    %v4862 = vadd.f32 %v4669, %v4861
    %4863 = vmatprep.mubr.bf16.mxu0 %v421
    %4864 = vmatmul.mubr.bf16.gmra.mrb[0].mxu0 %v420
    %v4865 = vpop.f32.mrb[0].mxu0
    %v4866 = vadd.f32 %v4673, %v4865
    %v4867 = vpop.f32.mrb[0].mxu0
    %v4868 = vadd.f32 %v4675, %v4867
    %v4869 = vpop.f32.mrb[0].mxu0
    %v4870 = vadd.f32 %v4677, %v4869
    %v4871 = vpop.f32.mrb[0].mxu0
    %v4872 = vadd.f32 %v4679, %v4871
    %4873 = vmatprep.mubr.bf16.mxu0 %v429
    %4874 = vmatmul.mubr.bf16.gmra.mrb[0].mxu0 %v428
    %v4875 = vpop.f32.mrb[0].mxu0
    %v4876 = vadd.f32 %v4683, %v4875
    %v4877 = vpop.f32.mrb[0].mxu0
    %v4878 = vadd.f32 %v4685, %v4877
    %v4879 = vpop.f32.mrb[0].mxu0
    %v4880 = vadd.f32 %v4687, %v4879
    %v4881 = vpop.f32.mrb[0].mxu0
    %v4882 = vadd.f32 %v4689, %v4881
    %4883 = vmatprep.mubr.bf16.mxu0 %v437
    %4884 = vmatmul.mubr.bf16.gmra.mrb[0].mxu0 %v436
    %v4885 = vpop.f32.mrb[0].mxu0
    %v4886 = vadd.f32 %v4693, %v4885
    %v4887 = vpop.f32.mrb[0].mxu0
    %v4888 = vadd.f32 %v4695, %v4887
    %v4889 = vpop.f32.mrb[0].mxu0
    %v4890 = vadd.f32 %v4697, %v4889
    %v4891 = vpop.f32.mrb[0].mxu0
    %v4892 = vadd.f32 %v4699, %v4891
    %4893 = vmatprep.mubr.bf16.mxu0 %v445
    %4894 = vmatmul.mubr.bf16.gmra.mrb[0].mxu0 %v444
    %v4895 = vpop.f32.mrb[0].mxu0
    %v4896 = vadd.f32 %v4703, %v4895
    %v4897 = vpop.f32.mrb[0].mxu0
    %v4898 = vadd.f32 %v4705, %v4897
    %v4899 = vpop.f32.mrb[0].mxu0
    %v4900 = vadd.f32 %v4707, %v4899
    %v4901 = vpop.f32.mrb[0].mxu0
    %v4902 = vadd.f32 %v4709, %v4901
    %4903 = vmatprep.mubr.bf16.mxu0 %v453
    %4904 = vmatmul.mubr.bf16.gmra.mrb[0].mxu0 %v452
    %v4905 = vpop.f32.mrb[0].mxu0
    %v4906 = vadd.f32 %v4713, %v4905
    %v4907 = vpop.f32.mrb[0].mxu0
    %v4908 = vadd.f32 %v4715, %v4907
    %v4909 = vpop.f32.mrb[0].mxu0
    %v4910 = vadd.f32 %v4717, %v4909
    %v4911 = vpop.f32.mrb[0].mxu0
    %v4912 = vadd.f32 %v4719, %v4911
    %4913 = vmatprep.mubr.bf16.mxu0 %v461
    %4914 = vmatmul.mubr.bf16.gmra.mrb[0].mxu0 %v460
    %v4915 = vpop.f32.mrb[0].mxu0
    %v4916 = vadd.f32 %v4723, %v4915
    %v4917 = vpop.f32.mrb[0].mxu0
    %v4918 = vadd.f32 %v4725, %v4917
    %v4919 = vpop.f32.mrb[0].mxu0
    %v4920 = vadd.f32 %v4727, %v4919
    %v4921 = vpop.f32.mrb[0].mxu0
    %v4922 = vadd.f32 %v4729, %v4921
    %4923 = vmatprep.mubr.bf16.mxu0 %v469
    %4924 = vmatmul.mubr.bf16.gmra.mrb[0].mxu0 %v468
    %v4925 = vpop.f32.mrb[0].mxu0
    %v4926 = vadd.f32 %v4733, %v4925
    %v4927 = vpop.f32.mrb[0].mxu0
    %v4928 = vadd.f32 %v4735, %v4927
    %v4929 = vpop.f32.mrb[0].mxu0
    %v4930 = vadd.f32 %v4737, %v4929
    %v4931 = vpop.f32.mrb[0].mxu0
    %v4932 = vadd.f32 %v4739, %v4931
    %4933 = vmatprep.mubr.bf16.mxu0 %v477
    %4934 = vmatmul.mubr.bf16.gmra.mrb[0].mxu0 %v476
    %v4935 = vpop.f32.mrb[0].mxu0
    %v4936 = vadd.f32 %v4743, %v4935
    %v4937 = vpop.f32.mrb[0].mxu0
    %v4938 = vadd.f32 %v4745, %v4937
    %v4939 = vpop.f32.mrb[0].mxu0
    %v4940 = vadd.f32 %v4747, %v4939
    %v4941 = vpop.f32.mrb[0].mxu0
    %v4942 = vadd.f32 %v4749, %v4941
    %4943 = vdwg.mxu0
    %4944 = vmatprep.subr.bf16.mxu0 %v2956
    %4945 = vmatpush1.bf16.msra.mxu0 %v2955
    %4946 = vmatprep.subr.bf16.mxu0 %v2964
    %4947 = vmatpush1.bf16.msra.mxu0 %v2963
    %4948 = vmatprep.subr.bf16.mxu0 %v2972
    %4949 = vmatpush1.bf16.msra.mxu0 %v2971
    %4950 = vmatprep.subr.bf16.mxu0 %v2980
    %4951 = vmatpush1.bf16.msra.mxu0 %v2979
    %4952 = vmatprep.subr.bf16.mxu0 %v2988
    %4953 = vmatpush1.bf16.msra.mxu0 %v2987
    %4954 = vmatprep.subr.bf16.mxu0 %v2996
    %4955 = vmatpush1.bf16.msra.mxu0 %v2995
    %4956 = vmatprep.subr.bf16.mxu0 %v3004
    %4957 = vmatpush1.bf16.msra.mxu0 %v3003
    %4958 = vmatprep.subr.bf16.mxu0 %v3012
    %4959 = vmatpush1.bf16.msra.mxu0 %v3011
    %4960 = vmatprep.subr.bf16.mxu0 %v3020
    %4961 = vmatpush1.bf16.msra.mxu0 %v3019
    %4962 = vmatprep.subr.bf16.mxu0 %v3028
    %4963 = vmatpush1.bf16.msra.mxu0 %v3027
    %4964 = vmatprep.subr.bf16.mxu0 %v3036
    %4965 = vmatpush1.bf16.msra.mxu0 %v3035
    %4966 = vmatprep.subr.bf16.mxu0 %v3044
    %4967 = vmatpush1.bf16.msra.mxu0 %v3043
    %4968 = vmatprep.subr.bf16.mxu0 %v3052
    %4969 = vmatpush1.bf16.msra.mxu0 %v3051
    %4970 = vmatprep.subr.bf16.mxu0 %v3060
    %4971 = vmatpush1.bf16.msra.mxu0 %v3059
    %4972 = vmatprep.subr.bf16.mxu0 %v3068
    %4973 = vmatpush1.bf16.msra.mxu0 %v3067
    %4974 = vmatprep.subr.bf16.mxu0 %v3076
    %4975 = vmatpush1.bf16.msra.mxu0 %v3075
    %4976 = vmatprep.mubr.bf16.mxu0 %v359
    %4977 = vmatmul.mubr.bf16.gmra.mrb[0].mxu0 %v358
    %v4978 = vpop.f32.mrb[0].mxu0
    %v4979 = vadd.f32 %v4786, %v4978
    %v4980 = vpop.f32.mrb[0].mxu0
    %v4981 = vadd.f32 %v4788, %v4980
    %v4982 = vpop.f32.mrb[0].mxu0
    %v4983 = vadd.f32 %v4790, %v4982
    %v4984 = vpop.f32.mrb[0].mxu0
    %v4985 = vadd.f32 %v4792, %v4984
    %4986 = vmatprep.mubr.bf16.mxu0 %v367
    %4987 = vmatmul.mubr.bf16.gmra.mrb[0].mxu0 %v366
    %v4988 = vpop.f32.mrb[0].mxu0
    %v4989 = vadd.f32 %v4796, %v4988
    %v4990 = vpop.f32.mrb[0].mxu0
    %v4991 = vadd.f32 %v4798, %v4990
    %v4992 = vpop.f32.mrb[0].mxu0
    %v4993 = vadd.f32 %v4800, %v4992
    %v4994 = vpop.f32.mrb[0].mxu0
    %v4995 = vadd.f32 %v4802, %v4994
    %4996 = vmatprep.mubr.bf16.mxu0 %v375
    %4997 = vmatmul.mubr.bf16.gmra.mrb[0].mxu0 %v374
    %v4998 = vpop.f32.mrb[0].mxu0
    %v4999 = vadd.f32 %v4806, %v4998
    %v5000 = vpop.f32.mrb[0].mxu0
    %v5001 = vadd.f32 %v4808, %v5000
    %v5002 = vpop.f32.mrb[0].mxu0
    %v5003 = vadd.f32 %v4810, %v5002
    %v5004 = vpop.f32.mrb[0].mxu0
    %v5005 = vadd.f32 %v4812, %v5004
    %5006 = vmatprep.mubr.bf16.mxu0 %v383
    %5007 = vmatmul.mubr.bf16.gmra.mrb[0].mxu0 %v382
    %v5008 = vpop.f32.mrb[0].mxu0
    %v5009 = vadd.f32 %v4816, %v5008
    %v5010 = vpop.f32.mrb[0].mxu0
    %v5011 = vadd.f32 %v4818, %v5010
    %v5012 = vpop.f32.mrb[0].mxu0
    %v5013 = vadd.f32 %v4820, %v5012
    %v5014 = vpop.f32.mrb[0].mxu0
    %v5015 = vadd.f32 %v4822, %v5014
    %5016 = vmatprep.mubr.bf16.mxu0 %v391
    %5017 = vmatmul.mubr.bf16.gmra.mrb[0].mxu0 %v390
    %v5018 = vpop.f32.mrb[0].mxu0
    %v5019 = vadd.f32 %v4826, %v5018
    %v5020 = vpop.f32.mrb[0].mxu0
    %v5021 = vadd.f32 %v4828, %v5020
    %v5022 = vpop.f32.mrb[0].mxu0
    %v5023 = vadd.f32 %v4830, %v5022
    %v5024 = vpop.f32.mrb[0].mxu0
    %v5025 = vadd.f32 %v4832, %v5024
    %5026 = vmatprep.mubr.bf16.mxu0 %v399
    %5027 = vmatmul.mubr.bf16.gmra.mrb[0].mxu0 %v398
    %v5028 = vpop.f32.mrb[0].mxu0
    %v5029 = vadd.f32 %v4836, %v5028
    %v5030 = vpop.f32.mrb[0].mxu0
    %v5031 = vadd.f32 %v4838, %v5030
    %v5032 = vpop.f32.mrb[0].mxu0
    %v5033 = vadd.f32 %v4840, %v5032
    %v5034 = vpop.f32.mrb[0].mxu0
    %v5035 = vadd.f32 %v4842, %v5034
    %5036 = vmatprep.mubr.bf16.mxu0 %v407
    %5037 = vmatmul.mubr.bf16.gmra.mrb[0].mxu0 %v406
    %v5038 = vpop.f32.mrb[0].mxu0
    %v5039 = vadd.f32 %v4846, %v5038
    %v5040 = vpop.f32.mrb[0].mxu0
    %v5041 = vadd.f32 %v4848, %v5040
    %v5042 = vpop.f32.mrb[0].mxu0
    %v5043 = vadd.f32 %v4850, %v5042
    %v5044 = vpop.f32.mrb[0].mxu0
    %v5045 = vadd.f32 %v4852, %v5044
    %5046 = vmatprep.mubr.bf16.mxu0 %v415
    %5047 = vmatmul.mubr.bf16.gmra.mrb[0].mxu0 %v414
    %v5048 = vpop.f32.mrb[0].mxu0
    %v5049 = vadd.f32 %v4856, %v5048
    %v5050 = vpop.f32.mrb[0].mxu0
    %v5051 = vadd.f32 %v4858, %v5050
    %v5052 = vpop.f32.mrb[0].mxu0
    %v5053 = vadd.f32 %v4860, %v5052
    %v5054 = vpop.f32.mrb[0].mxu0
    %v5055 = vadd.f32 %v4862, %v5054
    %5056 = vmatprep.mubr.bf16.mxu0 %v423
    %5057 = vmatmul.mubr.bf16.gmra.mrb[0].mxu0 %v422
    %v5058 = vpop.f32.mrb[0].mxu0
    %v5059 = vadd.f32 %v4866, %v5058
    %v5060 = vpop.f32.mrb[0].mxu0
    %v5061 = vadd.f32 %v4868, %v5060
    %v5062 = vpop.f32.mrb[0].mxu0
    %v5063 = vadd.f32 %v4870, %v5062
    %v5064 = vpop.f32.mrb[0].mxu0
    %v5065 = vadd.f32 %v4872, %v5064
    %5066 = vmatprep.mubr.bf16.mxu0 %v431
    %5067 = vmatmul.mubr.bf16.gmra.mrb[0].mxu0 %v430
    %v5068 = vpop.f32.mrb[0].mxu0
    %v5069 = vadd.f32 %v4876, %v5068
    %v5070 = vpop.f32.mrb[0].mxu0
    %v5071 = vadd.f32 %v4878, %v5070
    %v5072 = vpop.f32.mrb[0].mxu0
    %v5073 = vadd.f32 %v4880, %v5072
    %v5074 = vpop.f32.mrb[0].mxu0
    %v5075 = vadd.f32 %v4882, %v5074
    %5076 = vmatprep.mubr.bf16.mxu0 %v439
    %5077 = vmatmul.mubr.bf16.gmra.mrb[0].mxu0 %v438
    %v5078 = vpop.f32.mrb[0].mxu0
    %v5079 = vadd.f32 %v4886, %v5078
    %v5080 = vpop.f32.mrb[0].mxu0
    %v5081 = vadd.f32 %v4888, %v5080
    %v5082 = vpop.f32.mrb[0].mxu0
    %v5083 = vadd.f32 %v4890, %v5082
    %v5084 = vpop.f32.mrb[0].mxu0
    %v5085 = vadd.f32 %v4892, %v5084
    %5086 = vmatprep.mubr.bf16.mxu0 %v447
    %5087 = vmatmul.mubr.bf16.gmra.mrb[0].mxu0 %v446
    %v5088 = vpop.f32.mrb[0].mxu0
    %v5089 = vadd.f32 %v4896, %v5088
    %v5090 = vpop.f32.mrb[0].mxu0
    %v5091 = vadd.f32 %v4898, %v5090
    %v5092 = vpop.f32.mrb[0].mxu0
    %v5093 = vadd.f32 %v4900, %v5092
    %v5094 = vpop.f32.mrb[0].mxu0
    %v5095 = vadd.f32 %v4902, %v5094
    %5096 = vmatprep.mubr.bf16.mxu0 %v455
    %5097 = vmatmul.mubr.bf16.gmra.mrb[0].mxu0 %v454
    %v5098 = vpop.f32.mrb[0].mxu0
    %v5099 = vadd.f32 %v4906, %v5098
    %v5100 = vpop.f32.mrb[0].mxu0
    %v5101 = vadd.f32 %v4908, %v5100
    %v5102 = vpop.f32.mrb[0].mxu0
    %v5103 = vadd.f32 %v4910, %v5102
    %v5104 = vpop.f32.mrb[0].mxu0
    %v5105 = vadd.f32 %v4912, %v5104
    %5106 = vmatprep.mubr.bf16.mxu0 %v463
    %5107 = vmatmul.mubr.bf16.gmra.mrb[0].mxu0 %v462
    %v5108 = vpop.f32.mrb[0].mxu0
    %v5109 = vadd.f32 %v4916, %v5108
    %v5110 = vpop.f32.mrb[0].mxu0
    %v5111 = vadd.f32 %v4918, %v5110
    %v5112 = vpop.f32.mrb[0].mxu0
    %v5113 = vadd.f32 %v4920, %v5112
    %v5114 = vpop.f32.mrb[0].mxu0
    %v5115 = vadd.f32 %v4922, %v5114
    %5116 = vmatprep.mubr.bf16.mxu0 %v471
    %5117 = vmatmul.mubr.bf16.gmra.mrb[0].mxu0 %v470
    %v5118 = vpop.f32.mrb[0].mxu0
    %v5119 = vadd.f32 %v4926, %v5118
    %v5120 = vpop.f32.mrb[0].mxu0
    %v5121 = vadd.f32 %v4928, %v5120
    %v5122 = vpop.f32.mrb[0].mxu0
    %v5123 = vadd.f32 %v4930, %v5122
    %v5124 = vpop.f32.mrb[0].mxu0
    %v5125 = vadd.f32 %v4932, %v5124
    %5126 = vmatprep.mubr.bf16.mxu0 %v479
    %5127 = vmatmul.mubr.bf16.gmra.mrb[0].mxu0 %v478
    %v5128 = vpop.f32.mrb[0].mxu0
    %v5129 = vadd.f32 %v4936, %v5128
    %v5130 = vpop.f32.mrb[0].mxu0
    %v5131 = vadd.f32 %v4938, %v5130
    %v5132 = vpop.f32.mrb[0].mxu0
    %v5133 = vadd.f32 %v4940, %v5132
    %v5134 = vpop.f32.mrb[0].mxu0
    %v5135 = vadd.f32 %v4942, %v5134
    %5136 = vdwg.mxu0
    %5137 = vmatprep.subr.bf16.mxu0 %v2574
    %5138 = vmatpush1.bf16.msra.mxu0 %v2573
    %5139 = vmatprep.subr.bf16.mxu0 %v2582
    %5140 = vmatpush1.bf16.msra.mxu0 %v2581
    %5141 = vmatprep.subr.bf16.mxu0 %v2590
    %5142 = vmatpush1.bf16.msra.mxu0 %v2589
    %5143 = vmatprep.subr.bf16.mxu0 %v2598
    %5144 = vmatpush1.bf16.msra.mxu0 %v2597
    %5145 = vmatprep.subr.bf16.mxu0 %v2606
    %5146 = vmatpush1.bf16.msra.mxu0 %v2605
    %5147 = vmatprep.subr.bf16.mxu0 %v2614
    %5148 = vmatpush1.bf16.msra.mxu0 %v2613
    %5149 = vmatprep.subr.bf16.mxu0 %v2622
    %5150 = vmatpush1.bf16.msra.mxu0 %v2621
    %5151 = vmatprep.subr.bf16.mxu0 %v2630
    %5152 = vmatpush1.bf16.msra.mxu0 %v2629
    %5153 = vmatprep.subr.bf16.mxu0 %v2638
    %5154 = vmatpush1.bf16.msra.mxu0 %v2637
    %5155 = vmatprep.subr.bf16.mxu0 %v2646
    %5156 = vmatpush1.bf16.msra.mxu0 %v2645
    %5157 = vmatprep.subr.bf16.mxu0 %v2654
    %5158 = vmatpush1.bf16.msra.mxu0 %v2653
    %5159 = vmatprep.subr.bf16.mxu0 %v2662
    %5160 = vmatpush1.bf16.msra.mxu0 %v2661
    %5161 = vmatprep.subr.bf16.mxu0 %v2670
    %5162 = vmatpush1.bf16.msra.mxu0 %v2669
    %5163 = vmatprep.subr.bf16.mxu0 %v2678
    %5164 = vmatpush1.bf16.msra.mxu0 %v2677
    %5165 = vmatprep.subr.bf16.mxu0 %v2686
    %5166 = vmatpush1.bf16.msra.mxu0 %v2685
    %5167 = vmatprep.subr.bf16.mxu0 %v2694
    %5168 = vmatpush1.bf16.msra.mxu0 %v2693
    %5169 = vmatprep.mubr.bf16.mxu0 %v353
    %5170 = vmatmul.mubr.bf16.gmra.mrb[0].mxu0 %v352
    %v5171 = vpop.f32.mrb[0].mxu0
    %v5172 = vadd.f32 %v1012, %v5171
    %v5173 = vpop.f32.mrb[0].mxu0
    %v5174 = vadd.f32 %v1016, %v5173
    %v5175 = vpop.f32.mrb[0].mxu0
    %v5176 = vadd.f32 %v1012, %v5175
    %v5177 = vpop.f32.mrb[0].mxu0
    %v5178 = vadd.f32 %v1016, %v5177
    %5179 = vmatprep.mubr.bf16.mxu0 %v361
    %5180 = vmatmul.mubr.bf16.gmra.mrb[0].mxu0 %v360
    %v5181 = vpop.f32.mrb[0].mxu0
    %v5182 = vadd.f32 %v1012, %v5181
    %v5183 = vpop.f32.mrb[0].mxu0
    %v5184 = vadd.f32 %v1016, %v5183
    %v5185 = vpop.f32.mrb[0].mxu0
    %v5186 = vadd.f32 %v1012, %v5185
    %v5187 = vpop.f32.mrb[0].mxu0
    %v5188 = vadd.f32 %v1016, %v5187
    %5189 = vmatprep.mubr.bf16.mxu0 %v369
    %5190 = vmatmul.mubr.bf16.gmra.mrb[0].mxu0 %v368
    %v5191 = vpop.f32.mrb[0].mxu0
    %v5192 = vadd.f32 %v1012, %v5191
    %v5193 = vpop.f32.mrb[0].mxu0
    %v5194 = vadd.f32 %v1016, %v5193
    %v5195 = vpop.f32.mrb[0].mxu0
    %v5196 = vadd.f32 %v1012, %v5195
    %v5197 = vpop.f32.mrb[0].mxu0
    %v5198 = vadd.f32 %v1016, %v5197
    %5199 = vmatprep.mubr.bf16.mxu0 %v377
    %5200 = vmatmul.mubr.bf16.gmra.mrb[0].mxu0 %v376
    %v5201 = vpop.f32.mrb[0].mxu0
    %v5202 = vadd.f32 %v1012, %v5201
    %v5203 = vpop.f32.mrb[0].mxu0
    %v5204 = vadd.f32 %v1016, %v5203
    %v5205 = vpop.f32.mrb[0].mxu0
    %v5206 = vadd.f32 %v1012, %v5205
    %v5207 = vpop.f32.mrb[0].mxu0
    %v5208 = vadd.f32 %v1016, %v5207
    %5209 = vmatprep.mubr.bf16.mxu0 %v385
    %5210 = vmatmul.mubr.bf16.gmra.mrb[0].mxu0 %v384
    %v5211 = vpop.f32.mrb[0].mxu0
    %v5212 = vadd.f32 %v1012, %v5211
    %v5213 = vpop.f32.mrb[0].mxu0
    %v5214 = vadd.f32 %v1016, %v5213
    %v5215 = vpop.f32.mrb[0].mxu0
    %v5216 = vadd.f32 %v1012, %v5215
    %v5217 = vpop.f32.mrb[0].mxu0
    %v5218 = vadd.f32 %v1016, %v5217
    %5219 = vmatprep.mubr.bf16.mxu0 %v393
    %5220 = vmatmul.mubr.bf16.gmra.mrb[0].mxu0 %v392
    %v5221 = vpop.f32.mrb[0].mxu0
    %v5222 = vadd.f32 %v1012, %v5221
    %v5223 = vpop.f32.mrb[0].mxu0
    %v5224 = vadd.f32 %v1016, %v5223
    %v5225 = vpop.f32.mrb[0].mxu0
    %v5226 = vadd.f32 %v1012, %v5225
    %v5227 = vpop.f32.mrb[0].mxu0
    %v5228 = vadd.f32 %v1016, %v5227
    %5229 = vmatprep.mubr.bf16.mxu0 %v401
    %5230 = vmatmul.mubr.bf16.gmra.mrb[0].mxu0 %v400
    %v5231 = vpop.f32.mrb[0].mxu0
    %v5232 = vadd.f32 %v1012, %v5231
    %v5233 = vpop.f32.mrb[0].mxu0
    %v5234 = vadd.f32 %v1016, %v5233
    %v5235 = vpop.f32.mrb[0].mxu0
    %v5236 = vadd.f32 %v1012, %v5235
    %v5237 = vpop.f32.mrb[0].mxu0
    %v5238 = vadd.f32 %v1016, %v5237
    %5239 = vmatprep.mubr.bf16.mxu0 %v409
    %5240 = vmatmul.mubr.bf16.gmra.mrb[0].mxu0 %v408
    %v5241 = vpop.f32.mrb[0].mxu0
    %v5242 = vadd.f32 %v1012, %v5241
    %v5243 = vpop.f32.mrb[0].mxu0
    %v5244 = vadd.f32 %v1016, %v5243
    %v5245 = vpop.f32.mrb[0].mxu0
    %v5246 = vadd.f32 %v1012, %v5245
    %v5247 = vpop.f32.mrb[0].mxu0
    %v5248 = vadd.f32 %v1016, %v5247
    %5249 = vmatprep.mubr.bf16.mxu0 %v417
    %5250 = vmatmul.mubr.bf16.gmra.mrb[0].mxu0 %v416
    %v5251 = vpop.f32.mrb[0].mxu0
    %v5252 = vadd.f32 %v1012, %v5251
    %v5253 = vpop.f32.mrb[0].mxu0
    %v5254 = vadd.f32 %v1016, %v5253
    %v5255 = vpop.f32.mrb[0].mxu0
    %v5256 = vadd.f32 %v1012, %v5255
    %v5257 = vpop.f32.mrb[0].mxu0
    %v5258 = vadd.f32 %v1016, %v5257
    %5259 = vmatprep.mubr.bf16.mxu0 %v425
    %5260 = vmatmul.mubr.bf16.gmra.mrb[0].mxu0 %v424
    %v5261 = vpop.f32.mrb[0].mxu0
    %v5262 = vadd.f32 %v1012, %v5261
    %v5263 = vpop.f32.mrb[0].mxu0
    %v5264 = vadd.f32 %v1016, %v5263
    %v5265 = vpop.f32.mrb[0].mxu0
    %v5266 = vadd.f32 %v1012, %v5265
    %v5267 = vpop.f32.mrb[0].mxu0
    %v5268 = vadd.f32 %v1016, %v5267
    %5269 = vmatprep.mubr.bf16.mxu0 %v433
    %5270 = vmatmul.mubr.bf16.gmra.mrb[0].mxu0 %v432
    %v5271 = vpop.f32.mrb[0].mxu0
    %v5272 = vadd.f32 %v1012, %v5271
    %v5273 = vpop.f32.mrb[0].mxu0
    %v5274 = vadd.f32 %v1016, %v5273
    %v5275 = vpop.f32.mrb[0].mxu0
    %v5276 = vadd.f32 %v1012, %v5275
    %v5277 = vpop.f32.mrb[0].mxu0
    %v5278 = vadd.f32 %v1016, %v5277
    %5279 = vmatprep.mubr.bf16.mxu0 %v441
    %5280 = vmatmul.mubr.bf16.gmra.mrb[0].mxu0 %v440
    %v5281 = vpop.f32.mrb[0].mxu0
    %v5282 = vadd.f32 %v1012, %v5281
    %v5283 = vpop.f32.mrb[0].mxu0
    %v5284 = vadd.f32 %v1016, %v5283
    %v5285 = vpop.f32.mrb[0].mxu0
    %v5286 = vadd.f32 %v1012, %v5285
    %v5287 = vpop.f32.mrb[0].mxu0
    %v5288 = vadd.f32 %v1016, %v5287
    %5289 = vmatprep.mubr.bf16.mxu0 %v449
    %5290 = vmatmul.mubr.bf16.gmra.mrb[0].mxu0 %v448
    %v5291 = vpop.f32.mrb[0].mxu0
    %v5292 = vadd.f32 %v1012, %v5291
    %v5293 = vpop.f32.mrb[0].mxu0
    %v5294 = vadd.f32 %v1016, %v5293
    %v5295 = vpop.f32.mrb[0].mxu0
    %v5296 = vadd.f32 %v1012, %v5295
    %v5297 = vpop.f32.mrb[0].mxu0
    %v5298 = vadd.f32 %v1016, %v5297
    %5299 = vmatprep.mubr.bf16.mxu0 %v457
    %5300 = vmatmul.mubr.bf16.gmra.mrb[0].mxu0 %v456
    %v5301 = vpop.f32.mrb[0].mxu0
    %v5302 = vadd.f32 %v1012, %v5301
    %v5303 = vpop.f32.mrb[0].mxu0
    %v5304 = vadd.f32 %v1016, %v5303
    %v5305 = vpop.f32.mrb[0].mxu0
    %v5306 = vadd.f32 %v1012, %v5305
    %v5307 = vpop.f32.mrb[0].mxu0
    %v5308 = vadd.f32 %v1016, %v5307
    %5309 = vmatprep.mubr.bf16.mxu0 %v465
    %5310 = vmatmul.mubr.bf16.gmra.mrb[0].mxu0 %v464
    %v5311 = vpop.f32.mrb[0].mxu0
    %v5312 = vadd.f32 %v1012, %v5311
    %v5313 = vpop.f32.mrb[0].mxu0
    %v5314 = vadd.f32 %v1016, %v5313
    %v5315 = vpop.f32.mrb[0].mxu0
    %v5316 = vadd.f32 %v1012, %v5315
    %v5317 = vpop.f32.mrb[0].mxu0
    %v5318 = vadd.f32 %v1016, %v5317
    %5319 = vmatprep.mubr.bf16.mxu0 %v473
    %5320 = vmatmul.mubr.bf16.gmra.mrb[0].mxu0 %v472
    %v5321 = vpop.f32.mrb[0].mxu0
    %v5322 = vadd.f32 %v1012, %v5321
    %v5323 = vpop.f32.mrb[0].mxu0
    %v5324 = vadd.f32 %v1016, %v5323
    %v5325 = vpop.f32.mrb[0].mxu0
    %v5326 = vadd.f32 %v1012, %v5325
    %v5327 = vpop.f32.mrb[0].mxu0
    %v5328 = vadd.f32 %v1016, %v5327
    %5329 = vdwg.mxu0
    %5330 = vmatprep.subr.bf16.mxu0 %v2702
    %5331 = vmatpush1.bf16.msra.mxu0 %v2701
    %5332 = vmatprep.subr.bf16.mxu0 %v2710
    %5333 = vmatpush1.bf16.msra.mxu0 %v2709
    %5334 = vmatprep.subr.bf16.mxu0 %v2718
    %5335 = vmatpush1.bf16.msra.mxu0 %v2717
    %5336 = vmatprep.subr.bf16.mxu0 %v2726
    %5337 = vmatpush1.bf16.msra.mxu0 %v2725
    %5338 = vmatprep.subr.bf16.mxu0 %v2734
    %5339 = vmatpush1.bf16.msra.mxu0 %v2733
    %5340 = vmatprep.subr.bf16.mxu0 %v2742
    %5341 = vmatpush1.bf16.msra.mxu0 %v2741
    %5342 = vmatprep.subr.bf16.mxu0 %v2750
    %5343 = vmatpush1.bf16.msra.mxu0 %v2749
    %5344 = vmatprep.subr.bf16.mxu0 %v2758
    %5345 = vmatpush1.bf16.msra.mxu0 %v2757
    %5346 = vmatprep.subr.bf16.mxu0 %v2766
    %5347 = vmatpush1.bf16.msra.mxu0 %v2765
    %5348 = vmatprep.subr.bf16.mxu0 %v2774
    %5349 = vmatpush1.bf16.msra.mxu0 %v2773
    %5350 = vmatprep.subr.bf16.mxu0 %v2782
    %5351 = vmatpush1.bf16.msra.mxu0 %v2781
    %5352 = vmatprep.subr.bf16.mxu0 %v2790
    %5353 = vmatpush1.bf16.msra.mxu0 %v2789
    %5354 = vmatprep.subr.bf16.mxu0 %v2798
    %5355 = vmatpush1.bf16.msra.mxu0 %v2797
    %5356 = vmatprep.subr.bf16.mxu0 %v2806
    %5357 = vmatpush1.bf16.msra.mxu0 %v2805
    %5358 = vmatprep.subr.bf16.mxu0 %v2814
    %5359 = vmatpush1.bf16.msra.mxu0 %v2813
    %5360 = vmatprep.subr.bf16.mxu0 %v2822
    %5361 = vmatpush1.bf16.msra.mxu0 %v2821
    %5362 = vmatprep.mubr.bf16.mxu0 %v355
    %5363 = vmatmul.mubr.bf16.gmra.mrb[0].mxu0 %v354
    %v5364 = vpop.f32.mrb[0].mxu0
    %v5365 = vadd.f32 %v5172, %v5364
    %v5366 = vpop.f32.mrb[0].mxu0
    %v5367 = vadd.f32 %v5174, %v5366
    %v5368 = vpop.f32.mrb[0].mxu0
    %v5369 = vadd.f32 %v5176, %v5368
    %v5370 = vpop.f32.mrb[0].mxu0
    %v5371 = vadd.f32 %v5178, %v5370
    %5372 = vmatprep.mubr.bf16.mxu0 %v363
    %5373 = vmatmul.mubr.bf16.gmra.mrb[0].mxu0 %v362
    %v5374 = vpop.f32.mrb[0].mxu0
    %v5375 = vadd.f32 %v5182, %v5374
    %v5376 = vpop.f32.mrb[0].mxu0
    %v5377 = vadd.f32 %v5184, %v5376
    %v5378 = vpop.f32.mrb[0].mxu0
    %v5379 = vadd.f32 %v5186, %v5378
    %v5380 = vpop.f32.mrb[0].mxu0
    %v5381 = vadd.f32 %v5188, %v5380
    %5382 = vmatprep.mubr.bf16.mxu0 %v371
    %5383 = vmatmul.mubr.bf16.gmra.mrb[0].mxu0 %v370
    %v5384 = vpop.f32.mrb[0].mxu0
    %v5385 = vadd.f32 %v5192, %v5384
    %v5386 = vpop.f32.mrb[0].mxu0
    %v5387 = vadd.f32 %v5194, %v5386
    %v5388 = vpop.f32.mrb[0].mxu0
    %v5389 = vadd.f32 %v5196, %v5388
    %v5390 = vpop.f32.mrb[0].mxu0
    %v5391 = vadd.f32 %v5198, %v5390
    %5392 = vmatprep.mubr.bf16.mxu0 %v379
    %5393 = vmatmul.mubr.bf16.gmra.mrb[0].mxu0 %v378
    %v5394 = vpop.f32.mrb[0].mxu0
    %v5395 = vadd.f32 %v5202, %v5394
    %v5396 = vpop.f32.mrb[0].mxu0
    %v5397 = vadd.f32 %v5204, %v5396
    %v5398 = vpop.f32.mrb[0].mxu0
    %v5399 = vadd.f32 %v5206, %v5398
    %v5400 = vpop.f32.mrb[0].mxu0
    %v5401 = vadd.f32 %v5208, %v5400
    %5402 = vmatprep.mubr.bf16.mxu0 %v387
    %5403 = vmatmul.mubr.bf16.gmra.mrb[0].mxu0 %v386
    %v5404 = vpop.f32.mrb[0].mxu0
    %v5405 = vadd.f32 %v5212, %v5404
    %v5406 = vpop.f32.mrb[0].mxu0
    %v5407 = vadd.f32 %v5214, %v5406
    %v5408 = vpop.f32.mrb[0].mxu0
    %v5409 = vadd.f32 %v5216, %v5408
    %v5410 = vpop.f32.mrb[0].mxu0
    %v5411 = vadd.f32 %v5218, %v5410
    %5412 = vmatprep.mubr.bf16.mxu0 %v395
    %5413 = vmatmul.mubr.bf16.gmra.mrb[0].mxu0 %v394
    %v5414 = vpop.f32.mrb[0].mxu0
    %v5415 = vadd.f32 %v5222, %v5414
    %v5416 = vpop.f32.mrb[0].mxu0
    %v5417 = vadd.f32 %v5224, %v5416
    %v5418 = vpop.f32.mrb[0].mxu0
    %v5419 = vadd.f32 %v5226, %v5418
    %v5420 = vpop.f32.mrb[0].mxu0
    %v5421 = vadd.f32 %v5228, %v5420
    %5422 = vmatprep.mubr.bf16.mxu0 %v403
    %5423 = vmatmul.mubr.bf16.gmra.mrb[0].mxu0 %v402
    %v5424 = vpop.f32.mrb[0].mxu0
    %v5425 = vadd.f32 %v5232, %v5424
    %v5426 = vpop.f32.mrb[0].mxu0
    %v5427 = vadd.f32 %v5234, %v5426
    %v5428 = vpop.f32.mrb[0].mxu0
    %v5429 = vadd.f32 %v5236, %v5428
    %v5430 = vpop.f32.mrb[0].mxu0
    %v5431 = vadd.f32 %v5238, %v5430
    %5432 = vmatprep.mubr.bf16.mxu0 %v411
    %5433 = vmatmul.mubr.bf16.gmra.mrb[0].mxu0 %v410
    %v5434 = vpop.f32.mrb[0].mxu0
    %v5435 = vadd.f32 %v5242, %v5434
    %v5436 = vpop.f32.mrb[0].mxu0
    %v5437 = vadd.f32 %v5244, %v5436
    %v5438 = vpop.f32.mrb[0].mxu0
    %v5439 = vadd.f32 %v5246, %v5438
    %v5440 = vpop.f32.mrb[0].mxu0
    %v5441 = vadd.f32 %v5248, %v5440
    %5442 = vmatprep.mubr.bf16.mxu0 %v419
    %5443 = vmatmul.mubr.bf16.gmra.mrb[0].mxu0 %v418
    %v5444 = vpop.f32.mrb[0].mxu0
    %v5445 = vadd.f32 %v5252, %v5444
    %v5446 = vpop.f32.mrb[0].mxu0
    %v5447 = vadd.f32 %v5254, %v5446
    %v5448 = vpop.f32.mrb[0].mxu0
    %v5449 = vadd.f32 %v5256, %v5448
    %v5450 = vpop.f32.mrb[0].mxu0
    %v5451 = vadd.f32 %v5258, %v5450
    %5452 = vmatprep.mubr.bf16.mxu0 %v427
    %5453 = vmatmul.mubr.bf16.gmra.mrb[0].mxu0 %v426
    %v5454 = vpop.f32.mrb[0].mxu0
    %v5455 = vadd.f32 %v5262, %v5454
    %v5456 = vpop.f32.mrb[0].mxu0
    %v5457 = vadd.f32 %v5264, %v5456
    %v5458 = vpop.f32.mrb[0].mxu0
    %v5459 = vadd.f32 %v5266, %v5458
    %v5460 = vpop.f32.mrb[0].mxu0
    %v5461 = vadd.f32 %v5268, %v5460
    %5462 = vmatprep.mubr.bf16.mxu0 %v435
    %5463 = vmatmul.mubr.bf16.gmra.mrb[0].mxu0 %v434
    %v5464 = vpop.f32.mrb[0].mxu0
    %v5465 = vadd.f32 %v5272, %v5464
    %v5466 = vpop.f32.mrb[0].mxu0
    %v5467 = vadd.f32 %v5274, %v5466
    %v5468 = vpop.f32.mrb[0].mxu0
    %v5469 = vadd.f32 %v5276, %v5468
    %v5470 = vpop.f32.mrb[0].mxu0
    %v5471 = vadd.f32 %v5278, %v5470
    %5472 = vmatprep.mubr.bf16.mxu0 %v443
    %5473 = vmatmul.mubr.bf16.gmra.mrb[0].mxu0 %v442
    %v5474 = vpop.f32.mrb[0].mxu0
    %v5475 = vadd.f32 %v5282, %v5474
    %v5476 = vpop.f32.mrb[0].mxu0
    %v5477 = vadd.f32 %v5284, %v5476
    %v5478 = vpop.f32.mrb[0].mxu0
    %v5479 = vadd.f32 %v5286, %v5478
    %v5480 = vpop.f32.mrb[0].mxu0
    %v5481 = vadd.f32 %v5288, %v5480
    %5482 = vmatprep.mubr.bf16.mxu0 %v451
    %5483 = vmatmul.mubr.bf16.gmra.mrb[0].mxu0 %v450
    %v5484 = vpop.f32.mrb[0].mxu0
    %v5485 = vadd.f32 %v5292, %v5484
    %v5486 = vpop.f32.mrb[0].mxu0
    %v5487 = vadd.f32 %v5294, %v5486
    %v5488 = vpop.f32.mrb[0].mxu0
    %v5489 = vadd.f32 %v5296, %v5488
    %v5490 = vpop.f32.mrb[0].mxu0
    %v5491 = vadd.f32 %v5298, %v5490
    %5492 = vmatprep.mubr.bf16.mxu0 %v459
    %5493 = vmatmul.mubr.bf16.gmra.mrb[0].mxu0 %v458
    %v5494 = vpop.f32.mrb[0].mxu0
    %v5495 = vadd.f32 %v5302, %v5494
    %v5496 = vpop.f32.mrb[0].mxu0
    %v5497 = vadd.f32 %v5304, %v5496
    %v5498 = vpop.f32.mrb[0].mxu0
    %v5499 = vadd.f32 %v5306, %v5498
    %v5500 = vpop.f32.mrb[0].mxu0
    %v5501 = vadd.f32 %v5308, %v5500
    %5502 = vmatprep.mubr.bf16.mxu0 %v467
    %5503 = vmatmul.mubr.bf16.gmra.mrb[0].mxu0 %v466
    %v5504 = vpop.f32.mrb[0].mxu0
    %v5505 = vadd.f32 %v5312, %v5504
    %v5506 = vpop.f32.mrb[0].mxu0
    %v5507 = vadd.f32 %v5314, %v5506
    %v5508 = vpop.f32.mrb[0].mxu0
    %v5509 = vadd.f32 %v5316, %v5508
    %v5510 = vpop.f32.mrb[0].mxu0
    %v5511 = vadd.f32 %v5318, %v5510
    %5512 = vmatprep.mubr.bf16.mxu0 %v475
    %5513 = vmatmul.mubr.bf16.gmra.mrb[0].mxu0 %v474
    %v5514 = vpop.f32.mrb[0].mxu0
    %v5515 = vadd.f32 %v5322, %v5514
    %v5516 = vpop.f32.mrb[0].mxu0
    %v5517 = vadd.f32 %v5324, %v5516
    %v5518 = vpop.f32.mrb[0].mxu0
    %v5519 = vadd.f32 %v5326, %v5518
    %v5520 = vpop.f32.mrb[0].mxu0
    %v5521 = vadd.f32 %v5328, %v5520
    %5522 = vdwg.mxu0
    %5523 = vmatprep.subr.bf16.mxu0 %v2830
    %5524 = vmatpush1.bf16.msra.mxu0 %v2829
    %5525 = vmatprep.subr.bf16.mxu0 %v2838
    %5526 = vmatpush1.bf16.msra.mxu0 %v2837
    %5527 = vmatprep.subr.bf16.mxu0 %v2846
    %5528 = vmatpush1.bf16.msra.mxu0 %v2845
    %5529 = vmatprep.subr.bf16.mxu0 %v2854
    %5530 = vmatpush1.bf16.msra.mxu0 %v2853
    %5531 = vmatprep.subr.bf16.mxu0 %v2862
    %5532 = vmatpush1.bf16.msra.mxu0 %v2861
    %5533 = vmatprep.subr.bf16.mxu0 %v2870
    %5534 = vmatpush1.bf16.msra.mxu0 %v2869
    %5535 = vmatprep.subr.bf16.mxu0 %v2878
    %5536 = vmatpush1.bf16.msra.mxu0 %v2877
    %5537 = vmatprep.subr.bf16.mxu0 %v2886
    %5538 = vmatpush1.bf16.msra.mxu0 %v2885
    %5539 = vmatprep.subr.bf16.mxu0 %v2894
    %5540 = vmatpush1.bf16.msra.mxu0 %v2893
    %5541 = vmatprep.subr.bf16.mxu0 %v2902
    %5542 = vmatpush1.bf16.msra.mxu0 %v2901
    %5543 = vmatprep.subr.bf16.mxu0 %v2910
    %5544 = vmatpush1.bf16.msra.mxu0 %v2909
    %5545 = vmatprep.subr.bf16.mxu0 %v2918
    %5546 = vmatpush1.bf16.msra.mxu0 %v2917
    %5547 = vmatprep.subr.bf16.mxu0 %v2926
    %5548 = vmatpush1.bf16.msra.mxu0 %v2925
    %5549 = vmatprep.subr.bf16.mxu0 %v2934
    %5550 = vmatpush1.bf16.msra.mxu0 %v2933
    %5551 = vmatprep.subr.bf16.mxu0 %v2942
    %5552 = vmatpush1.bf16.msra.mxu0 %v2941
    %5553 = vmatprep.subr.bf16.mxu0 %v2950
    %5554 = vmatpush1.bf16.msra.mxu0 %v2949
    %5555 = vmatprep.mubr.bf16.mxu0 %v357
    %5556 = vmatmul.mubr.bf16.gmra.mrb[0].mxu0 %v356
    %v5557 = vpop.f32.mrb[0].mxu0
    %v5558 = vadd.f32 %v5365, %v5557
    %v5559 = vpop.f32.mrb[0].mxu0
    %v5560 = vadd.f32 %v5367, %v5559
    %v5561 = vpop.f32.mrb[0].mxu0
    %v5562 = vadd.f32 %v5369, %v5561
    %v5563 = vpop.f32.mrb[0].mxu0
    %v5564 = vadd.f32 %v5371, %v5563
    %5565 = vmatprep.mubr.bf16.mxu0 %v365
    %5566 = vmatmul.mubr.bf16.gmra.mrb[0].mxu0 %v364
    %v5567 = vpop.f32.mrb[0].mxu0
    %v5568 = vadd.f32 %v5375, %v5567
    %v5569 = vpop.f32.mrb[0].mxu0
    %v5570 = vadd.f32 %v5377, %v5569
    %v5571 = vpop.f32.mrb[0].mxu0
    %v5572 = vadd.f32 %v5379, %v5571
    %v5573 = vpop.f32.mrb[0].mxu0
    %v5574 = vadd.f32 %v5381, %v5573
    %5575 = vmatprep.mubr.bf16.mxu0 %v373
    %5576 = vmatmul.mubr.bf16.gmra.mrb[0].mxu0 %v372
    %v5577 = vpop.f32.mrb[0].mxu0
    %v5578 = vadd.f32 %v5385, %v5577
    %v5579 = vpop.f32.mrb[0].mxu0
    %v5580 = vadd.f32 %v5387, %v5579
    %v5581 = vpop.f32.mrb[0].mxu0
    %v5582 = vadd.f32 %v5389, %v5581
    %v5583 = vpop.f32.mrb[0].mxu0
    %v5584 = vadd.f32 %v5391, %v5583
    %5585 = vmatprep.mubr.bf16.mxu0 %v381
    %5586 = vmatmul.mubr.bf16.gmra.mrb[0].mxu0 %v380
    %v5587 = vpop.f32.mrb[0].mxu0
    %v5588 = vadd.f32 %v5395, %v5587
    %v5589 = vpop.f32.mrb[0].mxu0
    %v5590 = vadd.f32 %v5397, %v5589
    %v5591 = vpop.f32.mrb[0].mxu0
    %v5592 = vadd.f32 %v5399, %v5591
    %v5593 = vpop.f32.mrb[0].mxu0
    %v5594 = vadd.f32 %v5401, %v5593
    %5595 = vmatprep.mubr.bf16.mxu0 %v389
    %5596 = vmatmul.mubr.bf16.gmra.mrb[0].mxu0 %v388
    %v5597 = vpop.f32.mrb[0].mxu0
    %v5598 = vadd.f32 %v5405, %v5597
    %v5599 = vpop.f32.mrb[0].mxu0
    %v5600 = vadd.f32 %v5407, %v5599
    %v5601 = vpop.f32.mrb[0].mxu0
    %v5602 = vadd.f32 %v5409, %v5601
    %v5603 = vpop.f32.mrb[0].mxu0
    %v5604 = vadd.f32 %v5411, %v5603
    %5605 = vmatprep.mubr.bf16.mxu0 %v397
    %5606 = vmatmul.mubr.bf16.gmra.mrb[0].mxu0 %v396
    %v5607 = vpop.f32.mrb[0].mxu0
    %v5608 = vadd.f32 %v5415, %v5607
    %v5609 = vpop.f32.mrb[0].mxu0
    %v5610 = vadd.f32 %v5417, %v5609
    %v5611 = vpop.f32.mrb[0].mxu0
    %v5612 = vadd.f32 %v5419, %v5611
    %v5613 = vpop.f32.mrb[0].mxu0
    %v5614 = vadd.f32 %v5421, %v5613
    %5615 = vmatprep.mubr.bf16.mxu0 %v405
    %5616 = vmatmul.mubr.bf16.gmra.mrb[0].mxu0 %v404
    %v5617 = vpop.f32.mrb[0].mxu0
    %v5618 = vadd.f32 %v5425, %v5617
    %v5619 = vpop.f32.mrb[0].mxu0
    %v5620 = vadd.f32 %v5427, %v5619
    %v5621 = vpop.f32.mrb[0].mxu0
    %v5622 = vadd.f32 %v5429, %v5621
    %v5623 = vpop.f32.mrb[0].mxu0
    %v5624 = vadd.f32 %v5431, %v5623
    %5625 = vmatprep.mubr.bf16.mxu0 %v413
    %5626 = vmatmul.mubr.bf16.gmra.mrb[0].mxu0 %v412
    %v5627 = vpop.f32.mrb[0].mxu0
    %v5628 = vadd.f32 %v5435, %v5627
    %v5629 = vpop.f32.mrb[0].mxu0
    %v5630 = vadd.f32 %v5437, %v5629
    %v5631 = vpop.f32.mrb[0].mxu0
    %v5632 = vadd.f32 %v5439, %v5631
    %v5633 = vpop.f32.mrb[0].mxu0
    %v5634 = vadd.f32 %v5441, %v5633
    %5635 = vmatprep.mubr.bf16.mxu0 %v421
    %5636 = vmatmul.mubr.bf16.gmra.mrb[0].mxu0 %v420
    %v5637 = vpop.f32.mrb[0].mxu0
    %v5638 = vadd.f32 %v5445, %v5637
    %v5639 = vpop.f32.mrb[0].mxu0
    %v5640 = vadd.f32 %v5447, %v5639
    %v5641 = vpop.f32.mrb[0].mxu0
    %v5642 = vadd.f32 %v5449, %v5641
    %v5643 = vpop.f32.mrb[0].mxu0
    %v5644 = vadd.f32 %v5451, %v5643
    %5645 = vmatprep.mubr.bf16.mxu0 %v429
    %5646 = vmatmul.mubr.bf16.gmra.mrb[0].mxu0 %v428
    %v5647 = vpop.f32.mrb[0].mxu0
    %v5648 = vadd.f32 %v5455, %v5647
    %v5649 = vpop.f32.mrb[0].mxu0
    %v5650 = vadd.f32 %v5457, %v5649
    %v5651 = vpop.f32.mrb[0].mxu0
    %v5652 = vadd.f32 %v5459, %v5651
    %v5653 = vpop.f32.mrb[0].mxu0
    %v5654 = vadd.f32 %v5461, %v5653
    %5655 = vmatprep.mubr.bf16.mxu0 %v437
    %5656 = vmatmul.mubr.bf16.gmra.mrb[0].mxu0 %v436
    %v5657 = vpop.f32.mrb[0].mxu0
    %v5658 = vadd.f32 %v5465, %v5657
    %v5659 = vpop.f32.mrb[0].mxu0
    %v5660 = vadd.f32 %v5467, %v5659
    %v5661 = vpop.f32.mrb[0].mxu0
    %v5662 = vadd.f32 %v5469, %v5661
    %v5663 = vpop.f32.mrb[0].mxu0
    %v5664 = vadd.f32 %v5471, %v5663
    %5665 = vmatprep.mubr.bf16.mxu0 %v445
    %5666 = vmatmul.mubr.bf16.gmra.mrb[0].mxu0 %v444
    %v5667 = vpop.f32.mrb[0].mxu0
    %v5668 = vadd.f32 %v5475, %v5667
    %v5669 = vpop.f32.mrb[0].mxu0
    %v5670 = vadd.f32 %v5477, %v5669
    %v5671 = vpop.f32.mrb[0].mxu0
    %v5672 = vadd.f32 %v5479, %v5671
    %v5673 = vpop.f32.mrb[0].mxu0
    %v5674 = vadd.f32 %v5481, %v5673
    %5675 = vmatprep.mubr.bf16.mxu0 %v453
    %5676 = vmatmul.mubr.bf16.gmra.mrb[0].mxu0 %v452
    %v5677 = vpop.f32.mrb[0].mxu0
    %v5678 = vadd.f32 %v5485, %v5677
    %v5679 = vpop.f32.mrb[0].mxu0
    %v5680 = vadd.f32 %v5487, %v5679
    %v5681 = vpop.f32.mrb[0].mxu0
    %v5682 = vadd.f32 %v5489, %v5681
    %v5683 = vpop.f32.mrb[0].mxu0
    %v5684 = vadd.f32 %v5491, %v5683
    %5685 = vmatprep.mubr.bf16.mxu0 %v461
    %5686 = vmatmul.mubr.bf16.gmra.mrb[0].mxu0 %v460
    %v5687 = vpop.f32.mrb[0].mxu0
    %v5688 = vadd.f32 %v5495, %v5687
    %v5689 = vpop.f32.mrb[0].mxu0
    %v5690 = vadd.f32 %v5497, %v5689
    %v5691 = vpop.f32.mrb[0].mxu0
    %v5692 = vadd.f32 %v5499, %v5691
    %v5693 = vpop.f32.mrb[0].mxu0
    %v5694 = vadd.f32 %v5501, %v5693
    %5695 = vmatprep.mubr.bf16.mxu0 %v469
    %5696 = vmatmul.mubr.bf16.gmra.mrb[0].mxu0 %v468
    %v5697 = vpop.f32.mrb[0].mxu0
    %v5698 = vadd.f32 %v5505, %v5697
    %v5699 = vpop.f32.mrb[0].mxu0
    %v5700 = vadd.f32 %v5507, %v5699
    %v5701 = vpop.f32.mrb[0].mxu0
    %v5702 = vadd.f32 %v5509, %v5701
    %v5703 = vpop.f32.mrb[0].mxu0
    %v5704 = vadd.f32 %v5511, %v5703
    %5705 = vmatprep.mubr.bf16.mxu0 %v477
    %5706 = vmatmul.mubr.bf16.gmra.mrb[0].mxu0 %v476
    %v5707 = vpop.f32.mrb[0].mxu0
    %v5708 = vadd.f32 %v5515, %v5707
    %v5709 = vpop.f32.mrb[0].mxu0
    %v5710 = vadd.f32 %v5517, %v5709
    %v5711 = vpop.f32.mrb[0].mxu0
    %v5712 = vadd.f32 %v5519, %v5711
    %v5713 = vpop.f32.mrb[0].mxu0
    %v5714 = vadd.f32 %v5521, %v5713
    %5715 = vdwg.mxu0
    %5716 = vmatprep.subr.bf16.mxu0 %v2958
    %5717 = vmatpush1.bf16.msra.mxu0 %v2957
    %5718 = vmatprep.subr.bf16.mxu0 %v2966
    %5719 = vmatpush1.bf16.msra.mxu0 %v2965
    %5720 = vmatprep.subr.bf16.mxu0 %v2974
    %5721 = vmatpush1.bf16.msra.mxu0 %v2973
    %5722 = vmatprep.subr.bf16.mxu0 %v2982
    %5723 = vmatpush1.bf16.msra.mxu0 %v2981
    %5724 = vmatprep.subr.bf16.mxu0 %v2990
    %5725 = vmatpush1.bf16.msra.mxu0 %v2989
    %5726 = vmatprep.subr.bf16.mxu0 %v2998
    %5727 = vmatpush1.bf16.msra.mxu0 %v2997
    %5728 = vmatprep.subr.bf16.mxu0 %v3006
    %5729 = vmatpush1.bf16.msra.mxu0 %v3005
    %5730 = vmatprep.subr.bf16.mxu0 %v3014
    %5731 = vmatpush1.bf16.msra.mxu0 %v3013
    %5732 = vmatprep.subr.bf16.mxu0 %v3022
    %5733 = vmatpush1.bf16.msra.mxu0 %v3021
    %5734 = vmatprep.subr.bf16.mxu0 %v3030
    %5735 = vmatpush1.bf16.msra.mxu0 %v3029
    %5736 = vmatprep.subr.bf16.mxu0 %v3038
    %5737 = vmatpush1.bf16.msra.mxu0 %v3037
    %5738 = vmatprep.subr.bf16.mxu0 %v3046
    %5739 = vmatpush1.bf16.msra.mxu0 %v3045
    %5740 = vmatprep.subr.bf16.mxu0 %v3054
    %5741 = vmatpush1.bf16.msra.mxu0 %v3053
    %5742 = vmatprep.subr.bf16.mxu0 %v3062
    %5743 = vmatpush1.bf16.msra.mxu0 %v3061
    %5744 = vmatprep.subr.bf16.mxu0 %v3070
    %5745 = vmatpush1.bf16.msra.mxu0 %v3069
    %5746 = vmatprep.subr.bf16.mxu0 %v3078
    %5747 = vmatpush1.bf16.msra.mxu0 %v3077
    %5748 = vmatprep.mubr.bf16.mxu0 %v359
    %5749 = vmatmul.mubr.bf16.gmra.mrb[0].mxu0 %v358
    %v5750 = vpop.f32.mrb[0].mxu0
    %v5751 = vadd.f32 %v5558, %v5750
    %v5752 = vpop.f32.mrb[0].mxu0
    %v5753 = vadd.f32 %v5560, %v5752
    %v5754 = vpop.f32.mrb[0].mxu0
    %v5755 = vadd.f32 %v5562, %v5754
    %v5756 = vpop.f32.mrb[0].mxu0
    %v5757 = vadd.f32 %v5564, %v5756
    %5758 = vmatprep.mubr.bf16.mxu0 %v367
    %5759 = vmatmul.mubr.bf16.gmra.mrb[0].mxu0 %v366
    %v5760 = vpop.f32.mrb[0].mxu0
    %v5761 = vadd.f32 %v5568, %v5760
    %v5762 = vpop.f32.mrb[0].mxu0
    %v5763 = vadd.f32 %v5570, %v5762
    %v5764 = vpop.f32.mrb[0].mxu0
    %v5765 = vadd.f32 %v5572, %v5764
    %v5766 = vpop.f32.mrb[0].mxu0
    %v5767 = vadd.f32 %v5574, %v5766
    %5768 = vmatprep.mubr.bf16.mxu0 %v375
    %5769 = vmatmul.mubr.bf16.gmra.mrb[0].mxu0 %v374
    %v5770 = vpop.f32.mrb[0].mxu0
    %v5771 = vadd.f32 %v5578, %v5770
    %v5772 = vpop.f32.mrb[0].mxu0
    %v5773 = vadd.f32 %v5580, %v5772
    %v5774 = vpop.f32.mrb[0].mxu0
    %v5775 = vadd.f32 %v5582, %v5774
    %v5776 = vpop.f32.mrb[0].mxu0
    %v5777 = vadd.f32 %v5584, %v5776
    %5778 = vmatprep.mubr.bf16.mxu0 %v383
    %5779 = vmatmul.mubr.bf16.gmra.mrb[0].mxu0 %v382
    %v5780 = vpop.f32.mrb[0].mxu0
    %v5781 = vadd.f32 %v5588, %v5780
    %v5782 = vpop.f32.mrb[0].mxu0
    %v5783 = vadd.f32 %v5590, %v5782
    %v5784 = vpop.f32.mrb[0].mxu0
    %v5785 = vadd.f32 %v5592, %v5784
    %v5786 = vpop.f32.mrb[0].mxu0
    %v5787 = vadd.f32 %v5594, %v5786
    %5788 = vmatprep.mubr.bf16.mxu0 %v391
    %5789 = vmatmul.mubr.bf16.gmra.mrb[0].mxu0 %v390
    %v5790 = vpop.f32.mrb[0].mxu0
    %v5791 = vadd.f32 %v5598, %v5790
    %v5792 = vpop.f32.mrb[0].mxu0
    %v5793 = vadd.f32 %v5600, %v5792
    %v5794 = vpop.f32.mrb[0].mxu0
    %v5795 = vadd.f32 %v5602, %v5794
    %v5796 = vpop.f32.mrb[0].mxu0
    %v5797 = vadd.f32 %v5604, %v5796
    %5798 = vmatprep.mubr.bf16.mxu0 %v399
    %5799 = vmatmul.mubr.bf16.gmra.mrb[0].mxu0 %v398
    %v5800 = vpop.f32.mrb[0].mxu0
    %v5801 = vadd.f32 %v5608, %v5800
    %v5802 = vpop.f32.mrb[0].mxu0
    %v5803 = vadd.f32 %v5610, %v5802
    %v5804 = vpop.f32.mrb[0].mxu0
    %v5805 = vadd.f32 %v5612, %v5804
    %v5806 = vpop.f32.mrb[0].mxu0
    %v5807 = vadd.f32 %v5614, %v5806
    %5808 = vmatprep.mubr.bf16.mxu0 %v407
    %5809 = vmatmul.mubr.bf16.gmra.mrb[0].mxu0 %v406
    %v5810 = vpop.f32.mrb[0].mxu0
    %v5811 = vadd.f32 %v5618, %v5810
    %v5812 = vpop.f32.mrb[0].mxu0
    %v5813 = vadd.f32 %v5620, %v5812
    %v5814 = vpop.f32.mrb[0].mxu0
    %v5815 = vadd.f32 %v5622, %v5814
    %v5816 = vpop.f32.mrb[0].mxu0
    %v5817 = vadd.f32 %v5624, %v5816
    %5818 = vmatprep.mubr.bf16.mxu0 %v415
    %5819 = vmatmul.mubr.bf16.gmra.mrb[0].mxu0 %v414
    %v5820 = vpop.f32.mrb[0].mxu0
    %v5821 = vadd.f32 %v5628, %v5820
    %v5822 = vpop.f32.mrb[0].mxu0
    %v5823 = vadd.f32 %v5630, %v5822
    %v5824 = vpop.f32.mrb[0].mxu0
    %v5825 = vadd.f32 %v5632, %v5824
    %v5826 = vpop.f32.mrb[0].mxu0
    %v5827 = vadd.f32 %v5634, %v5826
    %5828 = vmatprep.mubr.bf16.mxu0 %v423
    %5829 = vmatmul.mubr.bf16.gmra.mrb[0].mxu0 %v422
    %v5830 = vpop.f32.mrb[0].mxu0
    %v5831 = vadd.f32 %v5638, %v5830
    %v5832 = vpop.f32.mrb[0].mxu0
    %v5833 = vadd.f32 %v5640, %v5832
    %v5834 = vpop.f32.mrb[0].mxu0
    %v5835 = vadd.f32 %v5642, %v5834
    %v5836 = vpop.f32.mrb[0].mxu0
    %v5837 = vadd.f32 %v5644, %v5836
    %5838 = vmatprep.mubr.bf16.mxu0 %v431
    %5839 = vmatmul.mubr.bf16.gmra.mrb[0].mxu0 %v430
    %v5840 = vpop.f32.mrb[0].mxu0
    %v5841 = vadd.f32 %v5648, %v5840
    %v5842 = vpop.f32.mrb[0].mxu0
    %v5843 = vadd.f32 %v5650, %v5842
    %v5844 = vpop.f32.mrb[0].mxu0
    %v5845 = vadd.f32 %v5652, %v5844
    %v5846 = vpop.f32.mrb[0].mxu0
    %v5847 = vadd.f32 %v5654, %v5846
    %5848 = vmatprep.mubr.bf16.mxu0 %v439
    %5849 = vmatmul.mubr.bf16.gmra.mrb[0].mxu0 %v438
    %v5850 = vpop.f32.mrb[0].mxu0
    %v5851 = vadd.f32 %v5658, %v5850
    %v5852 = vpop.f32.mrb[0].mxu0
    %v5853 = vadd.f32 %v5660, %v5852
    %v5854 = vpop.f32.mrb[0].mxu0
    %v5855 = vadd.f32 %v5662, %v5854
    %v5856 = vpop.f32.mrb[0].mxu0
    %v5857 = vadd.f32 %v5664, %v5856
    %5858 = vmatprep.mubr.bf16.mxu0 %v447
    %5859 = vmatmul.mubr.bf16.gmra.mrb[0].mxu0 %v446
    %v5860 = vpop.f32.mrb[0].mxu0
    %v5861 = vadd.f32 %v5668, %v5860
    %v5862 = vpop.f32.mrb[0].mxu0
    %v5863 = vadd.f32 %v5670, %v5862
    %v5864 = vpop.f32.mrb[0].mxu0
    %v5865 = vadd.f32 %v5672, %v5864
    %v5866 = vpop.f32.mrb[0].mxu0
    %v5867 = vadd.f32 %v5674, %v5866
    %5868 = vmatprep.mubr.bf16.mxu0 %v455
    %5869 = vmatmul.mubr.bf16.gmra.mrb[0].mxu0 %v454
    %v5870 = vpop.f32.mrb[0].mxu0
    %v5871 = vadd.f32 %v5678, %v5870
    %v5872 = vpop.f32.mrb[0].mxu0
    %v5873 = vadd.f32 %v5680, %v5872
    %v5874 = vpop.f32.mrb[0].mxu0
    %v5875 = vadd.f32 %v5682, %v5874
    %v5876 = vpop.f32.mrb[0].mxu0
    %v5877 = vadd.f32 %v5684, %v5876
    %5878 = vmatprep.mubr.bf16.mxu0 %v463
    %5879 = vmatmul.mubr.bf16.gmra.mrb[0].mxu0 %v462
    %v5880 = vpop.f32.mrb[0].mxu0
    %v5881 = vadd.f32 %v5688, %v5880
    %v5882 = vpop.f32.mrb[0].mxu0
    %v5883 = vadd.f32 %v5690, %v5882
    %v5884 = vpop.f32.mrb[0].mxu0
    %v5885 = vadd.f32 %v5692, %v5884
    %v5886 = vpop.f32.mrb[0].mxu0
    %v5887 = vadd.f32 %v5694, %v5886
    %5888 = vmatprep.mubr.bf16.mxu0 %v471
    %5889 = vmatmul.mubr.bf16.gmra.mrb[0].mxu0 %v470
    %v5890 = vpop.f32.mrb[0].mxu0
    %v5891 = vadd.f32 %v5698, %v5890
    %v5892 = vpop.f32.mrb[0].mxu0
    %v5893 = vadd.f32 %v5700, %v5892
    %v5894 = vpop.f32.mrb[0].mxu0
    %v5895 = vadd.f32 %v5702, %v5894
    %v5896 = vpop.f32.mrb[0].mxu0
    %v5897 = vadd.f32 %v5704, %v5896
    %5898 = vmatprep.mubr.bf16.mxu0 %v479
    %5899 = vmatmul.mubr.bf16.gmra.mrb[0].mxu0 %v478
    %v5900 = vpop.f32.mrb[0].mxu0
    %v5901 = vadd.f32 %v5708, %v5900
    %v5902 = vpop.f32.mrb[0].mxu0
    %v5903 = vadd.f32 %v5710, %v5902
    %v5904 = vpop.f32.mrb[0].mxu0
    %v5905 = vadd.f32 %v5712, %v5904
    %v5906 = vpop.f32.mrb[0].mxu0
    %v5907 = vadd.f32 %v5714, %v5906
    %5908 = vdwg.mxu0
    %5909 = vmatprep.subr.bf16.mxu0 %v2576
    %5910 = vmatpush1.bf16.msra.mxu0 %v2575
    %5911 = vmatprep.subr.bf16.mxu0 %v2584
    %5912 = vmatpush1.bf16.msra.mxu0 %v2583
    %5913 = vmatprep.subr.bf16.mxu0 %v2592
    %5914 = vmatpush1.bf16.msra.mxu0 %v2591
    %5915 = vmatprep.subr.bf16.mxu0 %v2600
    %5916 = vmatpush1.bf16.msra.mxu0 %v2599
    %5917 = vmatprep.subr.bf16.mxu0 %v2608
    %5918 = vmatpush1.bf16.msra.mxu0 %v2607
    %5919 = vmatprep.subr.bf16.mxu0 %v2616
    %5920 = vmatpush1.bf16.msra.mxu0 %v2615
    %5921 = vmatprep.subr.bf16.mxu0 %v2624
    %5922 = vmatpush1.bf16.msra.mxu0 %v2623
    %5923 = vmatprep.subr.bf16.mxu0 %v2632
    %5924 = vmatpush1.bf16.msra.mxu0 %v2631
    %5925 = vmatprep.subr.bf16.mxu0 %v2640
    %5926 = vmatpush1.bf16.msra.mxu0 %v2639
    %5927 = vmatprep.subr.bf16.mxu0 %v2648
    %5928 = vmatpush1.bf16.msra.mxu0 %v2647
    %5929 = vmatprep.subr.bf16.mxu0 %v2656
    %5930 = vmatpush1.bf16.msra.mxu0 %v2655
    %5931 = vmatprep.subr.bf16.mxu0 %v2664
    %5932 = vmatpush1.bf16.msra.mxu0 %v2663
    %5933 = vmatprep.subr.bf16.mxu0 %v2672
    %5934 = vmatpush1.bf16.msra.mxu0 %v2671
    %5935 = vmatprep.subr.bf16.mxu0 %v2680
    %5936 = vmatpush1.bf16.msra.mxu0 %v2679
    %5937 = vmatprep.subr.bf16.mxu0 %v2688
    %5938 = vmatpush1.bf16.msra.mxu0 %v2687
    %5939 = vmatprep.subr.bf16.mxu0 %v2696
    %5940 = vmatpush1.bf16.msra.mxu0 %v2695
    %5941 = vmatprep.mubr.bf16.mxu0 %v353
    %5942 = vmatmul.mubr.bf16.gmra.mrb[0].mxu0 %v352
    %v5943 = vpop.f32.mrb[0].mxu0
    %v5944 = vadd.f32 %v1020, %v5943
    %v5945 = vpop.f32.mrb[0].mxu0
    %v5946 = vadd.f32 %v1024, %v5945
    %v5947 = vpop.f32.mrb[0].mxu0
    %v5948 = vadd.f32 %v1020, %v5947
    %v5949 = vpop.f32.mrb[0].mxu0
    %v5950 = vadd.f32 %v1024, %v5949
    %5951 = vmatprep.mubr.bf16.mxu0 %v361
    %5952 = vmatmul.mubr.bf16.gmra.mrb[0].mxu0 %v360
    %v5953 = vpop.f32.mrb[0].mxu0
    %v5954 = vadd.f32 %v1020, %v5953
    %v5955 = vpop.f32.mrb[0].mxu0
    %v5956 = vadd.f32 %v1024, %v5955
    %v5957 = vpop.f32.mrb[0].mxu0
    %v5958 = vadd.f32 %v1020, %v5957
    %v5959 = vpop.f32.mrb[0].mxu0
    %v5960 = vadd.f32 %v1024, %v5959
    %5961 = vmatprep.mubr.bf16.mxu0 %v369
    %5962 = vmatmul.mubr.bf16.gmra.mrb[0].mxu0 %v368
    %v5963 = vpop.f32.mrb[0].mxu0
    %v5964 = vadd.f32 %v1020, %v5963
    %v5965 = vpop.f32.mrb[0].mxu0
    %v5966 = vadd.f32 %v1024, %v5965
    %v5967 = vpop.f32.mrb[0].mxu0
    %v5968 = vadd.f32 %v1020, %v5967
    %v5969 = vpop.f32.mrb[0].mxu0
    %v5970 = vadd.f32 %v1024, %v5969
    %5971 = vmatprep.mubr.bf16.mxu0 %v377
    %5972 = vmatmul.mubr.bf16.gmra.mrb[0].mxu0 %v376
    %v5973 = vpop.f32.mrb[0].mxu0
    %v5974 = vadd.f32 %v1020, %v5973
    %v5975 = vpop.f32.mrb[0].mxu0
    %v5976 = vadd.f32 %v1024, %v5975
    %v5977 = vpop.f32.mrb[0].mxu0
    %v5978 = vadd.f32 %v1020, %v5977
    %v5979 = vpop.f32.mrb[0].mxu0
    %v5980 = vadd.f32 %v1024, %v5979
    %5981 = vmatprep.mubr.bf16.mxu0 %v385
    %5982 = vmatmul.mubr.bf16.gmra.mrb[0].mxu0 %v384
    %v5983 = vpop.f32.mrb[0].mxu0
    %v5984 = vadd.f32 %v1020, %v5983
    %v5985 = vpop.f32.mrb[0].mxu0
    %v5986 = vadd.f32 %v1024, %v5985
    %v5987 = vpop.f32.mrb[0].mxu0
    %v5988 = vadd.f32 %v1020, %v5987
    %v5989 = vpop.f32.mrb[0].mxu0
    %v5990 = vadd.f32 %v1024, %v5989
    %5991 = vmatprep.mubr.bf16.mxu0 %v393
    %5992 = vmatmul.mubr.bf16.gmra.mrb[0].mxu0 %v392
    %v5993 = vpop.f32.mrb[0].mxu0
    %v5994 = vadd.f32 %v1020, %v5993
    %v5995 = vpop.f32.mrb[0].mxu0
    %v5996 = vadd.f32 %v1024, %v5995
    %v5997 = vpop.f32.mrb[0].mxu0
    %v5998 = vadd.f32 %v1020, %v5997
    %v5999 = vpop.f32.mrb[0].mxu0
    %v6000 = vadd.f32 %v1024, %v5999
    %6001 = vmatprep.mubr.bf16.mxu0 %v401
    %6002 = vmatmul.mubr.bf16.gmra.mrb[0].mxu0 %v400
    %v6003 = vpop.f32.mrb[0].mxu0
    %v6004 = vadd.f32 %v1020, %v6003
    %v6005 = vpop.f32.mrb[0].mxu0
    %v6006 = vadd.f32 %v1024, %v6005
    %v6007 = vpop.f32.mrb[0].mxu0
    %v6008 = vadd.f32 %v1020, %v6007
    %v6009 = vpop.f32.mrb[0].mxu0
    %v6010 = vadd.f32 %v1024, %v6009
    %6011 = vmatprep.mubr.bf16.mxu0 %v409
    %6012 = vmatmul.mubr.bf16.gmra.mrb[0].mxu0 %v408
    %v6013 = vpop.f32.mrb[0].mxu0
    %v6014 = vadd.f32 %v1020, %v6013
    %v6015 = vpop.f32.mrb[0].mxu0
    %v6016 = vadd.f32 %v1024, %v6015
    %v6017 = vpop.f32.mrb[0].mxu0
    %v6018 = vadd.f32 %v1020, %v6017
    %v6019 = vpop.f32.mrb[0].mxu0
    %v6020 = vadd.f32 %v1024, %v6019
    %6021 = vmatprep.mubr.bf16.mxu0 %v417
    %6022 = vmatmul.mubr.bf16.gmra.mrb[0].mxu0 %v416
    %v6023 = vpop.f32.mrb[0].mxu0
    %v6024 = vadd.f32 %v1020, %v6023
    %v6025 = vpop.f32.mrb[0].mxu0
    %v6026 = vadd.f32 %v1024, %v6025
    %v6027 = vpop.f32.mrb[0].mxu0
    %v6028 = vadd.f32 %v1020, %v6027
    %v6029 = vpop.f32.mrb[0].mxu0
    %v6030 = vadd.f32 %v1024, %v6029
    %6031 = vmatprep.mubr.bf16.mxu0 %v425
    %6032 = vmatmul.mubr.bf16.gmra.mrb[0].mxu0 %v424
    %v6033 = vpop.f32.mrb[0].mxu0
    %v6034 = vadd.f32 %v1020, %v6033
    %v6035 = vpop.f32.mrb[0].mxu0
    %v6036 = vadd.f32 %v1024, %v6035
    %v6037 = vpop.f32.mrb[0].mxu0
    %v6038 = vadd.f32 %v1020, %v6037
    %v6039 = vpop.f32.mrb[0].mxu0
    %v6040 = vadd.f32 %v1024, %v6039
    %6041 = vmatprep.mubr.bf16.mxu0 %v433
    %6042 = vmatmul.mubr.bf16.gmra.mrb[0].mxu0 %v432
    %v6043 = vpop.f32.mrb[0].mxu0
    %v6044 = vadd.f32 %v1020, %v6043
    %v6045 = vpop.f32.mrb[0].mxu0
    %v6046 = vadd.f32 %v1024, %v6045
    %v6047 = vpop.f32.mrb[0].mxu0
    %v6048 = vadd.f32 %v1020, %v6047
    %v6049 = vpop.f32.mrb[0].mxu0
    %v6050 = vadd.f32 %v1024, %v6049
    %6051 = vmatprep.mubr.bf16.mxu0 %v441
    %6052 = vmatmul.mubr.bf16.gmra.mrb[0].mxu0 %v440
    %v6053 = vpop.f32.mrb[0].mxu0
    %v6054 = vadd.f32 %v1020, %v6053
    %v6055 = vpop.f32.mrb[0].mxu0
    %v6056 = vadd.f32 %v1024, %v6055
    %v6057 = vpop.f32.mrb[0].mxu0
    %v6058 = vadd.f32 %v1020, %v6057
    %v6059 = vpop.f32.mrb[0].mxu0
    %v6060 = vadd.f32 %v1024, %v6059
    %6061 = vmatprep.mubr.bf16.mxu0 %v449
    %6062 = vmatmul.mubr.bf16.gmra.mrb[0].mxu0 %v448
    %v6063 = vpop.f32.mrb[0].mxu0
    %v6064 = vadd.f32 %v1020, %v6063
    %v6065 = vpop.f32.mrb[0].mxu0
    %v6066 = vadd.f32 %v1024, %v6065
    %v6067 = vpop.f32.mrb[0].mxu0
    %v6068 = vadd.f32 %v1020, %v6067
    %v6069 = vpop.f32.mrb[0].mxu0
    %v6070 = vadd.f32 %v1024, %v6069
    %6071 = vmatprep.mubr.bf16.mxu0 %v457
    %6072 = vmatmul.mubr.bf16.gmra.mrb[0].mxu0 %v456
    %v6073 = vpop.f32.mrb[0].mxu0
    %v6074 = vadd.f32 %v1020, %v6073
    %v6075 = vpop.f32.mrb[0].mxu0
    %v6076 = vadd.f32 %v1024, %v6075
    %v6077 = vpop.f32.mrb[0].mxu0
    %v6078 = vadd.f32 %v1020, %v6077
    %v6079 = vpop.f32.mrb[0].mxu0
    %v6080 = vadd.f32 %v1024, %v6079
    %6081 = vmatprep.mubr.bf16.mxu0 %v465
    %6082 = vmatmul.mubr.bf16.gmra.mrb[0].mxu0 %v464
    %v6083 = vpop.f32.mrb[0].mxu0
    %v6084 = vadd.f32 %v1020, %v6083
    %v6085 = vpop.f32.mrb[0].mxu0
    %v6086 = vadd.f32 %v1024, %v6085
    %v6087 = vpop.f32.mrb[0].mxu0
    %v6088 = vadd.f32 %v1020, %v6087
    %v6089 = vpop.f32.mrb[0].mxu0
    %v6090 = vadd.f32 %v1024, %v6089
    %6091 = vmatprep.mubr.bf16.mxu0 %v473
    %6092 = vmatmul.mubr.bf16.gmra.mrb[0].mxu0 %v472
    %v6093 = vpop.f32.mrb[0].mxu0
    %v6094 = vadd.f32 %v1020, %v6093
    %v6095 = vpop.f32.mrb[0].mxu0
    %v6096 = vadd.f32 %v1024, %v6095
    %v6097 = vpop.f32.mrb[0].mxu0
    %v6098 = vadd.f32 %v1020, %v6097
    %v6099 = vpop.f32.mrb[0].mxu0
    %v6100 = vadd.f32 %v1024, %v6099
    %6101 = vdwg.mxu0
    %6102 = vmatprep.subr.bf16.mxu0 %v2704
    %6103 = vmatpush1.bf16.msra.mxu0 %v2703
    %6104 = vmatprep.subr.bf16.mxu0 %v2712
    %6105 = vmatpush1.bf16.msra.mxu0 %v2711
    %6106 = vmatprep.subr.bf16.mxu0 %v2720
    %6107 = vmatpush1.bf16.msra.mxu0 %v2719
    %6108 = vmatprep.subr.bf16.mxu0 %v2728
    %6109 = vmatpush1.bf16.msra.mxu0 %v2727
    %6110 = vmatprep.subr.bf16.mxu0 %v2736
    %6111 = vmatpush1.bf16.msra.mxu0 %v2735
    %6112 = vmatprep.subr.bf16.mxu0 %v2744
    %6113 = vmatpush1.bf16.msra.mxu0 %v2743
    %6114 = vmatprep.subr.bf16.mxu0 %v2752
    %6115 = vmatpush1.bf16.msra.mxu0 %v2751
    %6116 = vmatprep.subr.bf16.mxu0 %v2760
    %6117 = vmatpush1.bf16.msra.mxu0 %v2759
    %6118 = vmatprep.subr.bf16.mxu0 %v2768
    %6119 = vmatpush1.bf16.msra.mxu0 %v2767
    %6120 = vmatprep.subr.bf16.mxu0 %v2776
    %6121 = vmatpush1.bf16.msra.mxu0 %v2775
    %6122 = vmatprep.subr.bf16.mxu0 %v2784
    %6123 = vmatpush1.bf16.msra.mxu0 %v2783
    %6124 = vmatprep.subr.bf16.mxu0 %v2792
    %6125 = vmatpush1.bf16.msra.mxu0 %v2791
    %6126 = vmatprep.subr.bf16.mxu0 %v2800
    %6127 = vmatpush1.bf16.msra.mxu0 %v2799
    %6128 = vmatprep.subr.bf16.mxu0 %v2808
    %6129 = vmatpush1.bf16.msra.mxu0 %v2807
    %6130 = vmatprep.subr.bf16.mxu0 %v2816
    %6131 = vmatpush1.bf16.msra.mxu0 %v2815
    %6132 = vmatprep.subr.bf16.mxu0 %v2824
    %6133 = vmatpush1.bf16.msra.mxu0 %v2823
    %6134 = vmatprep.mubr.bf16.mxu0 %v355
    %6135 = vmatmul.mubr.bf16.gmra.mrb[0].mxu0 %v354
    %v6136 = vpop.f32.mrb[0].mxu0
    %v6137 = vadd.f32 %v5944, %v6136
    %v6138 = vpop.f32.mrb[0].mxu0
    %v6139 = vadd.f32 %v5946, %v6138
    %v6140 = vpop.f32.mrb[0].mxu0
    %v6141 = vadd.f32 %v5948, %v6140
    %v6142 = vpop.f32.mrb[0].mxu0
    %v6143 = vadd.f32 %v5950, %v6142
    %6144 = vmatprep.mubr.bf16.mxu0 %v363
    %6145 = vmatmul.mubr.bf16.gmra.mrb[0].mxu0 %v362
    %v6146 = vpop.f32.mrb[0].mxu0
    %v6147 = vadd.f32 %v5954, %v6146
    %v6148 = vpop.f32.mrb[0].mxu0
    %v6149 = vadd.f32 %v5956, %v6148
    %v6150 = vpop.f32.mrb[0].mxu0
    %v6151 = vadd.f32 %v5958, %v6150
    %v6152 = vpop.f32.mrb[0].mxu0
    %v6153 = vadd.f32 %v5960, %v6152
    %6154 = vmatprep.mubr.bf16.mxu0 %v371
    %6155 = vmatmul.mubr.bf16.gmra.mrb[0].mxu0 %v370
    %v6156 = vpop.f32.mrb[0].mxu0
    %v6157 = vadd.f32 %v5964, %v6156
    %v6158 = vpop.f32.mrb[0].mxu0
    %v6159 = vadd.f32 %v5966, %v6158
    %v6160 = vpop.f32.mrb[0].mxu0
    %v6161 = vadd.f32 %v5968, %v6160
    %v6162 = vpop.f32.mrb[0].mxu0
    %v6163 = vadd.f32 %v5970, %v6162
    %6164 = vmatprep.mubr.bf16.mxu0 %v379
    %6165 = vmatmul.mubr.bf16.gmra.mrb[0].mxu0 %v378
    %v6166 = vpop.f32.mrb[0].mxu0
    %v6167 = vadd.f32 %v5974, %v6166
    %v6168 = vpop.f32.mrb[0].mxu0
    %v6169 = vadd.f32 %v5976, %v6168
    %v6170 = vpop.f32.mrb[0].mxu0
    %v6171 = vadd.f32 %v5978, %v6170
    %v6172 = vpop.f32.mrb[0].mxu0
    %v6173 = vadd.f32 %v5980, %v6172
    %6174 = vmatprep.mubr.bf16.mxu0 %v387
    %6175 = vmatmul.mubr.bf16.gmra.mrb[0].mxu0 %v386
    %v6176 = vpop.f32.mrb[0].mxu0
    %v6177 = vadd.f32 %v5984, %v6176
    %v6178 = vpop.f32.mrb[0].mxu0
    %v6179 = vadd.f32 %v5986, %v6178
    %v6180 = vpop.f32.mrb[0].mxu0
    %v6181 = vadd.f32 %v5988, %v6180
    %v6182 = vpop.f32.mrb[0].mxu0
    %v6183 = vadd.f32 %v5990, %v6182
    %6184 = vmatprep.mubr.bf16.mxu0 %v395
    %6185 = vmatmul.mubr.bf16.gmra.mrb[0].mxu0 %v394
    %v6186 = vpop.f32.mrb[0].mxu0
    %v6187 = vadd.f32 %v5994, %v6186
    %v6188 = vpop.f32.mrb[0].mxu0
    %v6189 = vadd.f32 %v5996, %v6188
    %v6190 = vpop.f32.mrb[0].mxu0
    %v6191 = vadd.f32 %v5998, %v6190
    %v6192 = vpop.f32.mrb[0].mxu0
    %v6193 = vadd.f32 %v6000, %v6192
    %6194 = vmatprep.mubr.bf16.mxu0 %v403
    %6195 = vmatmul.mubr.bf16.gmra.mrb[0].mxu0 %v402
    %v6196 = vpop.f32.mrb[0].mxu0
    %v6197 = vadd.f32 %v6004, %v6196
    %v6198 = vpop.f32.mrb[0].mxu0
    %v6199 = vadd.f32 %v6006, %v6198
    %v6200 = vpop.f32.mrb[0].mxu0
    %v6201 = vadd.f32 %v6008, %v6200
    %v6202 = vpop.f32.mrb[0].mxu0
    %v6203 = vadd.f32 %v6010, %v6202
    %6204 = vmatprep.mubr.bf16.mxu0 %v411
    %6205 = vmatmul.mubr.bf16.gmra.mrb[0].mxu0 %v410
    %v6206 = vpop.f32.mrb[0].mxu0
    %v6207 = vadd.f32 %v6014, %v6206
    %v6208 = vpop.f32.mrb[0].mxu0
    %v6209 = vadd.f32 %v6016, %v6208
    %v6210 = vpop.f32.mrb[0].mxu0
    %v6211 = vadd.f32 %v6018, %v6210
    %v6212 = vpop.f32.mrb[0].mxu0
    %v6213 = vadd.f32 %v6020, %v6212
    %6214 = vmatprep.mubr.bf16.mxu0 %v419
    %6215 = vmatmul.mubr.bf16.gmra.mrb[0].mxu0 %v418
    %v6216 = vpop.f32.mrb[0].mxu0
    %v6217 = vadd.f32 %v6024, %v6216
    %v6218 = vpop.f32.mrb[0].mxu0
    %v6219 = vadd.f32 %v6026, %v6218
    %v6220 = vpop.f32.mrb[0].mxu0
    %v6221 = vadd.f32 %v6028, %v6220
    %v6222 = vpop.f32.mrb[0].mxu0
    %v6223 = vadd.f32 %v6030, %v6222
    %6224 = vmatprep.mubr.bf16.mxu0 %v427
    %6225 = vmatmul.mubr.bf16.gmra.mrb[0].mxu0 %v426
    %v6226 = vpop.f32.mrb[0].mxu0
    %v6227 = vadd.f32 %v6034, %v6226
    %v6228 = vpop.f32.mrb[0].mxu0
    %v6229 = vadd.f32 %v6036, %v6228
    %v6230 = vpop.f32.mrb[0].mxu0
    %v6231 = vadd.f32 %v6038, %v6230
    %v6232 = vpop.f32.mrb[0].mxu0
    %v6233 = vadd.f32 %v6040, %v6232
    %6234 = vmatprep.mubr.bf16.mxu0 %v435
    %6235 = vmatmul.mubr.bf16.gmra.mrb[0].mxu0 %v434
    %v6236 = vpop.f32.mrb[0].mxu0
    %v6237 = vadd.f32 %v6044, %v6236
    %v6238 = vpop.f32.mrb[0].mxu0
    %v6239 = vadd.f32 %v6046, %v6238
    %v6240 = vpop.f32.mrb[0].mxu0
    %v6241 = vadd.f32 %v6048, %v6240
    %v6242 = vpop.f32.mrb[0].mxu0
    %v6243 = vadd.f32 %v6050, %v6242
    %6244 = vmatprep.mubr.bf16.mxu0 %v443
    %6245 = vmatmul.mubr.bf16.gmra.mrb[0].mxu0 %v442
    %v6246 = vpop.f32.mrb[0].mxu0
    %v6247 = vadd.f32 %v6054, %v6246
    %v6248 = vpop.f32.mrb[0].mxu0
    %v6249 = vadd.f32 %v6056, %v6248
    %v6250 = vpop.f32.mrb[0].mxu0
    %v6251 = vadd.f32 %v6058, %v6250
    %v6252 = vpop.f32.mrb[0].mxu0
    %v6253 = vadd.f32 %v6060, %v6252
    %6254 = vmatprep.mubr.bf16.mxu0 %v451
    %6255 = vmatmul.mubr.bf16.gmra.mrb[0].mxu0 %v450
    %v6256 = vpop.f32.mrb[0].mxu0
    %v6257 = vadd.f32 %v6064, %v6256
    %v6258 = vpop.f32.mrb[0].mxu0
    %v6259 = vadd.f32 %v6066, %v6258
    %v6260 = vpop.f32.mrb[0].mxu0
    %v6261 = vadd.f32 %v6068, %v6260
    %v6262 = vpop.f32.mrb[0].mxu0
    %v6263 = vadd.f32 %v6070, %v6262
    %6264 = vmatprep.mubr.bf16.mxu0 %v459
    %6265 = vmatmul.mubr.bf16.gmra.mrb[0].mxu0 %v458
    %v6266 = vpop.f32.mrb[0].mxu0
    %v6267 = vadd.f32 %v6074, %v6266
    %v6268 = vpop.f32.mrb[0].mxu0
    %v6269 = vadd.f32 %v6076, %v6268
    %v6270 = vpop.f32.mrb[0].mxu0
    %v6271 = vadd.f32 %v6078, %v6270
    %v6272 = vpop.f32.mrb[0].mxu0
    %v6273 = vadd.f32 %v6080, %v6272
    %6274 = vmatprep.mubr.bf16.mxu0 %v467
    %6275 = vmatmul.mubr.bf16.gmra.mrb[0].mxu0 %v466
    %v6276 = vpop.f32.mrb[0].mxu0
    %v6277 = vadd.f32 %v6084, %v6276
    %v6278 = vpop.f32.mrb[0].mxu0
    %v6279 = vadd.f32 %v6086, %v6278
    %v6280 = vpop.f32.mrb[0].mxu0
    %v6281 = vadd.f32 %v6088, %v6280
    %v6282 = vpop.f32.mrb[0].mxu0
    %v6283 = vadd.f32 %v6090, %v6282
    %6284 = vmatprep.mubr.bf16.mxu0 %v475
    %6285 = vmatmul.mubr.bf16.gmra.mrb[0].mxu0 %v474
    %v6286 = vpop.f32.mrb[0].mxu0
    %v6287 = vadd.f32 %v6094, %v6286
    %v6288 = vpop.f32.mrb[0].mxu0
    %v6289 = vadd.f32 %v6096, %v6288
    %v6290 = vpop.f32.mrb[0].mxu0
    %v6291 = vadd.f32 %v6098, %v6290
    %v6292 = vpop.f32.mrb[0].mxu0
    %v6293 = vadd.f32 %v6100, %v6292
    %6294 = vdwg.mxu0
    %6295 = vmatprep.subr.bf16.mxu0 %v2832
    %6296 = vmatpush1.bf16.msra.mxu0 %v2831
    %6297 = vmatprep.subr.bf16.mxu0 %v2840
    %6298 = vmatpush1.bf16.msra.mxu0 %v2839
    %6299 = vmatprep.subr.bf16.mxu0 %v2848
    %6300 = vmatpush1.bf16.msra.mxu0 %v2847
    %6301 = vmatprep.subr.bf16.mxu0 %v2856
    %6302 = vmatpush1.bf16.msra.mxu0 %v2855
    %6303 = vmatprep.subr.bf16.mxu0 %v2864
    %6304 = vmatpush1.bf16.msra.mxu0 %v2863
    %6305 = vmatprep.subr.bf16.mxu0 %v2872
    %6306 = vmatpush1.bf16.msra.mxu0 %v2871
    %6307 = vmatprep.subr.bf16.mxu0 %v2880
    %6308 = vmatpush1.bf16.msra.mxu0 %v2879
    %6309 = vmatprep.subr.bf16.mxu0 %v2888
    %6310 = vmatpush1.bf16.msra.mxu0 %v2887
    %6311 = vmatprep.subr.bf16.mxu0 %v2896
    %6312 = vmatpush1.bf16.msra.mxu0 %v2895
    %6313 = vmatprep.subr.bf16.mxu0 %v2904
    %6314 = vmatpush1.bf16.msra.mxu0 %v2903
    %6315 = vmatprep.subr.bf16.mxu0 %v2912
    %6316 = vmatpush1.bf16.msra.mxu0 %v2911
    %6317 = vmatprep.subr.bf16.mxu0 %v2920
    %6318 = vmatpush1.bf16.msra.mxu0 %v2919
    %6319 = vmatprep.subr.bf16.mxu0 %v2928
    %6320 = vmatpush1.bf16.msra.mxu0 %v2927
    %6321 = vmatprep.subr.bf16.mxu0 %v2936
    %6322 = vmatpush1.bf16.msra.mxu0 %v2935
    %6323 = vmatprep.subr.bf16.mxu0 %v2944
    %6324 = vmatpush1.bf16.msra.mxu0 %v2943
    %6325 = vmatprep.subr.bf16.mxu0 %v2952
    %6326 = vmatpush1.bf16.msra.mxu0 %v2951
    %6327 = vmatprep.mubr.bf16.mxu0 %v357
    %6328 = vmatmul.mubr.bf16.gmra.mrb[0].mxu0 %v356
    %v6329 = vpop.f32.mrb[0].mxu0
    %v6330 = vadd.f32 %v6137, %v6329
    %v6331 = vpop.f32.mrb[0].mxu0
    %v6332 = vadd.f32 %v6139, %v6331
    %v6333 = vpop.f32.mrb[0].mxu0
    %v6334 = vadd.f32 %v6141, %v6333
    %v6335 = vpop.f32.mrb[0].mxu0
    %v6336 = vadd.f32 %v6143, %v6335
    %6337 = vmatprep.mubr.bf16.mxu0 %v365
    %6338 = vmatmul.mubr.bf16.gmra.mrb[0].mxu0 %v364
    %v6339 = vpop.f32.mrb[0].mxu0
    %v6340 = vadd.f32 %v6147, %v6339
    %v6341 = vpop.f32.mrb[0].mxu0
    %v6342 = vadd.f32 %v6149, %v6341
    %v6343 = vpop.f32.mrb[0].mxu0
    %v6344 = vadd.f32 %v6151, %v6343
    %v6345 = vpop.f32.mrb[0].mxu0
    %v6346 = vadd.f32 %v6153, %v6345
    %6347 = vmatprep.mubr.bf16.mxu0 %v373
    %6348 = vmatmul.mubr.bf16.gmra.mrb[0].mxu0 %v372
    %v6349 = vpop.f32.mrb[0].mxu0
    %v6350 = vadd.f32 %v6157, %v6349
    %v6351 = vpop.f32.mrb[0].mxu0
    %v6352 = vadd.f32 %v6159, %v6351
    %v6353 = vpop.f32.mrb[0].mxu0
    %v6354 = vadd.f32 %v6161, %v6353
    %v6355 = vpop.f32.mrb[0].mxu0
    %v6356 = vadd.f32 %v6163, %v6355
    %6357 = vmatprep.mubr.bf16.mxu0 %v381
    %6358 = vmatmul.mubr.bf16.gmra.mrb[0].mxu0 %v380
    %v6359 = vpop.f32.mrb[0].mxu0
    %v6360 = vadd.f32 %v6167, %v6359
    %v6361 = vpop.f32.mrb[0].mxu0
    %v6362 = vadd.f32 %v6169, %v6361
    %v6363 = vpop.f32.mrb[0].mxu0
    %v6364 = vadd.f32 %v6171, %v6363
    %v6365 = vpop.f32.mrb[0].mxu0
    %v6366 = vadd.f32 %v6173, %v6365
    %6367 = vmatprep.mubr.bf16.mxu0 %v389
    %6368 = vmatmul.mubr.bf16.gmra.mrb[0].mxu0 %v388
    %v6369 = vpop.f32.mrb[0].mxu0
    %v6370 = vadd.f32 %v6177, %v6369
    %v6371 = vpop.f32.mrb[0].mxu0
    %v6372 = vadd.f32 %v6179, %v6371
    %v6373 = vpop.f32.mrb[0].mxu0
    %v6374 = vadd.f32 %v6181, %v6373
    %v6375 = vpop.f32.mrb[0].mxu0
    %v6376 = vadd.f32 %v6183, %v6375
    %6377 = vmatprep.mubr.bf16.mxu0 %v397
    %6378 = vmatmul.mubr.bf16.gmra.mrb[0].mxu0 %v396
    %v6379 = vpop.f32.mrb[0].mxu0
    %v6380 = vadd.f32 %v6187, %v6379
    %v6381 = vpop.f32.mrb[0].mxu0
    %v6382 = vadd.f32 %v6189, %v6381
    %v6383 = vpop.f32.mrb[0].mxu0
    %v6384 = vadd.f32 %v6191, %v6383
    %v6385 = vpop.f32.mrb[0].mxu0
    %v6386 = vadd.f32 %v6193, %v6385
    %6387 = vmatprep.mubr.bf16.mxu0 %v405
    %6388 = vmatmul.mubr.bf16.gmra.mrb[0].mxu0 %v404
    %v6389 = vpop.f32.mrb[0].mxu0
    %v6390 = vadd.f32 %v6197, %v6389
    %v6391 = vpop.f32.mrb[0].mxu0
    %v6392 = vadd.f32 %v6199, %v6391
    %v6393 = vpop.f32.mrb[0].mxu0
    %v6394 = vadd.f32 %v6201, %v6393
    %v6395 = vpop.f32.mrb[0].mxu0
    %v6396 = vadd.f32 %v6203, %v6395
    %6397 = vmatprep.mubr.bf16.mxu0 %v413
    %6398 = vmatmul.mubr.bf16.gmra.mrb[0].mxu0 %v412
    %v6399 = vpop.f32.mrb[0].mxu0
    %v6400 = vadd.f32 %v6207, %v6399
    %v6401 = vpop.f32.mrb[0].mxu0
    %v6402 = vadd.f32 %v6209, %v6401
    %v6403 = vpop.f32.mrb[0].mxu0
    %v6404 = vadd.f32 %v6211, %v6403
    %v6405 = vpop.f32.mrb[0].mxu0
    %v6406 = vadd.f32 %v6213, %v6405
    %6407 = vmatprep.mubr.bf16.mxu0 %v421
    %6408 = vmatmul.mubr.bf16.gmra.mrb[0].mxu0 %v420
    %v6409 = vpop.f32.mrb[0].mxu0
    %v6410 = vadd.f32 %v6217, %v6409
    %v6411 = vpop.f32.mrb[0].mxu0
    %v6412 = vadd.f32 %v6219, %v6411
    %v6413 = vpop.f32.mrb[0].mxu0
    %v6414 = vadd.f32 %v6221, %v6413
    %v6415 = vpop.f32.mrb[0].mxu0
    %v6416 = vadd.f32 %v6223, %v6415
    %6417 = vmatprep.mubr.bf16.mxu0 %v429
    %6418 = vmatmul.mubr.bf16.gmra.mrb[0].mxu0 %v428
    %v6419 = vpop.f32.mrb[0].mxu0
    %v6420 = vadd.f32 %v6227, %v6419
    %v6421 = vpop.f32.mrb[0].mxu0
    %v6422 = vadd.f32 %v6229, %v6421
    %v6423 = vpop.f32.mrb[0].mxu0
    %v6424 = vadd.f32 %v6231, %v6423
    %v6425 = vpop.f32.mrb[0].mxu0
    %v6426 = vadd.f32 %v6233, %v6425
    %6427 = vmatprep.mubr.bf16.mxu0 %v437
    %6428 = vmatmul.mubr.bf16.gmra.mrb[0].mxu0 %v436
    %v6429 = vpop.f32.mrb[0].mxu0
    %v6430 = vadd.f32 %v6237, %v6429
    %v6431 = vpop.f32.mrb[0].mxu0
    %v6432 = vadd.f32 %v6239, %v6431
    %v6433 = vpop.f32.mrb[0].mxu0
    %v6434 = vadd.f32 %v6241, %v6433
    %v6435 = vpop.f32.mrb[0].mxu0
    %v6436 = vadd.f32 %v6243, %v6435
    %6437 = vmatprep.mubr.bf16.mxu0 %v445
    %6438 = vmatmul.mubr.bf16.gmra.mrb[0].mxu0 %v444
    %v6439 = vpop.f32.mrb[0].mxu0
    %v6440 = vadd.f32 %v6247, %v6439
    %v6441 = vpop.f32.mrb[0].mxu0
    %v6442 = vadd.f32 %v6249, %v6441
    %v6443 = vpop.f32.mrb[0].mxu0
    %v6444 = vadd.f32 %v6251, %v6443
    %v6445 = vpop.f32.mrb[0].mxu0
    %v6446 = vadd.f32 %v6253, %v6445
    %6447 = vmatprep.mubr.bf16.mxu0 %v453
    %6448 = vmatmul.mubr.bf16.gmra.mrb[0].mxu0 %v452
    %v6449 = vpop.f32.mrb[0].mxu0
    %v6450 = vadd.f32 %v6257, %v6449
    %v6451 = vpop.f32.mrb[0].mxu0
    %v6452 = vadd.f32 %v6259, %v6451
    %v6453 = vpop.f32.mrb[0].mxu0
    %v6454 = vadd.f32 %v6261, %v6453
    %v6455 = vpop.f32.mrb[0].mxu0
    %v6456 = vadd.f32 %v6263, %v6455
    %6457 = vmatprep.mubr.bf16.mxu0 %v461
    %6458 = vmatmul.mubr.bf16.gmra.mrb[0].mxu0 %v460
    %v6459 = vpop.f32.mrb[0].mxu0
    %v6460 = vadd.f32 %v6267, %v6459
    %v6461 = vpop.f32.mrb[0].mxu0
    %v6462 = vadd.f32 %v6269, %v6461
    %v6463 = vpop.f32.mrb[0].mxu0
    %v6464 = vadd.f32 %v6271, %v6463
    %v6465 = vpop.f32.mrb[0].mxu0
    %v6466 = vadd.f32 %v6273, %v6465
    %6467 = vmatprep.mubr.bf16.mxu0 %v469
    %6468 = vmatmul.mubr.bf16.gmra.mrb[0].mxu0 %v468
    %v6469 = vpop.f32.mrb[0].mxu0
    %v6470 = vadd.f32 %v6277, %v6469
    %v6471 = vpop.f32.mrb[0].mxu0
    %v6472 = vadd.f32 %v6279, %v6471
    %v6473 = vpop.f32.mrb[0].mxu0
    %v6474 = vadd.f32 %v6281, %v6473
    %v6475 = vpop.f32.mrb[0].mxu0
    %v6476 = vadd.f32 %v6283, %v6475
    %6477 = vmatprep.mubr.bf16.mxu0 %v477
    %6478 = vmatmul.mubr.bf16.gmra.mrb[0].mxu0 %v476
    %v6479 = vpop.f32.mrb[0].mxu0
    %v6480 = vadd.f32 %v6287, %v6479
    %v6481 = vpop.f32.mrb[0].mxu0
    %v6482 = vadd.f32 %v6289, %v6481
    %v6483 = vpop.f32.mrb[0].mxu0
    %v6484 = vadd.f32 %v6291, %v6483
    %v6485 = vpop.f32.mrb[0].mxu0
    %v6486 = vadd.f32 %v6293, %v6485
    %6487 = vdwg.mxu0
    %6488 = vmatprep.subr.bf16.mxu0 %v2960
    %6489 = vmatpush1.bf16.msra.mxu0 %v2959
    %6490 = vmatprep.subr.bf16.mxu0 %v2968
    %6491 = vmatpush1.bf16.msra.mxu0 %v2967
    %6492 = vmatprep.subr.bf16.mxu0 %v2976
    %6493 = vmatpush1.bf16.msra.mxu0 %v2975
    %6494 = vmatprep.subr.bf16.mxu0 %v2984
    %6495 = vmatpush1.bf16.msra.mxu0 %v2983
    %6496 = vmatprep.subr.bf16.mxu0 %v2992
    %6497 = vmatpush1.bf16.msra.mxu0 %v2991
    %6498 = vmatprep.subr.bf16.mxu0 %v3000
    %6499 = vmatpush1.bf16.msra.mxu0 %v2999
    %6500 = vmatprep.subr.bf16.mxu0 %v3008
    %6501 = vmatpush1.bf16.msra.mxu0 %v3007
    %6502 = vmatprep.subr.bf16.mxu0 %v3016
    %6503 = vmatpush1.bf16.msra.mxu0 %v3015
    %6504 = vmatprep.subr.bf16.mxu0 %v3024
    %6505 = vmatpush1.bf16.msra.mxu0 %v3023
    %6506 = vmatprep.subr.bf16.mxu0 %v3032
    %6507 = vmatpush1.bf16.msra.mxu0 %v3031
    %6508 = vmatprep.subr.bf16.mxu0 %v3040
    %6509 = vmatpush1.bf16.msra.mxu0 %v3039
    %6510 = vmatprep.subr.bf16.mxu0 %v3048
    %6511 = vmatpush1.bf16.msra.mxu0 %v3047
    %6512 = vmatprep.subr.bf16.mxu0 %v3056
    %6513 = vmatpush1.bf16.msra.mxu0 %v3055
    %6514 = vmatprep.subr.bf16.mxu0 %v3064
    %6515 = vmatpush1.bf16.msra.mxu0 %v3063
    %6516 = vmatprep.subr.bf16.mxu0 %v3072
    %6517 = vmatpush1.bf16.msra.mxu0 %v3071
    %6518 = vmatprep.subr.bf16.mxu0 %v3080
    %6519 = vmatpush1.bf16.msra.mxu0 %v3079
    %6520 = vmatprep.mubr.bf16.mxu0 %v359
    %6521 = vmatmul.mubr.bf16.gmra.mrb[0].mxu0 %v358
    %v6522 = vpop.f32.mrb[0].mxu0
    %v6523 = vadd.f32 %v6330, %v6522
    %v6524 = vpop.f32.mrb[0].mxu0
    %v6525 = vadd.f32 %v6332, %v6524
    %v6526 = vpop.f32.mrb[0].mxu0
    %v6527 = vadd.f32 %v6334, %v6526
    %v6528 = vpop.f32.mrb[0].mxu0
    %v6529 = vadd.f32 %v6336, %v6528
    %6530 = vmatprep.mubr.bf16.mxu0 %v367
    %6531 = vmatmul.mubr.bf16.gmra.mrb[0].mxu0 %v366
    %v6532 = vpop.f32.mrb[0].mxu0
    %v6533 = vadd.f32 %v6340, %v6532
    %v6534 = vpop.f32.mrb[0].mxu0
    %v6535 = vadd.f32 %v6342, %v6534
    %v6536 = vpop.f32.mrb[0].mxu0
    %v6537 = vadd.f32 %v6344, %v6536
    %v6538 = vpop.f32.mrb[0].mxu0
    %v6539 = vadd.f32 %v6346, %v6538
    %6540 = vmatprep.mubr.bf16.mxu0 %v375
    %6541 = vmatmul.mubr.bf16.gmra.mrb[0].mxu0 %v374
    %v6542 = vpop.f32.mrb[0].mxu0
    %v6543 = vadd.f32 %v6350, %v6542
    %v6544 = vpop.f32.mrb[0].mxu0
    %v6545 = vadd.f32 %v6352, %v6544
    %v6546 = vpop.f32.mrb[0].mxu0
    %v6547 = vadd.f32 %v6354, %v6546
    %v6548 = vpop.f32.mrb[0].mxu0
    %v6549 = vadd.f32 %v6356, %v6548
    %6550 = vmatprep.mubr.bf16.mxu0 %v383
    %6551 = vmatmul.mubr.bf16.gmra.mrb[0].mxu0 %v382
    %v6552 = vpop.f32.mrb[0].mxu0
    %v6553 = vadd.f32 %v6360, %v6552
    %v6554 = vpop.f32.mrb[0].mxu0
    %v6555 = vadd.f32 %v6362, %v6554
    %v6556 = vpop.f32.mrb[0].mxu0
    %v6557 = vadd.f32 %v6364, %v6556
    %v6558 = vpop.f32.mrb[0].mxu0
    %v6559 = vadd.f32 %v6366, %v6558
    %6560 = vmatprep.mubr.bf16.mxu0 %v391
    %6561 = vmatmul.mubr.bf16.gmra.mrb[0].mxu0 %v390
    %v6562 = vpop.f32.mrb[0].mxu0
    %v6563 = vadd.f32 %v6370, %v6562
    %v6564 = vpop.f32.mrb[0].mxu0
    %v6565 = vadd.f32 %v6372, %v6564
    %v6566 = vpop.f32.mrb[0].mxu0
    %v6567 = vadd.f32 %v6374, %v6566
    %v6568 = vpop.f32.mrb[0].mxu0
    %v6569 = vadd.f32 %v6376, %v6568
    %6570 = vmatprep.mubr.bf16.mxu0 %v399
    %6571 = vmatmul.mubr.bf16.gmra.mrb[0].mxu0 %v398
    %v6572 = vpop.f32.mrb[0].mxu0
    %v6573 = vadd.f32 %v6380, %v6572
    %v6574 = vpop.f32.mrb[0].mxu0
    %v6575 = vadd.f32 %v6382, %v6574
    %v6576 = vpop.f32.mrb[0].mxu0
    %v6577 = vadd.f32 %v6384, %v6576
    %v6578 = vpop.f32.mrb[0].mxu0
    %v6579 = vadd.f32 %v6386, %v6578
    %6580 = vmatprep.mubr.bf16.mxu0 %v407
    %6581 = vmatmul.mubr.bf16.gmra.mrb[0].mxu0 %v406
    %v6582 = vpop.f32.mrb[0].mxu0
    %v6583 = vadd.f32 %v6390, %v6582
    %v6584 = vpop.f32.mrb[0].mxu0
    %v6585 = vadd.f32 %v6392, %v6584
    %v6586 = vpop.f32.mrb[0].mxu0
    %v6587 = vadd.f32 %v6394, %v6586
    %v6588 = vpop.f32.mrb[0].mxu0
    %v6589 = vadd.f32 %v6396, %v6588
    %6590 = vmatprep.mubr.bf16.mxu0 %v415
    %6591 = vmatmul.mubr.bf16.gmra.mrb[0].mxu0 %v414
    %v6592 = vpop.f32.mrb[0].mxu0
    %v6593 = vadd.f32 %v6400, %v6592
    %v6594 = vpop.f32.mrb[0].mxu0
    %v6595 = vadd.f32 %v6402, %v6594
    %v6596 = vpop.f32.mrb[0].mxu0
    %v6597 = vadd.f32 %v6404, %v6596
    %v6598 = vpop.f32.mrb[0].mxu0
    %v6599 = vadd.f32 %v6406, %v6598
    %6600 = vmatprep.mubr.bf16.mxu0 %v423
    %6601 = vmatmul.mubr.bf16.gmra.mrb[0].mxu0 %v422
    %v6602 = vpop.f32.mrb[0].mxu0
    %v6603 = vadd.f32 %v6410, %v6602
    %v6604 = vpop.f32.mrb[0].mxu0
    %v6605 = vadd.f32 %v6412, %v6604
    %v6606 = vpop.f32.mrb[0].mxu0
    %v6607 = vadd.f32 %v6414, %v6606
    %v6608 = vpop.f32.mrb[0].mxu0
    %v6609 = vadd.f32 %v6416, %v6608
    %6610 = vmatprep.mubr.bf16.mxu0 %v431
    %6611 = vmatmul.mubr.bf16.gmra.mrb[0].mxu0 %v430
    %v6612 = vpop.f32.mrb[0].mxu0
    %v6613 = vadd.f32 %v6420, %v6612
    %v6614 = vpop.f32.mrb[0].mxu0
    %v6615 = vadd.f32 %v6422, %v6614
    %v6616 = vpop.f32.mrb[0].mxu0
    %v6617 = vadd.f32 %v6424, %v6616
    %v6618 = vpop.f32.mrb[0].mxu0
    %v6619 = vadd.f32 %v6426, %v6618
    %6620 = vmatprep.mubr.bf16.mxu0 %v439
    %6621 = vmatmul.mubr.bf16.gmra.mrb[0].mxu0 %v438
    %v6622 = vpop.f32.mrb[0].mxu0
    %v6623 = vadd.f32 %v6430, %v6622
    %v6624 = vpop.f32.mrb[0].mxu0
    %v6625 = vadd.f32 %v6432, %v6624
    %v6626 = vpop.f32.mrb[0].mxu0
    %v6627 = vadd.f32 %v6434, %v6626
    %v6628 = vpop.f32.mrb[0].mxu0
    %v6629 = vadd.f32 %v6436, %v6628
    %6630 = vmatprep.mubr.bf16.mxu0 %v447
    %6631 = vmatmul.mubr.bf16.gmra.mrb[0].mxu0 %v446
    %v6632 = vpop.f32.mrb[0].mxu0
    %v6633 = vadd.f32 %v6440, %v6632
    %v6634 = vpop.f32.mrb[0].mxu0
    %v6635 = vadd.f32 %v6442, %v6634
    %v6636 = vpop.f32.mrb[0].mxu0
    %v6637 = vadd.f32 %v6444, %v6636
    %v6638 = vpop.f32.mrb[0].mxu0
    %v6639 = vadd.f32 %v6446, %v6638
    %6640 = vmatprep.mubr.bf16.mxu0 %v455
    %6641 = vmatmul.mubr.bf16.gmra.mrb[0].mxu0 %v454
    %v6642 = vpop.f32.mrb[0].mxu0
    %v6643 = vadd.f32 %v6450, %v6642
    %v6644 = vpop.f32.mrb[0].mxu0
    %v6645 = vadd.f32 %v6452, %v6644
    %v6646 = vpop.f32.mrb[0].mxu0
    %v6647 = vadd.f32 %v6454, %v6646
    %v6648 = vpop.f32.mrb[0].mxu0
    %v6649 = vadd.f32 %v6456, %v6648
    %6650 = vmatprep.mubr.bf16.mxu0 %v463
    %6651 = vmatmul.mubr.bf16.gmra.mrb[0].mxu0 %v462
    %v6652 = vpop.f32.mrb[0].mxu0
    %v6653 = vadd.f32 %v6460, %v6652
    %v6654 = vpop.f32.mrb[0].mxu0
    %v6655 = vadd.f32 %v6462, %v6654
    %v6656 = vpop.f32.mrb[0].mxu0
    %v6657 = vadd.f32 %v6464, %v6656
    %v6658 = vpop.f32.mrb[0].mxu0
    %v6659 = vadd.f32 %v6466, %v6658
    %6660 = vmatprep.mubr.bf16.mxu0 %v471
    %6661 = vmatmul.mubr.bf16.gmra.mrb[0].mxu0 %v470
    %v6662 = vpop.f32.mrb[0].mxu0
    %v6663 = vadd.f32 %v6470, %v6662
    %v6664 = vpop.f32.mrb[0].mxu0
    %v6665 = vadd.f32 %v6472, %v6664
    %v6666 = vpop.f32.mrb[0].mxu0
    %v6667 = vadd.f32 %v6474, %v6666
    %v6668 = vpop.f32.mrb[0].mxu0
    %v6669 = vadd.f32 %v6476, %v6668
    %6670 = vmatprep.mubr.bf16.mxu0 %v479
    %6671 = vmatmul.mubr.bf16.gmra.mrb[0].mxu0 %v478
    %v6672 = vpop.f32.mrb[0].mxu0
    %v6673 = vadd.f32 %v6480, %v6672
    %v6674 = vpop.f32.mrb[0].mxu0
    %v6675 = vadd.f32 %v6482, %v6674
    %v6676 = vpop.f32.mrb[0].mxu0
    %v6677 = vadd.f32 %v6484, %v6676
    %v6678 = vpop.f32.mrb[0].mxu0
    %v6679 = vadd.f32 %v6486, %v6678
    %6680 = vdwg.mxu0
    %v6681 = vtanh.pop %v4207
    %v6682 = vtanh.pop %v4209
    %v6683 = vtanh.pop %v4979
    %v6684 = vtanh.pop %v4981
    %v6685 = vtanh.pop %v4211
    %v6686 = vtanh.pop %v4213
    %v6687 = vtanh.pop %v4983
    %v6688 = vtanh.pop %v4985
    %v6689 = vtanh.pop %v4217
    %v6690 = vtanh.pop %v4219
    %v6691 = vtanh.pop %v4989
    %v6692 = vtanh.pop %v4991
    %v6693 = vtanh.pop %v4221
    %v6694 = vtanh.pop %v4223
    %v6695 = vtanh.pop %v4993
    %v6696 = vtanh.pop %v4995
    %v6697 = vtanh.pop %v4227
    %v6698 = vtanh.pop %v4229
    %v6699 = vtanh.pop %v4999
    %v6700 = vtanh.pop %v5001
    %v6701 = vtanh.pop %v4231
    %v6702 = vtanh.pop %v4233
    %v6703 = vtanh.pop %v5003
    %v6704 = vtanh.pop %v5005
    %v6705 = vtanh.pop %v4237
    %v6706 = vtanh.pop %v4239
    %v6707 = vtanh.pop %v5009
    %v6708 = vtanh.pop %v5011
    %v6709 = vtanh.pop %v4241
    %v6710 = vtanh.pop %v4243
    %v6711 = vtanh.pop %v5013
    %v6712 = vtanh.pop %v5015
    %v6713 = vtanh.pop %v4247
    %v6714 = vtanh.pop %v4249
    %v6715 = vtanh.pop %v5019
    %v6716 = vtanh.pop %v5021
    %v6717 = vtanh.pop %v4251
    %v6718 = vtanh.pop %v4253
    %v6719 = vtanh.pop %v5023
    %v6720 = vtanh.pop %v5025
    %v6721 = vtanh.pop %v4257
    %v6722 = vtanh.pop %v4259
    %v6723 = vtanh.pop %v5029
    %v6724 = vtanh.pop %v5031
    %v6725 = vtanh.pop %v4261
    %v6726 = vtanh.pop %v4263
    %v6727 = vtanh.pop %v5033
    %v6728 = vtanh.pop %v5035
    %v6729 = vtanh.pop %v4267
    %v6730 = vtanh.pop %v4269
    %v6731 = vtanh.pop %v5039
    %v6732 = vtanh.pop %v5041
    %v6733 = vtanh.pop %v4271
    %v6734 = vtanh.pop %v4273
    %v6735 = vtanh.pop %v5043
    %v6736 = vtanh.pop %v5045
    %v6737 = vtanh.pop %v4277
    %v6738 = vtanh.pop %v4279
    %v6739 = vtanh.pop %v5049
    %v6740 = vtanh.pop %v5051
    %v6741 = vtanh.pop %v4281
    %v6742 = vtanh.pop %v4283
    %v6743 = vtanh.pop %v5053
    %v6744 = vtanh.pop %v5055
    %v6745 = vtanh.pop %v4287
    %v6746 = vtanh.pop %v4289
    %v6747 = vtanh.pop %v5059
    %v6748 = vtanh.pop %v5061
    %v6749 = vtanh.pop %v4291
    %v6750 = vtanh.pop %v4293
    %v6751 = vtanh.pop %v5063
    %v6752 = vtanh.pop %v5065
    %v6753 = vtanh.pop %v4297
    %v6754 = vtanh.pop %v4299
    %v6755 = vtanh.pop %v5069
    %v6756 = vtanh.pop %v5071
    %v6757 = vtanh.pop %v4301
    %v6758 = vtanh.pop %v4303
    %v6759 = vtanh.pop %v5073
    %v6760 = vtanh.pop %v5075
    %v6761 = vtanh.pop %v4307
    %v6762 = vtanh.pop %v4309
    %v6763 = vtanh.pop %v5079
    %v6764 = vtanh.pop %v5081
    %v6765 = vtanh.pop %v4311
    %v6766 = vtanh.pop %v4313
    %v6767 = vtanh.pop %v5083
    %v6768 = vtanh.pop %v5085
    %v6769 = vtanh.pop %v4317
    %v6770 = vtanh.pop %v4319
    %v6771 = vtanh.pop %v5089
    %v6772 = vtanh.pop %v5091
    %v6773 = vtanh.pop %v4321
    %v6774 = vtanh.pop %v4323
    %v6775 = vtanh.pop %v5093
    %v6776 = vtanh.pop %v5095
    %v6777 = vtanh.pop %v4327
    %v6778 = vtanh.pop %v4329
    %v6779 = vtanh.pop %v5099
    %v6780 = vtanh.pop %v5101
    %v6781 = vtanh.pop %v4331
    %v6782 = vtanh.pop %v4333
    %v6783 = vtanh.pop %v5103
    %v6784 = vtanh.pop %v5105
    %v6785 = vtanh.pop %v4337
    %v6786 = vtanh.pop %v4339
    %v6787 = vtanh.pop %v5109
    %v6788 = vtanh.pop %v5111
    %v6789 = vtanh.pop %v4341
    %v6790 = vtanh.pop %v4343
    %v6791 = vtanh.pop %v5113
    %v6792 = vtanh.pop %v5115
    %v6793 = vtanh.pop %v4347
    %v6794 = vtanh.pop %v4349
    %v6795 = vtanh.pop %v5119
    %v6796 = vtanh.pop %v5121
    %v6797 = vtanh.pop %v4351
    %v6798 = vtanh.pop %v4353
    %v6799 = vtanh.pop %v5123
    %v6800 = vtanh.pop %v5125
    %v6801 = vtanh.pop %v4357
    %v6802 = vtanh.pop %v4359
    %v6803 = vtanh.pop %v5129
    %v6804 = vtanh.pop %v5131
    %v6805 = vtanh.pop %v4361
    %v6806 = vtanh.pop %v4363
    %v6807 = vtanh.pop %v5133
    %v6808 = vtanh.pop %v5135
    %v6809 = vxor.u32 %v5751, 2147483648
    %v6810 = vxor.u32 %v5753, 2147483648
    %v6811 = vxor.u32 %v6523, 2147483648
    %v6812 = vxor.u32 %v6525, 2147483648
    %v6813 = vxor.u32 %v5755, 2147483648
    %v6814 = vxor.u32 %v5757, 2147483648
    %v6815 = vxor.u32 %v6527, 2147483648
    %v6816 = vxor.u32 %v6529, 2147483648
    %v6817 = vxor.u32 %v5761, 2147483648
    %v6818 = vxor.u32 %v5763, 2147483648
    %v6819 = vxor.u32 %v6533, 2147483648
    %v6820 = vxor.u32 %v6535, 2147483648
    %v6821 = vxor.u32 %v5765, 2147483648
    %v6822 = vxor.u32 %v5767, 2147483648
    %v6823 = vxor.u32 %v6537, 2147483648
    %v6824 = vxor.u32 %v6539, 2147483648
    %v6825 = vxor.u32 %v5771, 2147483648
    %v6826 = vxor.u32 %v5773, 2147483648
    %v6827 = vxor.u32 %v6543, 2147483648
    %v6828 = vxor.u32 %v6545, 2147483648
    %v6829 = vxor.u32 %v5775, 2147483648
    %v6830 = vxor.u32 %v5777, 2147483648
    %v6831 = vxor.u32 %v6547, 2147483648
    %v6832 = vxor.u32 %v6549, 2147483648
    %v6833 = vxor.u32 %v5781, 2147483648
    %v6834 = vxor.u32 %v5783, 2147483648
    %v6835 = vxor.u32 %v6553, 2147483648
    %v6836 = vxor.u32 %v6555, 2147483648
    %v6837 = vxor.u32 %v5785, 2147483648
    %v6838 = vxor.u32 %v5787, 2147483648
    %v6839 = vxor.u32 %v6557, 2147483648
    %v6840 = vxor.u32 %v6559, 2147483648
    %v6841 = vxor.u32 %v5791, 2147483648
    %v6842 = vxor.u32 %v5793, 2147483648
    %v6843 = vxor.u32 %v6563, 2147483648
    %v6844 = vxor.u32 %v6565, 2147483648
    %v6845 = vxor.u32 %v5795, 2147483648
    %v6846 = vxor.u32 %v5797, 2147483648
    %v6847 = vxor.u32 %v6567, 2147483648
    %v6848 = vxor.u32 %v6569, 2147483648
    %v6849 = vxor.u32 %v5801, 2147483648
    %v6850 = vxor.u32 %v5803, 2147483648
    %v6851 = vxor.u32 %v6573, 2147483648
    %v6852 = vxor.u32 %v6575, 2147483648
    %v6853 = vxor.u32 %v5805, 2147483648
    %v6854 = vxor.u32 %v5807, 2147483648
    %v6855 = vxor.u32 %v6577, 2147483648
    %v6856 = vxor.u32 %v6579, 2147483648
    %v6857 = vxor.u32 %v5811, 2147483648
    %v6858 = vxor.u32 %v5813, 2147483648
    %v6859 = vxor.u32 %v6583, 2147483648
    %v6860 = vxor.u32 %v6585, 2147483648
    %v6861 = vxor.u32 %v5815, 2147483648
    %v6862 = vxor.u32 %v5817, 2147483648
    %v6863 = vxor.u32 %v6587, 2147483648
    %v6864 = vxor.u32 %v6589, 2147483648
    %v6865 = vxor.u32 %v5821, 2147483648
    %v6866 = vxor.u32 %v5823, 2147483648
    %v6867 = vxor.u32 %v6593, 2147483648
    %v6868 = vxor.u32 %v6595, 2147483648
    %v6869 = vxor.u32 %v5825, 2147483648
    %v6870 = vxor.u32 %v5827, 2147483648
    %v6871 = vxor.u32 %v6597, 2147483648
    %v6872 = vxor.u32 %v6599, 2147483648
    %v6873 = vxor.u32 %v5831, 2147483648
    %v6874 = vxor.u32 %v5833, 2147483648
    %v6875 = vxor.u32 %v6603, 2147483648
    %v6876 = vxor.u32 %v6605, 2147483648
    %v6877 = vxor.u32 %v5835, 2147483648
    %v6878 = vxor.u32 %v5837, 2147483648
    %v6879 = vxor.u32 %v6607, 2147483648
    %v6880 = vxor.u32 %v6609, 2147483648
    %v6881 = vxor.u32 %v5841, 2147483648
    %v6882 = vxor.u32 %v5843, 2147483648
    %v6883 = vxor.u32 %v6613, 2147483648
    %v6884 = vxor.u32 %v6615, 2147483648
    %v6885 = vxor.u32 %v5845, 2147483648
    %v6886 = vxor.u32 %v5847, 2147483648
    %v6887 = vxor.u32 %v6617, 2147483648
    %v6888 = vxor.u32 %v6619, 2147483648
    %v6889 = vxor.u32 %v5851, 2147483648
    %v6890 = vxor.u32 %v5853, 2147483648
    %v6891 = vxor.u32 %v6623, 2147483648
    %v6892 = vxor.u32 %v6625, 2147483648
    %v6893 = vxor.u32 %v5855, 2147483648
    %v6894 = vxor.u32 %v5857, 2147483648
    %v6895 = vxor.u32 %v6627, 2147483648
    %v6896 = vxor.u32 %v6629, 2147483648
    %v6897 = vxor.u32 %v5861, 2147483648
    %v6898 = vxor.u32 %v5863, 2147483648
    %v6899 = vxor.u32 %v6633, 2147483648
    %v6900 = vxor.u32 %v6635, 2147483648
    %v6901 = vxor.u32 %v5865, 2147483648
    %v6902 = vxor.u32 %v5867, 2147483648
    %v6903 = vxor.u32 %v6637, 2147483648
    %v6904 = vxor.u32 %v6639, 2147483648
    %v6905 = vxor.u32 %v5871, 2147483648
    %v6906 = vxor.u32 %v5873, 2147483648
    %v6907 = vxor.u32 %v6643, 2147483648
    %v6908 = vxor.u32 %v6645, 2147483648
    %v6909 = vxor.u32 %v5875, 2147483648
    %v6910 = vxor.u32 %v5877, 2147483648
    %v6911 = vxor.u32 %v6647, 2147483648
    %v6912 = vxor.u32 %v6649, 2147483648
    %v6913 = vxor.u32 %v5881, 2147483648
    %v6914 = vxor.u32 %v5883, 2147483648
    %v6915 = vxor.u32 %v6653, 2147483648
    %v6916 = vxor.u32 %v6655, 2147483648
    %v6917 = vxor.u32 %v5885, 2147483648
    %v6918 = vxor.u32 %v5887, 2147483648
    %v6919 = vxor.u32 %v6657, 2147483648
    %v6920 = vxor.u32 %v6659, 2147483648
    %v6921 = vxor.u32 %v5891, 2147483648
    %v6922 = vxor.u32 %v5893, 2147483648
    %v6923 = vxor.u32 %v6663, 2147483648
    %v6924 = vxor.u32 %v6665, 2147483648
    %v6925 = vxor.u32 %v5895, 2147483648
    %v6926 = vxor.u32 %v5897, 2147483648
    %v6927 = vxor.u32 %v6667, 2147483648
    %v6928 = vxor.u32 %v6669, 2147483648
    %v6929 = vxor.u32 %v5901, 2147483648
    %v6930 = vxor.u32 %v5903, 2147483648
    %v6931 = vxor.u32 %v6673, 2147483648
    %v6932 = vxor.u32 %v6675, 2147483648
    %v6933 = vxor.u32 %v5905, 2147483648
    %v6934 = vxor.u32 %v5907, 2147483648
    %v6935 = vxor.u32 %v6677, 2147483648
    %v6936 = vxor.u32 %v6679, 2147483648
    %v6937 = vmul.f32 %v6809, 1.442695
    %v6938 = vpow.pop %v6937
    %v6939 = vmul.f32 %v6810, 1.442695
    %v6940 = vpow.pop %v6939
    %v6941 = vmul.f32 %v6811, 1.442695
    %v6942 = vpow.pop %v6941
    %v6943 = vmul.f32 %v6812, 1.442695
    %v6944 = vpow.pop %v6943
    %v6945 = vmul.f32 %v6813, 1.442695
    %v6946 = vpow.pop %v6945
    %v6947 = vmul.f32 %v6814, 1.442695
    %v6948 = vpow.pop %v6947
    %v6949 = vmul.f32 %v6815, 1.442695
    %v6950 = vpow.pop %v6949
    %v6951 = vmul.f32 %v6816, 1.442695
    %v6952 = vpow.pop %v6951
    %v6953 = vmul.f32 %v6817, 1.442695
    %v6954 = vpow.pop %v6953
    %v6955 = vmul.f32 %v6818, 1.442695
    %v6956 = vpow.pop %v6955
    %v6957 = vmul.f32 %v6819, 1.442695
    %v6958 = vpow.pop %v6957
    %v6959 = vmul.f32 %v6820, 1.442695
    %v6960 = vpow.pop %v6959
    %v6961 = vmul.f32 %v6821, 1.442695
    %v6962 = vpow.pop %v6961
    %v6963 = vmul.f32 %v6822, 1.442695
    %v6964 = vpow.pop %v6963
    %v6965 = vmul.f32 %v6823, 1.442695
    %v6966 = vpow.pop %v6965
    %v6967 = vmul.f32 %v6824, 1.442695
    %v6968 = vpow.pop %v6967
    %v6969 = vmul.f32 %v6825, 1.442695
    %v6970 = vpow.pop %v6969
    %v6971 = vmul.f32 %v6826, 1.442695
    %v6972 = vpow.pop %v6971
    %v6973 = vmul.f32 %v6827, 1.442695
    %v6974 = vpow.pop %v6973
    %v6975 = vmul.f32 %v6828, 1.442695
    %v6976 = vpow.pop %v6975
    %v6977 = vmul.f32 %v6829, 1.442695
    %v6978 = vpow.pop %v6977
    %v6979 = vmul.f32 %v6830, 1.442695
    %v6980 = vpow.pop %v6979
    %v6981 = vmul.f32 %v6831, 1.442695
    %v6982 = vpow.pop %v6981
    %v6983 = vmul.f32 %v6832, 1.442695
    %v6984 = vpow.pop %v6983
    %v6985 = vmul.f32 %v6833, 1.442695
    %v6986 = vpow.pop %v6985
    %v6987 = vmul.f32 %v6834, 1.442695
    %v6988 = vpow.pop %v6987
    %v6989 = vmul.f32 %v6835, 1.442695
    %v6990 = vpow.pop %v6989
    %v6991 = vmul.f32 %v6836, 1.442695
    %v6992 = vpow.pop %v6991
    %v6993 = vmul.f32 %v6837, 1.442695
    %v6994 = vpow.pop %v6993
    %v6995 = vmul.f32 %v6838, 1.442695
    %v6996 = vpow.pop %v6995
    %v6997 = vmul.f32 %v6839, 1.442695
    %v6998 = vpow.pop %v6997
    %v6999 = vmul.f32 %v6840, 1.442695
    %v7000 = vpow.pop %v6999
    %v7001 = vmul.f32 %v6841, 1.442695
    %v7002 = vpow.pop %v7001
    %v7003 = vmul.f32 %v6842, 1.442695
    %v7004 = vpow.pop %v7003
    %v7005 = vmul.f32 %v6843, 1.442695
    %v7006 = vpow.pop %v7005
    %v7007 = vmul.f32 %v6844, 1.442695
    %v7008 = vpow.pop %v7007
    %v7009 = vmul.f32 %v6845, 1.442695
    %v7010 = vpow.pop %v7009
    %v7011 = vmul.f32 %v6846, 1.442695
    %v7012 = vpow.pop %v7011
    %v7013 = vmul.f32 %v6847, 1.442695
    %v7014 = vpow.pop %v7013
    %v7015 = vmul.f32 %v6848, 1.442695
    %v7016 = vpow.pop %v7015
    %v7017 = vmul.f32 %v6849, 1.442695
    %v7018 = vpow.pop %v7017
    %v7019 = vmul.f32 %v6850, 1.442695
    %v7020 = vpow.pop %v7019
    %v7021 = vmul.f32 %v6851, 1.442695
    %v7022 = vpow.pop %v7021
    %v7023 = vmul.f32 %v6852, 1.442695
    %v7024 = vpow.pop %v7023
    %v7025 = vmul.f32 %v6853, 1.442695
    %v7026 = vpow.pop %v7025
    %v7027 = vmul.f32 %v6854, 1.442695
    %v7028 = vpow.pop %v7027
    %v7029 = vmul.f32 %v6855, 1.442695
    %v7030 = vpow.pop %v7029
    %v7031 = vmul.f32 %v6856, 1.442695
    %v7032 = vpow.pop %v7031
    %v7033 = vmul.f32 %v6857, 1.442695
    %v7034 = vpow.pop %v7033
    %v7035 = vmul.f32 %v6858, 1.442695
    %v7036 = vpow.pop %v7035
    %v7037 = vmul.f32 %v6859, 1.442695
    %v7038 = vpow.pop %v7037
    %v7039 = vmul.f32 %v6860, 1.442695
    %v7040 = vpow.pop %v7039
    %v7041 = vmul.f32 %v6861, 1.442695
    %v7042 = vpow.pop %v7041
    %v7043 = vmul.f32 %v6862, 1.442695
    %v7044 = vpow.pop %v7043
    %v7045 = vmul.f32 %v6863, 1.442695
    %v7046 = vpow.pop %v7045
    %v7047 = vmul.f32 %v6864, 1.442695
    %v7048 = vpow.pop %v7047
    %v7049 = vmul.f32 %v6865, 1.442695
    %v7050 = vpow.pop %v7049
    %v7051 = vmul.f32 %v6866, 1.442695
    %v7052 = vpow.pop %v7051
    %v7053 = vmul.f32 %v6867, 1.442695
    %v7054 = vpow.pop %v7053
    %v7055 = vmul.f32 %v6868, 1.442695
    %v7056 = vpow.pop %v7055
    %v7057 = vmul.f32 %v6869, 1.442695
    %v7058 = vpow.pop %v7057
    %v7059 = vmul.f32 %v6870, 1.442695
    %v7060 = vpow.pop %v7059
    %v7061 = vmul.f32 %v6871, 1.442695
    %v7062 = vpow.pop %v7061
    %v7063 = vmul.f32 %v6872, 1.442695
    %v7064 = vpow.pop %v7063
    %v7065 = vmul.f32 %v6873, 1.442695
    %v7066 = vpow.pop %v7065
    %v7067 = vmul.f32 %v6874, 1.442695
    %v7068 = vpow.pop %v7067
    %v7069 = vmul.f32 %v6875, 1.442695
    %v7070 = vpow.pop %v7069
    %v7071 = vmul.f32 %v6876, 1.442695
    %v7072 = vpow.pop %v7071
    %v7073 = vmul.f32 %v6877, 1.442695
    %v7074 = vpow.pop %v7073
    %v7075 = vmul.f32 %v6878, 1.442695
    %v7076 = vpow.pop %v7075
    %v7077 = vmul.f32 %v6879, 1.442695
    %v7078 = vpow.pop %v7077
    %v7079 = vmul.f32 %v6880, 1.442695
    %v7080 = vpow.pop %v7079
    %v7081 = vmul.f32 %v6881, 1.442695
    %v7082 = vpow.pop %v7081
    %v7083 = vmul.f32 %v6882, 1.442695
    %v7084 = vpow.pop %v7083
    %v7085 = vmul.f32 %v6883, 1.442695
    %v7086 = vpow.pop %v7085
    %v7087 = vmul.f32 %v6884, 1.442695
    %v7088 = vpow.pop %v7087
    %v7089 = vmul.f32 %v6885, 1.442695
    %v7090 = vpow.pop %v7089
    %v7091 = vmul.f32 %v6886, 1.442695
    %v7092 = vpow.pop %v7091
    %v7093 = vmul.f32 %v6887, 1.442695
    %v7094 = vpow.pop %v7093
    %v7095 = vmul.f32 %v6888, 1.442695
    %v7096 = vpow.pop %v7095
    %v7097 = vmul.f32 %v6889, 1.442695
    %v7098 = vpow.pop %v7097
    %v7099 = vmul.f32 %v6890, 1.442695
    %v7100 = vpow.pop %v7099
    %v7101 = vmul.f32 %v6891, 1.442695
    %v7102 = vpow.pop %v7101
    %v7103 = vmul.f32 %v6892, 1.442695
    %v7104 = vpow.pop %v7103
    %v7105 = vmul.f32 %v6893, 1.442695
    %v7106 = vpow.pop %v7105
    %v7107 = vmul.f32 %v6894, 1.442695
    %v7108 = vpow.pop %v7107
    %v7109 = vmul.f32 %v6895, 1.442695
    %v7110 = vpow.pop %v7109
    %v7111 = vmul.f32 %v6896, 1.442695
    %v7112 = vpow.pop %v7111
    %v7113 = vmul.f32 %v6897, 1.442695
    %v7114 = vpow.pop %v7113
    %v7115 = vmul.f32 %v6898, 1.442695
    %v7116 = vpow.pop %v7115
    %v7117 = vmul.f32 %v6899, 1.442695
    %v7118 = vpow.pop %v7117
    %v7119 = vmul.f32 %v6900, 1.442695
    %v7120 = vpow.pop %v7119
    %v7121 = vmul.f32 %v6901, 1.442695
    %v7122 = vpow.pop %v7121
    %v7123 = vmul.f32 %v6902, 1.442695
    %v7124 = vpow.pop %v7123
    %v7125 = vmul.f32 %v6903, 1.442695
    %v7126 = vpow.pop %v7125
    %v7127 = vmul.f32 %v6904, 1.442695
    %v7128 = vpow.pop %v7127
    %v7129 = vmul.f32 %v6905, 1.442695
    %v7130 = vpow.pop %v7129
    %v7131 = vmul.f32 %v6906, 1.442695
    %v7132 = vpow.pop %v7131
    %v7133 = vmul.f32 %v6907, 1.442695
    %v7134 = vpow.pop %v7133
    %v7135 = vmul.f32 %v6908, 1.442695
    %v7136 = vpow.pop %v7135
    %v7137 = vmul.f32 %v6909, 1.442695
    %v7138 = vpow.pop %v7137
    %v7139 = vmul.f32 %v6910, 1.442695
    %v7140 = vpow.pop %v7139
    %v7141 = vmul.f32 %v6911, 1.442695
    %v7142 = vpow.pop %v7141
    %v7143 = vmul.f32 %v6912, 1.442695
    %v7144 = vpow.pop %v7143
    %v7145 = vmul.f32 %v6913, 1.442695
    %v7146 = vpow.pop %v7145
    %v7147 = vmul.f32 %v6914, 1.442695
    %v7148 = vpow.pop %v7147
    %v7149 = vmul.f32 %v6915, 1.442695
    %v7150 = vpow.pop %v7149
    %v7151 = vmul.f32 %v6916, 1.442695
    %v7152 = vpow.pop %v7151
    %v7153 = vmul.f32 %v6917, 1.442695
    %v7154 = vpow.pop %v7153
    %v7155 = vmul.f32 %v6918, 1.442695
    %v7156 = vpow.pop %v7155
    %v7157 = vmul.f32 %v6919, 1.442695
    %v7158 = vpow.pop %v7157
    %v7159 = vmul.f32 %v6920, 1.442695
    %v7160 = vpow.pop %v7159
    %v7161 = vmul.f32 %v6921, 1.442695
    %v7162 = vpow.pop %v7161
    %v7163 = vmul.f32 %v6922, 1.442695
    %v7164 = vpow.pop %v7163
    %v7165 = vmul.f32 %v6923, 1.442695
    %v7166 = vpow.pop %v7165
    %v7167 = vmul.f32 %v6924, 1.442695
    %v7168 = vpow.pop %v7167
    %v7169 = vmul.f32 %v6925, 1.442695
    %v7170 = vpow.pop %v7169
    %v7171 = vmul.f32 %v6926, 1.442695
    %v7172 = vpow.pop %v7171
    %v7173 = vmul.f32 %v6927, 1.442695
    %v7174 = vpow.pop %v7173
    %v7175 = vmul.f32 %v6928, 1.442695
    %v7176 = vpow.pop %v7175
    %v7177 = vmul.f32 %v6929, 1.442695
    %v7178 = vpow.pop %v7177
    %v7179 = vmul.f32 %v6930, 1.442695
    %v7180 = vpow.pop %v7179
    %v7181 = vmul.f32 %v6931, 1.442695
    %v7182 = vpow.pop %v7181
    %v7183 = vmul.f32 %v6932, 1.442695
    %v7184 = vpow.pop %v7183
    %v7185 = vmul.f32 %v6933, 1.442695
    %v7186 = vpow.pop %v7185
    %v7187 = vmul.f32 %v6934, 1.442695
    %v7188 = vpow.pop %v7187
    %v7189 = vmul.f32 %v6935, 1.442695
    %v7190 = vpow.pop %v7189
    %v7191 = vmul.f32 %v6936, 1.442695
    %v7192 = vpow.pop %v7191
    %v7193 = vadd.f32 %v6938, 1.0
    %v7194 = vadd.f32 %v6940, 1.0
    %v7195 = vadd.f32 %v6942, 1.0
    %v7196 = vadd.f32 %v6944, 1.0
    %v7197 = vadd.f32 %v6946, 1.0
    %v7198 = vadd.f32 %v6948, 1.0
    %v7199 = vadd.f32 %v6950, 1.0
    %v7200 = vadd.f32 %v6952, 1.0
    %v7201 = vadd.f32 %v6954, 1.0
    %v7202 = vadd.f32 %v6956, 1.0
    %v7203 = vadd.f32 %v6958, 1.0
    %v7204 = vadd.f32 %v6960, 1.0
    %v7205 = vadd.f32 %v6962, 1.0
    %v7206 = vadd.f32 %v6964, 1.0
    %v7207 = vadd.f32 %v6966, 1.0
    %v7208 = vadd.f32 %v6968, 1.0
    %v7209 = vadd.f32 %v6970, 1.0
    %v7210 = vadd.f32 %v6972, 1.0
    %v7211 = vadd.f32 %v6974, 1.0
    %v7212 = vadd.f32 %v6976, 1.0
    %v7213 = vadd.f32 %v6978, 1.0
    %v7214 = vadd.f32 %v6980, 1.0
    %v7215 = vadd.f32 %v6982, 1.0
    %v7216 = vadd.f32 %v6984, 1.0
    %v7217 = vadd.f32 %v6986, 1.0
    %v7218 = vadd.f32 %v6988, 1.0
    %v7219 = vadd.f32 %v6990, 1.0
    %v7220 = vadd.f32 %v6992, 1.0
    %v7221 = vadd.f32 %v6994, 1.0
    %v7222 = vadd.f32 %v6996, 1.0
    %v7223 = vadd.f32 %v6998, 1.0
    %v7224 = vadd.f32 %v7000, 1.0
    %v7225 = vadd.f32 %v7002, 1.0
    %v7226 = vadd.f32 %v7004, 1.0
    %v7227 = vadd.f32 %v7006, 1.0
    %v7228 = vadd.f32 %v7008, 1.0
    %v7229 = vadd.f32 %v7010, 1.0
    %v7230 = vadd.f32 %v7012, 1.0
    %v7231 = vadd.f32 %v7014, 1.0
    %v7232 = vadd.f32 %v7016, 1.0
    %v7233 = vadd.f32 %v7018, 1.0
    %v7234 = vadd.f32 %v7020, 1.0
    %v7235 = vadd.f32 %v7022, 1.0
    %v7236 = vadd.f32 %v7024, 1.0
    %v7237 = vadd.f32 %v7026, 1.0
    %v7238 = vadd.f32 %v7028, 1.0
    %v7239 = vadd.f32 %v7030, 1.0
    %v7240 = vadd.f32 %v7032, 1.0
    %v7241 = vadd.f32 %v7034, 1.0
    %v7242 = vadd.f32 %v7036, 1.0
    %v7243 = vadd.f32 %v7038, 1.0
    %v7244 = vadd.f32 %v7040, 1.0
    %v7245 = vadd.f32 %v7042, 1.0
    %v7246 = vadd.f32 %v7044, 1.0
    %v7247 = vadd.f32 %v7046, 1.0
    %v7248 = vadd.f32 %v7048, 1.0
    %v7249 = vadd.f32 %v7050, 1.0
    %v7250 = vadd.f32 %v7052, 1.0
    %v7251 = vadd.f32 %v7054, 1.0
    %v7252 = vadd.f32 %v7056, 1.0
    %v7253 = vadd.f32 %v7058, 1.0
    %v7254 = vadd.f32 %v7060, 1.0
    %v7255 = vadd.f32 %v7062, 1.0
    %v7256 = vadd.f32 %v7064, 1.0
    %v7257 = vadd.f32 %v7066, 1.0
    %v7258 = vadd.f32 %v7068, 1.0
    %v7259 = vadd.f32 %v7070, 1.0
    %v7260 = vadd.f32 %v7072, 1.0
    %v7261 = vadd.f32 %v7074, 1.0
    %v7262 = vadd.f32 %v7076, 1.0
    %v7263 = vadd.f32 %v7078, 1.0
    %v7264 = vadd.f32 %v7080, 1.0
    %v7265 = vadd.f32 %v7082, 1.0
    %v7266 = vadd.f32 %v7084, 1.0
    %v7267 = vadd.f32 %v7086, 1.0
    %v7268 = vadd.f32 %v7088, 1.0
    %v7269 = vadd.f32 %v7090, 1.0
    %v7270 = vadd.f32 %v7092, 1.0
    %v7271 = vadd.f32 %v7094, 1.0
    %v7272 = vadd.f32 %v7096, 1.0
    %v7273 = vadd.f32 %v7098, 1.0
    %v7274 = vadd.f32 %v7100, 1.0
    %v7275 = vadd.f32 %v7102, 1.0
    %v7276 = vadd.f32 %v7104, 1.0
    %v7277 = vadd.f32 %v7106, 1.0
    %v7278 = vadd.f32 %v7108, 1.0
    %v7279 = vadd.f32 %v7110, 1.0
    %v7280 = vadd.f32 %v7112, 1.0
    %v7281 = vadd.f32 %v7114, 1.0
    %v7282 = vadd.f32 %v7116, 1.0
    %v7283 = vadd.f32 %v7118, 1.0
    %v7284 = vadd.f32 %v7120, 1.0
    %v7285 = vadd.f32 %v7122, 1.0
    %v7286 = vadd.f32 %v7124, 1.0
    %v7287 = vadd.f32 %v7126, 1.0
    %v7288 = vadd.f32 %v7128, 1.0
    %v7289 = vadd.f32 %v7130, 1.0
    %v7290 = vadd.f32 %v7132, 1.0
    %v7291 = vadd.f32 %v7134, 1.0
    %v7292 = vadd.f32 %v7136, 1.0
    %v7293 = vadd.f32 %v7138, 1.0
    %v7294 = vadd.f32 %v7140, 1.0
    %v7295 = vadd.f32 %v7142, 1.0
    %v7296 = vadd.f32 %v7144, 1.0
    %v7297 = vadd.f32 %v7146, 1.0
    %v7298 = vadd.f32 %v7148, 1.0
    %v7299 = vadd.f32 %v7150, 1.0
    %v7300 = vadd.f32 %v7152, 1.0
    %v7301 = vadd.f32 %v7154, 1.0
    %v7302 = vadd.f32 %v7156, 1.0
    %v7303 = vadd.f32 %v7158, 1.0
    %v7304 = vadd.f32 %v7160, 1.0
    %v7305 = vadd.f32 %v7162, 1.0
    %v7306 = vadd.f32 %v7164, 1.0
    %v7307 = vadd.f32 %v7166, 1.0
    %v7308 = vadd.f32 %v7168, 1.0
    %v7309 = vadd.f32 %v7170, 1.0
    %v7310 = vadd.f32 %v7172, 1.0
    %v7311 = vadd.f32 %v7174, 1.0
    %v7312 = vadd.f32 %v7176, 1.0
    %v7313 = vadd.f32 %v7178, 1.0
    %v7314 = vadd.f32 %v7180, 1.0
    %v7315 = vadd.f32 %v7182, 1.0
    %v7316 = vadd.f32 %v7184, 1.0
    %v7317 = vadd.f32 %v7186, 1.0
    %v7318 = vadd.f32 %v7188, 1.0
    %v7319 = vadd.f32 %v7190, 1.0
    %v7320 = vadd.f32 %v7192, 1.0
    %v7321 = vrcp.pop %v7193
    %v7322 = vmul.f32 1.0, %v7321
    %v7323 = vrcp.pop %v7194
    %v7324 = vmul.f32 1.0, %v7323
    %v7325 = vrcp.pop %v7195
    %v7326 = vmul.f32 1.0, %v7325
    %v7327 = vrcp.pop %v7196
    %v7328 = vmul.f32 1.0, %v7327
    %v7329 = vrcp.pop %v7197
    %v7330 = vmul.f32 1.0, %v7329
    %v7331 = vrcp.pop %v7198
    %v7332 = vmul.f32 1.0, %v7331
    %v7333 = vrcp.pop %v7199
    %v7334 = vmul.f32 1.0, %v7333
    %v7335 = vrcp.pop %v7200
    %v7336 = vmul.f32 1.0, %v7335
    %v7337 = vrcp.pop %v7201
    %v7338 = vmul.f32 1.0, %v7337
    %v7339 = vrcp.pop %v7202
    %v7340 = vmul.f32 1.0, %v7339
    %v7341 = vrcp.pop %v7203
    %v7342 = vmul.f32 1.0, %v7341
    %v7343 = vrcp.pop %v7204
    %v7344 = vmul.f32 1.0, %v7343
    %v7345 = vrcp.pop %v7205
    %v7346 = vmul.f32 1.0, %v7345
    %v7347 = vrcp.pop %v7206
    %v7348 = vmul.f32 1.0, %v7347
    %v7349 = vrcp.pop %v7207
    %v7350 = vmul.f32 1.0, %v7349
    %v7351 = vrcp.pop %v7208
    %v7352 = vmul.f32 1.0, %v7351
    %v7353 = vrcp.pop %v7209
    %v7354 = vmul.f32 1.0, %v7353
    %v7355 = vrcp.pop %v7210
    %v7356 = vmul.f32 1.0, %v7355
    %v7357 = vrcp.pop %v7211
    %v7358 = vmul.f32 1.0, %v7357
    %v7359 = vrcp.pop %v7212
    %v7360 = vmul.f32 1.0, %v7359
    %v7361 = vrcp.pop %v7213
    %v7362 = vmul.f32 1.0, %v7361
    %v7363 = vrcp.pop %v7214
    %v7364 = vmul.f32 1.0, %v7363
    %v7365 = vrcp.pop %v7215
    %v7366 = vmul.f32 1.0, %v7365
    %v7367 = vrcp.pop %v7216
    %v7368 = vmul.f32 1.0, %v7367
    %v7369 = vrcp.pop %v7217
    %v7370 = vmul.f32 1.0, %v7369
    %v7371 = vrcp.pop %v7218
    %v7372 = vmul.f32 1.0, %v7371
    %v7373 = vrcp.pop %v7219
    %v7374 = vmul.f32 1.0, %v7373
    %v7375 = vrcp.pop %v7220
    %v7376 = vmul.f32 1.0, %v7375
    %v7377 = vrcp.pop %v7221
    %v7378 = vmul.f32 1.0, %v7377
    %v7379 = vrcp.pop %v7222
    %v7380 = vmul.f32 1.0, %v7379
    %v7381 = vrcp.pop %v7223
    %v7382 = vmul.f32 1.0, %v7381
    %v7383 = vrcp.pop %v7224
    %v7384 = vmul.f32 1.0, %v7383
    %v7385 = vrcp.pop %v7225
    %v7386 = vmul.f32 1.0, %v7385
    %v7387 = vrcp.pop %v7226
    %v7388 = vmul.f32 1.0, %v7387
    %v7389 = vrcp.pop %v7227
    %v7390 = vmul.f32 1.0, %v7389
    %v7391 = vrcp.pop %v7228
    %v7392 = vmul.f32 1.0, %v7391
    %v7393 = vrcp.pop %v7229
    %v7394 = vmul.f32 1.0, %v7393
    %v7395 = vrcp.pop %v7230
    %v7396 = vmul.f32 1.0, %v7395
    %v7397 = vrcp.pop %v7231
    %v7398 = vmul.f32 1.0, %v7397
    %v7399 = vrcp.pop %v7232
    %v7400 = vmul.f32 1.0, %v7399
    %v7401 = vrcp.pop %v7233
    %v7402 = vmul.f32 1.0, %v7401
    %v7403 = vrcp.pop %v7234
    %v7404 = vmul.f32 1.0, %v7403
    %v7405 = vrcp.pop %v7235
    %v7406 = vmul.f32 1.0, %v7405
    %v7407 = vrcp.pop %v7236
    %v7408 = vmul.f32 1.0, %v7407
    %v7409 = vrcp.pop %v7237
    %v7410 = vmul.f32 1.0, %v7409
    %v7411 = vrcp.pop %v7238
    %v7412 = vmul.f32 1.0, %v7411
    %v7413 = vrcp.pop %v7239
    %v7414 = vmul.f32 1.0, %v7413
    %v7415 = vrcp.pop %v7240
    %v7416 = vmul.f32 1.0, %v7415
    %v7417 = vrcp.pop %v7241
    %v7418 = vmul.f32 1.0, %v7417
    %v7419 = vrcp.pop %v7242
    %v7420 = vmul.f32 1.0, %v7419
    %v7421 = vrcp.pop %v7243
    %v7422 = vmul.f32 1.0, %v7421
    %v7423 = vrcp.pop %v7244
    %v7424 = vmul.f32 1.0, %v7423
    %v7425 = vrcp.pop %v7245
    %v7426 = vmul.f32 1.0, %v7425
    %v7427 = vrcp.pop %v7246
    %v7428 = vmul.f32 1.0, %v7427
    %v7429 = vrcp.pop %v7247
    %v7430 = vmul.f32 1.0, %v7429
    %v7431 = vrcp.pop %v7248
    %v7432 = vmul.f32 1.0, %v7431
    %v7433 = vrcp.pop %v7249
    %v7434 = vmul.f32 1.0, %v7433
    %v7435 = vrcp.pop %v7250
    %v7436 = vmul.f32 1.0, %v7435
    %v7437 = vrcp.pop %v7251
    %v7438 = vmul.f32 1.0, %v7437
    %v7439 = vrcp.pop %v7252
    %v7440 = vmul.f32 1.0, %v7439
    %v7441 = vrcp.pop %v7253
    %v7442 = vmul.f32 1.0, %v7441
    %v7443 = vrcp.pop %v7254
    %v7444 = vmul.f32 1.0, %v7443
    %v7445 = vrcp.pop %v7255
    %v7446 = vmul.f32 1.0, %v7445
    %v7447 = vrcp.pop %v7256
    %v7448 = vmul.f32 1.0, %v7447
    %v7449 = vrcp.pop %v7257
    %v7450 = vmul.f32 1.0, %v7449
    %v7451 = vrcp.pop %v7258
    %v7452 = vmul.f32 1.0, %v7451
    %v7453 = vrcp.pop %v7259
    %v7454 = vmul.f32 1.0, %v7453
    %v7455 = vrcp.pop %v7260
    %v7456 = vmul.f32 1.0, %v7455
    %v7457 = vrcp.pop %v7261
    %v7458 = vmul.f32 1.0, %v7457
    %v7459 = vrcp.pop %v7262
    %v7460 = vmul.f32 1.0, %v7459
    %v7461 = vrcp.pop %v7263
    %v7462 = vmul.f32 1.0, %v7461
    %v7463 = vrcp.pop %v7264
    %v7464 = vmul.f32 1.0, %v7463
    %v7465 = vrcp.pop %v7265
    %v7466 = vmul.f32 1.0, %v7465
    %v7467 = vrcp.pop %v7266
    %v7468 = vmul.f32 1.0, %v7467
    %v7469 = vrcp.pop %v7267
    %v7470 = vmul.f32 1.0, %v7469
    %v7471 = vrcp.pop %v7268
    %v7472 = vmul.f32 1.0, %v7471
    %v7473 = vrcp.pop %v7269
    %v7474 = vmul.f32 1.0, %v7473
    %v7475 = vrcp.pop %v7270
    %v7476 = vmul.f32 1.0, %v7475
    %v7477 = vrcp.pop %v7271
    %v7478 = vmul.f32 1.0, %v7477
    %v7479 = vrcp.pop %v7272
    %v7480 = vmul.f32 1.0, %v7479
    %v7481 = vrcp.pop %v7273
    %v7482 = vmul.f32 1.0, %v7481
    %v7483 = vrcp.pop %v7274
    %v7484 = vmul.f32 1.0, %v7483
    %v7485 = vrcp.pop %v7275
    %v7486 = vmul.f32 1.0, %v7485
    %v7487 = vrcp.pop %v7276
    %v7488 = vmul.f32 1.0, %v7487
    %v7489 = vrcp.pop %v7277
    %v7490 = vmul.f32 1.0, %v7489
    %v7491 = vrcp.pop %v7278
    %v7492 = vmul.f32 1.0, %v7491
    %v7493 = vrcp.pop %v7279
    %v7494 = vmul.f32 1.0, %v7493
    %v7495 = vrcp.pop %v7280
    %v7496 = vmul.f32 1.0, %v7495
    %v7497 = vrcp.pop %v7281
    %v7498 = vmul.f32 1.0, %v7497
    %v7499 = vrcp.pop %v7282
    %v7500 = vmul.f32 1.0, %v7499
    %v7501 = vrcp.pop %v7283
    %v7502 = vmul.f32 1.0, %v7501
    %v7503 = vrcp.pop %v7284
    %v7504 = vmul.f32 1.0, %v7503
    %v7505 = vrcp.pop %v7285
    %v7506 = vmul.f32 1.0, %v7505
    %v7507 = vrcp.pop %v7286
    %v7508 = vmul.f32 1.0, %v7507
    %v7509 = vrcp.pop %v7287
    %v7510 = vmul.f32 1.0, %v7509
    %v7511 = vrcp.pop %v7288
    %v7512 = vmul.f32 1.0, %v7511
    %v7513 = vrcp.pop %v7289
    %v7514 = vmul.f32 1.0, %v7513
    %v7515 = vrcp.pop %v7290
    %v7516 = vmul.f32 1.0, %v7515
    %v7517 = vrcp.pop %v7291
    %v7518 = vmul.f32 1.0, %v7517
    %v7519 = vrcp.pop %v7292
    %v7520 = vmul.f32 1.0, %v7519
    %v7521 = vrcp.pop %v7293
    %v7522 = vmul.f32 1.0, %v7521
    %v7523 = vrcp.pop %v7294
    %v7524 = vmul.f32 1.0, %v7523
    %v7525 = vrcp.pop %v7295
    %v7526 = vmul.f32 1.0, %v7525
    %v7527 = vrcp.pop %v7296
    %v7528 = vmul.f32 1.0, %v7527
    %v7529 = vrcp.pop %v7297
    %v7530 = vmul.f32 1.0, %v7529
    %v7531 = vrcp.pop %v7298
    %v7532 = vmul.f32 1.0, %v7531
    %v7533 = vrcp.pop %v7299
    %v7534 = vmul.f32 1.0, %v7533
    %v7535 = vrcp.pop %v7300
    %v7536 = vmul.f32 1.0, %v7535
    %v7537 = vrcp.pop %v7301
    %v7538 = vmul.f32 1.0, %v7537
    %v7539 = vrcp.pop %v7302
    %v7540 = vmul.f32 1.0, %v7539
    %v7541 = vrcp.pop %v7303
    %v7542 = vmul.f32 1.0, %v7541
    %v7543 = vrcp.pop %v7304
    %v7544 = vmul.f32 1.0, %v7543
    %v7545 = vrcp.pop %v7305
    %v7546 = vmul.f32 1.0, %v7545
    %v7547 = vrcp.pop %v7306
    %v7548 = vmul.f32 1.0, %v7547
    %v7549 = vrcp.pop %v7307
    %v7550 = vmul.f32 1.0, %v7549
    %v7551 = vrcp.pop %v7308
    %v7552 = vmul.f32 1.0, %v7551
    %v7553 = vrcp.pop %v7309
    %v7554 = vmul.f32 1.0, %v7553
    %v7555 = vrcp.pop %v7310
    %v7556 = vmul.f32 1.0, %v7555
    %v7557 = vrcp.pop %v7311
    %v7558 = vmul.f32 1.0, %v7557
    %v7559 = vrcp.pop %v7312
    %v7560 = vmul.f32 1.0, %v7559
    %v7561 = vrcp.pop %v7313
    %v7562 = vmul.f32 1.0, %v7561
    %v7563 = vrcp.pop %v7314
    %v7564 = vmul.f32 1.0, %v7563
    %v7565 = vrcp.pop %v7315
    %v7566 = vmul.f32 1.0, %v7565
    %v7567 = vrcp.pop %v7316
    %v7568 = vmul.f32 1.0, %v7567
    %v7569 = vrcp.pop %v7317
    %v7570 = vmul.f32 1.0, %v7569
    %v7571 = vrcp.pop %v7318
    %v7572 = vmul.f32 1.0, %v7571
    %v7573 = vrcp.pop %v7319
    %v7574 = vmul.f32 1.0, %v7573
    %v7575 = vrcp.pop %v7320
    %v7576 = vmul.f32 1.0, %v7575
    %v7577 = vmul.f32 %v6681, %v7322
    %v7578 = vmul.f32 %v6682, %v7324
    %v7579 = vmul.f32 %v6683, %v7326
    %v7580 = vmul.f32 %v6684, %v7328
    %v7581 = vmul.f32 %v6685, %v7330
    %v7582 = vmul.f32 %v6686, %v7332
    %v7583 = vmul.f32 %v6687, %v7334
    %v7584 = vmul.f32 %v6688, %v7336
    %v7585 = vmul.f32 %v6689, %v7338
    %v7586 = vmul.f32 %v6690, %v7340
    %v7587 = vmul.f32 %v6691, %v7342
    %v7588 = vmul.f32 %v6692, %v7344
    %v7589 = vmul.f32 %v6693, %v7346
    %v7590 = vmul.f32 %v6694, %v7348
    %v7591 = vmul.f32 %v6695, %v7350
    %v7592 = vmul.f32 %v6696, %v7352
    %v7593 = vmul.f32 %v6697, %v7354
    %v7594 = vmul.f32 %v6698, %v7356
    %v7595 = vmul.f32 %v6699, %v7358
    %v7596 = vmul.f32 %v6700, %v7360
    %v7597 = vmul.f32 %v6701, %v7362
    %v7598 = vmul.f32 %v6702, %v7364
    %v7599 = vmul.f32 %v6703, %v7366
    %v7600 = vmul.f32 %v6704, %v7368
    %v7601 = vmul.f32 %v6705, %v7370
    %v7602 = vmul.f32 %v6706, %v7372
    %v7603 = vmul.f32 %v6707, %v7374
    %v7604 = vmul.f32 %v6708, %v7376
    %v7605 = vmul.f32 %v6709, %v7378
    %v7606 = vmul.f32 %v6710, %v7380
    %v7607 = vmul.f32 %v6711, %v7382
    %v7608 = vmul.f32 %v6712, %v7384
    %v7609 = vmul.f32 %v6713, %v7386
    %v7610 = vmul.f32 %v6714, %v7388
    %v7611 = vmul.f32 %v6715, %v7390
    %v7612 = vmul.f32 %v6716, %v7392
    %v7613 = vmul.f32 %v6717, %v7394
    %v7614 = vmul.f32 %v6718, %v7396
    %v7615 = vmul.f32 %v6719, %v7398
    %v7616 = vmul.f32 %v6720, %v7400
    %v7617 = vmul.f32 %v6721, %v7402
    %v7618 = vmul.f32 %v6722, %v7404
    %v7619 = vmul.f32 %v6723, %v7406
    %v7620 = vmul.f32 %v6724, %v7408
    %v7621 = vmul.f32 %v6725, %v7410
    %v7622 = vmul.f32 %v6726, %v7412
    %v7623 = vmul.f32 %v6727, %v7414
    %v7624 = vmul.f32 %v6728, %v7416
    %v7625 = vmul.f32 %v6729, %v7418
    %v7626 = vmul.f32 %v6730, %v7420
    %v7627 = vmul.f32 %v6731, %v7422
    %v7628 = vmul.f32 %v6732, %v7424
    %v7629 = vmul.f32 %v6733, %v7426
    %v7630 = vmul.f32 %v6734, %v7428
    %v7631 = vmul.f32 %v6735, %v7430
    %v7632 = vmul.f32 %v6736, %v7432
    %v7633 = vmul.f32 %v6737, %v7434
    %v7634 = vmul.f32 %v6738, %v7436
    %v7635 = vmul.f32 %v6739, %v7438
    %v7636 = vmul.f32 %v6740, %v7440
    %v7637 = vmul.f32 %v6741, %v7442
    %v7638 = vmul.f32 %v6742, %v7444
    %v7639 = vmul.f32 %v6743, %v7446
    %v7640 = vmul.f32 %v6744, %v7448
    %v7641 = vmul.f32 %v6745, %v7450
    %v7642 = vmul.f32 %v6746, %v7452
    %v7643 = vmul.f32 %v6747, %v7454
    %v7644 = vmul.f32 %v6748, %v7456
    %v7645 = vmul.f32 %v6749, %v7458
    %v7646 = vmul.f32 %v6750, %v7460
    %v7647 = vmul.f32 %v6751, %v7462
    %v7648 = vmul.f32 %v6752, %v7464
    %v7649 = vmul.f32 %v6753, %v7466
    %v7650 = vmul.f32 %v6754, %v7468
    %v7651 = vmul.f32 %v6755, %v7470
    %v7652 = vmul.f32 %v6756, %v7472
    %v7653 = vmul.f32 %v6757, %v7474
    %v7654 = vmul.f32 %v6758, %v7476
    %v7655 = vmul.f32 %v6759, %v7478
    %v7656 = vmul.f32 %v6760, %v7480
    %v7657 = vmul.f32 %v6761, %v7482
    %v7658 = vmul.f32 %v6762, %v7484
    %v7659 = vmul.f32 %v6763, %v7486
    %v7660 = vmul.f32 %v6764, %v7488
    %v7661 = vmul.f32 %v6765, %v7490
    %v7662 = vmul.f32 %v6766, %v7492
    %v7663 = vmul.f32 %v6767, %v7494
    %v7664 = vmul.f32 %v6768, %v7496
    %v7665 = vmul.f32 %v6769, %v7498
    %v7666 = vmul.f32 %v6770, %v7500
    %v7667 = vmul.f32 %v6771, %v7502
    %v7668 = vmul.f32 %v6772, %v7504
    %v7669 = vmul.f32 %v6773, %v7506
    %v7670 = vmul.f32 %v6774, %v7508
    %v7671 = vmul.f32 %v6775, %v7510
    %v7672 = vmul.f32 %v6776, %v7512
    %v7673 = vmul.f32 %v6777, %v7514
    %v7674 = vmul.f32 %v6778, %v7516
    %v7675 = vmul.f32 %v6779, %v7518
    %v7676 = vmul.f32 %v6780, %v7520
    %v7677 = vmul.f32 %v6781, %v7522
    %v7678 = vmul.f32 %v6782, %v7524
    %v7679 = vmul.f32 %v6783, %v7526
    %v7680 = vmul.f32 %v6784, %v7528
    %v7681 = vmul.f32 %v6785, %v7530
    %v7682 = vmul.f32 %v6786, %v7532
    %v7683 = vmul.f32 %v6787, %v7534
    %v7684 = vmul.f32 %v6788, %v7536
    %v7685 = vmul.f32 %v6789, %v7538
    %v7686 = vmul.f32 %v6790, %v7540
    %v7687 = vmul.f32 %v6791, %v7542
    %v7688 = vmul.f32 %v6792, %v7544
    %v7689 = vmul.f32 %v6793, %v7546
    %v7690 = vmul.f32 %v6794, %v7548
    %v7691 = vmul.f32 %v6795, %v7550
    %v7692 = vmul.f32 %v6796, %v7552
    %v7693 = vmul.f32 %v6797, %v7554
    %v7694 = vmul.f32 %v6798, %v7556
    %v7695 = vmul.f32 %v6799, %v7558
    %v7696 = vmul.f32 %v6800, %v7560
    %v7697 = vmul.f32 %v6801, %v7562
    %v7698 = vmul.f32 %v6802, %v7564
    %v7699 = vmul.f32 %v6803, %v7566
    %v7700 = vmul.f32 %v6804, %v7568
    %v7701 = vmul.f32 %v6805, %v7570
    %v7702 = vmul.f32 %v6806, %v7572
    %v7703 = vmul.f32 %v6807, %v7574
    %v7704 = vmul.f32 %v6808, %v7576
    %v7706 = vlaneseq
    %v7707 = vshrl.u32 %v7706, 7
    %v7708 = vsub.s32 0, %v7707
    %v7709 = vrot.slane %v89, %v7708
    %v7710 = vlaneseq
    %v7711 = vshrl.u32 %v7710, 7
    %v7712 = vsub.s32 1, %v7711
    %v7713 = vrot.slane %v89, %v7712
    %v7714 = vlaneseq
    %v7715 = vshrl.u32 %v7714, 7
    %v7716 = vsub.s32 2, %v7715
    %v7717 = vrot.slane %v89, %v7716
    %v7718 = vlaneseq
    %v7719 = vshrl.u32 %v7718, 7
    %v7720 = vsub.s32 3, %v7719
    %v7721 = vrot.slane %v89, %v7720
    %v7726 = vmul.f32 %v7577, %v7709
    %v7727 = vmul.f32 %v7578, %v7713
    %v7728 = vmul.f32 %v7579, %v7717
    %v7729 = vmul.f32 %v7580, %v7721
    %v7730 = vmul.f32 %v7581, %v7709
    %v7731 = vmul.f32 %v7582, %v7713
    %v7732 = vmul.f32 %v7583, %v7717
    %v7733 = vmul.f32 %v7584, %v7721
    %v7734 = vmul.f32 %v7585, %v7709
    %v7735 = vmul.f32 %v7586, %v7713
    %v7736 = vmul.f32 %v7587, %v7717
    %v7737 = vmul.f32 %v7588, %v7721
    %v7738 = vmul.f32 %v7589, %v7709
    %v7739 = vmul.f32 %v7590, %v7713
    %v7740 = vmul.f32 %v7591, %v7717
    %v7741 = vmul.f32 %v7592, %v7721
    %v7742 = vmul.f32 %v7593, %v7709
    %v7743 = vmul.f32 %v7594, %v7713
    %v7744 = vmul.f32 %v7595, %v7717
    %v7745 = vmul.f32 %v7596, %v7721
    %v7746 = vmul.f32 %v7597, %v7709
    %v7747 = vmul.f32 %v7598, %v7713
    %v7748 = vmul.f32 %v7599, %v7717
    %v7749 = vmul.f32 %v7600, %v7721
    %v7750 = vmul.f32 %v7601, %v7709
    %v7751 = vmul.f32 %v7602, %v7713
    %v7752 = vmul.f32 %v7603, %v7717
    %v7753 = vmul.f32 %v7604, %v7721
    %v7754 = vmul.f32 %v7605, %v7709
    %v7755 = vmul.f32 %v7606, %v7713
    %v7756 = vmul.f32 %v7607, %v7717
    %v7757 = vmul.f32 %v7608, %v7721
    %v7758 = vmul.f32 %v7609, %v7709
    %v7759 = vmul.f32 %v7610, %v7713
    %v7760 = vmul.f32 %v7611, %v7717
    %v7761 = vmul.f32 %v7612, %v7721
    %v7762 = vmul.f32 %v7613, %v7709
    %v7763 = vmul.f32 %v7614, %v7713
    %v7764 = vmul.f32 %v7615, %v7717
    %v7765 = vmul.f32 %v7616, %v7721
    %v7766 = vmul.f32 %v7617, %v7709
    %v7767 = vmul.f32 %v7618, %v7713
    %v7768 = vmul.f32 %v7619, %v7717
    %v7769 = vmul.f32 %v7620, %v7721
    %v7770 = vmul.f32 %v7621, %v7709
    %v7771 = vmul.f32 %v7622, %v7713
    %v7772 = vmul.f32 %v7623, %v7717
    %v7773 = vmul.f32 %v7624, %v7721
    %v7774 = vmul.f32 %v7625, %v7709
    %v7775 = vmul.f32 %v7626, %v7713
    %v7776 = vmul.f32 %v7627, %v7717
    %v7777 = vmul.f32 %v7628, %v7721
    %v7778 = vmul.f32 %v7629, %v7709
    %v7779 = vmul.f32 %v7630, %v7713
    %v7780 = vmul.f32 %v7631, %v7717
    %v7781 = vmul.f32 %v7632, %v7721
    %v7782 = vmul.f32 %v7633, %v7709
    %v7783 = vmul.f32 %v7634, %v7713
    %v7784 = vmul.f32 %v7635, %v7717
    %v7785 = vmul.f32 %v7636, %v7721
    %v7786 = vmul.f32 %v7637, %v7709
    %v7787 = vmul.f32 %v7638, %v7713
    %v7788 = vmul.f32 %v7639, %v7717
    %v7789 = vmul.f32 %v7640, %v7721
    %v7790 = vmul.f32 %v7641, %v7709
    %v7791 = vmul.f32 %v7642, %v7713
    %v7792 = vmul.f32 %v7643, %v7717
    %v7793 = vmul.f32 %v7644, %v7721
    %v7794 = vmul.f32 %v7645, %v7709
    %v7795 = vmul.f32 %v7646, %v7713
    %v7796 = vmul.f32 %v7647, %v7717
    %v7797 = vmul.f32 %v7648, %v7721
    %v7798 = vmul.f32 %v7649, %v7709
    %v7799 = vmul.f32 %v7650, %v7713
    %v7800 = vmul.f32 %v7651, %v7717
    %v7801 = vmul.f32 %v7652, %v7721
    %v7802 = vmul.f32 %v7653, %v7709
    %v7803 = vmul.f32 %v7654, %v7713
    %v7804 = vmul.f32 %v7655, %v7717
    %v7805 = vmul.f32 %v7656, %v7721
    %v7806 = vmul.f32 %v7657, %v7709
    %v7807 = vmul.f32 %v7658, %v7713
    %v7808 = vmul.f32 %v7659, %v7717
    %v7809 = vmul.f32 %v7660, %v7721
    %v7810 = vmul.f32 %v7661, %v7709
    %v7811 = vmul.f32 %v7662, %v7713
    %v7812 = vmul.f32 %v7663, %v7717
    %v7813 = vmul.f32 %v7664, %v7721
    %v7814 = vmul.f32 %v7665, %v7709
    %v7815 = vmul.f32 %v7666, %v7713
    %v7816 = vmul.f32 %v7667, %v7717
    %v7817 = vmul.f32 %v7668, %v7721
    %v7818 = vmul.f32 %v7669, %v7709
    %v7819 = vmul.f32 %v7670, %v7713
    %v7820 = vmul.f32 %v7671, %v7717
    %v7821 = vmul.f32 %v7672, %v7721
    %v7822 = vmul.f32 %v7673, %v7709
    %v7823 = vmul.f32 %v7674, %v7713
    %v7824 = vmul.f32 %v7675, %v7717
    %v7825 = vmul.f32 %v7676, %v7721
    %v7826 = vmul.f32 %v7677, %v7709
    %v7827 = vmul.f32 %v7678, %v7713
    %v7828 = vmul.f32 %v7679, %v7717
    %v7829 = vmul.f32 %v7680, %v7721
    %v7830 = vmul.f32 %v7681, %v7709
    %v7831 = vmul.f32 %v7682, %v7713
    %v7832 = vmul.f32 %v7683, %v7717
    %v7833 = vmul.f32 %v7684, %v7721
    %v7834 = vmul.f32 %v7685, %v7709
    %v7835 = vmul.f32 %v7686, %v7713
    %v7836 = vmul.f32 %v7687, %v7717
    %v7837 = vmul.f32 %v7688, %v7721
    %v7838 = vmul.f32 %v7689, %v7709
    %v7839 = vmul.f32 %v7690, %v7713
    %v7840 = vmul.f32 %v7691, %v7717
    %v7841 = vmul.f32 %v7692, %v7721
    %v7842 = vmul.f32 %v7693, %v7709
    %v7843 = vmul.f32 %v7694, %v7713
    %v7844 = vmul.f32 %v7695, %v7717
    %v7845 = vmul.f32 %v7696, %v7721
    %v7846 = vmul.f32 %v7697, %v7709
    %v7847 = vmul.f32 %v7698, %v7713
    %v7848 = vmul.f32 %v7699, %v7717
    %v7849 = vmul.f32 %v7700, %v7721
    %v7850 = vmul.f32 %v7701, %v7709
    %v7851 = vmul.f32 %v7702, %v7713
    %v7852 = vmul.f32 %v7703, %v7717
    %v7853 = vmul.f32 %v7704, %v7721
    %v7854 = vadd.f32 %v7726, %v7727
    %v7855 = vadd.f32 %v7854, %v7728
    %v7856 = vadd.f32 %v7855, %v7729
    %7857 = vadd.xlane.f32.xlu0 %v7856
    %v7858 = vpop.xlane.xlu0 %7857
    %v7859 = vadd.f32 %v7730, %v7731
    %v7860 = vadd.f32 %v7859, %v7732
    %v7861 = vadd.f32 %v7860, %v7733
    %7862 = vadd.xlane.f32.xlu0 %v7861
    %v7863 = vpop.xlane.xlu0 %7862
    %v7864 = vadd.f32 %v7734, %v7735
    %v7865 = vadd.f32 %v7864, %v7736
    %v7866 = vadd.f32 %v7865, %v7737
    %7867 = vadd.xlane.f32.xlu0 %v7866
    %v7868 = vpop.xlane.xlu0 %7867
    %v7869 = vadd.f32 %v7738, %v7739
    %v7870 = vadd.f32 %v7869, %v7740
    %v7871 = vadd.f32 %v7870, %v7741
    %7872 = vadd.xlane.f32.xlu0 %v7871
    %v7873 = vpop.xlane.xlu0 %7872
    %v7874 = vadd.f32 %v7742, %v7743
    %v7875 = vadd.f32 %v7874, %v7744
    %v7876 = vadd.f32 %v7875, %v7745
    %7877 = vadd.xlane.f32.xlu0 %v7876
    %v7878 = vpop.xlane.xlu0 %7877
    %v7879 = vadd.f32 %v7746, %v7747
    %v7880 = vadd.f32 %v7879, %v7748
    %v7881 = vadd.f32 %v7880, %v7749
    %7882 = vadd.xlane.f32.xlu0 %v7881
    %v7883 = vpop.xlane.xlu0 %7882
    %v7884 = vadd.f32 %v7750, %v7751
    %v7885 = vadd.f32 %v7884, %v7752
    %v7886 = vadd.f32 %v7885, %v7753
    %7887 = vadd.xlane.f32.xlu0 %v7886
    %v7888 = vpop.xlane.xlu0 %7887
    %v7889 = vadd.f32 %v7754, %v7755
    %v7890 = vadd.f32 %v7889, %v7756
    %v7891 = vadd.f32 %v7890, %v7757
    %7892 = vadd.xlane.f32.xlu0 %v7891
    %v7893 = vpop.xlane.xlu0 %7892
    %v7894 = vadd.f32 %v7758, %v7759
    %v7895 = vadd.f32 %v7894, %v7760
    %v7896 = vadd.f32 %v7895, %v7761
    %7897 = vadd.xlane.f32.xlu0 %v7896
    %v7898 = vpop.xlane.xlu0 %7897
    %v7899 = vadd.f32 %v7762, %v7763
    %v7900 = vadd.f32 %v7899, %v7764
    %v7901 = vadd.f32 %v7900, %v7765
    %7902 = vadd.xlane.f32.xlu0 %v7901
    %v7903 = vpop.xlane.xlu0 %7902
    %v7904 = vadd.f32 %v7766, %v7767
    %v7905 = vadd.f32 %v7904, %v7768
    %v7906 = vadd.f32 %v7905, %v7769
    %7907 = vadd.xlane.f32.xlu0 %v7906
    %v7908 = vpop.xlane.xlu0 %7907
    %v7909 = vadd.f32 %v7770, %v7771
    %v7910 = vadd.f32 %v7909, %v7772
    %v7911 = vadd.f32 %v7910, %v7773
    %7912 = vadd.xlane.f32.xlu0 %v7911
    %v7913 = vpop.xlane.xlu0 %7912
    %v7914 = vadd.f32 %v7774, %v7775
    %v7915 = vadd.f32 %v7914, %v7776
    %v7916 = vadd.f32 %v7915, %v7777
    %7917 = vadd.xlane.f32.xlu0 %v7916
    %v7918 = vpop.xlane.xlu0 %7917
    %v7919 = vadd.f32 %v7778, %v7779
    %v7920 = vadd.f32 %v7919, %v7780
    %v7921 = vadd.f32 %v7920, %v7781
    %7922 = vadd.xlane.f32.xlu0 %v7921
    %v7923 = vpop.xlane.xlu0 %7922
    %v7924 = vadd.f32 %v7782, %v7783
    %v7925 = vadd.f32 %v7924, %v7784
    %v7926 = vadd.f32 %v7925, %v7785
    %7927 = vadd.xlane.f32.xlu0 %v7926
    %v7928 = vpop.xlane.xlu0 %7927
    %v7929 = vadd.f32 %v7786, %v7787
    %v7930 = vadd.f32 %v7929, %v7788
    %v7931 = vadd.f32 %v7930, %v7789
    %7932 = vadd.xlane.f32.xlu0 %v7931
    %v7933 = vpop.xlane.xlu0 %7932
    %v7934 = vadd.f32 %v7790, %v7791
    %v7935 = vadd.f32 %v7934, %v7792
    %v7936 = vadd.f32 %v7935, %v7793
    %7937 = vadd.xlane.f32.xlu0 %v7936
    %v7938 = vpop.xlane.xlu0 %7937
    %v7939 = vadd.f32 %v7794, %v7795
    %v7940 = vadd.f32 %v7939, %v7796
    %v7941 = vadd.f32 %v7940, %v7797
    %7942 = vadd.xlane.f32.xlu0 %v7941
    %v7943 = vpop.xlane.xlu0 %7942
    %v7944 = vadd.f32 %v7798, %v7799
    %v7945 = vadd.f32 %v7944, %v7800
    %v7946 = vadd.f32 %v7945, %v7801
    %7947 = vadd.xlane.f32.xlu0 %v7946
    %v7948 = vpop.xlane.xlu0 %7947
    %v7949 = vadd.f32 %v7802, %v7803
    %v7950 = vadd.f32 %v7949, %v7804
    %v7951 = vadd.f32 %v7950, %v7805
    %7952 = vadd.xlane.f32.xlu0 %v7951
    %v7953 = vpop.xlane.xlu0 %7952
    %v7954 = vadd.f32 %v7806, %v7807
    %v7955 = vadd.f32 %v7954, %v7808
    %v7956 = vadd.f32 %v7955, %v7809
    %7957 = vadd.xlane.f32.xlu0 %v7956
    %v7958 = vpop.xlane.xlu0 %7957
    %v7959 = vadd.f32 %v7810, %v7811
    %v7960 = vadd.f32 %v7959, %v7812
    %v7961 = vadd.f32 %v7960, %v7813
    %7962 = vadd.xlane.f32.xlu0 %v7961
    %v7963 = vpop.xlane.xlu0 %7962
    %v7964 = vadd.f32 %v7814, %v7815
    %v7965 = vadd.f32 %v7964, %v7816
    %v7966 = vadd.f32 %v7965, %v7817
    %7967 = vadd.xlane.f32.xlu0 %v7966
    %v7968 = vpop.xlane.xlu0 %7967
    %v7969 = vadd.f32 %v7818, %v7819
    %v7970 = vadd.f32 %v7969, %v7820
    %v7971 = vadd.f32 %v7970, %v7821
    %7972 = vadd.xlane.f32.xlu0 %v7971
    %v7973 = vpop.xlane.xlu0 %7972
    %v7974 = vadd.f32 %v7822, %v7823
    %v7975 = vadd.f32 %v7974, %v7824
    %v7976 = vadd.f32 %v7975, %v7825
    %7977 = vadd.xlane.f32.xlu0 %v7976
    %v7978 = vpop.xlane.xlu0 %7977
    %v7979 = vadd.f32 %v7826, %v7827
    %v7980 = vadd.f32 %v7979, %v7828
    %v7981 = vadd.f32 %v7980, %v7829
    %7982 = vadd.xlane.f32.xlu0 %v7981
    %v7983 = vpop.xlane.xlu0 %7982
    %v7984 = vadd.f32 %v7830, %v7831
    %v7985 = vadd.f32 %v7984, %v7832
    %v7986 = vadd.f32 %v7985, %v7833
    %7987 = vadd.xlane.f32.xlu0 %v7986
    %v7988 = vpop.xlane.xlu0 %7987
    %v7989 = vadd.f32 %v7834, %v7835
    %v7990 = vadd.f32 %v7989, %v7836
    %v7991 = vadd.f32 %v7990, %v7837
    %7992 = vadd.xlane.f32.xlu0 %v7991
    %v7993 = vpop.xlane.xlu0 %7992
    %v7994 = vadd.f32 %v7838, %v7839
    %v7995 = vadd.f32 %v7994, %v7840
    %v7996 = vadd.f32 %v7995, %v7841
    %7997 = vadd.xlane.f32.xlu0 %v7996
    %v7998 = vpop.xlane.xlu0 %7997
    %v7999 = vadd.f32 %v7842, %v7843
    %v8000 = vadd.f32 %v7999, %v7844
    %v8001 = vadd.f32 %v8000, %v7845
    %8002 = vadd.xlane.f32.xlu0 %v8001
    %v8003 = vpop.xlane.xlu0 %8002
    %v8004 = vadd.f32 %v7846, %v7847
    %v8005 = vadd.f32 %v8004, %v7848
    %v8006 = vadd.f32 %v8005, %v7849
    %8007 = vadd.xlane.f32.xlu0 %v8006
    %v8008 = vpop.xlane.xlu0 %8007
    %v8009 = vadd.f32 %v7850, %v7851
    %v8010 = vadd.f32 %v8009, %v7852
    %v8011 = vadd.f32 %v8010, %v7853
    %8012 = vadd.xlane.f32.xlu0 %v8011
    %v8013 = vpop.xlane.xlu0 %8012
    %v8014 = vstv %s94
    %v8015 = vadd.f32 %v7858, %v8014
    %v8016 = vadd.f32 %v7863, %v8014
    %v8017 = vadd.f32 %v7868, %v8014
    %v8018 = vadd.f32 %v7873, %v8014
    %v8019 = vadd.f32 %v7878, %v8014
    %v8020 = vadd.f32 %v7883, %v8014
    %v8021 = vadd.f32 %v7888, %v8014
    %v8022 = vadd.f32 %v7893, %v8014
    %v8023 = vadd.f32 %v7898, %v8014
    %v8024 = vadd.f32 %v7903, %v8014
    %v8025 = vadd.f32 %v7908, %v8014
    %v8026 = vadd.f32 %v7913, %v8014
    %v8027 = vadd.f32 %v7918, %v8014
    %v8028 = vadd.f32 %v7923, %v8014
    %v8029 = vadd.f32 %v7928, %v8014
    %v8030 = vadd.f32 %v7933, %v8014
    %v8031 = vadd.f32 %v7938, %v8014
    %v8032 = vadd.f32 %v7943, %v8014
    %v8033 = vadd.f32 %v7948, %v8014
    %v8034 = vadd.f32 %v7953, %v8014
    %v8035 = vadd.f32 %v7958, %v8014
    %v8036 = vadd.f32 %v7963, %v8014
    %v8037 = vadd.f32 %v7968, %v8014
    %v8038 = vadd.f32 %v7973, %v8014
    %v8039 = vadd.f32 %v7978, %v8014
    %v8040 = vadd.f32 %v7983, %v8014
    %v8041 = vadd.f32 %v7988, %v8014
    %v8042 = vadd.f32 %v7993, %v8014
    %v8043 = vadd.f32 %v7998, %v8014
    %v8044 = vadd.f32 %v8003, %v8014
    %v8045 = vadd.f32 %v8008, %v8014
    %v8046 = vadd.f32 %v8013, %v8014
    %v8047 = vmax.f32 %v8015, %v8016
    %v8048 = vrot.slane %v8047, 4
    %v8049 = vmax.f32 %v8047, %v8048
    %v8050 = vrot.slane %v8049, 2
    %v8051 = vmax.f32 %v8049, %v8050
    %v8052 = vrot.slane %v8051, 1
    %v8053 = vmax.f32 %v8051, %v8052
    %v8054 = vmax.f32 %v8017, %v8018
    %v8055 = vrot.slane %v8054, 4
    %v8056 = vmax.f32 %v8054, %v8055
    %v8057 = vrot.slane %v8056, 2
    %v8058 = vmax.f32 %v8056, %v8057
    %v8059 = vrot.slane %v8058, 1
    %v8060 = vmax.f32 %v8058, %v8059
    %v8061 = vmax.f32 %v8019, %v8020
    %v8062 = vrot.slane %v8061, 4
    %v8063 = vmax.f32 %v8061, %v8062
    %v8064 = vrot.slane %v8063, 2
    %v8065 = vmax.f32 %v8063, %v8064
    %v8066 = vrot.slane %v8065, 1
    %v8067 = vmax.f32 %v8065, %v8066
    %v8068 = vmax.f32 %v8021, %v8022
    %v8069 = vrot.slane %v8068, 4
    %v8070 = vmax.f32 %v8068, %v8069
    %v8071 = vrot.slane %v8070, 2
    %v8072 = vmax.f32 %v8070, %v8071
    %v8073 = vrot.slane %v8072, 1
    %v8074 = vmax.f32 %v8072, %v8073
    %v8075 = vmax.f32 %v8023, %v8024
    %v8076 = vrot.slane %v8075, 4
    %v8077 = vmax.f32 %v8075, %v8076
    %v8078 = vrot.slane %v8077, 2
    %v8079 = vmax.f32 %v8077, %v8078
    %v8080 = vrot.slane %v8079, 1
    %v8081 = vmax.f32 %v8079, %v8080
    %v8082 = vmax.f32 %v8025, %v8026
    %v8083 = vrot.slane %v8082, 4
    %v8084 = vmax.f32 %v8082, %v8083
    %v8085 = vrot.slane %v8084, 2
    %v8086 = vmax.f32 %v8084, %v8085
    %v8087 = vrot.slane %v8086, 1
    %v8088 = vmax.f32 %v8086, %v8087
    %v8089 = vmax.f32 %v8027, %v8028
    %v8090 = vrot.slane %v8089, 4
    %v8091 = vmax.f32 %v8089, %v8090
    %v8092 = vrot.slane %v8091, 2
    %v8093 = vmax.f32 %v8091, %v8092
    %v8094 = vrot.slane %v8093, 1
    %v8095 = vmax.f32 %v8093, %v8094
    %v8096 = vmax.f32 %v8029, %v8030
    %v8097 = vrot.slane %v8096, 4
    %v8098 = vmax.f32 %v8096, %v8097
    %v8099 = vrot.slane %v8098, 2
    %v8100 = vmax.f32 %v8098, %v8099
    %v8101 = vrot.slane %v8100, 1
    %v8102 = vmax.f32 %v8100, %v8101
    %v8103 = vmax.f32 %v8031, %v8032
    %v8104 = vrot.slane %v8103, 4
    %v8105 = vmax.f32 %v8103, %v8104
    %v8106 = vrot.slane %v8105, 2
    %v8107 = vmax.f32 %v8105, %v8106
    %v8108 = vrot.slane %v8107, 1
    %v8109 = vmax.f32 %v8107, %v8108
    %v8110 = vmax.f32 %v8033, %v8034
    %v8111 = vrot.slane %v8110, 4
    %v8112 = vmax.f32 %v8110, %v8111
    %v8113 = vrot.slane %v8112, 2
    %v8114 = vmax.f32 %v8112, %v8113
    %v8115 = vrot.slane %v8114, 1
    %v8116 = vmax.f32 %v8114, %v8115
    %v8117 = vmax.f32 %v8035, %v8036
    %v8118 = vrot.slane %v8117, 4
    %v8119 = vmax.f32 %v8117, %v8118
    %v8120 = vrot.slane %v8119, 2
    %v8121 = vmax.f32 %v8119, %v8120
    %v8122 = vrot.slane %v8121, 1
    %v8123 = vmax.f32 %v8121, %v8122
    %v8124 = vmax.f32 %v8037, %v8038
    %v8125 = vrot.slane %v8124, 4
    %v8126 = vmax.f32 %v8124, %v8125
    %v8127 = vrot.slane %v8126, 2
    %v8128 = vmax.f32 %v8126, %v8127
    %v8129 = vrot.slane %v8128, 1
    %v8130 = vmax.f32 %v8128, %v8129
    %v8131 = vmax.f32 %v8039, %v8040
    %v8132 = vrot.slane %v8131, 4
    %v8133 = vmax.f32 %v8131, %v8132
    %v8134 = vrot.slane %v8133, 2
    %v8135 = vmax.f32 %v8133, %v8134
    %v8136 = vrot.slane %v8135, 1
    %v8137 = vmax.f32 %v8135, %v8136
    %v8138 = vmax.f32 %v8041, %v8042
    %v8139 = vrot.slane %v8138, 4
    %v8140 = vmax.f32 %v8138, %v8139
    %v8141 = vrot.slane %v8140, 2
    %v8142 = vmax.f32 %v8140, %v8141
    %v8143 = vrot.slane %v8142, 1
    %v8144 = vmax.f32 %v8142, %v8143
    %v8145 = vmax.f32 %v8043, %v8044
    %v8146 = vrot.slane %v8145, 4
    %v8147 = vmax.f32 %v8145, %v8146
    %v8148 = vrot.slane %v8147, 2
    %v8149 = vmax.f32 %v8147, %v8148
    %v8150 = vrot.slane %v8149, 1
    %v8151 = vmax.f32 %v8149, %v8150
    %v8152 = vmax.f32 %v8045, %v8046
    %v8153 = vrot.slane %v8152, 4
    %v8154 = vmax.f32 %v8152, %v8153
    %v8155 = vrot.slane %v8154, 2
    %v8156 = vmax.f32 %v8154, %v8155
    %v8157 = vrot.slane %v8156, 1
    %v8158 = vmax.f32 %v8156, %v8157
    %v8159 = vsub.f32 %v8015, %v8053
    %v8160 = vsub.f32 %v8016, %v8053
    %v8161 = vsub.f32 %v8017, %v8060
    %v8162 = vsub.f32 %v8018, %v8060
    %v8163 = vsub.f32 %v8019, %v8067
    %v8164 = vsub.f32 %v8020, %v8067
    %v8165 = vsub.f32 %v8021, %v8074
    %v8166 = vsub.f32 %v8022, %v8074
    %v8167 = vsub.f32 %v8023, %v8081
    %v8168 = vsub.f32 %v8024, %v8081
    %v8169 = vsub.f32 %v8025, %v8088
    %v8170 = vsub.f32 %v8026, %v8088
    %v8171 = vsub.f32 %v8027, %v8095
    %v8172 = vsub.f32 %v8028, %v8095
    %v8173 = vsub.f32 %v8029, %v8102
    %v8174 = vsub.f32 %v8030, %v8102
    %v8175 = vsub.f32 %v8031, %v8109
    %v8176 = vsub.f32 %v8032, %v8109
    %v8177 = vsub.f32 %v8033, %v8116
    %v8178 = vsub.f32 %v8034, %v8116
    %v8179 = vsub.f32 %v8035, %v8123
    %v8180 = vsub.f32 %v8036, %v8123
    %v8181 = vsub.f32 %v8037, %v8130
    %v8182 = vsub.f32 %v8038, %v8130
    %v8183 = vsub.f32 %v8039, %v8137
    %v8184 = vsub.f32 %v8040, %v8137
    %v8185 = vsub.f32 %v8041, %v8144
    %v8186 = vsub.f32 %v8042, %v8144
    %v8187 = vsub.f32 %v8043, %v8151
    %v8188 = vsub.f32 %v8044, %v8151
    %v8189 = vsub.f32 %v8045, %v8158
    %v8190 = vsub.f32 %v8046, %v8158
    %v8191 = vmul.f32 %v8159, 1.442695
    %v8192 = vpow.pop %v8191
    %v8193 = vmul.f32 %v8160, 1.442695
    %v8194 = vpow.pop %v8193
    %v8195 = vmul.f32 %v8161, 1.442695
    %v8196 = vpow.pop %v8195
    %v8197 = vmul.f32 %v8162, 1.442695
    %v8198 = vpow.pop %v8197
    %v8199 = vmul.f32 %v8163, 1.442695
    %v8200 = vpow.pop %v8199
    %v8201 = vmul.f32 %v8164, 1.442695
    %v8202 = vpow.pop %v8201
    %v8203 = vmul.f32 %v8165, 1.442695
    %v8204 = vpow.pop %v8203
    %v8205 = vmul.f32 %v8166, 1.442695
    %v8206 = vpow.pop %v8205
    %v8207 = vmul.f32 %v8167, 1.442695
    %v8208 = vpow.pop %v8207
    %v8209 = vmul.f32 %v8168, 1.442695
    %v8210 = vpow.pop %v8209
    %v8211 = vmul.f32 %v8169, 1.442695
    %v8212 = vpow.pop %v8211
    %v8213 = vmul.f32 %v8170, 1.442695
    %v8214 = vpow.pop %v8213
    %v8215 = vmul.f32 %v8171, 1.442695
    %v8216 = vpow.pop %v8215
    %v8217 = vmul.f32 %v8172, 1.442695
    %v8218 = vpow.pop %v8217
    %v8219 = vmul.f32 %v8173, 1.442695
    %v8220 = vpow.pop %v8219
    %v8221 = vmul.f32 %v8174, 1.442695
    %v8222 = vpow.pop %v8221
    %v8223 = vmul.f32 %v8175, 1.442695
    %v8224 = vpow.pop %v8223
    %v8225 = vmul.f32 %v8176, 1.442695
    %v8226 = vpow.pop %v8225
    %v8227 = vmul.f32 %v8177, 1.442695
    %v8228 = vpow.pop %v8227
    %v8229 = vmul.f32 %v8178, 1.442695
    %v8230 = vpow.pop %v8229
    %v8231 = vmul.f32 %v8179, 1.442695
    %v8232 = vpow.pop %v8231
    %v8233 = vmul.f32 %v8180, 1.442695
    %v8234 = vpow.pop %v8233
    %v8235 = vmul.f32 %v8181, 1.442695
    %v8236 = vpow.pop %v8235
    %v8237 = vmul.f32 %v8182, 1.442695
    %v8238 = vpow.pop %v8237
    %v8239 = vmul.f32 %v8183, 1.442695
    %v8240 = vpow.pop %v8239
    %v8241 = vmul.f32 %v8184, 1.442695
    %v8242 = vpow.pop %v8241
    %v8243 = vmul.f32 %v8185, 1.442695
    %v8244 = vpow.pop %v8243
    %v8245 = vmul.f32 %v8186, 1.442695
    %v8246 = vpow.pop %v8245
    %v8247 = vmul.f32 %v8187, 1.442695
    %v8248 = vpow.pop %v8247
    %v8249 = vmul.f32 %v8188, 1.442695
    %v8250 = vpow.pop %v8249
    %v8251 = vmul.f32 %v8189, 1.442695
    %v8252 = vpow.pop %v8251
    %v8253 = vmul.f32 %v8190, 1.442695
    %v8254 = vpow.pop %v8253
    %v8255 = vadd.f32 %v8192, %v8194
    %v8256 = vrot.slane %v8255, 4
    %v8257 = vadd.f32 %v8255, %v8256
    %v8258 = vrot.slane %v8257, 2
    %v8259 = vadd.f32 %v8257, %v8258
    %v8260 = vrot.slane %v8259, 1
    %v8261 = vadd.f32 %v8259, %v8260
    %v8262 = vadd.f32 %v8196, %v8198
    %v8263 = vrot.slane %v8262, 4
    %v8264 = vadd.f32 %v8262, %v8263
    %v8265 = vrot.slane %v8264, 2
    %v8266 = vadd.f32 %v8264, %v8265
    %v8267 = vrot.slane %v8266, 1
    %v8268 = vadd.f32 %v8266, %v8267
    %v8269 = vadd.f32 %v8200, %v8202
    %v8270 = vrot.slane %v8269, 4
    %v8271 = vadd.f32 %v8269, %v8270
    %v8272 = vrot.slane %v8271, 2
    %v8273 = vadd.f32 %v8271, %v8272
    %v8274 = vrot.slane %v8273, 1
    %v8275 = vadd.f32 %v8273, %v8274
    %v8276 = vadd.f32 %v8204, %v8206
    %v8277 = vrot.slane %v8276, 4
    %v8278 = vadd.f32 %v8276, %v8277
    %v8279 = vrot.slane %v8278, 2
    %v8280 = vadd.f32 %v8278, %v8279
    %v8281 = vrot.slane %v8280, 1
    %v8282 = vadd.f32 %v8280, %v8281
    %v8283 = vadd.f32 %v8208, %v8210
    %v8284 = vrot.slane %v8283, 4
    %v8285 = vadd.f32 %v8283, %v8284
    %v8286 = vrot.slane %v8285, 2
    %v8287 = vadd.f32 %v8285, %v8286
    %v8288 = vrot.slane %v8287, 1
    %v8289 = vadd.f32 %v8287, %v8288
    %v8290 = vadd.f32 %v8212, %v8214
    %v8291 = vrot.slane %v8290, 4
    %v8292 = vadd.f32 %v8290, %v8291
    %v8293 = vrot.slane %v8292, 2
    %v8294 = vadd.f32 %v8292, %v8293
    %v8295 = vrot.slane %v8294, 1
    %v8296 = vadd.f32 %v8294, %v8295
    %v8297 = vadd.f32 %v8216, %v8218
    %v8298 = vrot.slane %v8297, 4
    %v8299 = vadd.f32 %v8297, %v8298
    %v8300 = vrot.slane %v8299, 2
    %v8301 = vadd.f32 %v8299, %v8300
    %v8302 = vrot.slane %v8301, 1
    %v8303 = vadd.f32 %v8301, %v8302
    %v8304 = vadd.f32 %v8220, %v8222
    %v8305 = vrot.slane %v8304, 4
    %v8306 = vadd.f32 %v8304, %v8305
    %v8307 = vrot.slane %v8306, 2
    %v8308 = vadd.f32 %v8306, %v8307
    %v8309 = vrot.slane %v8308, 1
    %v8310 = vadd.f32 %v8308, %v8309
    %v8311 = vadd.f32 %v8224, %v8226
    %v8312 = vrot.slane %v8311, 4
    %v8313 = vadd.f32 %v8311, %v8312
    %v8314 = vrot.slane %v8313, 2
    %v8315 = vadd.f32 %v8313, %v8314
    %v8316 = vrot.slane %v8315, 1
    %v8317 = vadd.f32 %v8315, %v8316
    %v8318 = vadd.f32 %v8228, %v8230
    %v8319 = vrot.slane %v8318, 4
    %v8320 = vadd.f32 %v8318, %v8319
    %v8321 = vrot.slane %v8320, 2
    %v8322 = vadd.f32 %v8320, %v8321
    %v8323 = vrot.slane %v8322, 1
    %v8324 = vadd.f32 %v8322, %v8323
    %v8325 = vadd.f32 %v8232, %v8234
    %v8326 = vrot.slane %v8325, 4
    %v8327 = vadd.f32 %v8325, %v8326
    %v8328 = vrot.slane %v8327, 2
    %v8329 = vadd.f32 %v8327, %v8328
    %v8330 = vrot.slane %v8329, 1
    %v8331 = vadd.f32 %v8329, %v8330
    %v8332 = vadd.f32 %v8236, %v8238
    %v8333 = vrot.slane %v8332, 4
    %v8334 = vadd.f32 %v8332, %v8333
    %v8335 = vrot.slane %v8334, 2
    %v8336 = vadd.f32 %v8334, %v8335
    %v8337 = vrot.slane %v8336, 1
    %v8338 = vadd.f32 %v8336, %v8337
    %v8339 = vadd.f32 %v8240, %v8242
    %v8340 = vrot.slane %v8339, 4
    %v8341 = vadd.f32 %v8339, %v8340
    %v8342 = vrot.slane %v8341, 2
    %v8343 = vadd.f32 %v8341, %v8342
    %v8344 = vrot.slane %v8343, 1
    %v8345 = vadd.f32 %v8343, %v8344
    %v8346 = vadd.f32 %v8244, %v8246
    %v8347 = vrot.slane %v8346, 4
    %v8348 = vadd.f32 %v8346, %v8347
    %v8349 = vrot.slane %v8348, 2
    %v8350 = vadd.f32 %v8348, %v8349
    %v8351 = vrot.slane %v8350, 1
    %v8352 = vadd.f32 %v8350, %v8351
    %v8353 = vadd.f32 %v8248, %v8250
    %v8354 = vrot.slane %v8353, 4
    %v8355 = vadd.f32 %v8353, %v8354
    %v8356 = vrot.slane %v8355, 2
    %v8357 = vadd.f32 %v8355, %v8356
    %v8358 = vrot.slane %v8357, 1
    %v8359 = vadd.f32 %v8357, %v8358
    %v8360 = vadd.f32 %v8252, %v8254
    %v8361 = vrot.slane %v8360, 4
    %v8362 = vadd.f32 %v8360, %v8361
    %v8363 = vrot.slane %v8362, 2
    %v8364 = vadd.f32 %v8362, %v8363
    %v8365 = vrot.slane %v8364, 1
    %v8366 = vadd.f32 %v8364, %v8365
    %v8367 = vrcp.pop %v8261
    %v8368 = vrcp.pop %v8268
    %v8369 = vrcp.pop %v8275
    %v8370 = vrcp.pop %v8282
    %v8371 = vrcp.pop %v8289
    %v8372 = vrcp.pop %v8296
    %v8373 = vrcp.pop %v8303
    %v8374 = vrcp.pop %v8310
    %v8375 = vrcp.pop %v8317
    %v8376 = vrcp.pop %v8324
    %v8377 = vrcp.pop %v8331
    %v8378 = vrcp.pop %v8338
    %v8379 = vrcp.pop %v8345
    %v8380 = vrcp.pop %v8352
    %v8381 = vrcp.pop %v8359
    %v8382 = vrcp.pop %v8366
    %v8383 = vmul.f32 %v8192, %v8367
    %v8384 = vmul.f32 %v8194, %v8367
    %v8385 = vmul.f32 %v8196, %v8368
    %v8386 = vmul.f32 %v8198, %v8368
    %v8387 = vmul.f32 %v8200, %v8369
    %v8388 = vmul.f32 %v8202, %v8369
    %v8389 = vmul.f32 %v8204, %v8370
    %v8390 = vmul.f32 %v8206, %v8370
    %v8391 = vmul.f32 %v8208, %v8371
    %v8392 = vmul.f32 %v8210, %v8371
    %v8393 = vmul.f32 %v8212, %v8372
    %v8394 = vmul.f32 %v8214, %v8372
    %v8395 = vmul.f32 %v8216, %v8373
    %v8396 = vmul.f32 %v8218, %v8373
    %v8397 = vmul.f32 %v8220, %v8374
    %v8398 = vmul.f32 %v8222, %v8374
    %v8399 = vmul.f32 %v8224, %v8375
    %v8400 = vmul.f32 %v8226, %v8375
    %v8401 = vmul.f32 %v8228, %v8376
    %v8402 = vmul.f32 %v8230, %v8376
    %v8403 = vmul.f32 %v8232, %v8377
    %v8404 = vmul.f32 %v8234, %v8377
    %v8405 = vmul.f32 %v8236, %v8378
    %v8406 = vmul.f32 %v8238, %v8378
    %v8407 = vmul.f32 %v8240, %v8379
    %v8408 = vmul.f32 %v8242, %v8379
    %v8409 = vmul.f32 %v8244, %v8380
    %v8410 = vmul.f32 %v8246, %v8380
    %v8411 = vmul.f32 %v8248, %v8381
    %v8412 = vmul.f32 %v8250, %v8381
    %v8413 = vmul.f32 %v8252, %v8382
    %v8414 = vmul.f32 %v8254, %v8382
    %v8415 = vmul.f32 %v8383, %v96
    %v8416 = vmul.f32 %v8383, %v97
    %v8417 = vmul.f32 %v8383, %v98
    %v8418 = vmul.f32 %v8383, %v99
    %v8419 = vmul.f32 %v8383, %v100
    %v8420 = vmul.f32 %v8383, %v101
    %v8421 = vmul.f32 %v8383, %v102
    %v8422 = vmul.f32 %v8383, %v103
    %v8423 = vmul.f32 %v8384, %v104
    %v8424 = vmul.f32 %v8384, %v105
    %v8425 = vmul.f32 %v8384, %v106
    %v8426 = vmul.f32 %v8384, %v107
    %v8427 = vmul.f32 %v8384, %v108
    %v8428 = vmul.f32 %v8384, %v109
    %v8429 = vmul.f32 %v8384, %v110
    %v8430 = vmul.f32 %v8384, %v111
    %v8431 = vmul.f32 %v8385, %v112
    %v8432 = vmul.f32 %v8385, %v113
    %v8433 = vmul.f32 %v8385, %v114
    %v8434 = vmul.f32 %v8385, %v115
    %v8435 = vmul.f32 %v8385, %v116
    %v8436 = vmul.f32 %v8385, %v117
    %v8437 = vmul.f32 %v8385, %v118
    %v8438 = vmul.f32 %v8385, %v119
    %v8439 = vmul.f32 %v8386, %v120
    %v8440 = vmul.f32 %v8386, %v121
    %v8441 = vmul.f32 %v8386, %v122
    %v8442 = vmul.f32 %v8386, %v123
    %v8443 = vmul.f32 %v8386, %v124
    %v8444 = vmul.f32 %v8386, %v125
    %v8445 = vmul.f32 %v8386, %v126
    %v8446 = vmul.f32 %v8386, %v127
    %v8447 = vmul.f32 %v8387, %v128
    %v8448 = vmul.f32 %v8387, %v129
    %v8449 = vmul.f32 %v8387, %v130
    %v8450 = vmul.f32 %v8387, %v131
    %v8451 = vmul.f32 %v8387, %v132
    %v8452 = vmul.f32 %v8387, %v133
    %v8453 = vmul.f32 %v8387, %v134
    %v8454 = vmul.f32 %v8387, %v135
    %v8455 = vmul.f32 %v8388, %v136
    %v8456 = vmul.f32 %v8388, %v137
    %v8457 = vmul.f32 %v8388, %v138
    %v8458 = vmul.f32 %v8388, %v139
    %v8459 = vmul.f32 %v8388, %v140
    %v8460 = vmul.f32 %v8388, %v141
    %v8461 = vmul.f32 %v8388, %v142
    %v8462 = vmul.f32 %v8388, %v143
    %v8463 = vmul.f32 %v8389, %v144
    %v8464 = vmul.f32 %v8389, %v145
    %v8465 = vmul.f32 %v8389, %v146
    %v8466 = vmul.f32 %v8389, %v147
    %v8467 = vmul.f32 %v8389, %v148
    %v8468 = vmul.f32 %v8389, %v149
    %v8469 = vmul.f32 %v8389, %v150
    %v8470 = vmul.f32 %v8389, %v151
    %v8471 = vmul.f32 %v8390, %v152
    %v8472 = vmul.f32 %v8390, %v153
    %v8473 = vmul.f32 %v8390, %v154
    %v8474 = vmul.f32 %v8390, %v155
    %v8475 = vmul.f32 %v8390, %v156
    %v8476 = vmul.f32 %v8390, %v157
    %v8477 = vmul.f32 %v8390, %v158
    %v8478 = vmul.f32 %v8390, %v159
    %v8479 = vmul.f32 %v8391, %v160
    %v8480 = vmul.f32 %v8391, %v161
    %v8481 = vmul.f32 %v8391, %v162
    %v8482 = vmul.f32 %v8391, %v163
    %v8483 = vmul.f32 %v8391, %v164
    %v8484 = vmul.f32 %v8391, %v165
    %v8485 = vmul.f32 %v8391, %v166
    %v8486 = vmul.f32 %v8391, %v167
    %v8487 = vmul.f32 %v8392, %v168
    %v8488 = vmul.f32 %v8392, %v169
    %v8489 = vmul.f32 %v8392, %v170
    %v8490 = vmul.f32 %v8392, %v171
    %v8491 = vmul.f32 %v8392, %v172
    %v8492 = vmul.f32 %v8392, %v173
    %v8493 = vmul.f32 %v8392, %v174
    %v8494 = vmul.f32 %v8392, %v175
    %v8495 = vmul.f32 %v8393, %v176
    %v8496 = vmul.f32 %v8393, %v177
    %v8497 = vmul.f32 %v8393, %v178
    %v8498 = vmul.f32 %v8393, %v179
    %v8499 = vmul.f32 %v8393, %v180
    %v8500 = vmul.f32 %v8393, %v181
    %v8501 = vmul.f32 %v8393, %v182
    %v8502 = vmul.f32 %v8393, %v183
    %v8503 = vmul.f32 %v8394, %v184
    %v8504 = vmul.f32 %v8394, %v185
    %v8505 = vmul.f32 %v8394, %v186
    %v8506 = vmul.f32 %v8394, %v187
    %v8507 = vmul.f32 %v8394, %v188
    %v8508 = vmul.f32 %v8394, %v189
    %v8509 = vmul.f32 %v8394, %v190
    %v8510 = vmul.f32 %v8394, %v191
    %v8511 = vmul.f32 %v8395, %v192
    %v8512 = vmul.f32 %v8395, %v193
    %v8513 = vmul.f32 %v8395, %v194
    %v8514 = vmul.f32 %v8395, %v195
    %v8515 = vmul.f32 %v8395, %v196
    %v8516 = vmul.f32 %v8395, %v197
    %v8517 = vmul.f32 %v8395, %v198
    %v8518 = vmul.f32 %v8395, %v199
    %v8519 = vmul.f32 %v8396, %v200
    %v8520 = vmul.f32 %v8396, %v201
    %v8521 = vmul.f32 %v8396, %v202
    %v8522 = vmul.f32 %v8396, %v203
    %v8523 = vmul.f32 %v8396, %v204
    %v8524 = vmul.f32 %v8396, %v205
    %v8525 = vmul.f32 %v8396, %v206
    %v8526 = vmul.f32 %v8396, %v207
    %v8527 = vmul.f32 %v8397, %v208
    %v8528 = vmul.f32 %v8397, %v209
    %v8529 = vmul.f32 %v8397, %v210
    %v8530 = vmul.f32 %v8397, %v211
    %v8531 = vmul.f32 %v8397, %v212
    %v8532 = vmul.f32 %v8397, %v213
    %v8533 = vmul.f32 %v8397, %v214
    %v8534 = vmul.f32 %v8397, %v215
    %v8535 = vmul.f32 %v8398, %v216
    %v8536 = vmul.f32 %v8398, %v217
    %v8537 = vmul.f32 %v8398, %v218
    %v8538 = vmul.f32 %v8398, %v219
    %v8539 = vmul.f32 %v8398, %v220
    %v8540 = vmul.f32 %v8398, %v221
    %v8541 = vmul.f32 %v8398, %v222
    %v8542 = vmul.f32 %v8398, %v223
    %v8543 = vmul.f32 %v8399, %v224
    %v8544 = vmul.f32 %v8399, %v225
    %v8545 = vmul.f32 %v8399, %v226
    %v8546 = vmul.f32 %v8399, %v227
    %v8547 = vmul.f32 %v8399, %v228
    %v8548 = vmul.f32 %v8399, %v229
    %v8549 = vmul.f32 %v8399, %v230
    %v8550 = vmul.f32 %v8399, %v231
    %v8551 = vmul.f32 %v8400, %v232
    %v8552 = vmul.f32 %v8400, %v233
    %v8553 = vmul.f32 %v8400, %v234
    %v8554 = vmul.f32 %v8400, %v235
    %v8555 = vmul.f32 %v8400, %v236
    %v8556 = vmul.f32 %v8400, %v237
    %v8557 = vmul.f32 %v8400, %v238
    %v8558 = vmul.f32 %v8400, %v239
    %v8559 = vmul.f32 %v8401, %v240
    %v8560 = vmul.f32 %v8401, %v241
    %v8561 = vmul.f32 %v8401, %v242
    %v8562 = vmul.f32 %v8401, %v243
    %v8563 = vmul.f32 %v8401, %v244
    %v8564 = vmul.f32 %v8401, %v245
    %v8565 = vmul.f32 %v8401, %v246
    %v8566 = vmul.f32 %v8401, %v247
    %v8567 = vmul.f32 %v8402, %v248
    %v8568 = vmul.f32 %v8402, %v249
    %v8569 = vmul.f32 %v8402, %v250
    %v8570 = vmul.f32 %v8402, %v251
    %v8571 = vmul.f32 %v8402, %v252
    %v8572 = vmul.f32 %v8402, %v253
    %v8573 = vmul.f32 %v8402, %v254
    %v8574 = vmul.f32 %v8402, %v255
    %v8575 = vmul.f32 %v8403, %v256
    %v8576 = vmul.f32 %v8403, %v257
    %v8577 = vmul.f32 %v8403, %v258
    %v8578 = vmul.f32 %v8403, %v259
    %v8579 = vmul.f32 %v8403, %v260
    %v8580 = vmul.f32 %v8403, %v261
    %v8581 = vmul.f32 %v8403, %v262
    %v8582 = vmul.f32 %v8403, %v263
    %v8583 = vmul.f32 %v8404, %v264
    %v8584 = vmul.f32 %v8404, %v265
    %v8585 = vmul.f32 %v8404, %v266
    %v8586 = vmul.f32 %v8404, %v267
    %v8587 = vmul.f32 %v8404, %v268
    %v8588 = vmul.f32 %v8404, %v269
    %v8589 = vmul.f32 %v8404, %v270
    %v8590 = vmul.f32 %v8404, %v271
    %v8591 = vmul.f32 %v8405, %v272
    %v8592 = vmul.f32 %v8405, %v273
    %v8593 = vmul.f32 %v8405, %v274
    %v8594 = vmul.f32 %v8405, %v275
    %v8595 = vmul.f32 %v8405, %v276
    %v8596 = vmul.f32 %v8405, %v277
    %v8597 = vmul.f32 %v8405, %v278
    %v8598 = vmul.f32 %v8405, %v279
    %v8599 = vmul.f32 %v8406, %v280
    %v8600 = vmul.f32 %v8406, %v281
    %v8601 = vmul.f32 %v8406, %v282
    %v8602 = vmul.f32 %v8406, %v283
    %v8603 = vmul.f32 %v8406, %v284
    %v8604 = vmul.f32 %v8406, %v285
    %v8605 = vmul.f32 %v8406, %v286
    %v8606 = vmul.f32 %v8406, %v287
    %v8607 = vmul.f32 %v8407, %v288
    %v8608 = vmul.f32 %v8407, %v289
    %v8609 = vmul.f32 %v8407, %v290
    %v8610 = vmul.f32 %v8407, %v291
    %v8611 = vmul.f32 %v8407, %v292
    %v8612 = vmul.f32 %v8407, %v293
    %v8613 = vmul.f32 %v8407, %v294
    %v8614 = vmul.f32 %v8407, %v295
    %v8615 = vmul.f32 %v8408, %v296
    %v8616 = vmul.f32 %v8408, %v297
    %v8617 = vmul.f32 %v8408, %v298
    %v8618 = vmul.f32 %v8408, %v299
    %v8619 = vmul.f32 %v8408, %v300
    %v8620 = vmul.f32 %v8408, %v301
    %v8621 = vmul.f32 %v8408, %v302
    %v8622 = vmul.f32 %v8408, %v303
    %v8623 = vmul.f32 %v8409, %v304
    %v8624 = vmul.f32 %v8409, %v305
    %v8625 = vmul.f32 %v8409, %v306
    %v8626 = vmul.f32 %v8409, %v307
    %v8627 = vmul.f32 %v8409, %v308
    %v8628 = vmul.f32 %v8409, %v309
    %v8629 = vmul.f32 %v8409, %v310
    %v8630 = vmul.f32 %v8409, %v311
    %v8631 = vmul.f32 %v8410, %v312
    %v8632 = vmul.f32 %v8410, %v313
    %v8633 = vmul.f32 %v8410, %v314
    %v8634 = vmul.f32 %v8410, %v315
    %v8635 = vmul.f32 %v8410, %v316
    %v8636 = vmul.f32 %v8410, %v317
    %v8637 = vmul.f32 %v8410, %v318
    %v8638 = vmul.f32 %v8410, %v319
    %v8639 = vmul.f32 %v8411, %v320
    %v8640 = vmul.f32 %v8411, %v321
    %v8641 = vmul.f32 %v8411, %v322
    %v8642 = vmul.f32 %v8411, %v323
    %v8643 = vmul.f32 %v8411, %v324
    %v8644 = vmul.f32 %v8411, %v325
    %v8645 = vmul.f32 %v8411, %v326
    %v8646 = vmul.f32 %v8411, %v327
    %v8647 = vmul.f32 %v8412, %v328
    %v8648 = vmul.f32 %v8412, %v329
    %v8649 = vmul.f32 %v8412, %v330
    %v8650 = vmul.f32 %v8412, %v331
    %v8651 = vmul.f32 %v8412, %v332
    %v8652 = vmul.f32 %v8412, %v333
    %v8653 = vmul.f32 %v8412, %v334
    %v8654 = vmul.f32 %v8412, %v335
    %v8655 = vmul.f32 %v8413, %v336
    %v8656 = vmul.f32 %v8413, %v337
    %v8657 = vmul.f32 %v8413, %v338
    %v8658 = vmul.f32 %v8413, %v339
    %v8659 = vmul.f32 %v8413, %v340
    %v8660 = vmul.f32 %v8413, %v341
    %v8661 = vmul.f32 %v8413, %v342
    %v8662 = vmul.f32 %v8413, %v343
    %v8663 = vmul.f32 %v8414, %v344
    %v8664 = vmul.f32 %v8414, %v345
    %v8665 = vmul.f32 %v8414, %v346
    %v8666 = vmul.f32 %v8414, %v347
    %v8667 = vmul.f32 %v8414, %v348
    %v8668 = vmul.f32 %v8414, %v349
    %v8669 = vmul.f32 %v8414, %v350
    %v8670 = vmul.f32 %v8414, %v351
    %v8671 = vadd.f32 %v8415, %v8423
    %v8672 = vrot.slane %v8671, 4
    %v8673 = vadd.f32 %v8671, %v8672
    %v8674 = vrot.slane %v8673, 2
    %v8675 = vadd.f32 %v8673, %v8674
    %v8676 = vrot.slane %v8675, 1
    %v8677 = vadd.f32 %v8675, %v8676
    %v8678 = vadd.f32 %v8416, %v8424
    %v8679 = vrot.slane %v8678, 4
    %v8680 = vadd.f32 %v8678, %v8679
    %v8681 = vrot.slane %v8680, 2
    %v8682 = vadd.f32 %v8680, %v8681
    %v8683 = vrot.slane %v8682, 1
    %v8684 = vadd.f32 %v8682, %v8683
    %v8685 = vadd.f32 %v8417, %v8425
    %v8686 = vrot.slane %v8685, 4
    %v8687 = vadd.f32 %v8685, %v8686
    %v8688 = vrot.slane %v8687, 2
    %v8689 = vadd.f32 %v8687, %v8688
    %v8690 = vrot.slane %v8689, 1
    %v8691 = vadd.f32 %v8689, %v8690
    %v8692 = vadd.f32 %v8418, %v8426
    %v8693 = vrot.slane %v8692, 4
    %v8694 = vadd.f32 %v8692, %v8693
    %v8695 = vrot.slane %v8694, 2
    %v8696 = vadd.f32 %v8694, %v8695
    %v8697 = vrot.slane %v8696, 1
    %v8698 = vadd.f32 %v8696, %v8697
    %v8699 = vadd.f32 %v8419, %v8427
    %v8700 = vrot.slane %v8699, 4
    %v8701 = vadd.f32 %v8699, %v8700
    %v8702 = vrot.slane %v8701, 2
    %v8703 = vadd.f32 %v8701, %v8702
    %v8704 = vrot.slane %v8703, 1
    %v8705 = vadd.f32 %v8703, %v8704
    %v8706 = vadd.f32 %v8420, %v8428
    %v8707 = vrot.slane %v8706, 4
    %v8708 = vadd.f32 %v8706, %v8707
    %v8709 = vrot.slane %v8708, 2
    %v8710 = vadd.f32 %v8708, %v8709
    %v8711 = vrot.slane %v8710, 1
    %v8712 = vadd.f32 %v8710, %v8711
    %v8713 = vadd.f32 %v8421, %v8429
    %v8714 = vrot.slane %v8713, 4
    %v8715 = vadd.f32 %v8713, %v8714
    %v8716 = vrot.slane %v8715, 2
    %v8717 = vadd.f32 %v8715, %v8716
    %v8718 = vrot.slane %v8717, 1
    %v8719 = vadd.f32 %v8717, %v8718
    %v8720 = vadd.f32 %v8422, %v8430
    %v8721 = vrot.slane %v8720, 4
    %v8722 = vadd.f32 %v8720, %v8721
    %v8723 = vrot.slane %v8722, 2
    %v8724 = vadd.f32 %v8722, %v8723
    %v8725 = vrot.slane %v8724, 1
    %v8726 = vadd.f32 %v8724, %v8725
    %v8727 = vadd.f32 %v8431, %v8439
    %v8728 = vrot.slane %v8727, 4
    %v8729 = vadd.f32 %v8727, %v8728
    %v8730 = vrot.slane %v8729, 2
    %v8731 = vadd.f32 %v8729, %v8730
    %v8732 = vrot.slane %v8731, 1
    %v8733 = vadd.f32 %v8731, %v8732
    %v8734 = vadd.f32 %v8432, %v8440
    %v8735 = vrot.slane %v8734, 4
    %v8736 = vadd.f32 %v8734, %v8735
    %v8737 = vrot.slane %v8736, 2
    %v8738 = vadd.f32 %v8736, %v8737
    %v8739 = vrot.slane %v8738, 1
    %v8740 = vadd.f32 %v8738, %v8739
    %v8741 = vadd.f32 %v8433, %v8441
    %v8742 = vrot.slane %v8741, 4
    %v8743 = vadd.f32 %v8741, %v8742
    %v8744 = vrot.slane %v8743, 2
    %v8745 = vadd.f32 %v8743, %v8744
    %v8746 = vrot.slane %v8745, 1
    %v8747 = vadd.f32 %v8745, %v8746
    %v8748 = vadd.f32 %v8434, %v8442
    %v8749 = vrot.slane %v8748, 4
    %v8750 = vadd.f32 %v8748, %v8749
    %v8751 = vrot.slane %v8750, 2
    %v8752 = vadd.f32 %v8750, %v8751
    %v8753 = vrot.slane %v8752, 1
    %v8754 = vadd.f32 %v8752, %v8753
    %v8755 = vadd.f32 %v8435, %v8443
    %v8756 = vrot.slane %v8755, 4
    %v8757 = vadd.f32 %v8755, %v8756
    %v8758 = vrot.slane %v8757, 2
    %v8759 = vadd.f32 %v8757, %v8758
    %v8760 = vrot.slane %v8759, 1
    %v8761 = vadd.f32 %v8759, %v8760
    %v8762 = vadd.f32 %v8436, %v8444
    %v8763 = vrot.slane %v8762, 4
    %v8764 = vadd.f32 %v8762, %v8763
    %v8765 = vrot.slane %v8764, 2
    %v8766 = vadd.f32 %v8764, %v8765
    %v8767 = vrot.slane %v8766, 1
    %v8768 = vadd.f32 %v8766, %v8767
    %v8769 = vadd.f32 %v8437, %v8445
    %v8770 = vrot.slane %v8769, 4
    %v8771 = vadd.f32 %v8769, %v8770
    %v8772 = vrot.slane %v8771, 2
    %v8773 = vadd.f32 %v8771, %v8772
    %v8774 = vrot.slane %v8773, 1
    %v8775 = vadd.f32 %v8773, %v8774
    %v8776 = vadd.f32 %v8438, %v8446
    %v8777 = vrot.slane %v8776, 4
    %v8778 = vadd.f32 %v8776, %v8777
    %v8779 = vrot.slane %v8778, 2
    %v8780 = vadd.f32 %v8778, %v8779
    %v8781 = vrot.slane %v8780, 1
    %v8782 = vadd.f32 %v8780, %v8781
    %v8783 = vadd.f32 %v8447, %v8455
    %v8784 = vrot.slane %v8783, 4
    %v8785 = vadd.f32 %v8783, %v8784
    %v8786 = vrot.slane %v8785, 2
    %v8787 = vadd.f32 %v8785, %v8786
    %v8788 = vrot.slane %v8787, 1
    %v8789 = vadd.f32 %v8787, %v8788
    %v8790 = vadd.f32 %v8448, %v8456
    %v8791 = vrot.slane %v8790, 4
    %v8792 = vadd.f32 %v8790, %v8791
    %v8793 = vrot.slane %v8792, 2
    %v8794 = vadd.f32 %v8792, %v8793
    %v8795 = vrot.slane %v8794, 1
    %v8796 = vadd.f32 %v8794, %v8795
    %v8797 = vadd.f32 %v8449, %v8457
    %v8798 = vrot.slane %v8797, 4
    %v8799 = vadd.f32 %v8797, %v8798
    %v8800 = vrot.slane %v8799, 2
    %v8801 = vadd.f32 %v8799, %v8800
    %v8802 = vrot.slane %v8801, 1
    %v8803 = vadd.f32 %v8801, %v8802
    %v8804 = vadd.f32 %v8450, %v8458
    %v8805 = vrot.slane %v8804, 4
    %v8806 = vadd.f32 %v8804, %v8805
    %v8807 = vrot.slane %v8806, 2
    %v8808 = vadd.f32 %v8806, %v8807
    %v8809 = vrot.slane %v8808, 1
    %v8810 = vadd.f32 %v8808, %v8809
    %v8811 = vadd.f32 %v8451, %v8459
    %v8812 = vrot.slane %v8811, 4
    %v8813 = vadd.f32 %v8811, %v8812
    %v8814 = vrot.slane %v8813, 2
    %v8815 = vadd.f32 %v8813, %v8814
    %v8816 = vrot.slane %v8815, 1
    %v8817 = vadd.f32 %v8815, %v8816
    %v8818 = vadd.f32 %v8452, %v8460
    %v8819 = vrot.slane %v8818, 4
    %v8820 = vadd.f32 %v8818, %v8819
    %v8821 = vrot.slane %v8820, 2
    %v8822 = vadd.f32 %v8820, %v8821
    %v8823 = vrot.slane %v8822, 1
    %v8824 = vadd.f32 %v8822, %v8823
    %v8825 = vadd.f32 %v8453, %v8461
    %v8826 = vrot.slane %v8825, 4
    %v8827 = vadd.f32 %v8825, %v8826
    %v8828 = vrot.slane %v8827, 2
    %v8829 = vadd.f32 %v8827, %v8828
    %v8830 = vrot.slane %v8829, 1
    %v8831 = vadd.f32 %v8829, %v8830
    %v8832 = vadd.f32 %v8454, %v8462
    %v8833 = vrot.slane %v8832, 4
    %v8834 = vadd.f32 %v8832, %v8833
    %v8835 = vrot.slane %v8834, 2
    %v8836 = vadd.f32 %v8834, %v8835
    %v8837 = vrot.slane %v8836, 1
    %v8838 = vadd.f32 %v8836, %v8837
    %v8839 = vadd.f32 %v8463, %v8471
    %v8840 = vrot.slane %v8839, 4
    %v8841 = vadd.f32 %v8839, %v8840
    %v8842 = vrot.slane %v8841, 2
    %v8843 = vadd.f32 %v8841, %v8842
    %v8844 = vrot.slane %v8843, 1
    %v8845 = vadd.f32 %v8843, %v8844
    %v8846 = vadd.f32 %v8464, %v8472
    %v8847 = vrot.slane %v8846, 4
    %v8848 = vadd.f32 %v8846, %v8847
    %v8849 = vrot.slane %v8848, 2
    %v8850 = vadd.f32 %v8848, %v8849
    %v8851 = vrot.slane %v8850, 1
    %v8852 = vadd.f32 %v8850, %v8851
    %v8853 = vadd.f32 %v8465, %v8473
    %v8854 = vrot.slane %v8853, 4
    %v8855 = vadd.f32 %v8853, %v8854
    %v8856 = vrot.slane %v8855, 2
    %v8857 = vadd.f32 %v8855, %v8856
    %v8858 = vrot.slane %v8857, 1
    %v8859 = vadd.f32 %v8857, %v8858
    %v8860 = vadd.f32 %v8466, %v8474
    %v8861 = vrot.slane %v8860, 4
    %v8862 = vadd.f32 %v8860, %v8861
    %v8863 = vrot.slane %v8862, 2
    %v8864 = vadd.f32 %v8862, %v8863
    %v8865 = vrot.slane %v8864, 1
    %v8866 = vadd.f32 %v8864, %v8865
    %v8867 = vadd.f32 %v8467, %v8475
    %v8868 = vrot.slane %v8867, 4
    %v8869 = vadd.f32 %v8867, %v8868
    %v8870 = vrot.slane %v8869, 2
    %v8871 = vadd.f32 %v8869, %v8870
    %v8872 = vrot.slane %v8871, 1
    %v8873 = vadd.f32 %v8871, %v8872
    %v8874 = vadd.f32 %v8468, %v8476
    %v8875 = vrot.slane %v8874, 4
    %v8876 = vadd.f32 %v8874, %v8875
    %v8877 = vrot.slane %v8876, 2
    %v8878 = vadd.f32 %v8876, %v8877
    %v8879 = vrot.slane %v8878, 1
    %v8880 = vadd.f32 %v8878, %v8879
    %v8881 = vadd.f32 %v8469, %v8477
    %v8882 = vrot.slane %v8881, 4
    %v8883 = vadd.f32 %v8881, %v8882
    %v8884 = vrot.slane %v8883, 2
    %v8885 = vadd.f32 %v8883, %v8884
    %v8886 = vrot.slane %v8885, 1
    %v8887 = vadd.f32 %v8885, %v8886
    %v8888 = vadd.f32 %v8470, %v8478
    %v8889 = vrot.slane %v8888, 4
    %v8890 = vadd.f32 %v8888, %v8889
    %v8891 = vrot.slane %v8890, 2
    %v8892 = vadd.f32 %v8890, %v8891
    %v8893 = vrot.slane %v8892, 1
    %v8894 = vadd.f32 %v8892, %v8893
    %v8895 = vadd.f32 %v8479, %v8487
    %v8896 = vrot.slane %v8895, 4
    %v8897 = vadd.f32 %v8895, %v8896
    %v8898 = vrot.slane %v8897, 2
    %v8899 = vadd.f32 %v8897, %v8898
    %v8900 = vrot.slane %v8899, 1
    %v8901 = vadd.f32 %v8899, %v8900
    %v8902 = vadd.f32 %v8480, %v8488
    %v8903 = vrot.slane %v8902, 4
    %v8904 = vadd.f32 %v8902, %v8903
    %v8905 = vrot.slane %v8904, 2
    %v8906 = vadd.f32 %v8904, %v8905
    %v8907 = vrot.slane %v8906, 1
    %v8908 = vadd.f32 %v8906, %v8907
    %v8909 = vadd.f32 %v8481, %v8489
    %v8910 = vrot.slane %v8909, 4
    %v8911 = vadd.f32 %v8909, %v8910
    %v8912 = vrot.slane %v8911, 2
    %v8913 = vadd.f32 %v8911, %v8912
    %v8914 = vrot.slane %v8913, 1
    %v8915 = vadd.f32 %v8913, %v8914
    %v8916 = vadd.f32 %v8482, %v8490
    %v8917 = vrot.slane %v8916, 4
    %v8918 = vadd.f32 %v8916, %v8917
    %v8919 = vrot.slane %v8918, 2
    %v8920 = vadd.f32 %v8918, %v8919
    %v8921 = vrot.slane %v8920, 1
    %v8922 = vadd.f32 %v8920, %v8921
    %v8923 = vadd.f32 %v8483, %v8491
    %v8924 = vrot.slane %v8923, 4
    %v8925 = vadd.f32 %v8923, %v8924
    %v8926 = vrot.slane %v8925, 2
    %v8927 = vadd.f32 %v8925, %v8926
    %v8928 = vrot.slane %v8927, 1
    %v8929 = vadd.f32 %v8927, %v8928
    %v8930 = vadd.f32 %v8484, %v8492
    %v8931 = vrot.slane %v8930, 4
    %v8932 = vadd.f32 %v8930, %v8931
    %v8933 = vrot.slane %v8932, 2
    %v8934 = vadd.f32 %v8932, %v8933
    %v8935 = vrot.slane %v8934, 1
    %v8936 = vadd.f32 %v8934, %v8935
    %v8937 = vadd.f32 %v8485, %v8493
    %v8938 = vrot.slane %v8937, 4
    %v8939 = vadd.f32 %v8937, %v8938
    %v8940 = vrot.slane %v8939, 2
    %v8941 = vadd.f32 %v8939, %v8940
    %v8942 = vrot.slane %v8941, 1
    %v8943 = vadd.f32 %v8941, %v8942
    %v8944 = vadd.f32 %v8486, %v8494
    %v8945 = vrot.slane %v8944, 4
    %v8946 = vadd.f32 %v8944, %v8945
    %v8947 = vrot.slane %v8946, 2
    %v8948 = vadd.f32 %v8946, %v8947
    %v8949 = vrot.slane %v8948, 1
    %v8950 = vadd.f32 %v8948, %v8949
    %v8951 = vadd.f32 %v8495, %v8503
    %v8952 = vrot.slane %v8951, 4
    %v8953 = vadd.f32 %v8951, %v8952
    %v8954 = vrot.slane %v8953, 2
    %v8955 = vadd.f32 %v8953, %v8954
    %v8956 = vrot.slane %v8955, 1
    %v8957 = vadd.f32 %v8955, %v8956
    %v8958 = vadd.f32 %v8496, %v8504
    %v8959 = vrot.slane %v8958, 4
    %v8960 = vadd.f32 %v8958, %v8959
    %v8961 = vrot.slane %v8960, 2
    %v8962 = vadd.f32 %v8960, %v8961
    %v8963 = vrot.slane %v8962, 1
    %v8964 = vadd.f32 %v8962, %v8963
    %v8965 = vadd.f32 %v8497, %v8505
    %v8966 = vrot.slane %v8965, 4
    %v8967 = vadd.f32 %v8965, %v8966
    %v8968 = vrot.slane %v8967, 2
    %v8969 = vadd.f32 %v8967, %v8968
    %v8970 = vrot.slane %v8969, 1
    %v8971 = vadd.f32 %v8969, %v8970
    %v8972 = vadd.f32 %v8498, %v8506
    %v8973 = vrot.slane %v8972, 4
    %v8974 = vadd.f32 %v8972, %v8973
    %v8975 = vrot.slane %v8974, 2
    %v8976 = vadd.f32 %v8974, %v8975
    %v8977 = vrot.slane %v8976, 1
    %v8978 = vadd.f32 %v8976, %v8977
    %v8979 = vadd.f32 %v8499, %v8507
    %v8980 = vrot.slane %v8979, 4
    %v8981 = vadd.f32 %v8979, %v8980
    %v8982 = vrot.slane %v8981, 2
    %v8983 = vadd.f32 %v8981, %v8982
    %v8984 = vrot.slane %v8983, 1
    %v8985 = vadd.f32 %v8983, %v8984
    %v8986 = vadd.f32 %v8500, %v8508
    %v8987 = vrot.slane %v8986, 4
    %v8988 = vadd.f32 %v8986, %v8987
    %v8989 = vrot.slane %v8988, 2
    %v8990 = vadd.f32 %v8988, %v8989
    %v8991 = vrot.slane %v8990, 1
    %v8992 = vadd.f32 %v8990, %v8991
    %v8993 = vadd.f32 %v8501, %v8509
    %v8994 = vrot.slane %v8993, 4
    %v8995 = vadd.f32 %v8993, %v8994
    %v8996 = vrot.slane %v8995, 2
    %v8997 = vadd.f32 %v8995, %v8996
    %v8998 = vrot.slane %v8997, 1
    %v8999 = vadd.f32 %v8997, %v8998
    %v9000 = vadd.f32 %v8502, %v8510
    %v9001 = vrot.slane %v9000, 4
    %v9002 = vadd.f32 %v9000, %v9001
    %v9003 = vrot.slane %v9002, 2
    %v9004 = vadd.f32 %v9002, %v9003
    %v9005 = vrot.slane %v9004, 1
    %v9006 = vadd.f32 %v9004, %v9005
    %v9007 = vadd.f32 %v8511, %v8519
    %v9008 = vrot.slane %v9007, 4
    %v9009 = vadd.f32 %v9007, %v9008
    %v9010 = vrot.slane %v9009, 2
    %v9011 = vadd.f32 %v9009, %v9010
    %v9012 = vrot.slane %v9011, 1
    %v9013 = vadd.f32 %v9011, %v9012
    %v9014 = vadd.f32 %v8512, %v8520
    %v9015 = vrot.slane %v9014, 4
    %v9016 = vadd.f32 %v9014, %v9015
    %v9017 = vrot.slane %v9016, 2
    %v9018 = vadd.f32 %v9016, %v9017
    %v9019 = vrot.slane %v9018, 1
    %v9020 = vadd.f32 %v9018, %v9019
    %v9021 = vadd.f32 %v8513, %v8521
    %v9022 = vrot.slane %v9021, 4
    %v9023 = vadd.f32 %v9021, %v9022
    %v9024 = vrot.slane %v9023, 2
    %v9025 = vadd.f32 %v9023, %v9024
    %v9026 = vrot.slane %v9025, 1
    %v9027 = vadd.f32 %v9025, %v9026
    %v9028 = vadd.f32 %v8514, %v8522
    %v9029 = vrot.slane %v9028, 4
    %v9030 = vadd.f32 %v9028, %v9029
    %v9031 = vrot.slane %v9030, 2
    %v9032 = vadd.f32 %v9030, %v9031
    %v9033 = vrot.slane %v9032, 1
    %v9034 = vadd.f32 %v9032, %v9033
    %v9035 = vadd.f32 %v8515, %v8523
    %v9036 = vrot.slane %v9035, 4
    %v9037 = vadd.f32 %v9035, %v9036
    %v9038 = vrot.slane %v9037, 2
    %v9039 = vadd.f32 %v9037, %v9038
    %v9040 = vrot.slane %v9039, 1
    %v9041 = vadd.f32 %v9039, %v9040
    %v9042 = vadd.f32 %v8516, %v8524
    %v9043 = vrot.slane %v9042, 4
    %v9044 = vadd.f32 %v9042, %v9043
    %v9045 = vrot.slane %v9044, 2
    %v9046 = vadd.f32 %v9044, %v9045
    %v9047 = vrot.slane %v9046, 1
    %v9048 = vadd.f32 %v9046, %v9047
    %v9049 = vadd.f32 %v8517, %v8525
    %v9050 = vrot.slane %v9049, 4
    %v9051 = vadd.f32 %v9049, %v9050
    %v9052 = vrot.slane %v9051, 2
    %v9053 = vadd.f32 %v9051, %v9052
    %v9054 = vrot.slane %v9053, 1
    %v9055 = vadd.f32 %v9053, %v9054
    %v9056 = vadd.f32 %v8518, %v8526
    %v9057 = vrot.slane %v9056, 4
    %v9058 = vadd.f32 %v9056, %v9057
    %v9059 = vrot.slane %v9058, 2
    %v9060 = vadd.f32 %v9058, %v9059
    %v9061 = vrot.slane %v9060, 1
    %v9062 = vadd.f32 %v9060, %v9061
    %v9063 = vadd.f32 %v8527, %v8535
    %v9064 = vrot.slane %v9063, 4
    %v9065 = vadd.f32 %v9063, %v9064
    %v9066 = vrot.slane %v9065, 2
    %v9067 = vadd.f32 %v9065, %v9066
    %v9068 = vrot.slane %v9067, 1
    %v9069 = vadd.f32 %v9067, %v9068
    %v9070 = vadd.f32 %v8528, %v8536
    %v9071 = vrot.slane %v9070, 4
    %v9072 = vadd.f32 %v9070, %v9071
    %v9073 = vrot.slane %v9072, 2
    %v9074 = vadd.f32 %v9072, %v9073
    %v9075 = vrot.slane %v9074, 1
    %v9076 = vadd.f32 %v9074, %v9075
    %v9077 = vadd.f32 %v8529, %v8537
    %v9078 = vrot.slane %v9077, 4
    %v9079 = vadd.f32 %v9077, %v9078
    %v9080 = vrot.slane %v9079, 2
    %v9081 = vadd.f32 %v9079, %v9080
    %v9082 = vrot.slane %v9081, 1
    %v9083 = vadd.f32 %v9081, %v9082
    %v9084 = vadd.f32 %v8530, %v8538
    %v9085 = vrot.slane %v9084, 4
    %v9086 = vadd.f32 %v9084, %v9085
    %v9087 = vrot.slane %v9086, 2
    %v9088 = vadd.f32 %v9086, %v9087
    %v9089 = vrot.slane %v9088, 1
    %v9090 = vadd.f32 %v9088, %v9089
    %v9091 = vadd.f32 %v8531, %v8539
    %v9092 = vrot.slane %v9091, 4
    %v9093 = vadd.f32 %v9091, %v9092
    %v9094 = vrot.slane %v9093, 2
    %v9095 = vadd.f32 %v9093, %v9094
    %v9096 = vrot.slane %v9095, 1
    %v9097 = vadd.f32 %v9095, %v9096
    %v9098 = vadd.f32 %v8532, %v8540
    %v9099 = vrot.slane %v9098, 4
    %v9100 = vadd.f32 %v9098, %v9099
    %v9101 = vrot.slane %v9100, 2
    %v9102 = vadd.f32 %v9100, %v9101
    %v9103 = vrot.slane %v9102, 1
    %v9104 = vadd.f32 %v9102, %v9103
    %v9105 = vadd.f32 %v8533, %v8541
    %v9106 = vrot.slane %v9105, 4
    %v9107 = vadd.f32 %v9105, %v9106
    %v9108 = vrot.slane %v9107, 2
    %v9109 = vadd.f32 %v9107, %v9108
    %v9110 = vrot.slane %v9109, 1
    %v9111 = vadd.f32 %v9109, %v9110
    %v9112 = vadd.f32 %v8534, %v8542
    %v9113 = vrot.slane %v9112, 4
    %v9114 = vadd.f32 %v9112, %v9113
    %v9115 = vrot.slane %v9114, 2
    %v9116 = vadd.f32 %v9114, %v9115
    %v9117 = vrot.slane %v9116, 1
    %v9118 = vadd.f32 %v9116, %v9117
    %v9119 = vadd.f32 %v8543, %v8551
    %v9120 = vrot.slane %v9119, 4
    %v9121 = vadd.f32 %v9119, %v9120
    %v9122 = vrot.slane %v9121, 2
    %v9123 = vadd.f32 %v9121, %v9122
    %v9124 = vrot.slane %v9123, 1
    %v9125 = vadd.f32 %v9123, %v9124
    %v9126 = vadd.f32 %v8544, %v8552
    %v9127 = vrot.slane %v9126, 4
    %v9128 = vadd.f32 %v9126, %v9127
    %v9129 = vrot.slane %v9128, 2
    %v9130 = vadd.f32 %v9128, %v9129
    %v9131 = vrot.slane %v9130, 1
    %v9132 = vadd.f32 %v9130, %v9131
    %v9133 = vadd.f32 %v8545, %v8553
    %v9134 = vrot.slane %v9133, 4
    %v9135 = vadd.f32 %v9133, %v9134
    %v9136 = vrot.slane %v9135, 2
    %v9137 = vadd.f32 %v9135, %v9136
    %v9138 = vrot.slane %v9137, 1
    %v9139 = vadd.f32 %v9137, %v9138
    %v9140 = vadd.f32 %v8546, %v8554
    %v9141 = vrot.slane %v9140, 4
    %v9142 = vadd.f32 %v9140, %v9141
    %v9143 = vrot.slane %v9142, 2
    %v9144 = vadd.f32 %v9142, %v9143
    %v9145 = vrot.slane %v9144, 1
    %v9146 = vadd.f32 %v9144, %v9145
    %v9147 = vadd.f32 %v8547, %v8555
    %v9148 = vrot.slane %v9147, 4
    %v9149 = vadd.f32 %v9147, %v9148
    %v9150 = vrot.slane %v9149, 2
    %v9151 = vadd.f32 %v9149, %v9150
    %v9152 = vrot.slane %v9151, 1
    %v9153 = vadd.f32 %v9151, %v9152
    %v9154 = vadd.f32 %v8548, %v8556
    %v9155 = vrot.slane %v9154, 4
    %v9156 = vadd.f32 %v9154, %v9155
    %v9157 = vrot.slane %v9156, 2
    %v9158 = vadd.f32 %v9156, %v9157
    %v9159 = vrot.slane %v9158, 1
    %v9160 = vadd.f32 %v9158, %v9159
    %v9161 = vadd.f32 %v8549, %v8557
    %v9162 = vrot.slane %v9161, 4
    %v9163 = vadd.f32 %v9161, %v9162
    %v9164 = vrot.slane %v9163, 2
    %v9165 = vadd.f32 %v9163, %v9164
    %v9166 = vrot.slane %v9165, 1
    %v9167 = vadd.f32 %v9165, %v9166
    %v9168 = vadd.f32 %v8550, %v8558
    %v9169 = vrot.slane %v9168, 4
    %v9170 = vadd.f32 %v9168, %v9169
    %v9171 = vrot.slane %v9170, 2
    %v9172 = vadd.f32 %v9170, %v9171
    %v9173 = vrot.slane %v9172, 1
    %v9174 = vadd.f32 %v9172, %v9173
    %v9175 = vadd.f32 %v8559, %v8567
    %v9176 = vrot.slane %v9175, 4
    %v9177 = vadd.f32 %v9175, %v9176
    %v9178 = vrot.slane %v9177, 2
    %v9179 = vadd.f32 %v9177, %v9178
    %v9180 = vrot.slane %v9179, 1
    %v9181 = vadd.f32 %v9179, %v9180
    %v9182 = vadd.f32 %v8560, %v8568
    %v9183 = vrot.slane %v9182, 4
    %v9184 = vadd.f32 %v9182, %v9183
    %v9185 = vrot.slane %v9184, 2
    %v9186 = vadd.f32 %v9184, %v9185
    %v9187 = vrot.slane %v9186, 1
    %v9188 = vadd.f32 %v9186, %v9187
    %v9189 = vadd.f32 %v8561, %v8569
    %v9190 = vrot.slane %v9189, 4
    %v9191 = vadd.f32 %v9189, %v9190
    %v9192 = vrot.slane %v9191, 2
    %v9193 = vadd.f32 %v9191, %v9192
    %v9194 = vrot.slane %v9193, 1
    %v9195 = vadd.f32 %v9193, %v9194
    %v9196 = vadd.f32 %v8562, %v8570
    %v9197 = vrot.slane %v9196, 4
    %v9198 = vadd.f32 %v9196, %v9197
    %v9199 = vrot.slane %v9198, 2
    %v9200 = vadd.f32 %v9198, %v9199
    %v9201 = vrot.slane %v9200, 1
    %v9202 = vadd.f32 %v9200, %v9201
    %v9203 = vadd.f32 %v8563, %v8571
    %v9204 = vrot.slane %v9203, 4
    %v9205 = vadd.f32 %v9203, %v9204
    %v9206 = vrot.slane %v9205, 2
    %v9207 = vadd.f32 %v9205, %v9206
    %v9208 = vrot.slane %v9207, 1
    %v9209 = vadd.f32 %v9207, %v9208
    %v9210 = vadd.f32 %v8564, %v8572
    %v9211 = vrot.slane %v9210, 4
    %v9212 = vadd.f32 %v9210, %v9211
    %v9213 = vrot.slane %v9212, 2
    %v9214 = vadd.f32 %v9212, %v9213
    %v9215 = vrot.slane %v9214, 1
    %v9216 = vadd.f32 %v9214, %v9215
    %v9217 = vadd.f32 %v8565, %v8573
    %v9218 = vrot.slane %v9217, 4
    %v9219 = vadd.f32 %v9217, %v9218
    %v9220 = vrot.slane %v9219, 2
    %v9221 = vadd.f32 %v9219, %v9220
    %v9222 = vrot.slane %v9221, 1
    %v9223 = vadd.f32 %v9221, %v9222
    %v9224 = vadd.f32 %v8566, %v8574
    %v9225 = vrot.slane %v9224, 4
    %v9226 = vadd.f32 %v9224, %v9225
    %v9227 = vrot.slane %v9226, 2
    %v9228 = vadd.f32 %v9226, %v9227
    %v9229 = vrot.slane %v9228, 1
    %v9230 = vadd.f32 %v9228, %v9229
    %v9231 = vadd.f32 %v8575, %v8583
    %v9232 = vrot.slane %v9231, 4
    %v9233 = vadd.f32 %v9231, %v9232
    %v9234 = vrot.slane %v9233, 2
    %v9235 = vadd.f32 %v9233, %v9234
    %v9236 = vrot.slane %v9235, 1
    %v9237 = vadd.f32 %v9235, %v9236
    %v9238 = vadd.f32 %v8576, %v8584
    %v9239 = vrot.slane %v9238, 4
    %v9240 = vadd.f32 %v9238, %v9239
    %v9241 = vrot.slane %v9240, 2
    %v9242 = vadd.f32 %v9240, %v9241
    %v9243 = vrot.slane %v9242, 1
    %v9244 = vadd.f32 %v9242, %v9243
    %v9245 = vadd.f32 %v8577, %v8585
    %v9246 = vrot.slane %v9245, 4
    %v9247 = vadd.f32 %v9245, %v9246
    %v9248 = vrot.slane %v9247, 2
    %v9249 = vadd.f32 %v9247, %v9248
    %v9250 = vrot.slane %v9249, 1
    %v9251 = vadd.f32 %v9249, %v9250
    %v9252 = vadd.f32 %v8578, %v8586
    %v9253 = vrot.slane %v9252, 4
    %v9254 = vadd.f32 %v9252, %v9253
    %v9255 = vrot.slane %v9254, 2
    %v9256 = vadd.f32 %v9254, %v9255
    %v9257 = vrot.slane %v9256, 1
    %v9258 = vadd.f32 %v9256, %v9257
    %v9259 = vadd.f32 %v8579, %v8587
    %v9260 = vrot.slane %v9259, 4
    %v9261 = vadd.f32 %v9259, %v9260
    %v9262 = vrot.slane %v9261, 2
    %v9263 = vadd.f32 %v9261, %v9262
    %v9264 = vrot.slane %v9263, 1
    %v9265 = vadd.f32 %v9263, %v9264
    %v9266 = vadd.f32 %v8580, %v8588
    %v9267 = vrot.slane %v9266, 4
    %v9268 = vadd.f32 %v9266, %v9267
    %v9269 = vrot.slane %v9268, 2
    %v9270 = vadd.f32 %v9268, %v9269
    %v9271 = vrot.slane %v9270, 1
    %v9272 = vadd.f32 %v9270, %v9271
    %v9273 = vadd.f32 %v8581, %v8589
    %v9274 = vrot.slane %v9273, 4
    %v9275 = vadd.f32 %v9273, %v9274
    %v9276 = vrot.slane %v9275, 2
    %v9277 = vadd.f32 %v9275, %v9276
    %v9278 = vrot.slane %v9277, 1
    %v9279 = vadd.f32 %v9277, %v9278
    %v9280 = vadd.f32 %v8582, %v8590
    %v9281 = vrot.slane %v9280, 4
    %v9282 = vadd.f32 %v9280, %v9281
    %v9283 = vrot.slane %v9282, 2
    %v9284 = vadd.f32 %v9282, %v9283
    %v9285 = vrot.slane %v9284, 1
    %v9286 = vadd.f32 %v9284, %v9285
    %v9287 = vadd.f32 %v8591, %v8599
    %v9288 = vrot.slane %v9287, 4
    %v9289 = vadd.f32 %v9287, %v9288
    %v9290 = vrot.slane %v9289, 2
    %v9291 = vadd.f32 %v9289, %v9290
    %v9292 = vrot.slane %v9291, 1
    %v9293 = vadd.f32 %v9291, %v9292
    %v9294 = vadd.f32 %v8592, %v8600
    %v9295 = vrot.slane %v9294, 4
    %v9296 = vadd.f32 %v9294, %v9295
    %v9297 = vrot.slane %v9296, 2
    %v9298 = vadd.f32 %v9296, %v9297
    %v9299 = vrot.slane %v9298, 1
    %v9300 = vadd.f32 %v9298, %v9299
    %v9301 = vadd.f32 %v8593, %v8601
    %v9302 = vrot.slane %v9301, 4
    %v9303 = vadd.f32 %v9301, %v9302
    %v9304 = vrot.slane %v9303, 2
    %v9305 = vadd.f32 %v9303, %v9304
    %v9306 = vrot.slane %v9305, 1
    %v9307 = vadd.f32 %v9305, %v9306
    %v9308 = vadd.f32 %v8594, %v8602
    %v9309 = vrot.slane %v9308, 4
    %v9310 = vadd.f32 %v9308, %v9309
    %v9311 = vrot.slane %v9310, 2
    %v9312 = vadd.f32 %v9310, %v9311
    %v9313 = vrot.slane %v9312, 1
    %v9314 = vadd.f32 %v9312, %v9313
    %v9315 = vadd.f32 %v8595, %v8603
    %v9316 = vrot.slane %v9315, 4
    %v9317 = vadd.f32 %v9315, %v9316
    %v9318 = vrot.slane %v9317, 2
    %v9319 = vadd.f32 %v9317, %v9318
    %v9320 = vrot.slane %v9319, 1
    %v9321 = vadd.f32 %v9319, %v9320
    %v9322 = vadd.f32 %v8596, %v8604
    %v9323 = vrot.slane %v9322, 4
    %v9324 = vadd.f32 %v9322, %v9323
    %v9325 = vrot.slane %v9324, 2
    %v9326 = vadd.f32 %v9324, %v9325
    %v9327 = vrot.slane %v9326, 1
    %v9328 = vadd.f32 %v9326, %v9327
    %v9329 = vadd.f32 %v8597, %v8605
    %v9330 = vrot.slane %v9329, 4
    %v9331 = vadd.f32 %v9329, %v9330
    %v9332 = vrot.slane %v9331, 2
    %v9333 = vadd.f32 %v9331, %v9332
    %v9334 = vrot.slane %v9333, 1
    %v9335 = vadd.f32 %v9333, %v9334
    %v9336 = vadd.f32 %v8598, %v8606
    %v9337 = vrot.slane %v9336, 4
    %v9338 = vadd.f32 %v9336, %v9337
    %v9339 = vrot.slane %v9338, 2
    %v9340 = vadd.f32 %v9338, %v9339
    %v9341 = vrot.slane %v9340, 1
    %v9342 = vadd.f32 %v9340, %v9341
    %v9343 = vadd.f32 %v8607, %v8615
    %v9344 = vrot.slane %v9343, 4
    %v9345 = vadd.f32 %v9343, %v9344
    %v9346 = vrot.slane %v9345, 2
    %v9347 = vadd.f32 %v9345, %v9346
    %v9348 = vrot.slane %v9347, 1
    %v9349 = vadd.f32 %v9347, %v9348
    %v9350 = vadd.f32 %v8608, %v8616
    %v9351 = vrot.slane %v9350, 4
    %v9352 = vadd.f32 %v9350, %v9351
    %v9353 = vrot.slane %v9352, 2
    %v9354 = vadd.f32 %v9352, %v9353
    %v9355 = vrot.slane %v9354, 1
    %v9356 = vadd.f32 %v9354, %v9355
    %v9357 = vadd.f32 %v8609, %v8617
    %v9358 = vrot.slane %v9357, 4
    %v9359 = vadd.f32 %v9357, %v9358
    %v9360 = vrot.slane %v9359, 2
    %v9361 = vadd.f32 %v9359, %v9360
    %v9362 = vrot.slane %v9361, 1
    %v9363 = vadd.f32 %v9361, %v9362
    %v9364 = vadd.f32 %v8610, %v8618
    %v9365 = vrot.slane %v9364, 4
    %v9366 = vadd.f32 %v9364, %v9365
    %v9367 = vrot.slane %v9366, 2
    %v9368 = vadd.f32 %v9366, %v9367
    %v9369 = vrot.slane %v9368, 1
    %v9370 = vadd.f32 %v9368, %v9369
    %v9371 = vadd.f32 %v8611, %v8619
    %v9372 = vrot.slane %v9371, 4
    %v9373 = vadd.f32 %v9371, %v9372
    %v9374 = vrot.slane %v9373, 2
    %v9375 = vadd.f32 %v9373, %v9374
    %v9376 = vrot.slane %v9375, 1
    %v9377 = vadd.f32 %v9375, %v9376
    %v9378 = vadd.f32 %v8612, %v8620
    %v9379 = vrot.slane %v9378, 4
    %v9380 = vadd.f32 %v9378, %v9379
    %v9381 = vrot.slane %v9380, 2
    %v9382 = vadd.f32 %v9380, %v9381
    %v9383 = vrot.slane %v9382, 1
    %v9384 = vadd.f32 %v9382, %v9383
    %v9385 = vadd.f32 %v8613, %v8621
    %v9386 = vrot.slane %v9385, 4
    %v9387 = vadd.f32 %v9385, %v9386
    %v9388 = vrot.slane %v9387, 2
    %v9389 = vadd.f32 %v9387, %v9388
    %v9390 = vrot.slane %v9389, 1
    %v9391 = vadd.f32 %v9389, %v9390
    %v9392 = vadd.f32 %v8614, %v8622
    %v9393 = vrot.slane %v9392, 4
    %v9394 = vadd.f32 %v9392, %v9393
    %v9395 = vrot.slane %v9394, 2
    %v9396 = vadd.f32 %v9394, %v9395
    %v9397 = vrot.slane %v9396, 1
    %v9398 = vadd.f32 %v9396, %v9397
    %v9399 = vadd.f32 %v8623, %v8631
    %v9400 = vrot.slane %v9399, 4
    %v9401 = vadd.f32 %v9399, %v9400
    %v9402 = vrot.slane %v9401, 2
    %v9403 = vadd.f32 %v9401, %v9402
    %v9404 = vrot.slane %v9403, 1
    %v9405 = vadd.f32 %v9403, %v9404
    %v9406 = vadd.f32 %v8624, %v8632
    %v9407 = vrot.slane %v9406, 4
    %v9408 = vadd.f32 %v9406, %v9407
    %v9409 = vrot.slane %v9408, 2
    %v9410 = vadd.f32 %v9408, %v9409
    %v9411 = vrot.slane %v9410, 1
    %v9412 = vadd.f32 %v9410, %v9411
    %v9413 = vadd.f32 %v8625, %v8633
    %v9414 = vrot.slane %v9413, 4
    %v9415 = vadd.f32 %v9413, %v9414
    %v9416 = vrot.slane %v9415, 2
    %v9417 = vadd.f32 %v9415, %v9416
    %v9418 = vrot.slane %v9417, 1
    %v9419 = vadd.f32 %v9417, %v9418
    %v9420 = vadd.f32 %v8626, %v8634
    %v9421 = vrot.slane %v9420, 4
    %v9422 = vadd.f32 %v9420, %v9421
    %v9423 = vrot.slane %v9422, 2
    %v9424 = vadd.f32 %v9422, %v9423
    %v9425 = vrot.slane %v9424, 1
    %v9426 = vadd.f32 %v9424, %v9425
    %v9427 = vadd.f32 %v8627, %v8635
    %v9428 = vrot.slane %v9427, 4
    %v9429 = vadd.f32 %v9427, %v9428
    %v9430 = vrot.slane %v9429, 2
    %v9431 = vadd.f32 %v9429, %v9430
    %v9432 = vrot.slane %v9431, 1
    %v9433 = vadd.f32 %v9431, %v9432
    %v9434 = vadd.f32 %v8628, %v8636
    %v9435 = vrot.slane %v9434, 4
    %v9436 = vadd.f32 %v9434, %v9435
    %v9437 = vrot.slane %v9436, 2
    %v9438 = vadd.f32 %v9436, %v9437
    %v9439 = vrot.slane %v9438, 1
    %v9440 = vadd.f32 %v9438, %v9439
    %v9441 = vadd.f32 %v8629, %v8637
    %v9442 = vrot.slane %v9441, 4
    %v9443 = vadd.f32 %v9441, %v9442
    %v9444 = vrot.slane %v9443, 2
    %v9445 = vadd.f32 %v9443, %v9444
    %v9446 = vrot.slane %v9445, 1
    %v9447 = vadd.f32 %v9445, %v9446
    %v9448 = vadd.f32 %v8630, %v8638
    %v9449 = vrot.slane %v9448, 4
    %v9450 = vadd.f32 %v9448, %v9449
    %v9451 = vrot.slane %v9450, 2
    %v9452 = vadd.f32 %v9450, %v9451
    %v9453 = vrot.slane %v9452, 1
    %v9454 = vadd.f32 %v9452, %v9453
    %v9455 = vadd.f32 %v8639, %v8647
    %v9456 = vrot.slane %v9455, 4
    %v9457 = vadd.f32 %v9455, %v9456
    %v9458 = vrot.slane %v9457, 2
    %v9459 = vadd.f32 %v9457, %v9458
    %v9460 = vrot.slane %v9459, 1
    %v9461 = vadd.f32 %v9459, %v9460
    %v9462 = vadd.f32 %v8640, %v8648
    %v9463 = vrot.slane %v9462, 4
    %v9464 = vadd.f32 %v9462, %v9463
    %v9465 = vrot.slane %v9464, 2
    %v9466 = vadd.f32 %v9464, %v9465
    %v9467 = vrot.slane %v9466, 1
    %v9468 = vadd.f32 %v9466, %v9467
    %v9469 = vadd.f32 %v8641, %v8649
    %v9470 = vrot.slane %v9469, 4
    %v9471 = vadd.f32 %v9469, %v9470
    %v9472 = vrot.slane %v9471, 2
    %v9473 = vadd.f32 %v9471, %v9472
    %v9474 = vrot.slane %v9473, 1
    %v9475 = vadd.f32 %v9473, %v9474
    %v9476 = vadd.f32 %v8642, %v8650
    %v9477 = vrot.slane %v9476, 4
    %v9478 = vadd.f32 %v9476, %v9477
    %v9479 = vrot.slane %v9478, 2
    %v9480 = vadd.f32 %v9478, %v9479
    %v9481 = vrot.slane %v9480, 1
    %v9482 = vadd.f32 %v9480, %v9481
    %v9483 = vadd.f32 %v8643, %v8651
    %v9484 = vrot.slane %v9483, 4
    %v9485 = vadd.f32 %v9483, %v9484
    %v9486 = vrot.slane %v9485, 2
    %v9487 = vadd.f32 %v9485, %v9486
    %v9488 = vrot.slane %v9487, 1
    %v9489 = vadd.f32 %v9487, %v9488
    %v9490 = vadd.f32 %v8644, %v8652
    %v9491 = vrot.slane %v9490, 4
    %v9492 = vadd.f32 %v9490, %v9491
    %v9493 = vrot.slane %v9492, 2
    %v9494 = vadd.f32 %v9492, %v9493
    %v9495 = vrot.slane %v9494, 1
    %v9496 = vadd.f32 %v9494, %v9495
    %v9497 = vadd.f32 %v8645, %v8653
    %v9498 = vrot.slane %v9497, 4
    %v9499 = vadd.f32 %v9497, %v9498
    %v9500 = vrot.slane %v9499, 2
    %v9501 = vadd.f32 %v9499, %v9500
    %v9502 = vrot.slane %v9501, 1
    %v9503 = vadd.f32 %v9501, %v9502
    %v9504 = vadd.f32 %v8646, %v8654
    %v9505 = vrot.slane %v9504, 4
    %v9506 = vadd.f32 %v9504, %v9505
    %v9507 = vrot.slane %v9506, 2
    %v9508 = vadd.f32 %v9506, %v9507
    %v9509 = vrot.slane %v9508, 1
    %v9510 = vadd.f32 %v9508, %v9509
    %v9511 = vadd.f32 %v8655, %v8663
    %v9512 = vrot.slane %v9511, 4
    %v9513 = vadd.f32 %v9511, %v9512
    %v9514 = vrot.slane %v9513, 2
    %v9515 = vadd.f32 %v9513, %v9514
    %v9516 = vrot.slane %v9515, 1
    %v9517 = vadd.f32 %v9515, %v9516
    %v9518 = vadd.f32 %v8656, %v8664
    %v9519 = vrot.slane %v9518, 4
    %v9520 = vadd.f32 %v9518, %v9519
    %v9521 = vrot.slane %v9520, 2
    %v9522 = vadd.f32 %v9520, %v9521
    %v9523 = vrot.slane %v9522, 1
    %v9524 = vadd.f32 %v9522, %v9523
    %v9525 = vadd.f32 %v8657, %v8665
    %v9526 = vrot.slane %v9525, 4
    %v9527 = vadd.f32 %v9525, %v9526
    %v9528 = vrot.slane %v9527, 2
    %v9529 = vadd.f32 %v9527, %v9528
    %v9530 = vrot.slane %v9529, 1
    %v9531 = vadd.f32 %v9529, %v9530
    %v9532 = vadd.f32 %v8658, %v8666
    %v9533 = vrot.slane %v9532, 4
    %v9534 = vadd.f32 %v9532, %v9533
    %v9535 = vrot.slane %v9534, 2
    %v9536 = vadd.f32 %v9534, %v9535
    %v9537 = vrot.slane %v9536, 1
    %v9538 = vadd.f32 %v9536, %v9537
    %v9539 = vadd.f32 %v8659, %v8667
    %v9540 = vrot.slane %v9539, 4
    %v9541 = vadd.f32 %v9539, %v9540
    %v9542 = vrot.slane %v9541, 2
    %v9543 = vadd.f32 %v9541, %v9542
    %v9544 = vrot.slane %v9543, 1
    %v9545 = vadd.f32 %v9543, %v9544
    %v9546 = vadd.f32 %v8660, %v8668
    %v9547 = vrot.slane %v9546, 4
    %v9548 = vadd.f32 %v9546, %v9547
    %v9549 = vrot.slane %v9548, 2
    %v9550 = vadd.f32 %v9548, %v9549
    %v9551 = vrot.slane %v9550, 1
    %v9552 = vadd.f32 %v9550, %v9551
    %v9553 = vadd.f32 %v8661, %v8669
    %v9554 = vrot.slane %v9553, 4
    %v9555 = vadd.f32 %v9553, %v9554
    %v9556 = vrot.slane %v9555, 2
    %v9557 = vadd.f32 %v9555, %v9556
    %v9558 = vrot.slane %v9557, 1
    %v9559 = vadd.f32 %v9557, %v9558
    %v9560 = vadd.f32 %v8662, %v8670
    %v9561 = vrot.slane %v9560, 4
    %v9562 = vadd.f32 %v9560, %v9561
    %v9563 = vrot.slane %v9562, 2
    %v9564 = vadd.f32 %v9562, %v9563
    %v9565 = vrot.slane %v9564, 1
    %v9566 = vadd.f32 %v9564, %v9565
    %v9567 = vpack.c.bf16 %v8677, %v8677
    %v9568 = vpack.c.bf16 %v8684, %v8684
    %v9569 = vpack.c.bf16 %v8691, %v8691
    %v9570 = vpack.c.bf16 %v8698, %v8698
    %v9571 = vpack.c.bf16 %v8705, %v8705
    %v9572 = vpack.c.bf16 %v8712, %v8712
    %v9573 = vpack.c.bf16 %v8719, %v8719
    %v9574 = vpack.c.bf16 %v8726, %v8726
    %v9575 = vpack.c.bf16 %v8733, %v8733
    %v9576 = vpack.c.bf16 %v8740, %v8740
    %v9577 = vpack.c.bf16 %v8747, %v8747
    %v9578 = vpack.c.bf16 %v8754, %v8754
    %v9579 = vpack.c.bf16 %v8761, %v8761
    %v9580 = vpack.c.bf16 %v8768, %v8768
    %v9581 = vpack.c.bf16 %v8775, %v8775
    %v9582 = vpack.c.bf16 %v8782, %v8782
    %v9583 = vpack.c.bf16 %v8789, %v8789
    %v9584 = vpack.c.bf16 %v8796, %v8796
    %v9585 = vpack.c.bf16 %v8803, %v8803
    %v9586 = vpack.c.bf16 %v8810, %v8810
    %v9587 = vpack.c.bf16 %v8817, %v8817
    %v9588 = vpack.c.bf16 %v8824, %v8824
    %v9589 = vpack.c.bf16 %v8831, %v8831
    %v9590 = vpack.c.bf16 %v8838, %v8838
    %v9591 = vpack.c.bf16 %v8845, %v8845
    %v9592 = vpack.c.bf16 %v8852, %v8852
    %v9593 = vpack.c.bf16 %v8859, %v8859
    %v9594 = vpack.c.bf16 %v8866, %v8866
    %v9595 = vpack.c.bf16 %v8873, %v8873
    %v9596 = vpack.c.bf16 %v8880, %v8880
    %v9597 = vpack.c.bf16 %v8887, %v8887
    %v9598 = vpack.c.bf16 %v8894, %v8894
    %v9599 = vpack.c.bf16 %v8901, %v8901
    %v9600 = vpack.c.bf16 %v8908, %v8908
    %v9601 = vpack.c.bf16 %v8915, %v8915
    %v9602 = vpack.c.bf16 %v8922, %v8922
    %v9603 = vpack.c.bf16 %v8929, %v8929
    %v9604 = vpack.c.bf16 %v8936, %v8936
    %v9605 = vpack.c.bf16 %v8943, %v8943
    %v9606 = vpack.c.bf16 %v8950, %v8950
    %v9607 = vpack.c.bf16 %v8957, %v8957
    %v9608 = vpack.c.bf16 %v8964, %v8964
    %v9609 = vpack.c.bf16 %v8971, %v8971
    %v9610 = vpack.c.bf16 %v8978, %v8978
    %v9611 = vpack.c.bf16 %v8985, %v8985
    %v9612 = vpack.c.bf16 %v8992, %v8992
    %v9613 = vpack.c.bf16 %v8999, %v8999
    %v9614 = vpack.c.bf16 %v9006, %v9006
    %v9615 = vpack.c.bf16 %v9013, %v9013
    %v9616 = vpack.c.bf16 %v9020, %v9020
    %v9617 = vpack.c.bf16 %v9027, %v9027
    %v9618 = vpack.c.bf16 %v9034, %v9034
    %v9619 = vpack.c.bf16 %v9041, %v9041
    %v9620 = vpack.c.bf16 %v9048, %v9048
    %v9621 = vpack.c.bf16 %v9055, %v9055
    %v9622 = vpack.c.bf16 %v9062, %v9062
    %v9623 = vpack.c.bf16 %v9069, %v9069
    %v9624 = vpack.c.bf16 %v9076, %v9076
    %v9625 = vpack.c.bf16 %v9083, %v9083
    %v9626 = vpack.c.bf16 %v9090, %v9090
    %v9627 = vpack.c.bf16 %v9097, %v9097
    %v9628 = vpack.c.bf16 %v9104, %v9104
    %v9629 = vpack.c.bf16 %v9111, %v9111
    %v9630 = vpack.c.bf16 %v9118, %v9118
    %v9631 = vpack.c.bf16 %v9125, %v9125
    %v9632 = vpack.c.bf16 %v9132, %v9132
    %v9633 = vpack.c.bf16 %v9139, %v9139
    %v9634 = vpack.c.bf16 %v9146, %v9146
    %v9635 = vpack.c.bf16 %v9153, %v9153
    %v9636 = vpack.c.bf16 %v9160, %v9160
    %v9637 = vpack.c.bf16 %v9167, %v9167
    %v9638 = vpack.c.bf16 %v9174, %v9174
    %v9639 = vpack.c.bf16 %v9181, %v9181
    %v9640 = vpack.c.bf16 %v9188, %v9188
    %v9641 = vpack.c.bf16 %v9195, %v9195
    %v9642 = vpack.c.bf16 %v9202, %v9202
    %v9643 = vpack.c.bf16 %v9209, %v9209
    %v9644 = vpack.c.bf16 %v9216, %v9216
    %v9645 = vpack.c.bf16 %v9223, %v9223
    %v9646 = vpack.c.bf16 %v9230, %v9230
    %v9647 = vpack.c.bf16 %v9237, %v9237
    %v9648 = vpack.c.bf16 %v9244, %v9244
    %v9649 = vpack.c.bf16 %v9251, %v9251
    %v9650 = vpack.c.bf16 %v9258, %v9258
    %v9651 = vpack.c.bf16 %v9265, %v9265
    %v9652 = vpack.c.bf16 %v9272, %v9272
    %v9653 = vpack.c.bf16 %v9279, %v9279
    %v9654 = vpack.c.bf16 %v9286, %v9286
    %v9655 = vpack.c.bf16 %v9293, %v9293
    %v9656 = vpack.c.bf16 %v9300, %v9300
    %v9657 = vpack.c.bf16 %v9307, %v9307
    %v9658 = vpack.c.bf16 %v9314, %v9314
    %v9659 = vpack.c.bf16 %v9321, %v9321
    %v9660 = vpack.c.bf16 %v9328, %v9328
    %v9661 = vpack.c.bf16 %v9335, %v9335
    %v9662 = vpack.c.bf16 %v9342, %v9342
    %v9663 = vpack.c.bf16 %v9349, %v9349
    %v9664 = vpack.c.bf16 %v9356, %v9356
    %v9665 = vpack.c.bf16 %v9363, %v9363
    %v9666 = vpack.c.bf16 %v9370, %v9370
    %v9667 = vpack.c.bf16 %v9377, %v9377
    %v9668 = vpack.c.bf16 %v9384, %v9384
    %v9669 = vpack.c.bf16 %v9391, %v9391
    %v9670 = vpack.c.bf16 %v9398, %v9398
    %v9671 = vpack.c.bf16 %v9405, %v9405
    %v9672 = vpack.c.bf16 %v9412, %v9412
    %v9673 = vpack.c.bf16 %v9419, %v9419
    %v9674 = vpack.c.bf16 %v9426, %v9426
    %v9675 = vpack.c.bf16 %v9433, %v9433
    %v9676 = vpack.c.bf16 %v9440, %v9440
    %v9677 = vpack.c.bf16 %v9447, %v9447
    %v9678 = vpack.c.bf16 %v9454, %v9454
    %v9679 = vpack.c.bf16 %v9461, %v9461
    %v9680 = vpack.c.bf16 %v9468, %v9468
    %v9681 = vpack.c.bf16 %v9475, %v9475
    %v9682 = vpack.c.bf16 %v9482, %v9482
    %v9683 = vpack.c.bf16 %v9489, %v9489
    %v9684 = vpack.c.bf16 %v9496, %v9496
    %v9685 = vpack.c.bf16 %v9503, %v9503
    %v9686 = vpack.c.bf16 %v9510, %v9510
    %v9687 = vpack.c.bf16 %v9517, %v9517
    %v9688 = vpack.c.bf16 %v9524, %v9524
    %v9689 = vpack.c.bf16 %v9531, %v9531
    %v9690 = vpack.c.bf16 %v9538, %v9538
    %v9691 = vpack.c.bf16 %v9545, %v9545
    %v9692 = vpack.c.bf16 %v9552, %v9552
    %v9693 = vpack.c.bf16 %v9559, %v9559
    %v9694 = vpack.c.bf16 %v9566, %v9566
    %v9695 = vld [vmem:[#allocation8] sm:$0xff]
    %v9696 = vld [vmem:[#allocation8 + $0x8] sm:$0xff]
    %v9697 = vld [vmem:[#allocation8 + $0x10] sm:$0xff]
    %v9698 = vld [vmem:[#allocation8 + $0x18] sm:$0xff]
    %v9699 = vld [vmem:[#allocation8 + $0x20] sm:$0xff]
    %v9700 = vld [vmem:[#allocation8 + $0x28] sm:$0xff]
    %v9701 = vld [vmem:[#allocation8 + $0x30] sm:$0xff]
    %v9702 = vld [vmem:[#allocation8 + $0x38] sm:$0xff]
    %v9703 = vld [vmem:[#allocation8 + $0x40] sm:$0xff]
    %v9704 = vld [vmem:[#allocation8 + $0x48] sm:$0xff]
    %v9705 = vld [vmem:[#allocation8 + $0x50] sm:$0xff]
    %v9706 = vld [vmem:[#allocation8 + $0x58] sm:$0xff]
    %v9707 = vld [vmem:[#allocation8 + $0x60] sm:$0xff]
    %v9708 = vld [vmem:[#allocation8 + $0x68] sm:$0xff]
    %v9709 = vld [vmem:[#allocation8 + $0x70] sm:$0xff]
    %v9710 = vld [vmem:[#allocation8 + $0x78] sm:$0xff]
    %v9711 = vld [vmem:[#allocation8 + $0x80] sm:$0xff]
    %v9712 = vld [vmem:[#allocation8 + $0x88] sm:$0xff]
    %v9713 = vld [vmem:[#allocation8 + $0x90] sm:$0xff]
    %v9714 = vld [vmem:[#allocation8 + $0x98] sm:$0xff]
    %v9715 = vld [vmem:[#allocation8 + $0xa0] sm:$0xff]
    %v9716 = vld [vmem:[#allocation8 + $0xa8] sm:$0xff]
    %v9717 = vld [vmem:[#allocation8 + $0xb0] sm:$0xff]
    %v9718 = vld [vmem:[#allocation8 + $0xb8] sm:$0xff]
    %v9719 = vld [vmem:[#allocation8 + $0xc0] sm:$0xff]
    %v9720 = vld [vmem:[#allocation8 + $0xc8] sm:$0xff]
    %v9721 = vld [vmem:[#allocation8 + $0xd0] sm:$0xff]
    %v9722 = vld [vmem:[#allocation8 + $0xd8] sm:$0xff]
    %v9723 = vld [vmem:[#allocation8 + $0xe0] sm:$0xff]
    %v9724 = vld [vmem:[#allocation8 + $0xe8] sm:$0xff]
    %v9725 = vld [vmem:[#allocation8 + $0xf0] sm:$0xff]
    %v9726 = vld [vmem:[#allocation8 + $0xf8] sm:$0xff]
    %v9727 = vld [vmem:[#allocation8 + $0x100] sm:$0xff]
    %v9728 = vld [vmem:[#allocation8 + $0x108] sm:$0xff]
    %v9729 = vld [vmem:[#allocation8 + $0x110] sm:$0xff]
    %v9730 = vld [vmem:[#allocation8 + $0x118] sm:$0xff]
    %v9731 = vld [vmem:[#allocation8 + $0x120] sm:$0xff]
    %v9732 = vld [vmem:[#allocation8 + $0x128] sm:$0xff]
    %v9733 = vld [vmem:[#allocation8 + $0x130] sm:$0xff]
    %v9734 = vld [vmem:[#allocation8 + $0x138] sm:$0xff]
    %v9735 = vld [vmem:[#allocation8 + $0x140] sm:$0xff]
    %v9736 = vld [vmem:[#allocation8 + $0x148] sm:$0xff]
    %v9737 = vld [vmem:[#allocation8 + $0x150] sm:$0xff]
    %v9738 = vld [vmem:[#allocation8 + $0x158] sm:$0xff]
    %v9739 = vld [vmem:[#allocation8 + $0x160] sm:$0xff]
    %v9740 = vld [vmem:[#allocation8 + $0x168] sm:$0xff]
    %v9741 = vld [vmem:[#allocation8 + $0x170] sm:$0xff]
    %v9742 = vld [vmem:[#allocation8 + $0x178] sm:$0xff]
    %v9743 = vld [vmem:[#allocation8 + $0x180] sm:$0xff]
    %v9744 = vld [vmem:[#allocation8 + $0x188] sm:$0xff]
    %v9745 = vld [vmem:[#allocation8 + $0x190] sm:$0xff]
    %v9746 = vld [vmem:[#allocation8 + $0x198] sm:$0xff]
    %v9747 = vld [vmem:[#allocation8 + $0x1a0] sm:$0xff]
    %v9748 = vld [vmem:[#allocation8 + $0x1a8] sm:$0xff]
    %v9749 = vld [vmem:[#allocation8 + $0x1b0] sm:$0xff]
    %v9750 = vld [vmem:[#allocation8 + $0x1b8] sm:$0xff]
    %v9751 = vld [vmem:[#allocation8 + $0x1c0] sm:$0xff]
    %v9752 = vld [vmem:[#allocation8 + $0x1c8] sm:$0xff]
    %v9753 = vld [vmem:[#allocation8 + $0x1d0] sm:$0xff]
    %v9754 = vld [vmem:[#allocation8 + $0x1d8] sm:$0xff]
    %v9755 = vld [vmem:[#allocation8 + $0x1e0] sm:$0xff]
    %v9756 = vld [vmem:[#allocation8 + $0x1e8] sm:$0xff]
    %v9757 = vld [vmem:[#allocation8 + $0x1f0] sm:$0xff]
    %v9758 = vld [vmem:[#allocation8 + $0x1f8] sm:$0xff]
    %v9759 = vld [vmem:[#allocation8 + $0x200] sm:$0xff]
    %v9760 = vld [vmem:[#allocation8 + $0x208] sm:$0xff]
    %v9761 = vld [vmem:[#allocation8 + $0x210] sm:$0xff]
    %v9762 = vld [vmem:[#allocation8 + $0x218] sm:$0xff]
    %v9763 = vld [vmem:[#allocation8 + $0x220] sm:$0xff]
    %v9764 = vld [vmem:[#allocation8 + $0x228] sm:$0xff]
    %v9765 = vld [vmem:[#allocation8 + $0x230] sm:$0xff]
    %v9766 = vld [vmem:[#allocation8 + $0x238] sm:$0xff]
    %v9767 = vld [vmem:[#allocation8 + $0x240] sm:$0xff]
    %v9768 = vld [vmem:[#allocation8 + $0x248] sm:$0xff]
    %v9769 = vld [vmem:[#allocation8 + $0x250] sm:$0xff]
    %v9770 = vld [vmem:[#allocation8 + $0x258] sm:$0xff]
    %v9771 = vld [vmem:[#allocation8 + $0x260] sm:$0xff]
    %v9772 = vld [vmem:[#allocation8 + $0x268] sm:$0xff]
    %v9773 = vld [vmem:[#allocation8 + $0x270] sm:$0xff]
    %v9774 = vld [vmem:[#allocation8 + $0x278] sm:$0xff]
    %v9775 = vld [vmem:[#allocation8 + $0x280] sm:$0xff]
    %v9776 = vld [vmem:[#allocation8 + $0x288] sm:$0xff]
    %v9777 = vld [vmem:[#allocation8 + $0x290] sm:$0xff]
    %v9778 = vld [vmem:[#allocation8 + $0x298] sm:$0xff]
    %v9779 = vld [vmem:[#allocation8 + $0x2a0] sm:$0xff]
    %v9780 = vld [vmem:[#allocation8 + $0x2a8] sm:$0xff]
    %v9781 = vld [vmem:[#allocation8 + $0x2b0] sm:$0xff]
    %v9782 = vld [vmem:[#allocation8 + $0x2b8] sm:$0xff]
    %v9783 = vld [vmem:[#allocation8 + $0x2c0] sm:$0xff]
    %v9784 = vld [vmem:[#allocation8 + $0x2c8] sm:$0xff]
    %v9785 = vld [vmem:[#allocation8 + $0x2d0] sm:$0xff]
    %v9786 = vld [vmem:[#allocation8 + $0x2d8] sm:$0xff]
    %v9787 = vld [vmem:[#allocation8 + $0x2e0] sm:$0xff]
    %v9788 = vld [vmem:[#allocation8 + $0x2e8] sm:$0xff]
    %v9789 = vld [vmem:[#allocation8 + $0x2f0] sm:$0xff]
    %v9790 = vld [vmem:[#allocation8 + $0x2f8] sm:$0xff]
    %v9791 = vld [vmem:[#allocation8 + $0x300] sm:$0xff]
    %v9792 = vld [vmem:[#allocation8 + $0x308] sm:$0xff]
    %v9793 = vld [vmem:[#allocation8 + $0x310] sm:$0xff]
    %v9794 = vld [vmem:[#allocation8 + $0x318] sm:$0xff]
    %v9795 = vld [vmem:[#allocation8 + $0x320] sm:$0xff]
    %v9796 = vld [vmem:[#allocation8 + $0x328] sm:$0xff]
    %v9797 = vld [vmem:[#allocation8 + $0x330] sm:$0xff]
    %v9798 = vld [vmem:[#allocation8 + $0x338] sm:$0xff]
    %v9799 = vld [vmem:[#allocation8 + $0x340] sm:$0xff]
    %v9800 = vld [vmem:[#allocation8 + $0x348] sm:$0xff]
    %v9801 = vld [vmem:[#allocation8 + $0x350] sm:$0xff]
    %v9802 = vld [vmem:[#allocation8 + $0x358] sm:$0xff]
    %v9803 = vld [vmem:[#allocation8 + $0x360] sm:$0xff]
    %v9804 = vld [vmem:[#allocation8 + $0x368] sm:$0xff]
    %v9805 = vld [vmem:[#allocation8 + $0x370] sm:$0xff]
    %v9806 = vld [vmem:[#allocation8 + $0x378] sm:$0xff]
    %v9807 = vld [vmem:[#allocation8 + $0x380] sm:$0xff]
    %v9808 = vld [vmem:[#allocation8 + $0x388] sm:$0xff]
    %v9809 = vld [vmem:[#allocation8 + $0x390] sm:$0xff]
    %v9810 = vld [vmem:[#allocation8 + $0x398] sm:$0xff]
    %v9811 = vld [vmem:[#allocation8 + $0x3a0] sm:$0xff]
    %v9812 = vld [vmem:[#allocation8 + $0x3a8] sm:$0xff]
    %v9813 = vld [vmem:[#allocation8 + $0x3b0] sm:$0xff]
    %v9814 = vld [vmem:[#allocation8 + $0x3b8] sm:$0xff]
    %v9815 = vld [vmem:[#allocation8 + $0x3c0] sm:$0xff]
    %v9816 = vld [vmem:[#allocation8 + $0x3c8] sm:$0xff]
    %v9817 = vld [vmem:[#allocation8 + $0x3d0] sm:$0xff]
    %v9818 = vld [vmem:[#allocation8 + $0x3d8] sm:$0xff]
    %v9819 = vld [vmem:[#allocation8 + $0x3e0] sm:$0xff]
    %v9820 = vld [vmem:[#allocation8 + $0x3e8] sm:$0xff]
    %v9821 = vld [vmem:[#allocation8 + $0x3f0] sm:$0xff]
    %v9822 = vld [vmem:[#allocation8 + $0x3f8] sm:$0xff]
    %v9824 = vlaneseq
    %v9825 = vshrl.u32 %v9824, 7
    %v9826 = vsub.s32 0, %v9825
    %v9827 = vrot.slane %v91, %v9826
    %v9828 = vlaneseq
    %v9829 = vshrl.u32 %v9828, 7
    %v9830 = vsub.s32 1, %v9829
    %v9831 = vrot.slane %v91, %v9830
    %v9962 = vunpack.c.l.b16 %v9567
    %v9963 = vunpack.c.l.b16 %v9568
    %v9964 = vunpack.c.l.b16 %v9569
    %v9965 = vunpack.c.l.b16 %v9570
    %v9966 = vunpack.c.l.b16 %v9571
    %v9967 = vunpack.c.l.b16 %v9572
    %v9968 = vunpack.c.l.b16 %v9573
    %v9969 = vunpack.c.l.b16 %v9574
    %v9970 = vunpack.c.l.b16 %v9575
    %v9971 = vunpack.c.l.b16 %v9576
    %v9972 = vunpack.c.l.b16 %v9577
    %v9973 = vunpack.c.l.b16 %v9578
    %v9974 = vunpack.c.l.b16 %v9579
    %v9975 = vunpack.c.l.b16 %v9580
    %v9976 = vunpack.c.l.b16 %v9581
    %v9977 = vunpack.c.l.b16 %v9582
    %v9978 = vunpack.c.l.b16 %v9583
    %v9979 = vunpack.c.l.b16 %v9584
    %v9980 = vunpack.c.l.b16 %v9585
    %v9981 = vunpack.c.l.b16 %v9586
    %v9982 = vunpack.c.l.b16 %v9587
    %v9983 = vunpack.c.l.b16 %v9588
    %v9984 = vunpack.c.l.b16 %v9589
    %v9985 = vunpack.c.l.b16 %v9590
    %v9986 = vunpack.c.l.b16 %v9591
    %v9987 = vunpack.c.l.b16 %v9592
    %v9988 = vunpack.c.l.b16 %v9593
    %v9989 = vunpack.c.l.b16 %v9594
    %v9990 = vunpack.c.l.b16 %v9595
    %v9991 = vunpack.c.l.b16 %v9596
    %v9992 = vunpack.c.l.b16 %v9597
    %v9993 = vunpack.c.l.b16 %v9598
    %v9994 = vunpack.c.l.b16 %v9599
    %v9995 = vunpack.c.l.b16 %v9600
    %v9996 = vunpack.c.l.b16 %v9601
    %v9997 = vunpack.c.l.b16 %v9602
    %v9998 = vunpack.c.l.b16 %v9603
    %v9999 = vunpack.c.l.b16 %v9604
    %v10000 = vunpack.c.l.b16 %v9605
    %v10001 = vunpack.c.l.b16 %v9606
    %v10002 = vunpack.c.l.b16 %v9607
    %v10003 = vunpack.c.l.b16 %v9608
    %v10004 = vunpack.c.l.b16 %v9609
    %v10005 = vunpack.c.l.b16 %v9610
    %v10006 = vunpack.c.l.b16 %v9611
    %v10007 = vunpack.c.l.b16 %v9612
    %v10008 = vunpack.c.l.b16 %v9613
    %v10009 = vunpack.c.l.b16 %v9614
    %v10010 = vunpack.c.l.b16 %v9615
    %v10011 = vunpack.c.l.b16 %v9616
    %v10012 = vunpack.c.l.b16 %v9617
    %v10013 = vunpack.c.l.b16 %v9618
    %v10014 = vunpack.c.l.b16 %v9619
    %v10015 = vunpack.c.l.b16 %v9620
    %v10016 = vunpack.c.l.b16 %v9621
    %v10017 = vunpack.c.l.b16 %v9622
    %v10018 = vunpack.c.l.b16 %v9623
    %v10019 = vunpack.c.l.b16 %v9624
    %v10020 = vunpack.c.l.b16 %v9625
    %v10021 = vunpack.c.l.b16 %v9626
    %v10022 = vunpack.c.l.b16 %v9627
    %v10023 = vunpack.c.l.b16 %v9628
    %v10024 = vunpack.c.l.b16 %v9629
    %v10025 = vunpack.c.l.b16 %v9630
    %v10026 = vunpack.c.l.b16 %v9631
    %v10027 = vunpack.c.l.b16 %v9632
    %v10028 = vunpack.c.l.b16 %v9633
    %v10029 = vunpack.c.l.b16 %v9634
    %v10030 = vunpack.c.l.b16 %v9635
    %v10031 = vunpack.c.l.b16 %v9636
    %v10032 = vunpack.c.l.b16 %v9637
    %v10033 = vunpack.c.l.b16 %v9638
    %v10034 = vunpack.c.l.b16 %v9639
    %v10035 = vunpack.c.l.b16 %v9640
    %v10036 = vunpack.c.l.b16 %v9641
    %v10037 = vunpack.c.l.b16 %v9642
    %v10038 = vunpack.c.l.b16 %v9643
    %v10039 = vunpack.c.l.b16 %v9644
    %v10040 = vunpack.c.l.b16 %v9645
    %v10041 = vunpack.c.l.b16 %v9646
    %v10042 = vunpack.c.l.b16 %v9647
    %v10043 = vunpack.c.l.b16 %v9648
    %v10044 = vunpack.c.l.b16 %v9649
    %v10045 = vunpack.c.l.b16 %v9650
    %v10046 = vunpack.c.l.b16 %v9651
    %v10047 = vunpack.c.l.b16 %v9652
    %v10048 = vunpack.c.l.b16 %v9653
    %v10049 = vunpack.c.l.b16 %v9654
    %v10050 = vunpack.c.l.b16 %v9655
    %v10051 = vunpack.c.l.b16 %v9656
    %v10052 = vunpack.c.l.b16 %v9657
    %v10053 = vunpack.c.l.b16 %v9658
    %v10054 = vunpack.c.l.b16 %v9659
    %v10055 = vunpack.c.l.b16 %v9660
    %v10056 = vunpack.c.l.b16 %v9661
    %v10057 = vunpack.c.l.b16 %v9662
    %v10058 = vunpack.c.l.b16 %v9663
    %v10059 = vunpack.c.l.b16 %v9664
    %v10060 = vunpack.c.l.b16 %v9665
    %v10061 = vunpack.c.l.b16 %v9666
    %v10062 = vunpack.c.l.b16 %v9667
    %v10063 = vunpack.c.l.b16 %v9668
    %v10064 = vunpack.c.l.b16 %v9669
    %v10065 = vunpack.c.l.b16 %v9670
    %v10066 = vunpack.c.l.b16 %v9671
    %v10067 = vunpack.c.l.b16 %v9672
    %v10068 = vunpack.c.l.b16 %v9673
    %v10069 = vunpack.c.l.b16 %v9674
    %v10070 = vunpack.c.l.b16 %v9675
    %v10071 = vunpack.c.l.b16 %v9676
    %v10072 = vunpack.c.l.b16 %v9677
    %v10073 = vunpack.c.l.b16 %v9678
    %v10074 = vunpack.c.l.b16 %v9679
    %v10075 = vunpack.c.l.b16 %v9680
    %v10076 = vunpack.c.l.b16 %v9681
    %v10077 = vunpack.c.l.b16 %v9682
    %v10078 = vunpack.c.l.b16 %v9683
    %v10079 = vunpack.c.l.b16 %v9684
    %v10080 = vunpack.c.l.b16 %v9685
    %v10081 = vunpack.c.l.b16 %v9686
    %v10082 = vunpack.c.l.b16 %v9687
    %v10083 = vunpack.c.l.b16 %v9688
    %v10084 = vunpack.c.l.b16 %v9689
    %v10085 = vunpack.c.l.b16 %v9690
    %v10086 = vunpack.c.l.b16 %v9691
    %v10087 = vunpack.c.l.b16 %v9692
    %v10088 = vunpack.c.l.b16 %v9693
    %v10089 = vunpack.c.l.b16 %v9694
    %vm10090 = vcmask 1041409
    %v10091 = vsel %vm10090, %v9970, %v9962
    %vm10092 = vcmask 1042434
    %v10093 = vsel %vm10092, %v9978, %v10091
    %vm10094 = vcmask 1043459
    %v10095 = vsel %vm10094, %v9986, %v10093
    %vm10096 = vcmask 1044484
    %v10097 = vsel %vm10096, %v9994, %v10095
    %vm10098 = vcmask 1045509
    %v10099 = vsel %vm10098, %v10002, %v10097
    %vm10100 = vcmask 1046534
    %v10101 = vsel %vm10100, %v10010, %v10099
    %vm10102 = vcmask 1047559
    %v10103 = vsel %vm10102, %v10018, %v10101
    %v10104 = vsel %vm10090, %v9971, %v9963
    %v10105 = vsel %vm10092, %v9979, %v10104
    %v10106 = vsel %vm10094, %v9987, %v10105
    %v10107 = vsel %vm10096, %v9995, %v10106
    %v10108 = vsel %vm10098, %v10003, %v10107
    %v10109 = vsel %vm10100, %v10011, %v10108
    %v10110 = vsel %vm10102, %v10019, %v10109
    %v10111 = vsel %vm10090, %v9972, %v9964
    %v10112 = vsel %vm10092, %v9980, %v10111
    %v10113 = vsel %vm10094, %v9988, %v10112
    %v10114 = vsel %vm10096, %v9996, %v10113
    %v10115 = vsel %vm10098, %v10004, %v10114
    %v10116 = vsel %vm10100, %v10012, %v10115
    %v10117 = vsel %vm10102, %v10020, %v10116
    %v10118 = vsel %vm10090, %v9973, %v9965
    %v10119 = vsel %vm10092, %v9981, %v10118
    %v10120 = vsel %vm10094, %v9989, %v10119
    %v10121 = vsel %vm10096, %v9997, %v10120
    %v10122 = vsel %vm10098, %v10005, %v10121
    %v10123 = vsel %vm10100, %v10013, %v10122
    %v10124 = vsel %vm10102, %v10021, %v10123
    %v10125 = vsel %vm10090, %v9974, %v9966
    %v10126 = vsel %vm10092, %v9982, %v10125
    %v10127 = vsel %vm10094, %v9990, %v10126
    %v10128 = vsel %vm10096, %v9998, %v10127
    %v10129 = vsel %vm10098, %v10006, %v10128
    %v10130 = vsel %vm10100, %v10014, %v10129
    %v10131 = vsel %vm10102, %v10022, %v10130
    %v10132 = vsel %vm10090, %v9975, %v9967
    %v10133 = vsel %vm10092, %v9983, %v10132
    %v10134 = vsel %vm10094, %v9991, %v10133
    %v10135 = vsel %vm10096, %v9999, %v10134
    %v10136 = vsel %vm10098, %v10007, %v10135
    %v10137 = vsel %vm10100, %v10015, %v10136
    %v10138 = vsel %vm10102, %v10023, %v10137
    %v10139 = vsel %vm10090, %v9976, %v9968
    %v10140 = vsel %vm10092, %v9984, %v10139
    %v10141 = vsel %vm10094, %v9992, %v10140
    %v10142 = vsel %vm10096, %v10000, %v10141
    %v10143 = vsel %vm10098, %v10008, %v10142
    %v10144 = vsel %vm10100, %v10016, %v10143
    %v10145 = vsel %vm10102, %v10024, %v10144
    %v10146 = vsel %vm10090, %v9977, %v9969
    %v10147 = vsel %vm10092, %v9985, %v10146
    %v10148 = vsel %vm10094, %v9993, %v10147
    %v10149 = vsel %vm10096, %v10001, %v10148
    %v10150 = vsel %vm10098, %v10009, %v10149
    %v10151 = vsel %vm10100, %v10017, %v10150
    %v10152 = vsel %vm10102, %v10025, %v10151
    %v10153 = vsel %vm10090, %v10034, %v10026
    %v10154 = vsel %vm10092, %v10042, %v10153
    %v10155 = vsel %vm10094, %v10050, %v10154
    %v10156 = vsel %vm10096, %v10058, %v10155
    %v10157 = vsel %vm10098, %v10066, %v10156
    %v10158 = vsel %vm10100, %v10074, %v10157
    %v10159 = vsel %vm10102, %v10082, %v10158
    %v10160 = vsel %vm10090, %v10035, %v10027
    %v10161 = vsel %vm10092, %v10043, %v10160
    %v10162 = vsel %vm10094, %v10051, %v10161
    %v10163 = vsel %vm10096, %v10059, %v10162
    %v10164 = vsel %vm10098, %v10067, %v10163
    %v10165 = vsel %vm10100, %v10075, %v10164
    %v10166 = vsel %vm10102, %v10083, %v10165
    %v10167 = vsel %vm10090, %v10036, %v10028
    %v10168 = vsel %vm10092, %v10044, %v10167
    %v10169 = vsel %vm10094, %v10052, %v10168
    %v10170 = vsel %vm10096, %v10060, %v10169
    %v10171 = vsel %vm10098, %v10068, %v10170
    %v10172 = vsel %vm10100, %v10076, %v10171
    %v10173 = vsel %vm10102, %v10084, %v10172
    %v10174 = vsel %vm10090, %v10037, %v10029
    %v10175 = vsel %vm10092, %v10045, %v10174
    %v10176 = vsel %vm10094, %v10053, %v10175
    %v10177 = vsel %vm10096, %v10061, %v10176
    %v10178 = vsel %vm10098, %v10069, %v10177
    %v10179 = vsel %vm10100, %v10077, %v10178
    %v10180 = vsel %vm10102, %v10085, %v10179
    %v10181 = vsel %vm10090, %v10038, %v10030
    %v10182 = vsel %vm10092, %v10046, %v10181
    %v10183 = vsel %vm10094, %v10054, %v10182
    %v10184 = vsel %vm10096, %v10062, %v10183
    %v10185 = vsel %vm10098, %v10070, %v10184
    %v10186 = vsel %vm10100, %v10078, %v10185
    %v10187 = vsel %vm10102, %v10086, %v10186
    %v10188 = vsel %vm10090, %v10039, %v10031
    %v10189 = vsel %vm10092, %v10047, %v10188
    %v10190 = vsel %vm10094, %v10055, %v10189
    %v10191 = vsel %vm10096, %v10063, %v10190
    %v10192 = vsel %vm10098, %v10071, %v10191
    %v10193 = vsel %vm10100, %v10079, %v10192
    %v10194 = vsel %vm10102, %v10087, %v10193
    %v10195 = vsel %vm10090, %v10040, %v10032
    %v10196 = vsel %vm10092, %v10048, %v10195
    %v10197 = vsel %vm10094, %v10056, %v10196
    %v10198 = vsel %vm10096, %v10064, %v10197
    %v10199 = vsel %vm10098, %v10072, %v10198
    %v10200 = vsel %vm10100, %v10080, %v10199
    %v10201 = vsel %vm10102, %v10088, %v10200
    %v10202 = vsel %vm10090, %v10041, %v10033
    %v10203 = vsel %vm10092, %v10049, %v10202
    %v10204 = vsel %vm10094, %v10057, %v10203
    %v10205 = vsel %vm10096, %v10065, %v10204
    %v10206 = vsel %vm10098, %v10073, %v10205
    %v10207 = vsel %vm10100, %v10081, %v10206
    %v10208 = vsel %vm10102, %v10089, %v10207
    %v10209 = vpack.c.b16 %v10159, %v10103
    %v10210 = vpack.c.b16 %v10166, %v10110
    %v10211 = vpack.c.b16 %v10173, %v10117
    %v10212 = vpack.c.b16 %v10180, %v10124
    %v10213 = vpack.c.b16 %v10187, %v10131
    %v10214 = vpack.c.b16 %v10194, %v10138
    %v10215 = vpack.c.b16 %v10201, %v10145
    %v10216 = vpack.c.b16 %v10208, %v10152
    %v10353 = vunpack.c.l.b16 %v9695
    %v10354 = vunpack.c.h.b16 %v9695
    %v10355 = vunpack.c.l.b16 %v9696
    %v10356 = vunpack.c.h.b16 %v9696
    %v10357 = vunpack.c.l.b16 %v9697
    %v10358 = vunpack.c.h.b16 %v9697
    %v10359 = vunpack.c.l.b16 %v9698
    %v10360 = vunpack.c.h.b16 %v9698
    %v10361 = vunpack.c.l.b16 %v9699
    %v10362 = vunpack.c.h.b16 %v9699
    %v10363 = vunpack.c.l.b16 %v9700
    %v10364 = vunpack.c.h.b16 %v9700
    %v10365 = vunpack.c.l.b16 %v9701
    %v10366 = vunpack.c.h.b16 %v9701
    %v10367 = vunpack.c.l.b16 %v9702
    %v10368 = vunpack.c.h.b16 %v9702
    %v10369 = vunpack.c.l.b16 %v9703
    %v10370 = vunpack.c.h.b16 %v9703
    %v10371 = vunpack.c.l.b16 %v9704
    %v10372 = vunpack.c.h.b16 %v9704
    %v10373 = vunpack.c.l.b16 %v9705
    %v10374 = vunpack.c.h.b16 %v9705
    %v10375 = vunpack.c.l.b16 %v9706
    %v10376 = vunpack.c.h.b16 %v9706
    %v10377 = vunpack.c.l.b16 %v9707
    %v10378 = vunpack.c.h.b16 %v9707
    %v10379 = vunpack.c.l.b16 %v9708
    %v10380 = vunpack.c.h.b16 %v9708
    %v10381 = vunpack.c.l.b16 %v9709
    %v10382 = vunpack.c.h.b16 %v9709
    %v10383 = vunpack.c.l.b16 %v9710
    %v10384 = vunpack.c.h.b16 %v9710
    %v10385 = vunpack.c.l.b16 %v9711
    %v10386 = vunpack.c.h.b16 %v9711
    %v10387 = vunpack.c.l.b16 %v9712
    %v10388 = vunpack.c.h.b16 %v9712
    %v10389 = vunpack.c.l.b16 %v9713
    %v10390 = vunpack.c.h.b16 %v9713
    %v10391 = vunpack.c.l.b16 %v9714
    %v10392 = vunpack.c.h.b16 %v9714
    %v10393 = vunpack.c.l.b16 %v9715
    %v10394 = vunpack.c.h.b16 %v9715
    %v10395 = vunpack.c.l.b16 %v9716
    %v10396 = vunpack.c.h.b16 %v9716
    %v10397 = vunpack.c.l.b16 %v9717
    %v10398 = vunpack.c.h.b16 %v9717
    %v10399 = vunpack.c.l.b16 %v9718
    %v10400 = vunpack.c.h.b16 %v9718
    %v10401 = vunpack.c.l.b16 %v9719
    %v10402 = vunpack.c.h.b16 %v9719
    %v10403 = vunpack.c.l.b16 %v9720
    %v10404 = vunpack.c.h.b16 %v9720
    %v10405 = vunpack.c.l.b16 %v9721
    %v10406 = vunpack.c.h.b16 %v9721
    %v10407 = vunpack.c.l.b16 %v9722
    %v10408 = vunpack.c.h.b16 %v9722
    %v10409 = vunpack.c.l.b16 %v9723
    %v10410 = vunpack.c.h.b16 %v9723
    %v10411 = vunpack.c.l.b16 %v9724
    %v10412 = vunpack.c.h.b16 %v9724
    %v10413 = vunpack.c.l.b16 %v9725
    %v10414 = vunpack.c.h.b16 %v9725
    %v10415 = vunpack.c.l.b16 %v9726
    %v10416 = vunpack.c.h.b16 %v9726
    %v10417 = vunpack.c.l.b16 %v9727
    %v10418 = vunpack.c.h.b16 %v9727
    %v10419 = vunpack.c.l.b16 %v9728
    %v10420 = vunpack.c.h.b16 %v9728
    %v10421 = vunpack.c.l.b16 %v9729
    %v10422 = vunpack.c.h.b16 %v9729
    %v10423 = vunpack.c.l.b16 %v9730
    %v10424 = vunpack.c.h.b16 %v9730
    %v10425 = vunpack.c.l.b16 %v9731
    %v10426 = vunpack.c.h.b16 %v9731
    %v10427 = vunpack.c.l.b16 %v9732
    %v10428 = vunpack.c.h.b16 %v9732
    %v10429 = vunpack.c.l.b16 %v9733
    %v10430 = vunpack.c.h.b16 %v9733
    %v10431 = vunpack.c.l.b16 %v9734
    %v10432 = vunpack.c.h.b16 %v9734
    %v10433 = vunpack.c.l.b16 %v9735
    %v10434 = vunpack.c.h.b16 %v9735
    %v10435 = vunpack.c.l.b16 %v9736
    %v10436 = vunpack.c.h.b16 %v9736
    %v10437 = vunpack.c.l.b16 %v9737
    %v10438 = vunpack.c.h.b16 %v9737
    %v10439 = vunpack.c.l.b16 %v9738
    %v10440 = vunpack.c.h.b16 %v9738
    %v10441 = vunpack.c.l.b16 %v9739
    %v10442 = vunpack.c.h.b16 %v9739
    %v10443 = vunpack.c.l.b16 %v9740
    %v10444 = vunpack.c.h.b16 %v9740
    %v10445 = vunpack.c.l.b16 %v9741
    %v10446 = vunpack.c.h.b16 %v9741
    %v10447 = vunpack.c.l.b16 %v9742
    %v10448 = vunpack.c.h.b16 %v9742
    %v10449 = vunpack.c.l.b16 %v9743
    %v10450 = vunpack.c.h.b16 %v9743
    %v10451 = vunpack.c.l.b16 %v9744
    %v10452 = vunpack.c.h.b16 %v9744
    %v10453 = vunpack.c.l.b16 %v9745
    %v10454 = vunpack.c.h.b16 %v9745
    %v10455 = vunpack.c.l.b16 %v9746
    %v10456 = vunpack.c.h.b16 %v9746
    %v10457 = vunpack.c.l.b16 %v9747
    %v10458 = vunpack.c.h.b16 %v9747
    %v10459 = vunpack.c.l.b16 %v9748
    %v10460 = vunpack.c.h.b16 %v9748
    %v10461 = vunpack.c.l.b16 %v9749
    %v10462 = vunpack.c.h.b16 %v9749
    %v10463 = vunpack.c.l.b16 %v9750
    %v10464 = vunpack.c.h.b16 %v9750
    %v10465 = vunpack.c.l.b16 %v9751
    %v10466 = vunpack.c.h.b16 %v9751
    %v10467 = vunpack.c.l.b16 %v9752
    %v10468 = vunpack.c.h.b16 %v9752
    %v10469 = vunpack.c.l.b16 %v9753
    %v10470 = vunpack.c.h.b16 %v9753
    %v10471 = vunpack.c.l.b16 %v9754
    %v10472 = vunpack.c.h.b16 %v9754
    %v10473 = vunpack.c.l.b16 %v9755
    %v10474 = vunpack.c.h.b16 %v9755
    %v10475 = vunpack.c.l.b16 %v9756
    %v10476 = vunpack.c.h.b16 %v9756
    %v10477 = vunpack.c.l.b16 %v9757
    %v10478 = vunpack.c.h.b16 %v9757
    %v10479 = vunpack.c.l.b16 %v9758
    %v10480 = vunpack.c.h.b16 %v9758
    %v10481 = vunpack.c.l.b16 %v9759
    %v10482 = vunpack.c.h.b16 %v9759
    %v10483 = vunpack.c.l.b16 %v9760
    %v10484 = vunpack.c.h.b16 %v9760
    %v10485 = vunpack.c.l.b16 %v9761
    %v10486 = vunpack.c.h.b16 %v9761
    %v10487 = vunpack.c.l.b16 %v9762
    %v10488 = vunpack.c.h.b16 %v9762
    %v10489 = vunpack.c.l.b16 %v9763
    %v10490 = vunpack.c.h.b16 %v9763
    %v10491 = vunpack.c.l.b16 %v9764
    %v10492 = vunpack.c.h.b16 %v9764
    %v10493 = vunpack.c.l.b16 %v9765
    %v10494 = vunpack.c.h.b16 %v9765
    %v10495 = vunpack.c.l.b16 %v9766
    %v10496 = vunpack.c.h.b16 %v9766
    %v10497 = vunpack.c.l.b16 %v9767
    %v10498 = vunpack.c.h.b16 %v9767
    %v10499 = vunpack.c.l.b16 %v9768
    %v10500 = vunpack.c.h.b16 %v9768
    %v10501 = vunpack.c.l.b16 %v9769
    %v10502 = vunpack.c.h.b16 %v9769
    %v10503 = vunpack.c.l.b16 %v9770
    %v10504 = vunpack.c.h.b16 %v9770
    %v10505 = vunpack.c.l.b16 %v9771
    %v10506 = vunpack.c.h.b16 %v9771
    %v10507 = vunpack.c.l.b16 %v9772
    %v10508 = vunpack.c.h.b16 %v9772
    %v10509 = vunpack.c.l.b16 %v9773
    %v10510 = vunpack.c.h.b16 %v9773
    %v10511 = vunpack.c.l.b16 %v9774
    %v10512 = vunpack.c.h.b16 %v9774
    %v10513 = vunpack.c.l.b16 %v9775
    %v10514 = vunpack.c.h.b16 %v9775
    %v10515 = vunpack.c.l.b16 %v9776
    %v10516 = vunpack.c.h.b16 %v9776
    %v10517 = vunpack.c.l.b16 %v9777
    %v10518 = vunpack.c.h.b16 %v9777
    %v10519 = vunpack.c.l.b16 %v9778
    %v10520 = vunpack.c.h.b16 %v9778
    %v10521 = vunpack.c.l.b16 %v9779
    %v10522 = vunpack.c.h.b16 %v9779
    %v10523 = vunpack.c.l.b16 %v9780
    %v10524 = vunpack.c.h.b16 %v9780
    %v10525 = vunpack.c.l.b16 %v9781
    %v10526 = vunpack.c.h.b16 %v9781
    %v10527 = vunpack.c.l.b16 %v9782
    %v10528 = vunpack.c.h.b16 %v9782
    %v10529 = vunpack.c.l.b16 %v9783
    %v10530 = vunpack.c.h.b16 %v9783
    %v10531 = vunpack.c.l.b16 %v9784
    %v10532 = vunpack.c.h.b16 %v9784
    %v10533 = vunpack.c.l.b16 %v9785
    %v10534 = vunpack.c.h.b16 %v9785
    %v10535 = vunpack.c.l.b16 %v9786
    %v10536 = vunpack.c.h.b16 %v9786
    %v10537 = vunpack.c.l.b16 %v9787
    %v10538 = vunpack.c.h.b16 %v9787
    %v10539 = vunpack.c.l.b16 %v9788
    %v10540 = vunpack.c.h.b16 %v9788
    %v10541 = vunpack.c.l.b16 %v9789
    %v10542 = vunpack.c.h.b16 %v9789
    %v10543 = vunpack.c.l.b16 %v9790
    %v10544 = vunpack.c.h.b16 %v9790
    %v10545 = vunpack.c.l.b16 %v9791
    %v10546 = vunpack.c.h.b16 %v9791
    %v10547 = vunpack.c.l.b16 %v9792
    %v10548 = vunpack.c.h.b16 %v9792
    %v10549 = vunpack.c.l.b16 %v9793
    %v10550 = vunpack.c.h.b16 %v9793
    %v10551 = vunpack.c.l.b16 %v9794
    %v10552 = vunpack.c.h.b16 %v9794
    %v10553 = vunpack.c.l.b16 %v9795
    %v10554 = vunpack.c.h.b16 %v9795
    %v10555 = vunpack.c.l.b16 %v9796
    %v10556 = vunpack.c.h.b16 %v9796
    %v10557 = vunpack.c.l.b16 %v9797
    %v10558 = vunpack.c.h.b16 %v9797
    %v10559 = vunpack.c.l.b16 %v9798
    %v10560 = vunpack.c.h.b16 %v9798
    %v10561 = vunpack.c.l.b16 %v9799
    %v10562 = vunpack.c.h.b16 %v9799
    %v10563 = vunpack.c.l.b16 %v9800
    %v10564 = vunpack.c.h.b16 %v9800
    %v10565 = vunpack.c.l.b16 %v9801
    %v10566 = vunpack.c.h.b16 %v9801
    %v10567 = vunpack.c.l.b16 %v9802
    %v10568 = vunpack.c.h.b16 %v9802
    %v10569 = vunpack.c.l.b16 %v9803
    %v10570 = vunpack.c.h.b16 %v9803
    %v10571 = vunpack.c.l.b16 %v9804
    %v10572 = vunpack.c.h.b16 %v9804
    %v10573 = vunpack.c.l.b16 %v9805
    %v10574 = vunpack.c.h.b16 %v9805
    %v10575 = vunpack.c.l.b16 %v9806
    %v10576 = vunpack.c.h.b16 %v9806
    %v10577 = vunpack.c.l.b16 %v9807
    %v10578 = vunpack.c.h.b16 %v9807
    %v10579 = vunpack.c.l.b16 %v9808
    %v10580 = vunpack.c.h.b16 %v9808
    %v10581 = vunpack.c.l.b16 %v9809
    %v10582 = vunpack.c.h.b16 %v9809
    %v10583 = vunpack.c.l.b16 %v9810
    %v10584 = vunpack.c.h.b16 %v9810
    %v10585 = vunpack.c.l.b16 %v9811
    %v10586 = vunpack.c.h.b16 %v9811
    %v10587 = vunpack.c.l.b16 %v9812
    %v10588 = vunpack.c.h.b16 %v9812
    %v10589 = vunpack.c.l.b16 %v9813
    %v10590 = vunpack.c.h.b16 %v9813
    %v10591 = vunpack.c.l.b16 %v9814
    %v10592 = vunpack.c.h.b16 %v9814
    %v10593 = vunpack.c.l.b16 %v9815
    %v10594 = vunpack.c.h.b16 %v9815
    %v10595 = vunpack.c.l.b16 %v9816
    %v10596 = vunpack.c.h.b16 %v9816
    %v10597 = vunpack.c.l.b16 %v9817
    %v10598 = vunpack.c.h.b16 %v9817
    %v10599 = vunpack.c.l.b16 %v9818
    %v10600 = vunpack.c.h.b16 %v9818
    %v10601 = vunpack.c.l.b16 %v9819
    %v10602 = vunpack.c.h.b16 %v9819
    %v10603 = vunpack.c.l.b16 %v9820
    %v10604 = vunpack.c.h.b16 %v9820
    %v10605 = vunpack.c.l.b16 %v9821
    %v10606 = vunpack.c.h.b16 %v9821
    %v10607 = vunpack.c.l.b16 %v9822
    %v10608 = vunpack.c.h.b16 %v9822
    %v10609 = vpack.c.b16 %v10355, %v10353
    %v10610 = vpack.c.b16 %v10356, %v10354
    %v10611 = vpack.c.b16 %v10359, %v10357
    %v10612 = vpack.c.b16 %v10360, %v10358
    %v10613 = vpack.c.b16 %v10363, %v10361
    %v10614 = vpack.c.b16 %v10364, %v10362
    %v10615 = vpack.c.b16 %v10367, %v10365
    %v10616 = vpack.c.b16 %v10368, %v10366
    %v10617 = vpack.c.b16 %v10371, %v10369
    %v10618 = vpack.c.b16 %v10372, %v10370
    %v10619 = vpack.c.b16 %v10375, %v10373
    %v10620 = vpack.c.b16 %v10376, %v10374
    %v10621 = vpack.c.b16 %v10379, %v10377
    %v10622 = vpack.c.b16 %v10380, %v10378
    %v10623 = vpack.c.b16 %v10383, %v10381
    %v10624 = vpack.c.b16 %v10384, %v10382
    %v10625 = vpack.c.b16 %v10387, %v10385
    %v10626 = vpack.c.b16 %v10388, %v10386
    %v10627 = vpack.c.b16 %v10391, %v10389
    %v10628 = vpack.c.b16 %v10392, %v10390
    %v10629 = vpack.c.b16 %v10395, %v10393
    %v10630 = vpack.c.b16 %v10396, %v10394
    %v10631 = vpack.c.b16 %v10399, %v10397
    %v10632 = vpack.c.b16 %v10400, %v10398
    %v10633 = vpack.c.b16 %v10403, %v10401
    %v10634 = vpack.c.b16 %v10404, %v10402
    %v10635 = vpack.c.b16 %v10407, %v10405
    %v10636 = vpack.c.b16 %v10408, %v10406
    %v10637 = vpack.c.b16 %v10411, %v10409
    %v10638 = vpack.c.b16 %v10412, %v10410
    %v10639 = vpack.c.b16 %v10415, %v10413
    %v10640 = vpack.c.b16 %v10416, %v10414
    %v10641 = vpack.c.b16 %v10419, %v10417
    %v10642 = vpack.c.b16 %v10420, %v10418
    %v10643 = vpack.c.b16 %v10423, %v10421
    %v10644 = vpack.c.b16 %v10424, %v10422
    %v10645 = vpack.c.b16 %v10427, %v10425
    %v10646 = vpack.c.b16 %v10428, %v10426
    %v10647 = vpack.c.b16 %v10431, %v10429
    %v10648 = vpack.c.b16 %v10432, %v10430
    %v10649 = vpack.c.b16 %v10435, %v10433
    %v10650 = vpack.c.b16 %v10436, %v10434
    %v10651 = vpack.c.b16 %v10439, %v10437
    %v10652 = vpack.c.b16 %v10440, %v10438
    %v10653 = vpack.c.b16 %v10443, %v10441
    %v10654 = vpack.c.b16 %v10444, %v10442
    %v10655 = vpack.c.b16 %v10447, %v10445
    %v10656 = vpack.c.b16 %v10448, %v10446
    %v10657 = vpack.c.b16 %v10451, %v10449
    %v10658 = vpack.c.b16 %v10452, %v10450
    %v10659 = vpack.c.b16 %v10455, %v10453
    %v10660 = vpack.c.b16 %v10456, %v10454
    %v10661 = vpack.c.b16 %v10459, %v10457
    %v10662 = vpack.c.b16 %v10460, %v10458
    %v10663 = vpack.c.b16 %v10463, %v10461
    %v10664 = vpack.c.b16 %v10464, %v10462
    %v10665 = vpack.c.b16 %v10467, %v10465
    %v10666 = vpack.c.b16 %v10468, %v10466
    %v10667 = vpack.c.b16 %v10471, %v10469
    %v10668 = vpack.c.b16 %v10472, %v10470
    %v10669 = vpack.c.b16 %v10475, %v10473
    %v10670 = vpack.c.b16 %v10476, %v10474
    %v10671 = vpack.c.b16 %v10479, %v10477
    %v10672 = vpack.c.b16 %v10480, %v10478
    %v10673 = vpack.c.b16 %v10483, %v10481
    %v10674 = vpack.c.b16 %v10484, %v10482
    %v10675 = vpack.c.b16 %v10487, %v10485
    %v10676 = vpack.c.b16 %v10488, %v10486
    %v10677 = vpack.c.b16 %v10491, %v10489
    %v10678 = vpack.c.b16 %v10492, %v10490
    %v10679 = vpack.c.b16 %v10495, %v10493
    %v10680 = vpack.c.b16 %v10496, %v10494
    %v10681 = vpack.c.b16 %v10499, %v10497
    %v10682 = vpack.c.b16 %v10500, %v10498
    %v10683 = vpack.c.b16 %v10503, %v10501
    %v10684 = vpack.c.b16 %v10504, %v10502
    %v10685 = vpack.c.b16 %v10507, %v10505
    %v10686 = vpack.c.b16 %v10508, %v10506
    %v10687 = vpack.c.b16 %v10511, %v10509
    %v10688 = vpack.c.b16 %v10512, %v10510
    %v10689 = vpack.c.b16 %v10515, %v10513
    %v10690 = vpack.c.b16 %v10516, %v10514
    %v10691 = vpack.c.b16 %v10519, %v10517
    %v10692 = vpack.c.b16 %v10520, %v10518
    %v10693 = vpack.c.b16 %v10523, %v10521
    %v10694 = vpack.c.b16 %v10524, %v10522
    %v10695 = vpack.c.b16 %v10527, %v10525
    %v10696 = vpack.c.b16 %v10528, %v10526
    %v10697 = vpack.c.b16 %v10531, %v10529
    %v10698 = vpack.c.b16 %v10532, %v10530
    %v10699 = vpack.c.b16 %v10535, %v10533
    %v10700 = vpack.c.b16 %v10536, %v10534
    %v10701 = vpack.c.b16 %v10539, %v10537
    %v10702 = vpack.c.b16 %v10540, %v10538
    %v10703 = vpack.c.b16 %v10543, %v10541
    %v10704 = vpack.c.b16 %v10544, %v10542
    %v10705 = vpack.c.b16 %v10547, %v10545
    %v10706 = vpack.c.b16 %v10548, %v10546
    %v10707 = vpack.c.b16 %v10551, %v10549
    %v10708 = vpack.c.b16 %v10552, %v10550
    %v10709 = vpack.c.b16 %v10555, %v10553
    %v10710 = vpack.c.b16 %v10556, %v10554
    %v10711 = vpack.c.b16 %v10559, %v10557
    %v10712 = vpack.c.b16 %v10560, %v10558
    %v10713 = vpack.c.b16 %v10563, %v10561
    %v10714 = vpack.c.b16 %v10564, %v10562
    %v10715 = vpack.c.b16 %v10567, %v10565
    %v10716 = vpack.c.b16 %v10568, %v10566
    %v10717 = vpack.c.b16 %v10571, %v10569
    %v10718 = vpack.c.b16 %v10572, %v10570
    %v10719 = vpack.c.b16 %v10575, %v10573
    %v10720 = vpack.c.b16 %v10576, %v10574
    %v10721 = vpack.c.b16 %v10579, %v10577
    %v10722 = vpack.c.b16 %v10580, %v10578
    %v10723 = vpack.c.b16 %v10583, %v10581
    %v10724 = vpack.c.b16 %v10584, %v10582
    %v10725 = vpack.c.b16 %v10587, %v10585
    %v10726 = vpack.c.b16 %v10588, %v10586
    %v10727 = vpack.c.b16 %v10591, %v10589
    %v10728 = vpack.c.b16 %v10592, %v10590
    %v10729 = vpack.c.b16 %v10595, %v10593
    %v10730 = vpack.c.b16 %v10596, %v10594
    %v10731 = vpack.c.b16 %v10599, %v10597
    %v10732 = vpack.c.b16 %v10600, %v10598
    %v10733 = vpack.c.b16 %v10603, %v10601
    %v10734 = vpack.c.b16 %v10604, %v10602
    %v10735 = vpack.c.b16 %v10607, %v10605
    %v10736 = vpack.c.b16 %v10608, %v10606
    %10865 = vmatprep.subr.bf16.mxu0 %v10610
    %10866 = vmatpush1.bf16.msra.mxu0 %v10609
    %10867 = vmatprep.subr.bf16.mxu0 %v10612
    %10868 = vmatpush1.bf16.msra.mxu0 %v10611
    %10869 = vmatprep.subr.bf16.mxu0 %v10614
    %10870 = vmatpush1.bf16.msra.mxu0 %v10613
    %10871 = vmatprep.subr.bf16.mxu0 %v10616
    %10872 = vmatpush1.bf16.msra.mxu0 %v10615
    %10873 = vmatprep.subr.bf16.mxu0 %v10618
    %10874 = vmatpush1.bf16.msra.mxu0 %v10617
    %10875 = vmatprep.subr.bf16.mxu0 %v10620
    %10876 = vmatpush1.bf16.msra.mxu0 %v10619
    %10877 = vmatprep.subr.bf16.mxu0 %v10622
    %10878 = vmatpush1.bf16.msra.mxu0 %v10621
    %10879 = vmatprep.subr.bf16.mxu0 %v10624
    %10880 = vmatpush1.bf16.msra.mxu0 %v10623
    %10881 = vmatprep.subr.bf16.mxu0 %v10626
    %10882 = vmatpush1.bf16.msra.mxu0 %v10625
    %10883 = vmatprep.subr.bf16.mxu0 %v10628
    %10884 = vmatpush1.bf16.msra.mxu0 %v10627
    %10885 = vmatprep.subr.bf16.mxu0 %v10630
    %10886 = vmatpush1.bf16.msra.mxu0 %v10629
    %10887 = vmatprep.subr.bf16.mxu0 %v10632
    %10888 = vmatpush1.bf16.msra.mxu0 %v10631
    %10889 = vmatprep.subr.bf16.mxu0 %v10634
    %10890 = vmatpush1.bf16.msra.mxu0 %v10633
    %10891 = vmatprep.subr.bf16.mxu0 %v10636
    %10892 = vmatpush1.bf16.msra.mxu0 %v10635
    %10893 = vmatprep.subr.bf16.mxu0 %v10638
    %10894 = vmatpush1.bf16.msra.mxu0 %v10637
    %10895 = vmatprep.subr.bf16.mxu0 %v10640
    %10896 = vmatpush1.bf16.msra.mxu0 %v10639
    %10897 = vmatprep.mubr.bf16.mxu0 %v10210
    %10898 = vmatmul.mubr.bf16.gmra.mrb[0].mxu0 %v10209
    %v10899 = vpop.f32.mrb[0].mxu0
    %v10900 = vadd.f32 %v9827, %v10899
    %v10901 = vpop.f32.mrb[0].mxu0
    %v10902 = vadd.f32 %v9831, %v10901
    %v10903 = vpop.f32.mrb[0].mxu0
    %v10904 = vadd.f32 %v9827, %v10903
    %v10905 = vpop.f32.mrb[0].mxu0
    %v10906 = vadd.f32 %v9831, %v10905
    %10907 = vdwg.mxu0
    %10908 = vmatprep.subr.bf16.mxu0 %v10642
    %10909 = vmatpush1.bf16.msra.mxu0 %v10641
    %10910 = vmatprep.subr.bf16.mxu0 %v10644
    %10911 = vmatpush1.bf16.msra.mxu0 %v10643
    %10912 = vmatprep.subr.bf16.mxu0 %v10646
    %10913 = vmatpush1.bf16.msra.mxu0 %v10645
    %10914 = vmatprep.subr.bf16.mxu0 %v10648
    %10915 = vmatpush1.bf16.msra.mxu0 %v10647
    %10916 = vmatprep.subr.bf16.mxu0 %v10650
    %10917 = vmatpush1.bf16.msra.mxu0 %v10649
    %10918 = vmatprep.subr.bf16.mxu0 %v10652
    %10919 = vmatpush1.bf16.msra.mxu0 %v10651
    %10920 = vmatprep.subr.bf16.mxu0 %v10654
    %10921 = vmatpush1.bf16.msra.mxu0 %v10653
    %10922 = vmatprep.subr.bf16.mxu0 %v10656
    %10923 = vmatpush1.bf16.msra.mxu0 %v10655
    %10924 = vmatprep.subr.bf16.mxu0 %v10658
    %10925 = vmatpush1.bf16.msra.mxu0 %v10657
    %10926 = vmatprep.subr.bf16.mxu0 %v10660
    %10927 = vmatpush1.bf16.msra.mxu0 %v10659
    %10928 = vmatprep.subr.bf16.mxu0 %v10662
    %10929 = vmatpush1.bf16.msra.mxu0 %v10661
    %10930 = vmatprep.subr.bf16.mxu0 %v10664
    %10931 = vmatpush1.bf16.msra.mxu0 %v10663
    %10932 = vmatprep.subr.bf16.mxu0 %v10666
    %10933 = vmatpush1.bf16.msra.mxu0 %v10665
    %10934 = vmatprep.subr.bf16.mxu0 %v10668
    %10935 = vmatpush1.bf16.msra.mxu0 %v10667
    %10936 = vmatprep.subr.bf16.mxu0 %v10670
    %10937 = vmatpush1.bf16.msra.mxu0 %v10669
    %10938 = vmatprep.subr.bf16.mxu0 %v10672
    %10939 = vmatpush1.bf16.msra.mxu0 %v10671
    %10940 = vmatprep.mubr.bf16.mxu0 %v10212
    %10941 = vmatmul.mubr.bf16.gmra.mrb[0].mxu0 %v10211
    %v10942 = vpop.f32.mrb[0].mxu0
    %v10943 = vadd.f32 %v10900, %v10942
    %v10944 = vpop.f32.mrb[0].mxu0
    %v10945 = vadd.f32 %v10902, %v10944
    %v10946 = vpop.f32.mrb[0].mxu0
    %v10947 = vadd.f32 %v10904, %v10946
    %v10948 = vpop.f32.mrb[0].mxu0
    %v10949 = vadd.f32 %v10906, %v10948
    %10950 = vdwg.mxu0
    %10951 = vmatprep.subr.bf16.mxu0 %v10674
    %10952 = vmatpush1.bf16.msra.mxu0 %v10673
    %10953 = vmatprep.subr.bf16.mxu0 %v10676
    %10954 = vmatpush1.bf16.msra.mxu0 %v10675
    %10955 = vmatprep.subr.bf16.mxu0 %v10678
    %10956 = vmatpush1.bf16.msra.mxu0 %v10677
    %10957 = vmatprep.subr.bf16.mxu0 %v10680
    %10958 = vmatpush1.bf16.msra.mxu0 %v10679
    %10959 = vmatprep.subr.bf16.mxu0 %v10682
    %10960 = vmatpush1.bf16.msra.mxu0 %v10681
    %10961 = vmatprep.subr.bf16.mxu0 %v10684
    %10962 = vmatpush1.bf16.msra.mxu0 %v10683
    %10963 = vmatprep.subr.bf16.mxu0 %v10686
    %10964 = vmatpush1.bf16.msra.mxu0 %v10685
    %10965 = vmatprep.subr.bf16.mxu0 %v10688
    %10966 = vmatpush1.bf16.msra.mxu0 %v10687
    %10967 = vmatprep.subr.bf16.mxu0 %v10690
    %10968 = vmatpush1.bf16.msra.mxu0 %v10689
    %10969 = vmatprep.subr.bf16.mxu0 %v10692
    %10970 = vmatpush1.bf16.msra.mxu0 %v10691
    %10971 = vmatprep.subr.bf16.mxu0 %v10694
    %10972 = vmatpush1.bf16.msra.mxu0 %v10693
    %10973 = vmatprep.subr.bf16.mxu0 %v10696
    %10974 = vmatpush1.bf16.msra.mxu0 %v10695
    %10975 = vmatprep.subr.bf16.mxu0 %v10698
    %10976 = vmatpush1.bf16.msra.mxu0 %v10697
    %10977 = vmatprep.subr.bf16.mxu0 %v10700
    %10978 = vmatpush1.bf16.msra.mxu0 %v10699
    %10979 = vmatprep.subr.bf16.mxu0 %v10702
    %10980 = vmatpush1.bf16.msra.mxu0 %v10701
    %10981 = vmatprep.subr.bf16.mxu0 %v10704
    %10982 = vmatpush1.bf16.msra.mxu0 %v10703
    %10983 = vmatprep.mubr.bf16.mxu0 %v10214
    %10984 = vmatmul.mubr.bf16.gmra.mrb[0].mxu0 %v10213
    %v10985 = vpop.f32.mrb[0].mxu0
    %v10986 = vadd.f32 %v10943, %v10985
    %v10987 = vpop.f32.mrb[0].mxu0
    %v10988 = vadd.f32 %v10945, %v10987
    %v10989 = vpop.f32.mrb[0].mxu0
    %v10990 = vadd.f32 %v10947, %v10989
    %v10991 = vpop.f32.mrb[0].mxu0
    %v10992 = vadd.f32 %v10949, %v10991
    %10993 = vdwg.mxu0
    %10994 = vmatprep.subr.bf16.mxu0 %v10706
    %10995 = vmatpush1.bf16.msra.mxu0 %v10705
    %10996 = vmatprep.subr.bf16.mxu0 %v10708
    %10997 = vmatpush1.bf16.msra.mxu0 %v10707
    %10998 = vmatprep.subr.bf16.mxu0 %v10710
    %10999 = vmatpush1.bf16.msra.mxu0 %v10709
    %11000 = vmatprep.subr.bf16.mxu0 %v10712
    %11001 = vmatpush1.bf16.msra.mxu0 %v10711
    %11002 = vmatprep.subr.bf16.mxu0 %v10714
    %11003 = vmatpush1.bf16.msra.mxu0 %v10713
    %11004 = vmatprep.subr.bf16.mxu0 %v10716
    %11005 = vmatpush1.bf16.msra.mxu0 %v10715
    %11006 = vmatprep.subr.bf16.mxu0 %v10718
    %11007 = vmatpush1.bf16.msra.mxu0 %v10717
    %11008 = vmatprep.subr.bf16.mxu0 %v10720
    %11009 = vmatpush1.bf16.msra.mxu0 %v10719
    %11010 = vmatprep.subr.bf16.mxu0 %v10722
    %11011 = vmatpush1.bf16.msra.mxu0 %v10721
    %11012 = vmatprep.subr.bf16.mxu0 %v10724
    %11013 = vmatpush1.bf16.msra.mxu0 %v10723
    %11014 = vmatprep.subr.bf16.mxu0 %v10726
    %11015 = vmatpush1.bf16.msra.mxu0 %v10725
    %11016 = vmatprep.subr.bf16.mxu0 %v10728
    %11017 = vmatpush1.bf16.msra.mxu0 %v10727
    %11018 = vmatprep.subr.bf16.mxu0 %v10730
    %11019 = vmatpush1.bf16.msra.mxu0 %v10729
    %11020 = vmatprep.subr.bf16.mxu0 %v10732
    %11021 = vmatpush1.bf16.msra.mxu0 %v10731
    %11022 = vmatprep.subr.bf16.mxu0 %v10734
    %11023 = vmatpush1.bf16.msra.mxu0 %v10733
    %11024 = vmatprep.subr.bf16.mxu0 %v10736
    %11025 = vmatpush1.bf16.msra.mxu0 %v10735
    %11026 = vmatprep.mubr.bf16.mxu0 %v10216
    %11027 = vmatmul.mubr.bf16.gmra.mrb[0].mxu0 %v10215
    %v11028 = vpop.f32.mrb[0].mxu0
    %v11029 = vadd.f32 %v10986, %v11028
    %v11030 = vpop.f32.mrb[0].mxu0
    %v11031 = vadd.f32 %v10988, %v11030
    %v11032 = vpop.f32.mrb[0].mxu0
    %v11033 = vadd.f32 %v10990, %v11032
    %v11034 = vpop.f32.mrb[0].mxu0
    %v11035 = vadd.f32 %v10992, %v11034
    %11036 = vdwg.mxu0
    %v11037 = vmax.f32 %v11029, 0.0
    %v11038 = vmax.f32 %v11031, 0.0
    %v11039 = vmax.f32 %v11033, 0.0
    %v11040 = vmax.f32 %v11035, 0.0
    %v11042 = vlaneseq
    %v11043 = vshrl.u32 %v11042, 7
    %v11044 = vsub.s32 0, %v11043
    %v11045 = vrot.slane %v93, %v11044
    %v11046 = vlaneseq
    %v11047 = vshrl.u32 %v11046, 7
    %v11048 = vsub.s32 1, %v11047
    %v11049 = vrot.slane %v93, %v11048
    %v11052 = vmul.f32 %v11037, %v11045
    %v11053 = vmul.f32 %v11038, %v11049
    %v11054 = vmul.f32 %v11039, %v11045
    %v11055 = vmul.f32 %v11040, %v11049
    %v11056 = vadd.f32 %v11052, %v11053
    %11057 = vadd.xlane.f32.xlu0 %v11056
    %v11058 = vpop.xlane.xlu0 %11057
    %v11059 = vadd.f32 %v11054, %v11055
    %11060 = vadd.xlane.f32.xlu0 %v11059
    %v11061 = vpop.xlane.xlu0 %11060
    %v11062 = vstv %s95
    %v11063 = vadd.f32 %v11058, %v11062
    %v11064 = vadd.f32 %v11061, %v11062
    %v11067 = vlaneseq
    %v11068 = vand.u32 %v11067, 127
    %v11069 = vlaneseq
    %v11070 = vshrl.u32 %v11069, 7
    %v11071 = vsub.s32 %v11068, %v11070
    %v11072 = vrot.slane %v11063, %v11071
    %v11073 = vadd.s32 %v11068, 4294967288
    %v11074 = vlaneseq
    %v11075 = vshrl.u32 %v11074, 7
    %v11076 = vsub.s32 %v11073, %v11075
    %v11077 = vrot.slane %v11064, %v11076
    %vm11078 = vcmask 130112
    %v11079 = vsel %vm11078, %v11077, %v11072
    %vm11081 = vcmask 122880
    %11082 = vst.msk [vmem:[#allocation12] sm:$0x1] %vm11081, %v11079
    // Predicated region
    $region42: #{base_model_forward.1} parent=1 // pred_check
      _
    $region43: #{base_model_forward.1} parent=1 // pred_check_branch
      %11084 = sbr.rel (0) target = $region45
    $region44: #{base_model_forward.1} parent=1 // pred_region
      %s11086 = ssub.s32 16, 16
      %11087 = vsyncadd [#allocation4], %s11086
      %s11089 = sshll.u32 [#allocation12], 4
      %s11090 = int_to_ptr.vmem [resolvable:$true] %s11089
      %11092 = dma.vmem_to_hbm [thread:$0]  %s11090, 16, %s5, [#allocation4]
    $region45: #{base_model_forward.1} parent=1 // pred_fallthru
      _
    // Predicated region
    $region46: #{base_model_forward.1} parent=1 // pred_check
      _
    $region47: #{base_model_forward.1} parent=1 // pred_check_branch
      %11094 = sbr.rel (0) target = $region49
    $region48: #{base_model_forward.1} parent=1 // pred_region
      %11095 = dma.done [#allocation4], 16
    $region49: #{base_model_forward.1} parent=1 // pred_fallthru
      _
    %11096 = vsyncpa [#allocation3], 1
    %11097 = vsyncpa [#allocation7], 1
    %11098 = vsyncpa [#allocation10], 1
    %11099 = vsyncpa [#allocation4], 1
    %11100 = vsyncpa [#allocation5], 1

</llo_original>
